<compile_context>
chip_gen: v6e
topology: v6e:2x2x1
jax: 0.10.0
libtpu: 0.0.40
codegen_flags: <defaults>
</compile_context>

<pallas_src>
import functools
import math

import jax
import jax.numpy as jnp
from jax.experimental import pallas as pl
from jax.experimental.pallas import tpu as pltpu

_VMEM = pl.BlockSpec(memory_space=pltpu.MemorySpace.VMEM)


# ----------------------------------------------------------------------------
# Pallas kernels
# ----------------------------------------------------------------------------
def _matmul_bias_act_kernel(x_ref, w_ref, b_ref, o_ref, *, act):
    """y = act(x @ w + b); bf16 operands, f32 MXU accumulation."""
    y = jnp.dot(x_ref[...], w_ref[...], preferred_element_type=jnp.float32)
    y = y + b_ref[...]
    if act == "relu":
        y = jnp.maximum(y, 0.0)
    o_ref[...] = y.astype(o_ref.dtype)


def _fc_ln_tanh_kernel(x_ref, w_ref, b_ref, g_ref, beta_ref, o_ref):
    """Encoder head: Linear -> LayerNorm(eps=1e-5, biased var) -> tanh (all f32 stats)."""
    y = jnp.dot(x_ref[...], w_ref[...], preferred_element_type=jnp.float32)
    y = y + b_ref[...]
    mean = jnp.mean(y, axis=-1, keepdims=True)
    var = jnp.mean((y - mean) ** 2, axis=-1, keepdims=True)
    y = (y - mean) * jax.lax.rsqrt(var + 1e-5)
    y = y * g_ref[...] + beta_ref[...]
    o_ref[...] = jnp.tanh(y).astype(o_ref.dtype)


def _q_head_kernel(oa_ref, w1_ref, b1_ref, w2_ref, b2_ref, w3_ref, b3_ref, q_ref):
    """One Q head per grid step: Linear->ReLU->Linear->ReLU->Linear.

    grid=(2,) + dimension_semantics=("parallel",):
      - on v7x the two independent heads run on the two TensorCores,
      - on v5e/v6e the next head's weights stream into VMEM while this head
        computes (automatic double-buffering of the BlockSpec tiles).
    """
    oa = oa_ref[...]                                                    # (B, IN) bf16
    h = jnp.dot(oa, w1_ref[0], preferred_element_type=jnp.float32) + b1_ref[0]
    h = jnp.maximum(h, 0.0).astype(jnp.bfloat16)
    h = jnp.dot(h, w2_ref[0], preferred_element_type=jnp.float32) + b2_ref[0]
    h = jnp.maximum(h, 0.0).astype(jnp.bfloat16)
    q = jnp.dot(h, w3_ref[0], preferred_element_type=jnp.float32) + b3_ref[0]
    q_ref[0] = q.astype(q_ref.dtype)


# ----------------------------------------------------------------------------
# Wrappers (glue: im2col, reshapes, pallas_call plumbing)
# ----------------------------------------------------------------------------
def pallas_matmul_bias_act(x, w, b, act="none", out_dtype=jnp.float32):
    m, k = x.shape
    n = w.shape[1]
    cost = pl.CostEstimate(
        flops=2 * m * k * n,
        transcendentals=0,
        bytes_accessed=int(x.size) * x.dtype.itemsize
        + int(w.size) * w.dtype.itemsize
        + int(b.size) * b.dtype.itemsize
        + m * n * jnp.dtype(out_dtype).itemsize,
    )
    return pl.pallas_call(
        functools.partial(_matmul_bias_act_kernel, act=act),
        out_shape=jax.ShapeDtypeStruct((m, n), out_dtype),
        in_specs=[_VMEM, _VMEM, _VMEM],
        out_specs=_VMEM,
        cost_estimate=cost,
    )(x, w, b.reshape(1, n))


def _im2col_nhwc(x, k, stride):
    """NHWC -> [B*Ho*Wo, K*K*C] patches, feature order (ki, kj, c)."""
    bsz, h, w, c = x.shape
    ho = (h - k) // stride + 1
    wo = (w - k) // stride + 1
    cols = []
    for i in range(k):
        for j in range(k):
            cols.append(
                x[:, i:i + stride * (ho - 1) + 1:stride,
                     j:j + stride * (wo - 1) + 1:stride, :]
            )
    p = jnp.stack(cols, axis=3)                       # (B, Ho, Wo, K*K, C)
    p = p.reshape(bsz * ho * wo, k * k * c)
    return p, ho, wo


def pallas_conv2d_relu_nhwc(x, w2d, b, k, stride):
    """Valid (no padding) Conv2d + ReLU via im2col + Pallas matmul, channels-last."""
    bsz = x.shape[0]
    cout = w2d.shape[1]
    patches, ho, wo = _im2col_nhwc(x, k, stride)
    y = pallas_matmul_bias_act(patches.astype(jnp.bfloat16), w2d, b,
                               act="relu", out_dtype=jnp.bfloat16)
    # Stays channels-last: no NCHW<->NHWC transposes between conv layers.
    return y.reshape(bsz, ho, wo, cout)


def encoder_forward(params, state_nchw):
    """NaSATD3-style encoder: conv stack -> flatten -> fc -> LayerNorm -> tanh."""
    k = params["kernel_size"]
    h = jnp.transpose(state_nchw, (0, 2, 3, 1))       # single layout change NCHW->NHWC
    h = h.astype(jnp.bfloat16)
    for (w2d, b), stride in zip(params["conv"], params["conv_strides"]):
        h = pallas_conv2d_relu_nhwc(h, w2d, b, k, stride)
    h = h.reshape(h.shape[0], -1)                     # flatten in (H, W, C) order (bf16)
    fc_w, fc_b = params["fc"]
    gamma, beta = params["ln"]
    latent = fc_w.shape[1]
    z = pl.pallas_call(
        _fc_ln_tanh_kernel,
        out_shape=jax.ShapeDtypeStruct((h.shape[0], latent), jnp.float32),
        in_specs=[_VMEM] * 5,
        out_specs=_VMEM,
    )(h, fc_w, fc_b.reshape(1, latent), gamma.reshape(1, latent),
      beta.reshape(1, latent))
    return z


def critic_forward(params, state, action, detach_encoder=False):
    # detach_encoder only affects autograd in PyTorch; it is a no-op for forward values.
    z = encoder_forward(params["encoder"], state)
    obs_action = jnp.concatenate([z, action], axis=1).astype(jnp.bfloat16)
    bsz, in_dim = obs_action.shape

    qp = params["q_heads"]
    w1, b1, w2, b2, w3, b3 = qp["w1"], qp["b1"], qp["w2"], qp["b2"], qp["w3"], qp["b3"]
    h1 = w1.shape[-1]
    h2 = w2.shape[-1]

    flops = 2 * 2 * bsz * (in_dim * h1 + h1 * h2 + h2 * 1)
    bytes_accessed = (
        int(obs_action.size) * 2
        + sum(int(a.size) * a.dtype.itemsize for a in (w1, b1, w2, b2, w3, b3))
        + 2 * bsz * 4
    )

    # NOTE: q outputs are (B, 1) so the final store is lane-sparse; at a few bytes
    # per head this is negligible, so no lane-dense repacking is done for it.
    qs = pl.pallas_call(
        _q_head_kernel,
        grid=(2,),
        out_shape=jax.ShapeDtypeStruct((2, bsz, 1), jnp.float32),
        in_specs=[
            pl.BlockSpec((bsz, in_dim), lambda h: (0, 0)),       # shared obs_action
            pl.BlockSpec((1, in_dim, h1), lambda h: (h, 0, 0)),  # W1[h]
            pl.BlockSpec((1, 1, h1), lambda h: (h, 0, 0)),       # b1[h]
            pl.BlockSpec((1, h1, h2), lambda h: (h, 0, 0)),      # W2[h]
            pl.BlockSpec((1, 1, h2), lambda h: (h, 0, 0)),       # b2[h]
            pl.BlockSpec((1, h2, 1), lambda h: (h, 0, 0)),       # W3[h]
            pl.BlockSpec((1, 1, 1), lambda h: (h, 0, 0)),        # b3[h]
        ],
        out_specs=pl.BlockSpec((1, bsz, 1), lambda h: (h, 0, 0)),
        compiler_params=pltpu.CompilerParams(
            dimension_semantics=("parallel",),
            vmem_limit_bytes=32 * 1024 * 1024,
        ),
        cost_estimate=pl.CostEstimate(flops=flops, transcendentals=0,
                                      bytes_accessed=bytes_accessed),
    )(obs_action, w1, b1, w2, b2, w3, b3)
    return qs[0], qs[1]


# ----------------------------------------------------------------------------
# Deterministic parameter initialization (synthetic; no checkpoint loading)
# ----------------------------------------------------------------------------
def init_params(key, in_channels, img_hw, latent_size, num_actions,
                num_filters=16, kernel_size=3):
    keys = iter(jax.random.split(key, 64))

    def linear(fan_in, fan_out, w_dtype=jnp.float32):
        bound = 1.0 / math.sqrt(fan_in)
        w = jax.random.uniform(next(keys), (fan_in, fan_out), jnp.float32, -bound, bound)
        b = jax.random.uniform(next(keys), (fan_out,), jnp.float32, -bound, bound)
        return w.astype(w_dtype), b

    def conv2d(cin, cout, k):
        bound = 1.0 / math.sqrt(cin * k * k)
        w = jax.random.uniform(next(keys), (cout, cin, k, k), jnp.float32, -bound, bound)
        b = jax.random.uniform(next(keys), (cout,), jnp.float32, -bound, bound)
        # Pre-reshape to matmul layout with (ki, kj, cin) feature order, matching
        # _im2col_nhwc, and cast to bf16 (weights streamed, f32 accumulation on MXU).
        w2d = w.transpose(2, 3, 1, 0).reshape(cin * k * k, cout).astype(jnp.bfloat16)
        return w2d, b

    # TODO(synk): the encoder is an injected nn.Module in critic.py; we instantiate a
    # NaSATD3-style conv encoder (4 convs, stride 2/1/1/1, fc + LayerNorm + tanh) as a
    # deterministic stand-in rather than the exact external class.
    conv_strides = (2, 1, 1, 1)
    convs = [conv2d(in_channels, num_filters, kernel_size)]
    for _ in range(3):
        convs.append(conv2d(num_filters, num_filters, kernel_size))

    hw = img_hw
    for s in conv_strides:
        hw = (hw - kernel_size) // s + 1
    flat_dim = num_filters * hw * hw

    encoder = {
        "conv": convs,
        "conv_strides": conv_strides,
        "kernel_size": kernel_size,
        "fc": linear(flat_dim, latent_size, w_dtype=jnp.bfloat16),
        "ln": (jnp.ones((latent_size,), jnp.float32),
               jnp.zeros((latent_size,), jnp.float32)),
    }

    hidden = (1024, 1024)
    in_dim = latent_size + num_actions

    def q_head():
        return [linear(in_dim, hidden[0]),
                linear(hidden[0], hidden[1]),
                linear(hidden[1], 1)]

    q1, q2 = q_head(), q_head()

    def stack(layer, which):
        a = jnp.stack([q1[layer][which], q2[layer][which]])
        if which == 0:                                   # weights: (2, fan_in, fan_out) bf16
            return a.astype(jnp.bfloat16)
        return a.reshape(2, 1, -1).astype(jnp.float32)   # biases:  (2, 1, fan_out) f32

    q_heads = {
        "w1": stack(0, 0), "b1": stack(0, 1),
        "w2": stack(1, 0), "b2": stack(1, 1),
        "w3": stack(2, 0), "b3": stack(2, 1),
    }

    return {"encoder": encoder, "q_heads": q_heads}


# ----------------------------------------------------------------------------
if __name__ == "__main__":
    B, C, HW = 2, 3, 32
    latent_size, num_actions = 32, 4

    root = jax.random.PRNGKey(0)
    k_params, k_state, k_action = jax.random.split(root, 3)

    params = init_params(k_params, C, HW, latent_size, num_actions)
    state = jax.random.normal(k_state, (B, C, HW, HW), jnp.float32)      # NCHW
    action = jax.random.uniform(k_action, (B, num_actions), jnp.float32, -1.0, 1.0)

    # params captured by closure so python-int hyperparameters stay static under jit.
    fwd = jax.jit(lambda s, a: critic_forward(params, s, a))

    q1, q2 = fwd(state, action)
    jax.block_until_ready((q1, q2))

    assert q1.shape == (B, 1) and q2.shape == (B, 1)
    assert q1.dtype == jnp.float32 and q2.dtype == jnp.float32
    assert bool(jnp.all(jnp.isfinite(q1))) and bool(jnp.all(jnp.isfinite(q2)))
    print("KERNEL_OK")
</pallas_src>

<mosaic_0001>
module attributes {stable_mosaic.version = 11 : i64} {
  func.func @_matmul_bias_act_kernel(%arg0: memref<450x27xbf16, #tpu.memory_space<vmem>>, %arg1: memref<27x16xbf16, #tpu.memory_space<vmem>>, %arg2: memref<1x16xf32, #tpu.memory_space<vmem>>, %arg3: memref<450x16xbf16, #tpu.memory_space<vmem>>) attributes {dimension_semantics = [], scalar_prefetch = 0 : i64, scratch_operands = 0 : i64, tpu.core_type = #tpu.core_type<tc>} {
    %c0 = arith.constant 0 : index
    %c0_0 = arith.constant 0 : index
    %0 = vector.load %arg0[%c0, %c0_0] : memref<450x27xbf16, #tpu.memory_space<vmem>>, vector<450x27xbf16>
    %c0_1 = arith.constant 0 : index
    %c0_2 = arith.constant 0 : index
    %1 = vector.load %arg1[%c0_1, %c0_2] : memref<27x16xbf16, #tpu.memory_space<vmem>>, vector<27x16xbf16>
    %cst = arith.constant dense<0.000000e+00> : vector<450x16xf32>
    %2 = tpu.matmul %0, %1, %cst {dimension_numbers = #tpu.dot_dimension_numbers<[1], [0], [0], [1], [0, 0, 1, 1], [], []>} : vector<450x27xbf16>, vector<27x16xbf16>, vector<450x16xf32> -> vector<450x16xf32>
    %c0_3 = arith.constant 0 : index
    %c0_4 = arith.constant 0 : index
    %3 = vector.load %arg2[%c0_3, %c0_4] : memref<1x16xf32, #tpu.memory_space<vmem>>, vector<1x16xf32>
    %4 = vector.broadcast %3 : vector<1x16xf32> to vector<450x16xf32>
    %5 = arith.addf %2, %4 : vector<450x16xf32>
    %cst_5 = arith.constant 0.000000e+00 : f32
    %6 = vector.broadcast %cst_5 : f32 to vector<450x16xf32>
    %7 = arith.maximumf %5, %6 : vector<450x16xf32>
    %8 = arith.truncf %7 : vector<450x16xf32> to vector<450x16xbf16>
    %c0_6 = arith.constant 0 : index
    %c0_7 = arith.constant 0 : index
    %9 = vector.load %arg3[%c0_6, %c0_7] : memref<450x16xbf16, #tpu.memory_space<vmem>>, vector<450x16xbf16>
    tpu.vector_store %arg3[%c0_6, %c0_7], %8 {strides = array<i32>} : memref<450x16xbf16, #tpu.memory_space<vmem>>, vector<450x16xbf16>,
    return
  }
}

module attributes {stable_mosaic.version = 11 : i64} {
  func.func @_matmul_bias_act_kernel(%arg0: memref<338x144xbf16, #tpu.memory_space<vmem>>, %arg1: memref<144x16xbf16, #tpu.memory_space<vmem>>, %arg2: memref<1x16xf32, #tpu.memory_space<vmem>>, %arg3: memref<338x16xbf16, #tpu.memory_space<vmem>>) attributes {dimension_semantics = [], scalar_prefetch = 0 : i64, scratch_operands = 0 : i64, tpu.core_type = #tpu.core_type<tc>} {
    %c0 = arith.constant 0 : index
    %c0_0 = arith.constant 0 : index
    %0 = vector.load %arg0[%c0, %c0_0] : memref<338x144xbf16, #tpu.memory_space<vmem>>, vector<338x144xbf16>
    %c0_1 = arith.constant 0 : index
    %c0_2 = arith.constant 0 : index
    %1 = vector.load %arg1[%c0_1, %c0_2] : memref<144x16xbf16, #tpu.memory_space<vmem>>, vector<144x16xbf16>
    %cst = arith.constant dense<0.000000e+00> : vector<338x16xf32>
    %2 = tpu.matmul %0, %1, %cst {dimension_numbers = #tpu.dot_dimension_numbers<[1], [0], [0], [1], [0, 0, 1, 1], [], []>} : vector<338x144xbf16>, vector<144x16xbf16>, vector<338x16xf32> -> vector<338x16xf32>
    %c0_3 = arith.constant 0 : index
    %c0_4 = arith.constant 0 : index
    %3 = vector.load %arg2[%c0_3, %c0_4] : memref<1x16xf32, #tpu.memory_space<vmem>>, vector<1x16xf32>
    %4 = vector.broadcast %3 : vector<1x16xf32> to vector<338x16xf32>
    %5 = arith.addf %2, %4 : vector<338x16xf32>
    %cst_5 = arith.constant 0.000000e+00 : f32
    %6 = vector.broadcast %cst_5 : f32 to vector<338x16xf32>
    %7 = arith.maximumf %5, %6 : vector<338x16xf32>
    %8 = arith.truncf %7 : vector<338x16xf32> to vector<338x16xbf16>
    %c0_6 = arith.constant 0 : index
    %c0_7 = arith.constant 0 : index
    %9 = vector.load %arg3[%c0_6, %c0_7] : memref<338x16xbf16, #tpu.memory_space<vmem>>, vector<338x16xbf16>
    tpu.vector_store %arg3[%c0_6, %c0_7], %8 {strides = array<i32>} : memref<338x16xbf16, #tpu.memory_space<vmem>>, vector<338x16xbf16>,
    return
  }
}

module attributes {stable_mosaic.version = 11 : i64} {
  func.func @_matmul_bias_act_kernel(%arg0: memref<242x144xbf16, #tpu.memory_space<vmem>>, %arg1: memref<144x16xbf16, #tpu.memory_space<vmem>>, %arg2: memref<1x16xf32, #tpu.memory_space<vmem>>, %arg3: memref<242x16xbf16, #tpu.memory_space<vmem>>) attributes {dimension_semantics = [], scalar_prefetch = 0 : i64, scratch_operands = 0 : i64, tpu.core_type = #tpu.core_type<tc>} {
    %c0 = arith.constant 0 : index
    %c0_0 = arith.constant 0 : index
    %0 = vector.load %arg0[%c0, %c0_0] : memref<242x144xbf16, #tpu.memory_space<vmem>>, vector<242x144xbf16>
    %c0_1 = arith.constant 0 : index
    %c0_2 = arith.constant 0 : index
    %1 = vector.load %arg1[%c0_1, %c0_2] : memref<144x16xbf16, #tpu.memory_space<vmem>>, vector<144x16xbf16>
    %cst = arith.constant dense<0.000000e+00> : vector<242x16xf32>
    %2 = tpu.matmul %0, %1, %cst {dimension_numbers = #tpu.dot_dimension_numbers<[1], [0], [0], [1], [0, 0, 1, 1], [], []>} : vector<242x144xbf16>, vector<144x16xbf16>, vector<242x16xf32> -> vector<242x16xf32>
    %c0_3 = arith.constant 0 : index
    %c0_4 = arith.constant 0 : index
    %3 = vector.load %arg2[%c0_3, %c0_4] : memref<1x16xf32, #tpu.memory_space<vmem>>, vector<1x16xf32>
    %4 = vector.broadcast %3 : vector<1x16xf32> to vector<242x16xf32>
    %5 = arith.addf %2, %4 : vector<242x16xf32>
    %cst_5 = arith.constant 0.000000e+00 : f32
    %6 = vector.broadcast %cst_5 : f32 to vector<242x16xf32>
    %7 = arith.maximumf %5, %6 : vector<242x16xf32>
    %8 = arith.truncf %7 : vector<242x16xf32> to vector<242x16xbf16>
    %c0_6 = arith.constant 0 : index
    %c0_7 = arith.constant 0 : index
    %9 = vector.load %arg3[%c0_6, %c0_7] : memref<242x16xbf16, #tpu.memory_space<vmem>>, vector<242x16xbf16>
    tpu.vector_store %arg3[%c0_6, %c0_7], %8 {strides = array<i32>} : memref<242x16xbf16, #tpu.memory_space<vmem>>, vector<242x16xbf16>,
    return
  }
}

module attributes {stable_mosaic.version = 11 : i64} {
  func.func @_matmul_bias_act_kernel(%arg0: memref<162x144xbf16, #tpu.memory_space<vmem>>, %arg1: memref<144x16xbf16, #tpu.memory_space<vmem>>, %arg2: memref<1x16xf32, #tpu.memory_space<vmem>>, %arg3: memref<162x16xbf16, #tpu.memory_space<vmem>>) attributes {dimension_semantics = [], scalar_prefetch = 0 : i64, scratch_operands = 0 : i64, tpu.core_type = #tpu.core_type<tc>} {
    %c0 = arith.constant 0 : index
    %c0_0 = arith.constant 0 : index
    %0 = vector.load %arg0[%c0, %c0_0] : memref<162x144xbf16, #tpu.memory_space<vmem>>, vector<162x144xbf16>
    %c0_1 = arith.constant 0 : index
    %c0_2 = arith.constant 0 : index
    %1 = vector.load %arg1[%c0_1, %c0_2] : memref<144x16xbf16, #tpu.memory_space<vmem>>, vector<144x16xbf16>
    %cst = arith.constant dense<0.000000e+00> : vector<162x16xf32>
    %2 = tpu.matmul %0, %1, %cst {dimension_numbers = #tpu.dot_dimension_numbers<[1], [0], [0], [1], [0, 0, 1, 1], [], []>} : vector<162x144xbf16>, vector<144x16xbf16>, vector<162x16xf32> -> vector<162x16xf32>
    %c0_3 = arith.constant 0 : index
    %c0_4 = arith.constant 0 : index
    %3 = vector.load %arg2[%c0_3, %c0_4] : memref<1x16xf32, #tpu.memory_space<vmem>>, vector<1x16xf32>
    %4 = vector.broadcast %3 : vector<1x16xf32> to vector<162x16xf32>
    %5 = arith.addf %2, %4 : vector<162x16xf32>
    %cst_5 = arith.constant 0.000000e+00 : f32
    %6 = vector.broadcast %cst_5 : f32 to vector<162x16xf32>
    %7 = arith.maximumf %5, %6 : vector<162x16xf32>
    %8 = arith.truncf %7 : vector<162x16xf32> to vector<162x16xbf16>
    %c0_6 = arith.constant 0 : index
    %c0_7 = arith.constant 0 : index
    %9 = vector.load %arg3[%c0_6, %c0_7] : memref<162x16xbf16, #tpu.memory_space<vmem>>, vector<162x16xbf16>
    tpu.vector_store %arg3[%c0_6, %c0_7], %8 {strides = array<i32>} : memref<162x16xbf16, #tpu.memory_space<vmem>>, vector<162x16xbf16>,
    return
  }
}

module attributes {stable_mosaic.version = 11 : i64} {
  func.func @_fc_ln_tanh_kernel(%arg0: memref<2x1296xbf16, #tpu.memory_space<vmem>>, %arg1: memref<1296x32xbf16, #tpu.memory_space<vmem>>, %arg2: memref<1x32xf32, #tpu.memory_space<vmem>>, %arg3: memref<1x32xf32, #tpu.memory_space<vmem>>, %arg4: memref<1x32xf32, #tpu.memory_space<vmem>>, %arg5: memref<2x32xf32, #tpu.memory_space<vmem>>) attributes {dimension_semantics = [], scalar_prefetch = 0 : i64, scratch_operands = 0 : i64, tpu.core_type = #tpu.core_type<tc>} {
    %c0 = arith.constant 0 : index
    %c0_0 = arith.constant 0 : index
    %0 = vector.load %arg0[%c0, %c0_0] : memref<2x1296xbf16, #tpu.memory_space<vmem>>, vector<2x1296xbf16>
    %c0_1 = arith.constant 0 : index
    %c0_2 = arith.constant 0 : index
    %1 = vector.load %arg1[%c0_1, %c0_2] : memref<1296x32xbf16, #tpu.memory_space<vmem>>, vector<1296x32xbf16>
    %cst = arith.constant dense<0.000000e+00> : vector<2x32xf32>
    %2 = tpu.matmul %0, %1, %cst {dimension_numbers = #tpu.dot_dimension_numbers<[1], [0], [0], [1], [0, 0, 1, 1], [], []>} : vector<2x1296xbf16>, vector<1296x32xbf16>, vector<2x32xf32> -> vector<2x32xf32>
    %c0_3 = arith.constant 0 : index
    %c0_4 = arith.constant 0 : index
    %3 = vector.load %arg2[%c0_3, %c0_4] : memref<1x32xf32, #tpu.memory_space<vmem>>, vector<1x32xf32>
    %4 = vector.broadcast %3 : vector<1x32xf32> to vector<2x32xf32>
    %5 = arith.addf %2, %4 : vector<2x32xf32>
    %cst_5 = arith.constant dense<0.000000e+00> : vector<2xf32>
    %6 = vector.multi_reduction <add>, %5, %cst_5 [1] : vector<2x32xf32> to vector<2xf32>
    %7 = vector.shape_cast %6 : vector<2xf32> to vector<2x1xf32>
    %cst_6 = arith.constant 3.200000e+01 : f32
    %8 = vector.broadcast %cst_6 : f32 to vector<2x1xf32>
    %9 = arith.divf %7, %8 : vector<2x1xf32>
    %10 = vector.broadcast %9 : vector<2x1xf32> to vector<2x32xf32>
    %11 = arith.subf %5, %10 : vector<2x32xf32>
    %12 = arith.mulf %11, %11 : vector<2x32xf32>
    %cst_7 = arith.constant dense<0.000000e+00> : vector<2xf32>
    %13 = vector.multi_reduction <add>, %12, %cst_7 [1] : vector<2x32xf32> to vector<2xf32>
    %14 = vector.shape_cast %13 : vector<2xf32> to vector<2x1xf32>
    %cst_8 = arith.constant 3.200000e+01 : f32
    %15 = vector.broadcast %cst_8 : f32 to vector<2x1xf32>
    %16 = arith.divf %14, %15 : vector<2x1xf32>
    %17 = vector.broadcast %9 : vector<2x1xf32> to vector<2x32xf32>
    %18 = arith.subf %5, %17 : vector<2x32xf32>
    %cst_9 = arith.constant 9.99999974E-6 : f32
    %19 = vector.broadcast %cst_9 : f32 to vector<2x1xf32>
    %20 = arith.addf %16, %19 : vector<2x1xf32>
    %21 = math.rsqrt %20 : vector<2x1xf32>
    %22 = vector.broadcast %21 : vector<2x1xf32> to vector<2x32xf32>
    %23 = arith.mulf %18, %22 : vector<2x32xf32>
    %c0_10 = arith.constant 0 : index
    %c0_11 = arith.constant 0 : index
    %24 = vector.load %arg3[%c0_10, %c0_11] : memref<1x32xf32, #tpu.memory_space<vmem>>, vector<1x32xf32>
    %25 = vector.broadcast %24 : vector<1x32xf32> to vector<2x32xf32>
    %26 = arith.mulf %23, %25 : vector<2x32xf32>
    %c0_12 = arith.constant 0 : index
    %c0_13 = arith.constant 0 : index
    %27 = vector.load %arg4[%c0_12, %c0_13] : memref<1x32xf32, #tpu.memory_space<vmem>>, vector<1x32xf32>
    %28 = vector.broadcast %27 : vector<1x32xf32> to vector<2x32xf32>
    %29 = arith.addf %26, %28 : vector<2x32xf32>
    %30 = math.tanh %29 : vector<2x32xf32>
    %c0_14 = arith.constant 0 : index
    %c0_15 = arith.constant 0 : index
    %31 = vector.load %arg5[%c0_14, %c0_15] : memref<2x32xf32, #tpu.memory_space<vmem>>, vector<2x32xf32>
    tpu.vector_store %arg5[%c0_14, %c0_15], %30 {strides = array<i32>} : memref<2x32xf32, #tpu.memory_space<vmem>>, vector<2x32xf32>,
    return
  }
}

module attributes {stable_mosaic.version = 11 : i64} {
  func.func @_q_head_kernel(%arg0: i32, %arg1: memref<2x36xbf16, #tpu.memory_space<vmem>>, %arg2: memref<1x36x1024xbf16, #tpu.memory_space<vmem>>, %arg3: memref<1x1x1024xf32, #tpu.memory_space<vmem>>, %arg4: memref<1x1024x1024xbf16, #tpu.memory_space<vmem>>, %arg5: memref<1x1x1024xf32, #tpu.memory_space<vmem>>, %arg6: memref<1x1024x1xbf16, #tpu.memory_space<vmem>>, %arg7: memref<1x1x1xf32, #tpu.memory_space<vmem>>, %arg8: memref<1x2x1xf32, #tpu.memory_space<vmem>>) attributes {dimension_semantics = [#tpu.dimension_semantics<parallel>], iteration_bounds = array<i64: 2>, scalar_prefetch = 0 : i64, scratch_operands = 0 : i64, tpu.core_type = #tpu.core_type<tc>, window_params = [{pipeline_mode = #tpu.pipeline_mode<synchronous>, transform_indices = @transform_0, window_bounds = array<i64: 2, 36>}, {transform_indices = @transform_1, window_bounds = array<i64: 1, 36, 1024>}, {transform_indices = @transform_2, window_bounds = array<i64: 1, 1, 1024>}, {transform_indices = @transform_3, window_bounds = array<i64: 1, 1024, 1024>}, {transform_indices = @transform_4, window_bounds = array<i64: 1, 1, 1024>}, {transform_indices = @transform_5, window_bounds = array<i64: 1, 1024, 1>}, {transform_indices = @transform_6, window_bounds = array<i64: 1, 1, 1>}, {transform_indices = @transform_7, window_bounds = array<i64: 1, 2, 1>}]} {
    %c0 = arith.constant 0 : index
    %c0_0 = arith.constant 0 : index
    %0 = vector.load %arg1[%c0, %c0_0] : memref<2x36xbf16, #tpu.memory_space<vmem>>, vector<2x36xbf16>
    %c0_1 = arith.constant 0 : index
    %c0_2 = arith.constant 0 : index
    %c0_3 = arith.constant 0 : index
    %1 = vector.load %arg2[%c0_1, %c0_2, %c0_3] : memref<1x36x1024xbf16, #tpu.memory_space<vmem>>, vector<1x36x1024xbf16>
    %2 = vector.shape_cast %1 : vector<1x36x1024xbf16> to vector<36x1024xbf16>
    %cst = arith.constant dense<0.000000e+00> : vector<2x1024xf32>
    %3 = tpu.matmul %0, %2, %cst {dimension_numbers = #tpu.dot_dimension_numbers<[1], [0], [0], [1], [0, 0, 1, 1], [], []>} : vector<2x36xbf16>, vector<36x1024xbf16>, vector<2x1024xf32> -> vector<2x1024xf32>
    %c0_4 = arith.constant 0 : index
    %c0_5 = arith.constant 0 : index
    %c0_6 = arith.constant 0 : index
    %4 = vector.load %arg3[%c0_4, %c0_5, %c0_6] : memref<1x1x1024xf32, #tpu.memory_space<vmem>>, vector<1x1x1024xf32>
    %5 = vector.shape_cast %4 : vector<1x1x1024xf32> to vector<1x1024xf32>
    %6 = vector.broadcast %5 : vector<1x1024xf32> to vector<2x1024xf32>
    %7 = arith.addf %3, %6 : vector<2x1024xf32>
    %cst_7 = arith.constant 0.000000e+00 : f32
    %8 = vector.broadcast %cst_7 : f32 to vector<2x1024xf32>
    %9 = arith.maximumf %7, %8 : vector<2x1024xf32>
    %10 = arith.truncf %9 : vector<2x1024xf32> to vector<2x1024xbf16>
    %c0_8 = arith.constant 0 : index
    %c0_9 = arith.constant 0 : index
    %c0_10 = arith.constant 0 : index
    %11 = vector.load %arg4[%c0_8, %c0_9, %c0_10] : memref<1x1024x1024xbf16, #tpu.memory_space<vmem>>, vector<1x1024x1024xbf16>
    %12 = vector.shape_cast %11 : vector<1x1024x1024xbf16> to vector<1024x1024xbf16>
    %cst_11 = arith.constant dense<0.000000e+00> : vector<2x1024xf32>
    %13 = tpu.matmul %10, %12, %cst_11 {dimension_numbers = #tpu.dot_dimension_numbers<[1], [0], [0], [1], [0, 0, 1, 1], [], []>} : vector<2x1024xbf16>, vector<1024x1024xbf16>, vector<2x1024xf32> -> vector<2x1024xf32>
    %c0_12 = arith.constant 0 : index
    %c0_13 = arith.constant 0 : index
    %c0_14 = arith.constant 0 : index
    %14 = vector.load %arg5[%c0_12, %c0_13, %c0_14] : memref<1x1x1024xf32, #tpu.memory_space<vmem>>, vector<1x1x1024xf32>
    %15 = vector.shape_cast %14 : vector<1x1x1024xf32> to vector<1x1024xf32>
    %16 = vector.broadcast %15 : vector<1x1024xf32> to vector<2x1024xf32>
    %17 = arith.addf %13, %16 : vector<2x1024xf32>
    %cst_15 = arith.constant 0.000000e+00 : f32
    %18 = vector.broadcast %cst_15 : f32 to vector<2x1024xf32>
    %19 = arith.maximumf %17, %18 : vector<2x1024xf32>
    %20 = arith.truncf %19 : vector<2x1024xf32> to vector<2x1024xbf16>
    %c0_16 = arith.constant 0 : index
    %c0_17 = arith.constant 0 : index
    %c0_18 = arith.constant 0 : index
    %21 = vector.load %arg6[%c0_16, %c0_17, %c0_18] : memref<1x1024x1xbf16, #tpu.memory_space<vmem>>, vector<1x1024x1xbf16>
    %22 = vector.shape_cast %21 : vector<1x1024x1xbf16> to vector<1024x1xbf16>
    %cst_19 = arith.constant dense<0.000000e+00> : vector<2x1xf32>
    %23 = tpu.matmul %20, %22, %cst_19 {dimension_numbers = #tpu.dot_dimension_numbers<[1], [0], [0], [1], [0, 0, 1, 1], [], []>} : vector<2x1024xbf16>, vector<1024x1xbf16>, vector<2x1xf32> -> vector<2x1xf32>
    %c0_20 = arith.constant 0 : index
    %c0_21 = arith.constant 0 : index
    %c0_22 = arith.constant 0 : index
    %24 = vector.load %arg7[%c0_20, %c0_21, %c0_22] : memref<1x1x1xf32, #tpu.memory_space<vmem>>, vector<1x1x1xf32>
    %25 = vector.shape_cast %24 : vector<1x1x1xf32> to vector<1x1xf32>
    %26 = vector.broadcast %25 : vector<1x1xf32> to vector<2x1xf32>
    %27 = arith.addf %23, %26 : vector<2x1xf32>
    %c0_23 = arith.constant 0 : index
    %c0_24 = arith.constant 0 : index
    %c0_25 = arith.constant 0 : index
    %28 = vector.load %arg8[%c0_23, %c0_24, %c0_25] : memref<1x2x1xf32, #tpu.memory_space<vmem>>, vector<1x2x1xf32>
    %29 = vector.shape_cast %28 : vector<1x2x1xf32> to vector<2x1xf32>
    %30 = vector.shape_cast %27 : vector<2x1xf32> to vector<1x2x1xf32>
    tpu.vector_store %arg8[%c0_23, %c0_24, %c0_25], %30 {strides = array<i32>} : memref<1x2x1xf32, #tpu.memory_space<vmem>>, vector<1x2x1xf32>,
    return
  }
  func.func @transform_0(%arg0: i32) -> (i32, i32) {
    %c0_i32 = arith.constant 0 : i32
    %c0_i32_0 = arith.constant 0 : i32
    %c0_i32_1 = arith.constant 0 : i32
    return %c0_i32, %c0_i32_0 : i32, i32
  }
  func.func @transform_1(%arg0: i32) -> (i32, i32, i32) {
    %c0_i32 = arith.constant 0 : i32
    %c0_i32_0 = arith.constant 0 : i32
    %c0_i32_1 = arith.constant 0 : i32
    return %arg0, %c0_i32, %c0_i32_0 : i32, i32, i32
  }
  func.func @transform_2(%arg0: i32) -> (i32, i32, i32) {
    %c0_i32 = arith.constant 0 : i32
    %c0_i32_0 = arith.constant 0 : i32
    %c0_i32_1 = arith.constant 0 : i32
    return %arg0, %c0_i32, %c0_i32_0 : i32, i32, i32
  }
  func.func @transform_3(%arg0: i32) -> (i32, i32, i32) {
    %c0_i32 = arith.constant 0 : i32
    %c0_i32_0 = arith.constant 0 : i32
    %c0_i32_1 = arith.constant 0 : i32
    return %arg0, %c0_i32, %c0_i32_0 : i32, i32, i32
  }
  func.func @transform_4(%arg0: i32) -> (i32, i32, i32) {
    %c0_i32 = arith.constant 0 : i32
    %c0_i32_0 = arith.constant 0 : i32
    %c0_i32_1 = arith.constant 0 : i32
    return %arg0, %c0_i32, %c0_i32_0 : i32, i32, i32
  }
  func.func @transform_5(%arg0: i32) -> (i32, i32, i32) {
    %c0_i32 = arith.constant 0 : i32
    %c0_i32_0 = arith.constant 0 : i32
    %c0_i32_1 = arith.constant 0 : i32
    return %arg0, %c0_i32, %c0_i32_0 : i32, i32, i32
  }
  func.func @transform_6(%arg0: i32) -> (i32, i32, i32) {
    %c0_i32 = arith.constant 0 : i32
    %c0_i32_0 = arith.constant 0 : i32
    %c0_i32_1 = arith.constant 0 : i32
    return %arg0, %c0_i32, %c0_i32_0 : i32, i32, i32
  }
  func.func @transform_7(%arg0: i32) -> (i32, i32, i32) {
    %c0_i32 = arith.constant 0 : i32
    %c0_i32_0 = arith.constant 0 : i32
    %c0_i32_1 = arith.constant 0 : i32
    return %arg0, %c0_i32, %c0_i32_0 : i32, i32, i32
  }
}

</mosaic_0001>

<llo_original>
// kernel: _lambda_.6
$region0: #{_lambda_.6}
  #allocation0 [shape = 'u32[]', space=smem, size = 0x4, offset = 0x4, fixed_abs, tag = 'smem constant byte address 0x4 - core index']
  #allocation1 [shape = 'u32[144,128]{1,0:T(1,128)}', space=vmem, size = 0x12000, scoped, tag = 'internal scratch']
  %s0 = inlined_call_operand.vmem [shape: bf16[450,27], index: 0, kind: input, shape index: {}]
  %s1 = inlined_call_operand.vmem [shape: bf16[27,16], index: 1, kind: input, shape index: {}]
  %s2 = inlined_call_operand.vmem [shape: f32[1,16], index: 2, kind: input, shape index: {}]
  %s3 = inlined_call_operand.vmem [shape: bf16[450,16], index: 3, kind: output, shape index: {}]
  %s4 = sld [smem:[#allocation0]]
  $region22: #{_lambda_.6} parent=0
    _
  %s6 = ssub.s32 1, %s4
  %s7 = scalar_select 0, %s6, %s4
  // Predicated region
  $region2: #{_lambda_.6} parent=0 // pred_check
    _
  $region3: #{_lambda_.6} parent=0 // pred_check_branch
    %9 = sbr.rel (0) target = $region5
  $region4: #{_lambda_.6} parent=0 // pred_region
    _
  $region5: #{_lambda_.6} parent=0 // pred_fallthru
    _
  // Predicated region
  $region6: #{_lambda_.6} parent=0 // pred_check
    _
  $region7: #{_lambda_.6} parent=0 // pred_check_branch
    %11 = sbr.rel (0) target = $region9
  $region8: #{_lambda_.6} parent=0 // pred_region
    _
  $region9: #{_lambda_.6} parent=0 // pred_fallthru
    _
  // Predicated region
  $region10: #{_lambda_.6} parent=0 // pred_check
    _
  $region11: #{_lambda_.6} parent=0 // pred_check_branch
    %13 = sbr.rel (0) target = $region13
  $region12: #{_lambda_.6} parent=0 // pred_region
    _
  $region13: #{_lambda_.6} parent=0 // pred_fallthru
    _
  %v15 = vld [vmem:[%s0] sm:$0xf]
  %v16 = vld [vmem:[%s0 + $0x4] sm:$0xf]
  %v17 = vld [vmem:[%s0 + $0x8] sm:$0xf]
  %v18 = vld [vmem:[%s0 + $0xc] sm:$0xf]
  %v19 = vld [vmem:[%s0 + $0x10] sm:$0xf]
  %v20 = vld [vmem:[%s0 + $0x14] sm:$0xf]
  %v21 = vld [vmem:[%s0 + $0x18] sm:$0xf]
  %v22 = vld [vmem:[%s0 + $0x1c] sm:$0xf]
  %v23 = vld [vmem:[%s0 + $0x20] sm:$0xf]
  %v24 = vld [vmem:[%s0 + $0x24] sm:$0xf]
  %v25 = vld [vmem:[%s0 + $0x28] sm:$0xf]
  %v26 = vld [vmem:[%s0 + $0x2c] sm:$0xf]
  %v27 = vld [vmem:[%s0 + $0x30] sm:$0xf]
  %v28 = vld [vmem:[%s0 + $0x34] sm:$0xf]
  %v29 = vld [vmem:[%s0 + $0x38] sm:$0xf]
  %v30 = vld [vmem:[%s0 + $0x3c] sm:$0xf]
  %v31 = vld [vmem:[%s0 + $0x40] sm:$0xf]
  %v32 = vld [vmem:[%s0 + $0x44] sm:$0xf]
  %v33 = vld [vmem:[%s0 + $0x48] sm:$0xf]
  %v34 = vld [vmem:[%s0 + $0x4c] sm:$0xf]
  %v35 = vld [vmem:[%s0 + $0x50] sm:$0xf]
  %v36 = vld [vmem:[%s0 + $0x54] sm:$0xf]
  %v37 = vld [vmem:[%s0 + $0x58] sm:$0xf]
  %v38 = vld [vmem:[%s0 + $0x5c] sm:$0xf]
  %v39 = vld [vmem:[%s0 + $0x60] sm:$0xf]
  %v40 = vld [vmem:[%s0 + $0x64] sm:$0xf]
  %v41 = vld [vmem:[%s0 + $0x68] sm:$0xf]
  %v42 = vld [vmem:[%s0 + $0x6c] sm:$0xf]
  %v43 = vld [vmem:[%s0 + $0x70] sm:$0xf]
  %v44 = vld [vmem:[%s0 + $0x74] sm:$0xf]
  %v45 = vld [vmem:[%s0 + $0x78] sm:$0xf]
  %v46 = vld [vmem:[%s0 + $0x7c] sm:$0xf]
  %v47 = vld [vmem:[%s0 + $0x80] sm:$0xf]
  %v48 = vld [vmem:[%s0 + $0x84] sm:$0xf]
  %v49 = vld [vmem:[%s0 + $0x88] sm:$0xf]
  %v50 = vld [vmem:[%s0 + $0x8c] sm:$0xf]
  %v51 = vld [vmem:[%s0 + $0x90] sm:$0xf]
  %v52 = vld [vmem:[%s0 + $0x94] sm:$0xf]
  %v53 = vld [vmem:[%s0 + $0x98] sm:$0xf]
  %v54 = vld [vmem:[%s0 + $0x9c] sm:$0xf]
  %v55 = vld [vmem:[%s0 + $0xa0] sm:$0xf]
  %v56 = vld [vmem:[%s0 + $0xa4] sm:$0xf]
  %v57 = vld [vmem:[%s0 + $0xa8] sm:$0xf]
  %v58 = vld [vmem:[%s0 + $0xac] sm:$0xf]
  %v59 = vld [vmem:[%s0 + $0xb0] sm:$0xf]
  %v60 = vld [vmem:[%s0 + $0xb4] sm:$0xf]
  %v61 = vld [vmem:[%s0 + $0xb8] sm:$0xf]
  %v62 = vld [vmem:[%s0 + $0xbc] sm:$0xf]
  %v63 = vld [vmem:[%s0 + $0xc0] sm:$0xf]
  %v64 = vld [vmem:[%s0 + $0xc4] sm:$0xf]
  %v65 = vld [vmem:[%s0 + $0xc8] sm:$0xf]
  %v66 = vld [vmem:[%s0 + $0xcc] sm:$0xf]
  %v67 = vld [vmem:[%s0 + $0xd0] sm:$0xf]
  %v68 = vld [vmem:[%s0 + $0xd4] sm:$0xf]
  %v69 = vld [vmem:[%s0 + $0xd8] sm:$0xf]
  %v70 = vld [vmem:[%s0 + $0xdc] sm:$0xf]
  %v71 = vld [vmem:[%s0 + $0xe0] sm:$0x1]
  %v72 = vld [vmem:[%s1] sm:$0xf]
  %v73 = vld [vmem:[%s1 + $0x4] sm:$0xf]
  %v74 = vld [vmem:[%s1 + $0x8] sm:$0xf]
  %v75 = vld [vmem:[%s1 + $0xc] sm:$0x3]
  %v76 = vld [vmem:[%s2] sm:$0x1]
  %v78 = vlaneseq
  %v79 = vshrl.u32 %v78, 7
  %v80 = vsub.s32 0, %v79
  %v81 = vrot.slane %v76, %v80
  %v140 = vunpack.c.l.b16 %v15
  %v141 = vunpack.c.l.b16 %v16
  %v142 = vunpack.c.l.b16 %v17
  %v143 = vunpack.c.l.b16 %v18
  %v144 = vunpack.c.l.b16 %v19
  %v145 = vunpack.c.l.b16 %v20
  %v146 = vunpack.c.l.b16 %v21
  %v147 = vunpack.c.l.b16 %v22
  %v148 = vunpack.c.l.b16 %v23
  %v149 = vunpack.c.l.b16 %v24
  %v150 = vunpack.c.l.b16 %v25
  %v151 = vunpack.c.l.b16 %v26
  %v152 = vunpack.c.l.b16 %v27
  %v153 = vunpack.c.l.b16 %v28
  %v154 = vunpack.c.l.b16 %v29
  %v155 = vunpack.c.l.b16 %v30
  %v156 = vunpack.c.l.b16 %v31
  %v157 = vunpack.c.l.b16 %v32
  %v158 = vunpack.c.l.b16 %v33
  %v159 = vunpack.c.l.b16 %v34
  %v160 = vunpack.c.l.b16 %v35
  %v161 = vunpack.c.l.b16 %v36
  %v162 = vunpack.c.l.b16 %v37
  %v163 = vunpack.c.l.b16 %v38
  %v164 = vunpack.c.l.b16 %v39
  %v165 = vunpack.c.l.b16 %v40
  %v166 = vunpack.c.l.b16 %v41
  %v167 = vunpack.c.l.b16 %v42
  %v168 = vunpack.c.l.b16 %v43
  %v169 = vunpack.c.l.b16 %v44
  %v170 = vunpack.c.l.b16 %v45
  %v171 = vunpack.c.l.b16 %v46
  %v172 = vunpack.c.l.b16 %v47
  %v173 = vunpack.c.l.b16 %v48
  %v174 = vunpack.c.l.b16 %v49
  %v175 = vunpack.c.l.b16 %v50
  %v176 = vunpack.c.l.b16 %v51
  %v177 = vunpack.c.l.b16 %v52
  %v178 = vunpack.c.l.b16 %v53
  %v179 = vunpack.c.l.b16 %v54
  %v180 = vunpack.c.l.b16 %v55
  %v181 = vunpack.c.l.b16 %v56
  %v182 = vunpack.c.l.b16 %v57
  %v183 = vunpack.c.l.b16 %v58
  %v184 = vunpack.c.l.b16 %v59
  %v185 = vunpack.c.l.b16 %v60
  %v186 = vunpack.c.l.b16 %v61
  %v187 = vunpack.c.l.b16 %v62
  %v188 = vunpack.c.l.b16 %v63
  %v189 = vunpack.c.l.b16 %v64
  %v190 = vunpack.c.l.b16 %v65
  %v191 = vunpack.c.l.b16 %v66
  %v192 = vunpack.c.l.b16 %v67
  %v193 = vunpack.c.l.b16 %v68
  %v194 = vunpack.c.l.b16 %v69
  %v195 = vunpack.c.l.b16 %v70
  %v196 = vunpack.c.l.b16 %v71
  %v197 = vpack.c.b16 %v141, %v140
  %v198 = vpack.c.b16 %v143, %v142
  %v199 = vpack.c.b16 %v145, %v144
  %v200 = vpack.c.b16 %v147, %v146
  %v201 = vpack.c.b16 %v149, %v148
  %v202 = vpack.c.b16 %v151, %v150
  %v203 = vpack.c.b16 %v153, %v152
  %v204 = vpack.c.b16 %v155, %v154
  %v205 = vpack.c.b16 %v157, %v156
  %v206 = vpack.c.b16 %v159, %v158
  %v207 = vpack.c.b16 %v161, %v160
  %v208 = vpack.c.b16 %v163, %v162
  %v209 = vpack.c.b16 %v165, %v164
  %v210 = vpack.c.b16 %v167, %v166
  %v211 = vpack.c.b16 %v169, %v168
  %v212 = vpack.c.b16 %v171, %v170
  %v213 = vpack.c.b16 %v173, %v172
  %v214 = vpack.c.b16 %v175, %v174
  %v215 = vpack.c.b16 %v177, %v176
  %v216 = vpack.c.b16 %v179, %v178
  %v217 = vpack.c.b16 %v181, %v180
  %v218 = vpack.c.b16 %v183, %v182
  %v219 = vpack.c.b16 %v185, %v184
  %v220 = vpack.c.b16 %v187, %v186
  %v221 = vpack.c.b16 %v189, %v188
  %v222 = vpack.c.b16 %v191, %v190
  %v223 = vpack.c.b16 %v193, %v192
  %v224 = vpack.c.b16 %v195, %v194
  %v225 = vpack.c.b16 %v196, %v196
  %v230 = vunpack.c.l.b16 %v72
  %v231 = vunpack.c.l.b16 %v73
  %v232 = vunpack.c.l.b16 %v74
  %v233 = vunpack.c.l.b16 %v75
  %v234 = vpack.c.b16 %v231, %v230
  %v235 = vpack.c.b16 %v233, %v232
  %vm237 = vcmask 220160
  %v239 = vsel %vm237, %v197, 0
  %v242 = vsel %vm237, %v198, 0
  %v245 = vsel %vm237, %v199, 0
  %v248 = vsel %vm237, %v200, 0
  %v251 = vsel %vm237, %v201, 0
  %v254 = vsel %vm237, %v202, 0
  %v257 = vsel %vm237, %v203, 0
  %v260 = vsel %vm237, %v204, 0
  %v263 = vsel %vm237, %v205, 0
  %v266 = vsel %vm237, %v206, 0
  %v269 = vsel %vm237, %v207, 0
  %v272 = vsel %vm237, %v208, 0
  %v275 = vsel %vm237, %v209, 0
  %v278 = vsel %vm237, %v210, 0
  %v281 = vsel %vm237, %v211, 0
  %v284 = vsel %vm237, %v212, 0
  %v287 = vsel %vm237, %v213, 0
  %v290 = vsel %vm237, %v214, 0
  %v293 = vsel %vm237, %v215, 0
  %v296 = vsel %vm237, %v216, 0
  %v299 = vsel %vm237, %v217, 0
  %v302 = vsel %vm237, %v218, 0
  %v305 = vsel %vm237, %v219, 0
  %v308 = vsel %vm237, %v220, 0
  %v311 = vsel %vm237, %v221, 0
  %v314 = vsel %vm237, %v222, 0
  %v317 = vsel %vm237, %v223, 0
  %v320 = vsel %vm237, %v224, 0
  %v323 = vsel %vm237, %v225, 0
  %vm325 = vcmask 1044480
  %vm326 = vcmask 1045504
  %v327 = vsel %vm325, 4294967295, 65535
  %v328 = vsel %vm326, %v327, 0
  %v330 = vand.u32 %v235, %v328
  %332 = vmatprep.subr.bf16.mxu0 0
  %333 = vmatpush1.bf16.msra.mxu0 0
  %334 = vmatprep.subr.bf16.mxu0 0
  %335 = vmatpush1.bf16.msra.mxu0 0
  %336 = vmatprep.subr.bf16.mxu0 0
  %337 = vmatpush1.bf16.msra.mxu0 0
  %338 = vmatprep.subr.bf16.mxu0 0
  %339 = vmatpush1.bf16.msra.mxu0 0
  %340 = vmatprep.subr.bf16.mxu0 0
  %341 = vmatpush1.bf16.msra.mxu0 0
  %342 = vmatprep.subr.bf16.mxu0 0
  %343 = vmatpush1.bf16.msra.mxu0 0
  %344 = vmatprep.subr.bf16.mxu0 0
  %345 = vmatpush1.bf16.msra.mxu0 %v330
  %346 = vmatprep.subr.bf16.mxu0 0
  %347 = vmatpush1.bf16.msra.mxu0 %v234
  %348 = vmatprep.subr.bf16.mxu0 0
  %349 = vmatpush2.bf16.msra.mxu0 0
  %350 = vmatprep.subr.bf16.mxu0 0
  %351 = vmatpush2.bf16.msra.mxu0 0
  %352 = vmatprep.subr.bf16.mxu0 0
  %353 = vmatpush2.bf16.msra.mxu0 0
  %354 = vmatprep.subr.bf16.mxu0 0
  %355 = vmatpush2.bf16.msra.mxu0 0
  %356 = vmatprep.subr.bf16.mxu0 0
  %357 = vmatpush2.bf16.msra.mxu0 0
  %358 = vmatprep.subr.bf16.mxu0 0
  %359 = vmatpush2.bf16.msra.mxu0 0
  %360 = vmatprep.subr.bf16.mxu0 0
  %361 = vmatpush2.bf16.msra.mxu0 0
  %362 = vmatprep.subr.bf16.mxu0 0
  %363 = vmatpush2.bf16.msra.mxu0 0
  %364 = vmatprep.mubr.bf16.mxu0 0
  %365 = vmatmul.mubr.bf16.gmra.mxu0 %v239
  %v366 = vpop.f32.mrf.mxu0
  %v367 = vadd.f32 %v81, %v366
  %v368 = vpop.f32.mrf.mxu0
  %v369 = vpop.f32.mrf.mxu0
  %v370 = vadd.f32 %v81, %v369
  %v371 = vpop.f32.mrf.mxu0
  %372 = vmatprep.mubr.bf16.mxu0 0
  %373 = vmatmul.mubr.bf16.gmra.mxu0 %v242
  %v374 = vpop.f32.mrf.mxu0
  %v375 = vadd.f32 %v81, %v374
  %v376 = vpop.f32.mrf.mxu0
  %v377 = vpop.f32.mrf.mxu0
  %v378 = vadd.f32 %v81, %v377
  %v379 = vpop.f32.mrf.mxu0
  %380 = vmatprep.mubr.bf16.mxu0 0
  %381 = vmatmul.mubr.bf16.gmra.mxu0 %v245
  %v382 = vpop.f32.mrf.mxu0
  %v383 = vadd.f32 %v81, %v382
  %v384 = vpop.f32.mrf.mxu0
  %v385 = vpop.f32.mrf.mxu0
  %v386 = vadd.f32 %v81, %v385
  %v387 = vpop.f32.mrf.mxu0
  %388 = vmatprep.mubr.bf16.mxu0 0
  %389 = vmatmul.mubr.bf16.gmra.mxu0 %v248
  %v390 = vpop.f32.mrf.mxu0
  %v391 = vadd.f32 %v81, %v390
  %v392 = vpop.f32.mrf.mxu0
  %v393 = vpop.f32.mrf.mxu0
  %v394 = vadd.f32 %v81, %v393
  %v395 = vpop.f32.mrf.mxu0
  %396 = vmatprep.mubr.bf16.mxu0 0
  %397 = vmatmul.mubr.bf16.gmra.mxu0 %v251
  %v398 = vpop.f32.mrf.mxu0
  %v399 = vadd.f32 %v81, %v398
  %v400 = vpop.f32.mrf.mxu0
  %v401 = vpop.f32.mrf.mxu0
  %v402 = vadd.f32 %v81, %v401
  %v403 = vpop.f32.mrf.mxu0
  %404 = vmatprep.mubr.bf16.mxu0 0
  %405 = vmatmul.mubr.bf16.gmra.mxu0 %v254
  %v406 = vpop.f32.mrf.mxu0
  %v407 = vadd.f32 %v81, %v406
  %v408 = vpop.f32.mrf.mxu0
  %v409 = vpop.f32.mrf.mxu0
  %v410 = vadd.f32 %v81, %v409
  %v411 = vpop.f32.mrf.mxu0
  %412 = vmatprep.mubr.bf16.mxu0 0
  %413 = vmatmul.mubr.bf16.gmra.mxu0 %v257
  %v414 = vpop.f32.mrf.mxu0
  %v415 = vadd.f32 %v81, %v414
  %v416 = vpop.f32.mrf.mxu0
  %v417 = vpop.f32.mrf.mxu0
  %v418 = vadd.f32 %v81, %v417
  %v419 = vpop.f32.mrf.mxu0
  %420 = vmatprep.mubr.bf16.mxu0 0
  %421 = vmatmul.mubr.bf16.gmra.mxu0 %v260
  %v422 = vpop.f32.mrf.mxu0
  %v423 = vadd.f32 %v81, %v422
  %v424 = vpop.f32.mrf.mxu0
  %v425 = vpop.f32.mrf.mxu0
  %v426 = vadd.f32 %v81, %v425
  %v427 = vpop.f32.mrf.mxu0
  %428 = vmatprep.mubr.bf16.mxu0 0
  %429 = vmatmul.mubr.bf16.gmra.mxu0 %v263
  %v430 = vpop.f32.mrf.mxu0
  %v431 = vadd.f32 %v81, %v430
  %v432 = vpop.f32.mrf.mxu0
  %v433 = vpop.f32.mrf.mxu0
  %v434 = vadd.f32 %v81, %v433
  %v435 = vpop.f32.mrf.mxu0
  %436 = vmatprep.mubr.bf16.mxu0 0
  %437 = vmatmul.mubr.bf16.gmra.mxu0 %v266
  %v438 = vpop.f32.mrf.mxu0
  %v439 = vadd.f32 %v81, %v438
  %v440 = vpop.f32.mrf.mxu0
  %v441 = vpop.f32.mrf.mxu0
  %v442 = vadd.f32 %v81, %v441
  %v443 = vpop.f32.mrf.mxu0
  %444 = vmatprep.mubr.bf16.mxu0 0
  %445 = vmatmul.mubr.bf16.gmra.mxu0 %v269
  %v446 = vpop.f32.mrf.mxu0
  %v447 = vadd.f32 %v81, %v446
  %v448 = vpop.f32.mrf.mxu0
  %v449 = vpop.f32.mrf.mxu0
  %v450 = vadd.f32 %v81, %v449
  %v451 = vpop.f32.mrf.mxu0
  %452 = vmatprep.mubr.bf16.mxu0 0
  %453 = vmatmul.mubr.bf16.gmra.mxu0 %v272
  %v454 = vpop.f32.mrf.mxu0
  %v455 = vadd.f32 %v81, %v454
  %v456 = vpop.f32.mrf.mxu0
  %v457 = vpop.f32.mrf.mxu0
  %v458 = vadd.f32 %v81, %v457
  %v459 = vpop.f32.mrf.mxu0
  %460 = vmatprep.mubr.bf16.mxu0 0
  %461 = vmatmul.mubr.bf16.gmra.mxu0 %v275
  %v462 = vpop.f32.mrf.mxu0
  %v463 = vadd.f32 %v81, %v462
  %v464 = vpop.f32.mrf.mxu0
  %v465 = vpop.f32.mrf.mxu0
  %v466 = vadd.f32 %v81, %v465
  %v467 = vpop.f32.mrf.mxu0
  %468 = vmatprep.mubr.bf16.mxu0 0
  %469 = vmatmul.mubr.bf16.gmra.mxu0 %v278
  %v470 = vpop.f32.mrf.mxu0
  %v471 = vadd.f32 %v81, %v470
  %v472 = vpop.f32.mrf.mxu0
  %v473 = vpop.f32.mrf.mxu0
  %v474 = vadd.f32 %v81, %v473
  %v475 = vpop.f32.mrf.mxu0
  %476 = vmatprep.mubr.bf16.mxu0 0
  %477 = vmatmul.mubr.bf16.gmra.mxu0 %v281
  %v478 = vpop.f32.mrf.mxu0
  %v479 = vadd.f32 %v81, %v478
  %v480 = vpop.f32.mrf.mxu0
  %v481 = vpop.f32.mrf.mxu0
  %v482 = vadd.f32 %v81, %v481
  %v483 = vpop.f32.mrf.mxu0
  %484 = vmatprep.mubr.bf16.mxu0 0
  %485 = vmatmul.mubr.bf16.gmra.mxu0 %v284
  %v486 = vpop.f32.mrf.mxu0
  %v487 = vadd.f32 %v81, %v486
  %v488 = vpop.f32.mrf.mxu0
  %v489 = vpop.f32.mrf.mxu0
  %v490 = vadd.f32 %v81, %v489
  %v491 = vpop.f32.mrf.mxu0
  %492 = vmatprep.mubr.bf16.mxu0 0
  %493 = vmatmul.mubr.bf16.gmra.mxu0 %v287
  %v494 = vpop.f32.mrf.mxu0
  %v495 = vadd.f32 %v81, %v494
  %v496 = vpop.f32.mrf.mxu0
  %v497 = vpop.f32.mrf.mxu0
  %v498 = vadd.f32 %v81, %v497
  %v499 = vpop.f32.mrf.mxu0
  %500 = vmatprep.mubr.bf16.mxu0 0
  %501 = vmatmul.mubr.bf16.gmra.mxu0 %v290
  %v502 = vpop.f32.mrf.mxu0
  %v503 = vadd.f32 %v81, %v502
  %v504 = vpop.f32.mrf.mxu0
  %v505 = vpop.f32.mrf.mxu0
  %v506 = vadd.f32 %v81, %v505
  %v507 = vpop.f32.mrf.mxu0
  %508 = vmatprep.mubr.bf16.mxu0 0
  %509 = vmatmul.mubr.bf16.gmra.mxu0 %v293
  %v510 = vpop.f32.mrf.mxu0
  %v511 = vadd.f32 %v81, %v510
  %v512 = vpop.f32.mrf.mxu0
  %v513 = vpop.f32.mrf.mxu0
  %v514 = vadd.f32 %v81, %v513
  %v515 = vpop.f32.mrf.mxu0
  %516 = vmatprep.mubr.bf16.mxu0 0
  %517 = vmatmul.mubr.bf16.gmra.mxu0 %v296
  %v518 = vpop.f32.mrf.mxu0
  %v519 = vadd.f32 %v81, %v518
  %v520 = vpop.f32.mrf.mxu0
  %v521 = vpop.f32.mrf.mxu0
  %v522 = vadd.f32 %v81, %v521
  %v523 = vpop.f32.mrf.mxu0
  %524 = vmatprep.mubr.bf16.mxu0 0
  %525 = vmatmul.mubr.bf16.gmra.mxu0 %v299
  %v526 = vpop.f32.mrf.mxu0
  %v527 = vadd.f32 %v81, %v526
  %v528 = vpop.f32.mrf.mxu0
  %v529 = vpop.f32.mrf.mxu0
  %v530 = vadd.f32 %v81, %v529
  %v531 = vpop.f32.mrf.mxu0
  %532 = vmatprep.mubr.bf16.mxu0 0
  %533 = vmatmul.mubr.bf16.gmra.mxu0 %v302
  %v534 = vpop.f32.mrf.mxu0
  %v535 = vadd.f32 %v81, %v534
  %v536 = vpop.f32.mrf.mxu0
  %v537 = vpop.f32.mrf.mxu0
  %v538 = vadd.f32 %v81, %v537
  %v539 = vpop.f32.mrf.mxu0
  %540 = vmatprep.mubr.bf16.mxu0 0
  %541 = vmatmul.mubr.bf16.gmra.mxu0 %v305
  %v542 = vpop.f32.mrf.mxu0
  %v543 = vadd.f32 %v81, %v542
  %v544 = vpop.f32.mrf.mxu0
  %v545 = vpop.f32.mrf.mxu0
  %v546 = vadd.f32 %v81, %v545
  %v547 = vpop.f32.mrf.mxu0
  %548 = vmatprep.mubr.bf16.mxu0 0
  %549 = vmatmul.mubr.bf16.gmra.mxu0 %v308
  %v550 = vpop.f32.mrf.mxu0
  %v551 = vadd.f32 %v81, %v550
  %v552 = vpop.f32.mrf.mxu0
  %v553 = vpop.f32.mrf.mxu0
  %v554 = vadd.f32 %v81, %v553
  %v555 = vpop.f32.mrf.mxu0
  %556 = vmatprep.mubr.bf16.mxu0 0
  %557 = vmatmul.mubr.bf16.gmra.mxu0 %v311
  %v558 = vpop.f32.mrf.mxu0
  %v559 = vadd.f32 %v81, %v558
  %v560 = vpop.f32.mrf.mxu0
  %v561 = vpop.f32.mrf.mxu0
  %v562 = vadd.f32 %v81, %v561
  %v563 = vpop.f32.mrf.mxu0
  %564 = vmatprep.mubr.bf16.mxu0 0
  %565 = vmatmul.mubr.bf16.gmra.mxu0 %v314
  %v566 = vpop.f32.mrf.mxu0
  %v567 = vadd.f32 %v81, %v566
  %v568 = vpop.f32.mrf.mxu0
  %v569 = vpop.f32.mrf.mxu0
  %v570 = vadd.f32 %v81, %v569
  %v571 = vpop.f32.mrf.mxu0
  %572 = vmatprep.mubr.bf16.mxu0 0
  %573 = vmatmul.mubr.bf16.gmra.mxu0 %v317
  %v574 = vpop.f32.mrf.mxu0
  %v575 = vadd.f32 %v81, %v574
  %v576 = vpop.f32.mrf.mxu0
  %v577 = vpop.f32.mrf.mxu0
  %v578 = vadd.f32 %v81, %v577
  %v579 = vpop.f32.mrf.mxu0
  %580 = vmatprep.mubr.bf16.mxu0 0
  %581 = vmatmul.mubr.bf16.gmra.mxu0 %v320
  %v582 = vpop.f32.mrf.mxu0
  %v583 = vadd.f32 %v81, %v582
  %v584 = vpop.f32.mrf.mxu0
  %v585 = vpop.f32.mrf.mxu0
  %v586 = vadd.f32 %v81, %v585
  %v587 = vpop.f32.mrf.mxu0
  %588 = vmatprep.mubr.bf16.mxu0 0
  %589 = vmatmul.mubr.bf16.gmra.mxu0 %v323
  %v590 = vpop.f32.mrf.mxu0
  %v591 = vadd.f32 %v81, %v590
  %v592 = vpop.f32.mrf.mxu0
  %v593 = vpop.f32.mrf.mxu0
  %v594 = vpop.f32.mrf.mxu0
  %595 = vdwg.mxu0
  %v596 = vmax.f32 %v367, 0.0
  %v597 = vmax.f32 %v370, 0.0
  %v598 = vmax.f32 %v375, 0.0
  %v599 = vmax.f32 %v378, 0.0
  %v600 = vmax.f32 %v383, 0.0
  %v601 = vmax.f32 %v386, 0.0
  %v602 = vmax.f32 %v391, 0.0
  %v603 = vmax.f32 %v394, 0.0
  %v604 = vmax.f32 %v399, 0.0
  %v605 = vmax.f32 %v402, 0.0
  %v606 = vmax.f32 %v407, 0.0
  %v607 = vmax.f32 %v410, 0.0
  %v608 = vmax.f32 %v415, 0.0
  %v609 = vmax.f32 %v418, 0.0
  %v610 = vmax.f32 %v423, 0.0
  %v611 = vmax.f32 %v426, 0.0
  %v612 = vmax.f32 %v431, 0.0
  %v613 = vmax.f32 %v434, 0.0
  %v614 = vmax.f32 %v439, 0.0
  %v615 = vmax.f32 %v442, 0.0
  %v616 = vmax.f32 %v447, 0.0
  %v617 = vmax.f32 %v450, 0.0
  %v618 = vmax.f32 %v455, 0.0
  %v619 = vmax.f32 %v458, 0.0
  %v620 = vmax.f32 %v463, 0.0
  %v621 = vmax.f32 %v466, 0.0
  %v622 = vmax.f32 %v471, 0.0
  %v623 = vmax.f32 %v474, 0.0
  %v624 = vmax.f32 %v479, 0.0
  %v625 = vmax.f32 %v482, 0.0
  %v626 = vmax.f32 %v487, 0.0
  %v627 = vmax.f32 %v490, 0.0
  %v628 = vmax.f32 %v495, 0.0
  %v629 = vmax.f32 %v498, 0.0
  %v630 = vmax.f32 %v503, 0.0
  %v631 = vmax.f32 %v506, 0.0
  %v632 = vmax.f32 %v511, 0.0
  %v633 = vmax.f32 %v514, 0.0
  %v634 = vmax.f32 %v519, 0.0
  %v635 = vmax.f32 %v522, 0.0
  %v636 = vmax.f32 %v527, 0.0
  %v637 = vmax.f32 %v530, 0.0
  %v638 = vmax.f32 %v535, 0.0
  %v639 = vmax.f32 %v538, 0.0
  %v640 = vmax.f32 %v543, 0.0
  %v641 = vmax.f32 %v546, 0.0
  %v642 = vmax.f32 %v551, 0.0
  %v643 = vmax.f32 %v554, 0.0
  %v644 = vmax.f32 %v559, 0.0
  %v645 = vmax.f32 %v562, 0.0
  %v646 = vmax.f32 %v567, 0.0
  %v647 = vmax.f32 %v570, 0.0
  %v648 = vmax.f32 %v575, 0.0
  %v649 = vmax.f32 %v578, 0.0
  %v650 = vmax.f32 %v583, 0.0
  %v651 = vmax.f32 %v586, 0.0
  %v652 = vmax.f32 %v591, 0.0
  %v653 = vpack.c.bf16 %v597, %v596
  %v654 = vpack.c.bf16 %v599, %v598
  %v655 = vpack.c.bf16 %v601, %v600
  %v656 = vpack.c.bf16 %v603, %v602
  %v657 = vpack.c.bf16 %v605, %v604
  %v658 = vpack.c.bf16 %v607, %v606
  %v659 = vpack.c.bf16 %v609, %v608
  %v660 = vpack.c.bf16 %v611, %v610
  %v661 = vpack.c.bf16 %v613, %v612
  %v662 = vpack.c.bf16 %v615, %v614
  %v663 = vpack.c.bf16 %v617, %v616
  %v664 = vpack.c.bf16 %v619, %v618
  %v665 = vpack.c.bf16 %v621, %v620
  %v666 = vpack.c.bf16 %v623, %v622
  %v667 = vpack.c.bf16 %v625, %v624
  %v668 = vpack.c.bf16 %v627, %v626
  %v669 = vpack.c.bf16 %v629, %v628
  %v670 = vpack.c.bf16 %v631, %v630
  %v671 = vpack.c.bf16 %v633, %v632
  %v672 = vpack.c.bf16 %v635, %v634
  %v673 = vpack.c.bf16 %v637, %v636
  %v674 = vpack.c.bf16 %v639, %v638
  %v675 = vpack.c.bf16 %v641, %v640
  %v676 = vpack.c.bf16 %v643, %v642
  %v677 = vpack.c.bf16 %v645, %v644
  %v678 = vpack.c.bf16 %v647, %v646
  %v679 = vpack.c.bf16 %v649, %v648
  %v680 = vpack.c.bf16 %v651, %v650
  %v681 = vpack.c.bf16 %v652, %v652
  %v711 = vunpack.c.l.b16 %v653
  %v712 = vunpack.c.h.b16 %v653
  %v713 = vunpack.c.l.b16 %v654
  %v714 = vunpack.c.h.b16 %v654
  %v715 = vunpack.c.l.b16 %v655
  %v716 = vunpack.c.h.b16 %v655
  %v717 = vunpack.c.l.b16 %v656
  %v718 = vunpack.c.h.b16 %v656
  %v719 = vunpack.c.l.b16 %v657
  %v720 = vunpack.c.h.b16 %v657
  %v721 = vunpack.c.l.b16 %v658
  %v722 = vunpack.c.h.b16 %v658
  %v723 = vunpack.c.l.b16 %v659
  %v724 = vunpack.c.h.b16 %v659
  %v725 = vunpack.c.l.b16 %v660
  %v726 = vunpack.c.h.b16 %v660
  %v727 = vunpack.c.l.b16 %v661
  %v728 = vunpack.c.h.b16 %v661
  %v729 = vunpack.c.l.b16 %v662
  %v730 = vunpack.c.h.b16 %v662
  %v731 = vunpack.c.l.b16 %v663
  %v732 = vunpack.c.h.b16 %v663
  %v733 = vunpack.c.l.b16 %v664
  %v734 = vunpack.c.h.b16 %v664
  %v735 = vunpack.c.l.b16 %v665
  %v736 = vunpack.c.h.b16 %v665
  %v737 = vunpack.c.l.b16 %v666
  %v738 = vunpack.c.h.b16 %v666
  %v739 = vunpack.c.l.b16 %v667
  %v740 = vunpack.c.h.b16 %v667
  %v741 = vunpack.c.l.b16 %v668
  %v742 = vunpack.c.h.b16 %v668
  %v743 = vunpack.c.l.b16 %v669
  %v744 = vunpack.c.h.b16 %v669
  %v745 = vunpack.c.l.b16 %v670
  %v746 = vunpack.c.h.b16 %v670
  %v747 = vunpack.c.l.b16 %v671
  %v748 = vunpack.c.h.b16 %v671
  %v749 = vunpack.c.l.b16 %v672
  %v750 = vunpack.c.h.b16 %v672
  %v751 = vunpack.c.l.b16 %v673
  %v752 = vunpack.c.h.b16 %v673
  %v753 = vunpack.c.l.b16 %v674
  %v754 = vunpack.c.h.b16 %v674
  %v755 = vunpack.c.l.b16 %v675
  %v756 = vunpack.c.h.b16 %v675
  %v757 = vunpack.c.l.b16 %v676
  %v758 = vunpack.c.h.b16 %v676
  %v759 = vunpack.c.l.b16 %v677
  %v760 = vunpack.c.h.b16 %v677
  %v761 = vunpack.c.l.b16 %v678
  %v762 = vunpack.c.h.b16 %v678
  %v763 = vunpack.c.l.b16 %v679
  %v764 = vunpack.c.h.b16 %v679
  %v765 = vunpack.c.l.b16 %v680
  %v766 = vunpack.c.h.b16 %v680
  %v767 = vunpack.c.l.b16 %v681
  %v768 = vpack.c.b16 %v711, %v711
  %v769 = vpack.c.b16 %v712, %v712
  %v770 = vpack.c.b16 %v713, %v713
  %v771 = vpack.c.b16 %v714, %v714
  %v772 = vpack.c.b16 %v715, %v715
  %v773 = vpack.c.b16 %v716, %v716
  %v774 = vpack.c.b16 %v717, %v717
  %v775 = vpack.c.b16 %v718, %v718
  %v776 = vpack.c.b16 %v719, %v719
  %v777 = vpack.c.b16 %v720, %v720
  %v778 = vpack.c.b16 %v721, %v721
  %v779 = vpack.c.b16 %v722, %v722
  %v780 = vpack.c.b16 %v723, %v723
  %v781 = vpack.c.b16 %v724, %v724
  %v782 = vpack.c.b16 %v725, %v725
  %v783 = vpack.c.b16 %v726, %v726
  %v784 = vpack.c.b16 %v727, %v727
  %v785 = vpack.c.b16 %v728, %v728
  %v786 = vpack.c.b16 %v729, %v729
  %v787 = vpack.c.b16 %v730, %v730
  %v788 = vpack.c.b16 %v731, %v731
  %v789 = vpack.c.b16 %v732, %v732
  %v790 = vpack.c.b16 %v733, %v733
  %v791 = vpack.c.b16 %v734, %v734
  %v792 = vpack.c.b16 %v735, %v735
  %v793 = vpack.c.b16 %v736, %v736
  %v794 = vpack.c.b16 %v737, %v737
  %v795 = vpack.c.b16 %v738, %v738
  %v796 = vpack.c.b16 %v739, %v739
  %v797 = vpack.c.b16 %v740, %v740
  %v798 = vpack.c.b16 %v741, %v741
  %v799 = vpack.c.b16 %v742, %v742
  %v800 = vpack.c.b16 %v743, %v743
  %v801 = vpack.c.b16 %v744, %v744
  %v802 = vpack.c.b16 %v745, %v745
  %v803 = vpack.c.b16 %v746, %v746
  %v804 = vpack.c.b16 %v747, %v747
  %v805 = vpack.c.b16 %v748, %v748
  %v806 = vpack.c.b16 %v749, %v749
  %v807 = vpack.c.b16 %v750, %v750
  %v808 = vpack.c.b16 %v751, %v751
  %v809 = vpack.c.b16 %v752, %v752
  %v810 = vpack.c.b16 %v753, %v753
  %v811 = vpack.c.b16 %v754, %v754
  %v812 = vpack.c.b16 %v755, %v755
  %v813 = vpack.c.b16 %v756, %v756
  %v814 = vpack.c.b16 %v757, %v757
  %v815 = vpack.c.b16 %v758, %v758
  %v816 = vpack.c.b16 %v759, %v759
  %v817 = vpack.c.b16 %v760, %v760
  %v818 = vpack.c.b16 %v761, %v761
  %v819 = vpack.c.b16 %v762, %v762
  %v820 = vpack.c.b16 %v763, %v763
  %v821 = vpack.c.b16 %v764, %v764
  %v822 = vpack.c.b16 %v765, %v765
  %v823 = vpack.c.b16 %v766, %v766
  %v824 = vpack.c.b16 %v767, %v767
  %vm882 = vcmask 125952
  %883 = vst.msk [vmem:[%s3] sm:$0xf] %vm882, %v768
  %884 = vst.msk [vmem:[%s3 + $0x4] sm:$0xf] %vm882, %v769
  %885 = vst.msk [vmem:[%s3 + $0x8] sm:$0xf] %vm882, %v770
  %886 = vst.msk [vmem:[%s3 + $0xc] sm:$0xf] %vm882, %v771
  %887 = vst.msk [vmem:[%s3 + $0x10] sm:$0xf] %vm882, %v772
  %888 = vst.msk [vmem:[%s3 + $0x14] sm:$0xf] %vm882, %v773
  %889 = vst.msk [vmem:[%s3 + $0x18] sm:$0xf] %vm882, %v774
  %890 = vst.msk [vmem:[%s3 + $0x1c] sm:$0xf] %vm882, %v775
  %891 = vst.msk [vmem:[%s3 + $0x20] sm:$0xf] %vm882, %v776
  %892 = vst.msk [vmem:[%s3 + $0x24] sm:$0xf] %vm882, %v777
  %893 = vst.msk [vmem:[%s3 + $0x28] sm:$0xf] %vm882, %v778
  %894 = vst.msk [vmem:[%s3 + $0x2c] sm:$0xf] %vm882, %v779
  %895 = vst.msk [vmem:[%s3 + $0x30] sm:$0xf] %vm882, %v780
  %896 = vst.msk [vmem:[%s3 + $0x34] sm:$0xf] %vm882, %v781
  %897 = vst.msk [vmem:[%s3 + $0x38] sm:$0xf] %vm882, %v782
  %898 = vst.msk [vmem:[%s3 + $0x3c] sm:$0xf] %vm882, %v783
  %899 = vst.msk [vmem:[%s3 + $0x40] sm:$0xf] %vm882, %v784
  %900 = vst.msk [vmem:[%s3 + $0x44] sm:$0xf] %vm882, %v785
  %901 = vst.msk [vmem:[%s3 + $0x48] sm:$0xf] %vm882, %v786
  %902 = vst.msk [vmem:[%s3 + $0x4c] sm:$0xf] %vm882, %v787
  %903 = vst.msk [vmem:[%s3 + $0x50] sm:$0xf] %vm882, %v788
  %904 = vst.msk [vmem:[%s3 + $0x54] sm:$0xf] %vm882, %v789
  %905 = vst.msk [vmem:[%s3 + $0x58] sm:$0xf] %vm882, %v790
  %906 = vst.msk [vmem:[%s3 + $0x5c] sm:$0xf] %vm882, %v791
  %907 = vst.msk [vmem:[%s3 + $0x60] sm:$0xf] %vm882, %v792
  %908 = vst.msk [vmem:[%s3 + $0x64] sm:$0xf] %vm882, %v793
  %909 = vst.msk [vmem:[%s3 + $0x68] sm:$0xf] %vm882, %v794
  %910 = vst.msk [vmem:[%s3 + $0x6c] sm:$0xf] %vm882, %v795
  %911 = vst.msk [vmem:[%s3 + $0x70] sm:$0xf] %vm882, %v796
  %912 = vst.msk [vmem:[%s3 + $0x74] sm:$0xf] %vm882, %v797
  %913 = vst.msk [vmem:[%s3 + $0x78] sm:$0xf] %vm882, %v798
  %914 = vst.msk [vmem:[%s3 + $0x7c] sm:$0xf] %vm882, %v799
  %915 = vst.msk [vmem:[%s3 + $0x80] sm:$0xf] %vm882, %v800
  %916 = vst.msk [vmem:[%s3 + $0x84] sm:$0xf] %vm882, %v801
  %917 = vst.msk [vmem:[%s3 + $0x88] sm:$0xf] %vm882, %v802
  %918 = vst.msk [vmem:[%s3 + $0x8c] sm:$0xf] %vm882, %v803
  %919 = vst.msk [vmem:[%s3 + $0x90] sm:$0xf] %vm882, %v804
  %920 = vst.msk [vmem:[%s3 + $0x94] sm:$0xf] %vm882, %v805
  %921 = vst.msk [vmem:[%s3 + $0x98] sm:$0xf] %vm882, %v806
  %922 = vst.msk [vmem:[%s3 + $0x9c] sm:$0xf] %vm882, %v807
  %923 = vst.msk [vmem:[%s3 + $0xa0] sm:$0xf] %vm882, %v808
  %924 = vst.msk [vmem:[%s3 + $0xa4] sm:$0xf] %vm882, %v809
  %925 = vst.msk [vmem:[%s3 + $0xa8] sm:$0xf] %vm882, %v810
  %926 = vst.msk [vmem:[%s3 + $0xac] sm:$0xf] %vm882, %v811
  %927 = vst.msk [vmem:[%s3 + $0xb0] sm:$0xf] %vm882, %v812
  %928 = vst.msk [vmem:[%s3 + $0xb4] sm:$0xf] %vm882, %v813
  %929 = vst.msk [vmem:[%s3 + $0xb8] sm:$0xf] %vm882, %v814
  %930 = vst.msk [vmem:[%s3 + $0xbc] sm:$0xf] %vm882, %v815
  %931 = vst.msk [vmem:[%s3 + $0xc0] sm:$0xf] %vm882, %v816
  %932 = vst.msk [vmem:[%s3 + $0xc4] sm:$0xf] %vm882, %v817
  %933 = vst.msk [vmem:[%s3 + $0xc8] sm:$0xf] %vm882, %v818
  %934 = vst.msk [vmem:[%s3 + $0xcc] sm:$0xf] %vm882, %v819
  %935 = vst.msk [vmem:[%s3 + $0xd0] sm:$0xf] %vm882, %v820
  %936 = vst.msk [vmem:[%s3 + $0xd4] sm:$0xf] %vm882, %v821
  %937 = vst.msk [vmem:[%s3 + $0xd8] sm:$0xf] %vm882, %v822
  %938 = vst.msk [vmem:[%s3 + $0xdc] sm:$0xf] %vm882, %v823
  %vm939 = vcmask 122880
  %940 = vst.msk [vmem:[%s3 + $0xe0] sm:$0x1] %vm939, %v824
  // Predicated region
  $region14: #{_lambda_.6} parent=0 // pred_check
    _
  $region15: #{_lambda_.6} parent=0 // pred_check_branch
    %942 = sbr.rel (0) target = $region17
  $region16: #{_lambda_.6} parent=0 // pred_region
    _
  $region17: #{_lambda_.6} parent=0 // pred_fallthru
    _
  // Predicated region
  $region18: #{_lambda_.6} parent=0 // pred_check
    _
  $region19: #{_lambda_.6} parent=0 // pred_check_branch
    %944 = sbr.rel (0) target = $region21
  $region20: #{_lambda_.6} parent=0 // pred_region
    _
  $region21: #{_lambda_.6} parent=0 // pred_fallthru
    _

// kernel: _lambda_.7
$region0: #{_lambda_.7}
  #allocation0 [shape = 'u32[]', space=smem, size = 0x4, offset = 0x4, fixed_abs, tag = 'smem constant byte address 0x4 - core index']
  #allocation1 [shape = 'u32[144,128]{1,0:T(1,128)}', space=vmem, size = 0x12000, scoped, tag = 'internal scratch']
  %s0 = inlined_call_operand.vmem [shape: bf16[338,144], index: 0, kind: input, shape index: {}]
  %s1 = inlined_call_operand.vmem [shape: bf16[144,16], index: 1, kind: input, shape index: {}]
  %s2 = inlined_call_operand.vmem [shape: f32[1,16], index: 2, kind: input, shape index: {}]
  %s3 = inlined_call_operand.vmem [shape: bf16[338,16], index: 3, kind: output, shape index: {}]
  %s4 = sld [smem:[#allocation0]]
  $region22: #{_lambda_.7} parent=0
    _
  %s6 = ssub.s32 1, %s4
  %s7 = scalar_select 0, %s6, %s4
  // Predicated region
  $region2: #{_lambda_.7} parent=0 // pred_check
    _
  $region3: #{_lambda_.7} parent=0 // pred_check_branch
    %9 = sbr.rel (0) target = $region5
  $region4: #{_lambda_.7} parent=0 // pred_region
    _
  $region5: #{_lambda_.7} parent=0 // pred_fallthru
    _
  // Predicated region
  $region6: #{_lambda_.7} parent=0 // pred_check
    _
  $region7: #{_lambda_.7} parent=0 // pred_check_branch
    %11 = sbr.rel (0) target = $region9
  $region8: #{_lambda_.7} parent=0 // pred_region
    _
  $region9: #{_lambda_.7} parent=0 // pred_fallthru
    _
  // Predicated region
  $region10: #{_lambda_.7} parent=0 // pred_check
    _
  $region11: #{_lambda_.7} parent=0 // pred_check_branch
    %13 = sbr.rel (0) target = $region13
  $region12: #{_lambda_.7} parent=0 // pred_region
    _
  $region13: #{_lambda_.7} parent=0 // pred_fallthru
    _
  %v15 = vld [vmem:[%s0] sm:$0xff]
  %v16 = vld [vmem:[%s0 + $0x8] sm:$0xff]
  %v17 = vld [vmem:[%s0 + $0x10] sm:$0xff]
  %v18 = vld [vmem:[%s0 + $0x18] sm:$0xff]
  %v19 = vld [vmem:[%s0 + $0x20] sm:$0xff]
  %v20 = vld [vmem:[%s0 + $0x28] sm:$0xff]
  %v21 = vld [vmem:[%s0 + $0x30] sm:$0xff]
  %v22 = vld [vmem:[%s0 + $0x38] sm:$0xff]
  %v23 = vld [vmem:[%s0 + $0x40] sm:$0xff]
  %v24 = vld [vmem:[%s0 + $0x48] sm:$0xff]
  %v25 = vld [vmem:[%s0 + $0x50] sm:$0xff]
  %v26 = vld [vmem:[%s0 + $0x58] sm:$0xff]
  %v27 = vld [vmem:[%s0 + $0x60] sm:$0xff]
  %v28 = vld [vmem:[%s0 + $0x68] sm:$0xff]
  %v29 = vld [vmem:[%s0 + $0x70] sm:$0xff]
  %v30 = vld [vmem:[%s0 + $0x78] sm:$0xff]
  %v31 = vld [vmem:[%s0 + $0x80] sm:$0xff]
  %v32 = vld [vmem:[%s0 + $0x88] sm:$0xff]
  %v33 = vld [vmem:[%s0 + $0x90] sm:$0xff]
  %v34 = vld [vmem:[%s0 + $0x98] sm:$0xff]
  %v35 = vld [vmem:[%s0 + $0xa0] sm:$0xff]
  %v36 = vld [vmem:[%s0 + $0xa8] sm:$0xff]
  %v37 = vld [vmem:[%s0 + $0xb0] sm:$0xff]
  %v38 = vld [vmem:[%s0 + $0xb8] sm:$0xff]
  %v39 = vld [vmem:[%s0 + $0xc0] sm:$0xff]
  %v40 = vld [vmem:[%s0 + $0xc8] sm:$0xff]
  %v41 = vld [vmem:[%s0 + $0xd0] sm:$0xff]
  %v42 = vld [vmem:[%s0 + $0xd8] sm:$0xff]
  %v43 = vld [vmem:[%s0 + $0xe0] sm:$0xff]
  %v44 = vld [vmem:[%s0 + $0xe8] sm:$0xff]
  %v45 = vld [vmem:[%s0 + $0xf0] sm:$0xff]
  %v46 = vld [vmem:[%s0 + $0xf8] sm:$0xff]
  %v47 = vld [vmem:[%s0 + $0x100] sm:$0xff]
  %v48 = vld [vmem:[%s0 + $0x108] sm:$0xff]
  %v49 = vld [vmem:[%s0 + $0x110] sm:$0xff]
  %v50 = vld [vmem:[%s0 + $0x118] sm:$0xff]
  %v51 = vld [vmem:[%s0 + $0x120] sm:$0xff]
  %v52 = vld [vmem:[%s0 + $0x128] sm:$0xff]
  %v53 = vld [vmem:[%s0 + $0x130] sm:$0xff]
  %v54 = vld [vmem:[%s0 + $0x138] sm:$0xff]
  %v55 = vld [vmem:[%s0 + $0x140] sm:$0xff]
  %v56 = vld [vmem:[%s0 + $0x148] sm:$0xff]
  %v57 = vld [vmem:[%s0 + $0x150] sm:$0x11]
  %v58 = vld [vmem:[%s1] sm:$0xf]
  %v59 = vld [vmem:[%s1 + $0x4] sm:$0xf]
  %v60 = vld [vmem:[%s1 + $0x8] sm:$0xf]
  %v61 = vld [vmem:[%s1 + $0xc] sm:$0xf]
  %v62 = vld [vmem:[%s1 + $0x10] sm:$0xf]
  %v63 = vld [vmem:[%s1 + $0x14] sm:$0xf]
  %v64 = vld [vmem:[%s1 + $0x18] sm:$0xf]
  %v65 = vld [vmem:[%s1 + $0x1c] sm:$0xf]
  %v66 = vld [vmem:[%s1 + $0x20] sm:$0xf]
  %v67 = vld [vmem:[%s1 + $0x24] sm:$0xf]
  %v68 = vld [vmem:[%s1 + $0x28] sm:$0xf]
  %v69 = vld [vmem:[%s1 + $0x2c] sm:$0xf]
  %v70 = vld [vmem:[%s1 + $0x30] sm:$0xf]
  %v71 = vld [vmem:[%s1 + $0x34] sm:$0xf]
  %v72 = vld [vmem:[%s1 + $0x38] sm:$0xf]
  %v73 = vld [vmem:[%s1 + $0x3c] sm:$0xf]
  %v74 = vld [vmem:[%s1 + $0x40] sm:$0xf]
  %v75 = vld [vmem:[%s1 + $0x44] sm:$0xf]
  %v76 = vld [vmem:[%s2] sm:$0x1]
  %v78 = vlaneseq
  %v79 = vshrl.u32 %v78, 7
  %v80 = vsub.s32 0, %v79
  %v81 = vrot.slane %v76, %v80
  %v126 = vunpack.c.l.b16 %v15
  %v127 = vunpack.c.h.b16 %v15
  %v128 = vunpack.c.l.b16 %v16
  %v129 = vunpack.c.h.b16 %v16
  %v130 = vunpack.c.l.b16 %v17
  %v131 = vunpack.c.h.b16 %v17
  %v132 = vunpack.c.l.b16 %v18
  %v133 = vunpack.c.h.b16 %v18
  %v134 = vunpack.c.l.b16 %v19
  %v135 = vunpack.c.h.b16 %v19
  %v136 = vunpack.c.l.b16 %v20
  %v137 = vunpack.c.h.b16 %v20
  %v138 = vunpack.c.l.b16 %v21
  %v139 = vunpack.c.h.b16 %v21
  %v140 = vunpack.c.l.b16 %v22
  %v141 = vunpack.c.h.b16 %v22
  %v142 = vunpack.c.l.b16 %v23
  %v143 = vunpack.c.h.b16 %v23
  %v144 = vunpack.c.l.b16 %v24
  %v145 = vunpack.c.h.b16 %v24
  %v146 = vunpack.c.l.b16 %v25
  %v147 = vunpack.c.h.b16 %v25
  %v148 = vunpack.c.l.b16 %v26
  %v149 = vunpack.c.h.b16 %v26
  %v150 = vunpack.c.l.b16 %v27
  %v151 = vunpack.c.h.b16 %v27
  %v152 = vunpack.c.l.b16 %v28
  %v153 = vunpack.c.h.b16 %v28
  %v154 = vunpack.c.l.b16 %v29
  %v155 = vunpack.c.h.b16 %v29
  %v156 = vunpack.c.l.b16 %v30
  %v157 = vunpack.c.h.b16 %v30
  %v158 = vunpack.c.l.b16 %v31
  %v159 = vunpack.c.h.b16 %v31
  %v160 = vunpack.c.l.b16 %v32
  %v161 = vunpack.c.h.b16 %v32
  %v162 = vunpack.c.l.b16 %v33
  %v163 = vunpack.c.h.b16 %v33
  %v164 = vunpack.c.l.b16 %v34
  %v165 = vunpack.c.h.b16 %v34
  %v166 = vunpack.c.l.b16 %v35
  %v167 = vunpack.c.h.b16 %v35
  %v168 = vunpack.c.l.b16 %v36
  %v169 = vunpack.c.h.b16 %v36
  %v170 = vunpack.c.l.b16 %v37
  %v171 = vunpack.c.h.b16 %v37
  %v172 = vunpack.c.l.b16 %v38
  %v173 = vunpack.c.h.b16 %v38
  %v174 = vunpack.c.l.b16 %v39
  %v175 = vunpack.c.h.b16 %v39
  %v176 = vunpack.c.l.b16 %v40
  %v177 = vunpack.c.h.b16 %v40
  %v178 = vunpack.c.l.b16 %v41
  %v179 = vunpack.c.h.b16 %v41
  %v180 = vunpack.c.l.b16 %v42
  %v181 = vunpack.c.h.b16 %v42
  %v182 = vunpack.c.l.b16 %v43
  %v183 = vunpack.c.h.b16 %v43
  %v184 = vunpack.c.l.b16 %v44
  %v185 = vunpack.c.h.b16 %v44
  %v186 = vunpack.c.l.b16 %v45
  %v187 = vunpack.c.h.b16 %v45
  %v188 = vunpack.c.l.b16 %v46
  %v189 = vunpack.c.h.b16 %v46
  %v190 = vunpack.c.l.b16 %v47
  %v191 = vunpack.c.h.b16 %v47
  %v192 = vunpack.c.l.b16 %v48
  %v193 = vunpack.c.h.b16 %v48
  %v194 = vunpack.c.l.b16 %v49
  %v195 = vunpack.c.h.b16 %v49
  %v196 = vunpack.c.l.b16 %v50
  %v197 = vunpack.c.h.b16 %v50
  %v198 = vunpack.c.l.b16 %v51
  %v199 = vunpack.c.h.b16 %v51
  %v200 = vunpack.c.l.b16 %v52
  %v201 = vunpack.c.h.b16 %v52
  %v202 = vunpack.c.l.b16 %v53
  %v203 = vunpack.c.h.b16 %v53
  %v204 = vunpack.c.l.b16 %v54
  %v205 = vunpack.c.h.b16 %v54
  %v206 = vunpack.c.l.b16 %v55
  %v207 = vunpack.c.h.b16 %v55
  %v208 = vunpack.c.l.b16 %v56
  %v209 = vunpack.c.h.b16 %v56
  %v210 = vunpack.c.l.b16 %v57
  %v211 = vunpack.c.h.b16 %v57
  %v212 = vpack.c.b16 %v128, %v126
  %v213 = vpack.c.b16 %v129, %v127
  %v214 = vpack.c.b16 %v132, %v130
  %v215 = vpack.c.b16 %v133, %v131
  %v216 = vpack.c.b16 %v136, %v134
  %v217 = vpack.c.b16 %v137, %v135
  %v218 = vpack.c.b16 %v140, %v138
  %v219 = vpack.c.b16 %v141, %v139
  %v220 = vpack.c.b16 %v144, %v142
  %v221 = vpack.c.b16 %v145, %v143
  %v222 = vpack.c.b16 %v148, %v146
  %v223 = vpack.c.b16 %v149, %v147
  %v224 = vpack.c.b16 %v152, %v150
  %v225 = vpack.c.b16 %v153, %v151
  %v226 = vpack.c.b16 %v156, %v154
  %v227 = vpack.c.b16 %v157, %v155
  %v228 = vpack.c.b16 %v160, %v158
  %v229 = vpack.c.b16 %v161, %v159
  %v230 = vpack.c.b16 %v164, %v162
  %v231 = vpack.c.b16 %v165, %v163
  %v232 = vpack.c.b16 %v168, %v166
  %v233 = vpack.c.b16 %v169, %v167
  %v234 = vpack.c.b16 %v172, %v170
  %v235 = vpack.c.b16 %v173, %v171
  %v236 = vpack.c.b16 %v176, %v174
  %v237 = vpack.c.b16 %v177, %v175
  %v238 = vpack.c.b16 %v180, %v178
  %v239 = vpack.c.b16 %v181, %v179
  %v240 = vpack.c.b16 %v184, %v182
  %v241 = vpack.c.b16 %v185, %v183
  %v242 = vpack.c.b16 %v188, %v186
  %v243 = vpack.c.b16 %v189, %v187
  %v244 = vpack.c.b16 %v192, %v190
  %v245 = vpack.c.b16 %v193, %v191
  %v246 = vpack.c.b16 %v196, %v194
  %v247 = vpack.c.b16 %v197, %v195
  %v248 = vpack.c.b16 %v200, %v198
  %v249 = vpack.c.b16 %v201, %v199
  %v250 = vpack.c.b16 %v204, %v202
  %v251 = vpack.c.b16 %v205, %v203
  %v252 = vpack.c.b16 %v208, %v206
  %v253 = vpack.c.b16 %v209, %v207
  %v254 = vpack.c.b16 %v210, %v210
  %v255 = vpack.c.b16 %v211, %v211
  %v296 = vunpack.c.l.b16 %v58
  %v297 = vunpack.c.l.b16 %v59
  %v298 = vunpack.c.l.b16 %v60
  %v299 = vunpack.c.l.b16 %v61
  %v300 = vunpack.c.l.b16 %v62
  %v301 = vunpack.c.l.b16 %v63
  %v302 = vunpack.c.l.b16 %v64
  %v303 = vunpack.c.l.b16 %v65
  %v304 = vunpack.c.l.b16 %v66
  %v305 = vunpack.c.l.b16 %v67
  %v306 = vunpack.c.l.b16 %v68
  %v307 = vunpack.c.l.b16 %v69
  %v308 = vunpack.c.l.b16 %v70
  %v309 = vunpack.c.l.b16 %v71
  %v310 = vunpack.c.l.b16 %v72
  %v311 = vunpack.c.l.b16 %v73
  %v312 = vunpack.c.l.b16 %v74
  %v313 = vunpack.c.l.b16 %v75
  %v314 = vpack.c.b16 %v297, %v296
  %v315 = vpack.c.b16 %v299, %v298
  %v316 = vpack.c.b16 %v301, %v300
  %v317 = vpack.c.b16 %v303, %v302
  %v318 = vpack.c.b16 %v305, %v304
  %v319 = vpack.c.b16 %v307, %v306
  %v320 = vpack.c.b16 %v309, %v308
  %v321 = vpack.c.b16 %v311, %v310
  %v322 = vpack.c.b16 %v313, %v312
  %vm332 = vcmask 130048
  %v334 = vsel %vm332, %v213, 0
  %v337 = vsel %vm332, %v215, 0
  %v340 = vsel %vm332, %v217, 0
  %v343 = vsel %vm332, %v219, 0
  %v346 = vsel %vm332, %v221, 0
  %v349 = vsel %vm332, %v223, 0
  %v352 = vsel %vm332, %v225, 0
  %v355 = vsel %vm332, %v227, 0
  %v358 = vsel %vm332, %v229, 0
  %v361 = vsel %vm332, %v231, 0
  %v364 = vsel %vm332, %v233, 0
  %v367 = vsel %vm332, %v235, 0
  %v370 = vsel %vm332, %v237, 0
  %v373 = vsel %vm332, %v239, 0
  %v376 = vsel %vm332, %v241, 0
  %v379 = vsel %vm332, %v243, 0
  %v382 = vsel %vm332, %v245, 0
  %v385 = vsel %vm332, %v247, 0
  %v388 = vsel %vm332, %v249, 0
  %v391 = vsel %vm332, %v251, 0
  %v394 = vsel %vm332, %v253, 0
  %v397 = vsel %vm332, %v255, 0
  %399 = vmatprep.subr.bf16.mxu0 0
  %400 = vmatpush1.bf16.msra.mxu0 %v321
  %401 = vmatprep.subr.bf16.mxu0 0
  %402 = vmatpush1.bf16.msra.mxu0 %v320
  %403 = vmatprep.subr.bf16.mxu0 0
  %404 = vmatpush1.bf16.msra.mxu0 %v319
  %405 = vmatprep.subr.bf16.mxu0 0
  %406 = vmatpush1.bf16.msra.mxu0 %v318
  %407 = vmatprep.subr.bf16.mxu0 0
  %408 = vmatpush1.bf16.msra.mxu0 %v317
  %409 = vmatprep.subr.bf16.mxu0 0
  %410 = vmatpush1.bf16.msra.mxu0 %v316
  %411 = vmatprep.subr.bf16.mxu0 0
  %412 = vmatpush1.bf16.msra.mxu0 %v315
  %413 = vmatprep.subr.bf16.mxu0 0
  %414 = vmatpush1.bf16.msra.mxu0 %v314
  %415 = vmatprep.subr.bf16.mxu0 0
  %416 = vmatpush2.bf16.msra.mxu0 0
  %417 = vmatprep.subr.bf16.mxu0 0
  %418 = vmatpush2.bf16.msra.mxu0 0
  %419 = vmatprep.subr.bf16.mxu0 0
  %420 = vmatpush2.bf16.msra.mxu0 0
  %421 = vmatprep.subr.bf16.mxu0 0
  %422 = vmatpush2.bf16.msra.mxu0 0
  %423 = vmatprep.subr.bf16.mxu0 0
  %424 = vmatpush2.bf16.msra.mxu0 0
  %425 = vmatprep.subr.bf16.mxu0 0
  %426 = vmatpush2.bf16.msra.mxu0 0
  %427 = vmatprep.subr.bf16.mxu0 0
  %428 = vmatpush2.bf16.msra.mxu0 0
  %429 = vmatprep.subr.bf16.mxu0 0
  %430 = vmatpush2.bf16.msra.mxu0 %v322
  %431 = vmatprep.mubr.bf16.mxu0 %v334
  %432 = vmatmul.mubr.bf16.gmra.mxu0 %v212
  %v433 = vpop.f32.mrf.mxu0
  %v434 = vadd.f32 %v81, %v433
  %v435 = vpop.f32.mrf.mxu0
  %v436 = vpop.f32.mrf.mxu0
  %v437 = vadd.f32 %v81, %v436
  %v438 = vpop.f32.mrf.mxu0
  %439 = vmatprep.mubr.bf16.mxu0 %v337
  %440 = vmatmul.mubr.bf16.gmra.mxu0 %v214
  %v441 = vpop.f32.mrf.mxu0
  %v442 = vadd.f32 %v81, %v441
  %v443 = vpop.f32.mrf.mxu0
  %v444 = vpop.f32.mrf.mxu0
  %v445 = vadd.f32 %v81, %v444
  %v446 = vpop.f32.mrf.mxu0
  %447 = vmatprep.mubr.bf16.mxu0 %v340
  %448 = vmatmul.mubr.bf16.gmra.mxu0 %v216
  %v449 = vpop.f32.mrf.mxu0
  %v450 = vadd.f32 %v81, %v449
  %v451 = vpop.f32.mrf.mxu0
  %v452 = vpop.f32.mrf.mxu0
  %v453 = vadd.f32 %v81, %v452
  %v454 = vpop.f32.mrf.mxu0
  %455 = vmatprep.mubr.bf16.mxu0 %v343
  %456 = vmatmul.mubr.bf16.gmra.mxu0 %v218
  %v457 = vpop.f32.mrf.mxu0
  %v458 = vadd.f32 %v81, %v457
  %v459 = vpop.f32.mrf.mxu0
  %v460 = vpop.f32.mrf.mxu0
  %v461 = vadd.f32 %v81, %v460
  %v462 = vpop.f32.mrf.mxu0
  %463 = vmatprep.mubr.bf16.mxu0 %v346
  %464 = vmatmul.mubr.bf16.gmra.mxu0 %v220
  %v465 = vpop.f32.mrf.mxu0
  %v466 = vadd.f32 %v81, %v465
  %v467 = vpop.f32.mrf.mxu0
  %v468 = vpop.f32.mrf.mxu0
  %v469 = vadd.f32 %v81, %v468
  %v470 = vpop.f32.mrf.mxu0
  %471 = vmatprep.mubr.bf16.mxu0 %v349
  %472 = vmatmul.mubr.bf16.gmra.mxu0 %v222
  %v473 = vpop.f32.mrf.mxu0
  %v474 = vadd.f32 %v81, %v473
  %v475 = vpop.f32.mrf.mxu0
  %v476 = vpop.f32.mrf.mxu0
  %v477 = vadd.f32 %v81, %v476
  %v478 = vpop.f32.mrf.mxu0
  %479 = vmatprep.mubr.bf16.mxu0 %v352
  %480 = vmatmul.mubr.bf16.gmra.mxu0 %v224
  %v481 = vpop.f32.mrf.mxu0
  %v482 = vadd.f32 %v81, %v481
  %v483 = vpop.f32.mrf.mxu0
  %v484 = vpop.f32.mrf.mxu0
  %v485 = vadd.f32 %v81, %v484
  %v486 = vpop.f32.mrf.mxu0
  %487 = vmatprep.mubr.bf16.mxu0 %v355
  %488 = vmatmul.mubr.bf16.gmra.mxu0 %v226
  %v489 = vpop.f32.mrf.mxu0
  %v490 = vadd.f32 %v81, %v489
  %v491 = vpop.f32.mrf.mxu0
  %v492 = vpop.f32.mrf.mxu0
  %v493 = vadd.f32 %v81, %v492
  %v494 = vpop.f32.mrf.mxu0
  %495 = vmatprep.mubr.bf16.mxu0 %v358
  %496 = vmatmul.mubr.bf16.gmra.mxu0 %v228
  %v497 = vpop.f32.mrf.mxu0
  %v498 = vadd.f32 %v81, %v497
  %v499 = vpop.f32.mrf.mxu0
  %v500 = vpop.f32.mrf.mxu0
  %v501 = vadd.f32 %v81, %v500
  %v502 = vpop.f32.mrf.mxu0
  %503 = vmatprep.mubr.bf16.mxu0 %v361
  %504 = vmatmul.mubr.bf16.gmra.mxu0 %v230
  %v505 = vpop.f32.mrf.mxu0
  %v506 = vadd.f32 %v81, %v505
  %v507 = vpop.f32.mrf.mxu0
  %v508 = vpop.f32.mrf.mxu0
  %v509 = vadd.f32 %v81, %v508
  %v510 = vpop.f32.mrf.mxu0
  %511 = vmatprep.mubr.bf16.mxu0 %v364
  %512 = vmatmul.mubr.bf16.gmra.mxu0 %v232
  %v513 = vpop.f32.mrf.mxu0
  %v514 = vadd.f32 %v81, %v513
  %v515 = vpop.f32.mrf.mxu0
  %v516 = vpop.f32.mrf.mxu0
  %v517 = vadd.f32 %v81, %v516
  %v518 = vpop.f32.mrf.mxu0
  %519 = vmatprep.mubr.bf16.mxu0 %v367
  %520 = vmatmul.mubr.bf16.gmra.mxu0 %v234
  %v521 = vpop.f32.mrf.mxu0
  %v522 = vadd.f32 %v81, %v521
  %v523 = vpop.f32.mrf.mxu0
  %v524 = vpop.f32.mrf.mxu0
  %v525 = vadd.f32 %v81, %v524
  %v526 = vpop.f32.mrf.mxu0
  %527 = vmatprep.mubr.bf16.mxu0 %v370
  %528 = vmatmul.mubr.bf16.gmra.mxu0 %v236
  %v529 = vpop.f32.mrf.mxu0
  %v530 = vadd.f32 %v81, %v529
  %v531 = vpop.f32.mrf.mxu0
  %v532 = vpop.f32.mrf.mxu0
  %v533 = vadd.f32 %v81, %v532
  %v534 = vpop.f32.mrf.mxu0
  %535 = vmatprep.mubr.bf16.mxu0 %v373
  %536 = vmatmul.mubr.bf16.gmra.mxu0 %v238
  %v537 = vpop.f32.mrf.mxu0
  %v538 = vadd.f32 %v81, %v537
  %v539 = vpop.f32.mrf.mxu0
  %v540 = vpop.f32.mrf.mxu0
  %v541 = vadd.f32 %v81, %v540
  %v542 = vpop.f32.mrf.mxu0
  %543 = vmatprep.mubr.bf16.mxu0 %v376
  %544 = vmatmul.mubr.bf16.gmra.mxu0 %v240
  %v545 = vpop.f32.mrf.mxu0
  %v546 = vadd.f32 %v81, %v545
  %v547 = vpop.f32.mrf.mxu0
  %v548 = vpop.f32.mrf.mxu0
  %v549 = vadd.f32 %v81, %v548
  %v550 = vpop.f32.mrf.mxu0
  %551 = vmatprep.mubr.bf16.mxu0 %v379
  %552 = vmatmul.mubr.bf16.gmra.mxu0 %v242
  %v553 = vpop.f32.mrf.mxu0
  %v554 = vadd.f32 %v81, %v553
  %v555 = vpop.f32.mrf.mxu0
  %v556 = vpop.f32.mrf.mxu0
  %v557 = vadd.f32 %v81, %v556
  %v558 = vpop.f32.mrf.mxu0
  %559 = vmatprep.mubr.bf16.mxu0 %v382
  %560 = vmatmul.mubr.bf16.gmra.mxu0 %v244
  %v561 = vpop.f32.mrf.mxu0
  %v562 = vadd.f32 %v81, %v561
  %v563 = vpop.f32.mrf.mxu0
  %v564 = vpop.f32.mrf.mxu0
  %v565 = vadd.f32 %v81, %v564
  %v566 = vpop.f32.mrf.mxu0
  %567 = vmatprep.mubr.bf16.mxu0 %v385
  %568 = vmatmul.mubr.bf16.gmra.mxu0 %v246
  %v569 = vpop.f32.mrf.mxu0
  %v570 = vadd.f32 %v81, %v569
  %v571 = vpop.f32.mrf.mxu0
  %v572 = vpop.f32.mrf.mxu0
  %v573 = vadd.f32 %v81, %v572
  %v574 = vpop.f32.mrf.mxu0
  %575 = vmatprep.mubr.bf16.mxu0 %v388
  %576 = vmatmul.mubr.bf16.gmra.mxu0 %v248
  %v577 = vpop.f32.mrf.mxu0
  %v578 = vadd.f32 %v81, %v577
  %v579 = vpop.f32.mrf.mxu0
  %v580 = vpop.f32.mrf.mxu0
  %v581 = vadd.f32 %v81, %v580
  %v582 = vpop.f32.mrf.mxu0
  %583 = vmatprep.mubr.bf16.mxu0 %v391
  %584 = vmatmul.mubr.bf16.gmra.mxu0 %v250
  %v585 = vpop.f32.mrf.mxu0
  %v586 = vadd.f32 %v81, %v585
  %v587 = vpop.f32.mrf.mxu0
  %v588 = vpop.f32.mrf.mxu0
  %v589 = vadd.f32 %v81, %v588
  %v590 = vpop.f32.mrf.mxu0
  %591 = vmatprep.mubr.bf16.mxu0 %v394
  %592 = vmatmul.mubr.bf16.gmra.mxu0 %v252
  %v593 = vpop.f32.mrf.mxu0
  %v594 = vadd.f32 %v81, %v593
  %v595 = vpop.f32.mrf.mxu0
  %v596 = vpop.f32.mrf.mxu0
  %v597 = vadd.f32 %v81, %v596
  %v598 = vpop.f32.mrf.mxu0
  %599 = vmatprep.mubr.bf16.mxu0 %v397
  %600 = vmatmul.mubr.bf16.gmra.mxu0 %v254
  %v601 = vpop.f32.mrf.mxu0
  %v602 = vadd.f32 %v81, %v601
  %v603 = vpop.f32.mrf.mxu0
  %v604 = vpop.f32.mrf.mxu0
  %v605 = vpop.f32.mrf.mxu0
  %606 = vdwg.mxu0
  %v607 = vmax.f32 %v434, 0.0
  %v608 = vmax.f32 %v437, 0.0
  %v609 = vmax.f32 %v442, 0.0
  %v610 = vmax.f32 %v445, 0.0
  %v611 = vmax.f32 %v450, 0.0
  %v612 = vmax.f32 %v453, 0.0
  %v613 = vmax.f32 %v458, 0.0
  %v614 = vmax.f32 %v461, 0.0
  %v615 = vmax.f32 %v466, 0.0
  %v616 = vmax.f32 %v469, 0.0
  %v617 = vmax.f32 %v474, 0.0
  %v618 = vmax.f32 %v477, 0.0
  %v619 = vmax.f32 %v482, 0.0
  %v620 = vmax.f32 %v485, 0.0
  %v621 = vmax.f32 %v490, 0.0
  %v622 = vmax.f32 %v493, 0.0
  %v623 = vmax.f32 %v498, 0.0
  %v624 = vmax.f32 %v501, 0.0
  %v625 = vmax.f32 %v506, 0.0
  %v626 = vmax.f32 %v509, 0.0
  %v627 = vmax.f32 %v514, 0.0
  %v628 = vmax.f32 %v517, 0.0
  %v629 = vmax.f32 %v522, 0.0
  %v630 = vmax.f32 %v525, 0.0
  %v631 = vmax.f32 %v530, 0.0
  %v632 = vmax.f32 %v533, 0.0
  %v633 = vmax.f32 %v538, 0.0
  %v634 = vmax.f32 %v541, 0.0
  %v635 = vmax.f32 %v546, 0.0
  %v636 = vmax.f32 %v549, 0.0
  %v637 = vmax.f32 %v554, 0.0
  %v638 = vmax.f32 %v557, 0.0
  %v639 = vmax.f32 %v562, 0.0
  %v640 = vmax.f32 %v565, 0.0
  %v641 = vmax.f32 %v570, 0.0
  %v642 = vmax.f32 %v573, 0.0
  %v643 = vmax.f32 %v578, 0.0
  %v644 = vmax.f32 %v581, 0.0
  %v645 = vmax.f32 %v586, 0.0
  %v646 = vmax.f32 %v589, 0.0
  %v647 = vmax.f32 %v594, 0.0
  %v648 = vmax.f32 %v597, 0.0
  %v649 = vmax.f32 %v602, 0.0
  %v650 = vpack.c.bf16 %v608, %v607
  %v651 = vpack.c.bf16 %v610, %v609
  %v652 = vpack.c.bf16 %v612, %v611
  %v653 = vpack.c.bf16 %v614, %v613
  %v654 = vpack.c.bf16 %v616, %v615
  %v655 = vpack.c.bf16 %v618, %v617
  %v656 = vpack.c.bf16 %v620, %v619
  %v657 = vpack.c.bf16 %v622, %v621
  %v658 = vpack.c.bf16 %v624, %v623
  %v659 = vpack.c.bf16 %v626, %v625
  %v660 = vpack.c.bf16 %v628, %v627
  %v661 = vpack.c.bf16 %v630, %v629
  %v662 = vpack.c.bf16 %v632, %v631
  %v663 = vpack.c.bf16 %v634, %v633
  %v664 = vpack.c.bf16 %v636, %v635
  %v665 = vpack.c.bf16 %v638, %v637
  %v666 = vpack.c.bf16 %v640, %v639
  %v667 = vpack.c.bf16 %v642, %v641
  %v668 = vpack.c.bf16 %v644, %v643
  %v669 = vpack.c.bf16 %v646, %v645
  %v670 = vpack.c.bf16 %v648, %v647
  %v671 = vpack.c.bf16 %v649, %v649
  %v694 = vunpack.c.l.b16 %v650
  %v695 = vunpack.c.h.b16 %v650
  %v696 = vunpack.c.l.b16 %v651
  %v697 = vunpack.c.h.b16 %v651
  %v698 = vunpack.c.l.b16 %v652
  %v699 = vunpack.c.h.b16 %v652
  %v700 = vunpack.c.l.b16 %v653
  %v701 = vunpack.c.h.b16 %v653
  %v702 = vunpack.c.l.b16 %v654
  %v703 = vunpack.c.h.b16 %v654
  %v704 = vunpack.c.l.b16 %v655
  %v705 = vunpack.c.h.b16 %v655
  %v706 = vunpack.c.l.b16 %v656
  %v707 = vunpack.c.h.b16 %v656
  %v708 = vunpack.c.l.b16 %v657
  %v709 = vunpack.c.h.b16 %v657
  %v710 = vunpack.c.l.b16 %v658
  %v711 = vunpack.c.h.b16 %v658
  %v712 = vunpack.c.l.b16 %v659
  %v713 = vunpack.c.h.b16 %v659
  %v714 = vunpack.c.l.b16 %v660
  %v715 = vunpack.c.h.b16 %v660
  %v716 = vunpack.c.l.b16 %v661
  %v717 = vunpack.c.h.b16 %v661
  %v718 = vunpack.c.l.b16 %v662
  %v719 = vunpack.c.h.b16 %v662
  %v720 = vunpack.c.l.b16 %v663
  %v721 = vunpack.c.h.b16 %v663
  %v722 = vunpack.c.l.b16 %v664
  %v723 = vunpack.c.h.b16 %v664
  %v724 = vunpack.c.l.b16 %v665
  %v725 = vunpack.c.h.b16 %v665
  %v726 = vunpack.c.l.b16 %v666
  %v727 = vunpack.c.h.b16 %v666
  %v728 = vunpack.c.l.b16 %v667
  %v729 = vunpack.c.h.b16 %v667
  %v730 = vunpack.c.l.b16 %v668
  %v731 = vunpack.c.h.b16 %v668
  %v732 = vunpack.c.l.b16 %v669
  %v733 = vunpack.c.h.b16 %v669
  %v734 = vunpack.c.l.b16 %v670
  %v735 = vunpack.c.h.b16 %v670
  %v736 = vunpack.c.l.b16 %v671
  %v737 = vpack.c.b16 %v694, %v694
  %v738 = vpack.c.b16 %v695, %v695
  %v739 = vpack.c.b16 %v696, %v696
  %v740 = vpack.c.b16 %v697, %v697
  %v741 = vpack.c.b16 %v698, %v698
  %v742 = vpack.c.b16 %v699, %v699
  %v743 = vpack.c.b16 %v700, %v700
  %v744 = vpack.c.b16 %v701, %v701
  %v745 = vpack.c.b16 %v702, %v702
  %v746 = vpack.c.b16 %v703, %v703
  %v747 = vpack.c.b16 %v704, %v704
  %v748 = vpack.c.b16 %v705, %v705
  %v749 = vpack.c.b16 %v706, %v706
  %v750 = vpack.c.b16 %v707, %v707
  %v751 = vpack.c.b16 %v708, %v708
  %v752 = vpack.c.b16 %v709, %v709
  %v753 = vpack.c.b16 %v710, %v710
  %v754 = vpack.c.b16 %v711, %v711
  %v755 = vpack.c.b16 %v712, %v712
  %v756 = vpack.c.b16 %v713, %v713
  %v757 = vpack.c.b16 %v714, %v714
  %v758 = vpack.c.b16 %v715, %v715
  %v759 = vpack.c.b16 %v716, %v716
  %v760 = vpack.c.b16 %v717, %v717
  %v761 = vpack.c.b16 %v718, %v718
  %v762 = vpack.c.b16 %v719, %v719
  %v763 = vpack.c.b16 %v720, %v720
  %v764 = vpack.c.b16 %v721, %v721
  %v765 = vpack.c.b16 %v722, %v722
  %v766 = vpack.c.b16 %v723, %v723
  %v767 = vpack.c.b16 %v724, %v724
  %v768 = vpack.c.b16 %v725, %v725
  %v769 = vpack.c.b16 %v726, %v726
  %v770 = vpack.c.b16 %v727, %v727
  %v771 = vpack.c.b16 %v728, %v728
  %v772 = vpack.c.b16 %v729, %v729
  %v773 = vpack.c.b16 %v730, %v730
  %v774 = vpack.c.b16 %v731, %v731
  %v775 = vpack.c.b16 %v732, %v732
  %v776 = vpack.c.b16 %v733, %v733
  %v777 = vpack.c.b16 %v734, %v734
  %v778 = vpack.c.b16 %v735, %v735
  %v779 = vpack.c.b16 %v736, %v736
  %vm823 = vcmask 125952
  %824 = vst.msk [vmem:[%s3] sm:$0xf] %vm823, %v737
  %825 = vst.msk [vmem:[%s3 + $0x4] sm:$0xf] %vm823, %v738
  %826 = vst.msk [vmem:[%s3 + $0x8] sm:$0xf] %vm823, %v739
  %827 = vst.msk [vmem:[%s3 + $0xc] sm:$0xf] %vm823, %v740
  %828 = vst.msk [vmem:[%s3 + $0x10] sm:$0xf] %vm823, %v741
  %829 = vst.msk [vmem:[%s3 + $0x14] sm:$0xf] %vm823, %v742
  %830 = vst.msk [vmem:[%s3 + $0x18] sm:$0xf] %vm823, %v743
  %831 = vst.msk [vmem:[%s3 + $0x1c] sm:$0xf] %vm823, %v744
  %832 = vst.msk [vmem:[%s3 + $0x20] sm:$0xf] %vm823, %v745
  %833 = vst.msk [vmem:[%s3 + $0x24] sm:$0xf] %vm823, %v746
  %834 = vst.msk [vmem:[%s3 + $0x28] sm:$0xf] %vm823, %v747
  %835 = vst.msk [vmem:[%s3 + $0x2c] sm:$0xf] %vm823, %v748
  %836 = vst.msk [vmem:[%s3 + $0x30] sm:$0xf] %vm823, %v749
  %837 = vst.msk [vmem:[%s3 + $0x34] sm:$0xf] %vm823, %v750
  %838 = vst.msk [vmem:[%s3 + $0x38] sm:$0xf] %vm823, %v751
  %839 = vst.msk [vmem:[%s3 + $0x3c] sm:$0xf] %vm823, %v752
  %840 = vst.msk [vmem:[%s3 + $0x40] sm:$0xf] %vm823, %v753
  %841 = vst.msk [vmem:[%s3 + $0x44] sm:$0xf] %vm823, %v754
  %842 = vst.msk [vmem:[%s3 + $0x48] sm:$0xf] %vm823, %v755
  %843 = vst.msk [vmem:[%s3 + $0x4c] sm:$0xf] %vm823, %v756
  %844 = vst.msk [vmem:[%s3 + $0x50] sm:$0xf] %vm823, %v757
  %845 = vst.msk [vmem:[%s3 + $0x54] sm:$0xf] %vm823, %v758
  %846 = vst.msk [vmem:[%s3 + $0x58] sm:$0xf] %vm823, %v759
  %847 = vst.msk [vmem:[%s3 + $0x5c] sm:$0xf] %vm823, %v760
  %848 = vst.msk [vmem:[%s3 + $0x60] sm:$0xf] %vm823, %v761
  %849 = vst.msk [vmem:[%s3 + $0x64] sm:$0xf] %vm823, %v762
  %850 = vst.msk [vmem:[%s3 + $0x68] sm:$0xf] %vm823, %v763
  %851 = vst.msk [vmem:[%s3 + $0x6c] sm:$0xf] %vm823, %v764
  %852 = vst.msk [vmem:[%s3 + $0x70] sm:$0xf] %vm823, %v765
  %853 = vst.msk [vmem:[%s3 + $0x74] sm:$0xf] %vm823, %v766
  %854 = vst.msk [vmem:[%s3 + $0x78] sm:$0xf] %vm823, %v767
  %855 = vst.msk [vmem:[%s3 + $0x7c] sm:$0xf] %vm823, %v768
  %856 = vst.msk [vmem:[%s3 + $0x80] sm:$0xf] %vm823, %v769
  %857 = vst.msk [vmem:[%s3 + $0x84] sm:$0xf] %vm823, %v770
  %858 = vst.msk [vmem:[%s3 + $0x88] sm:$0xf] %vm823, %v771
  %859 = vst.msk [vmem:[%s3 + $0x8c] sm:$0xf] %vm823, %v772
  %860 = vst.msk [vmem:[%s3 + $0x90] sm:$0xf] %vm823, %v773
  %861 = vst.msk [vmem:[%s3 + $0x94] sm:$0xf] %vm823, %v774
  %862 = vst.msk [vmem:[%s3 + $0x98] sm:$0xf] %vm823, %v775
  %863 = vst.msk [vmem:[%s3 + $0x9c] sm:$0xf] %vm823, %v776
  %864 = vst.msk [vmem:[%s3 + $0xa0] sm:$0xf] %vm823, %v777
  %865 = vst.msk [vmem:[%s3 + $0xa4] sm:$0xf] %vm823, %v778
  %vm866 = vcmask 122880
  %867 = vst.msk [vmem:[%s3 + $0xa8] sm:$0x1] %vm866, %v779
  // Predicated region
  $region14: #{_lambda_.7} parent=0 // pred_check
    _
  $region15: #{_lambda_.7} parent=0 // pred_check_branch
    %869 = sbr.rel (0) target = $region17
  $region16: #{_lambda_.7} parent=0 // pred_region
    _
  $region17: #{_lambda_.7} parent=0 // pred_fallthru
    _
  // Predicated region
  $region18: #{_lambda_.7} parent=0 // pred_check
    _
  $region19: #{_lambda_.7} parent=0 // pred_check_branch
    %871 = sbr.rel (0) target = $region21
  $region20: #{_lambda_.7} parent=0 // pred_region
    _
  $region21: #{_lambda_.7} parent=0 // pred_fallthru
    _

// kernel: _lambda_.8
$region0: #{_lambda_.8}
  #allocation0 [shape = 'u32[]', space=smem, size = 0x4, offset = 0x4, fixed_abs, tag = 'smem constant byte address 0x4 - core index']
  #allocation1 [shape = 'u32[144,128]{1,0:T(1,128)}', space=vmem, size = 0x12000, scoped, tag = 'internal scratch']
  %s0 = inlined_call_operand.vmem [shape: bf16[242,144], index: 0, kind: input, shape index: {}]
  %s1 = inlined_call_operand.vmem [shape: bf16[144,16], index: 1, kind: input, shape index: {}]
  %s2 = inlined_call_operand.vmem [shape: f32[1,16], index: 2, kind: input, shape index: {}]
  %s3 = inlined_call_operand.vmem [shape: bf16[242,16], index: 3, kind: output, shape index: {}]
  %s4 = sld [smem:[#allocation0]]
  $region22: #{_lambda_.8} parent=0
    _
  %s6 = ssub.s32 1, %s4
  %s7 = scalar_select 0, %s6, %s4
  // Predicated region
  $region2: #{_lambda_.8} parent=0 // pred_check
    _
  $region3: #{_lambda_.8} parent=0 // pred_check_branch
    %9 = sbr.rel (0) target = $region5
  $region4: #{_lambda_.8} parent=0 // pred_region
    _
  $region5: #{_lambda_.8} parent=0 // pred_fallthru
    _
  // Predicated region
  $region6: #{_lambda_.8} parent=0 // pred_check
    _
  $region7: #{_lambda_.8} parent=0 // pred_check_branch
    %11 = sbr.rel (0) target = $region9
  $region8: #{_lambda_.8} parent=0 // pred_region
    _
  $region9: #{_lambda_.8} parent=0 // pred_fallthru
    _
  // Predicated region
  $region10: #{_lambda_.8} parent=0 // pred_check
    _
  $region11: #{_lambda_.8} parent=0 // pred_check_branch
    %13 = sbr.rel (0) target = $region13
  $region12: #{_lambda_.8} parent=0 // pred_region
    _
  $region13: #{_lambda_.8} parent=0 // pred_fallthru
    _
  %v15 = vld [vmem:[%s0] sm:$0xff]
  %v16 = vld [vmem:[%s0 + $0x8] sm:$0xff]
  %v17 = vld [vmem:[%s0 + $0x10] sm:$0xff]
  %v18 = vld [vmem:[%s0 + $0x18] sm:$0xff]
  %v19 = vld [vmem:[%s0 + $0x20] sm:$0xff]
  %v20 = vld [vmem:[%s0 + $0x28] sm:$0xff]
  %v21 = vld [vmem:[%s0 + $0x30] sm:$0xff]
  %v22 = vld [vmem:[%s0 + $0x38] sm:$0xff]
  %v23 = vld [vmem:[%s0 + $0x40] sm:$0xff]
  %v24 = vld [vmem:[%s0 + $0x48] sm:$0xff]
  %v25 = vld [vmem:[%s0 + $0x50] sm:$0xff]
  %v26 = vld [vmem:[%s0 + $0x58] sm:$0xff]
  %v27 = vld [vmem:[%s0 + $0x60] sm:$0xff]
  %v28 = vld [vmem:[%s0 + $0x68] sm:$0xff]
  %v29 = vld [vmem:[%s0 + $0x70] sm:$0xff]
  %v30 = vld [vmem:[%s0 + $0x78] sm:$0xff]
  %v31 = vld [vmem:[%s0 + $0x80] sm:$0xff]
  %v32 = vld [vmem:[%s0 + $0x88] sm:$0xff]
  %v33 = vld [vmem:[%s0 + $0x90] sm:$0xff]
  %v34 = vld [vmem:[%s0 + $0x98] sm:$0xff]
  %v35 = vld [vmem:[%s0 + $0xa0] sm:$0xff]
  %v36 = vld [vmem:[%s0 + $0xa8] sm:$0xff]
  %v37 = vld [vmem:[%s0 + $0xb0] sm:$0xff]
  %v38 = vld [vmem:[%s0 + $0xb8] sm:$0xff]
  %v39 = vld [vmem:[%s0 + $0xc0] sm:$0xff]
  %v40 = vld [vmem:[%s0 + $0xc8] sm:$0xff]
  %v41 = vld [vmem:[%s0 + $0xd0] sm:$0xff]
  %v42 = vld [vmem:[%s0 + $0xd8] sm:$0xff]
  %v43 = vld [vmem:[%s0 + $0xe0] sm:$0xff]
  %v44 = vld [vmem:[%s0 + $0xe8] sm:$0xff]
  %v45 = vld [vmem:[%s0 + $0xf0] sm:$0x11]
  %v46 = vld [vmem:[%s1] sm:$0xf]
  %v47 = vld [vmem:[%s1 + $0x4] sm:$0xf]
  %v48 = vld [vmem:[%s1 + $0x8] sm:$0xf]
  %v49 = vld [vmem:[%s1 + $0xc] sm:$0xf]
  %v50 = vld [vmem:[%s1 + $0x10] sm:$0xf]
  %v51 = vld [vmem:[%s1 + $0x14] sm:$0xf]
  %v52 = vld [vmem:[%s1 + $0x18] sm:$0xf]
  %v53 = vld [vmem:[%s1 + $0x1c] sm:$0xf]
  %v54 = vld [vmem:[%s1 + $0x20] sm:$0xf]
  %v55 = vld [vmem:[%s1 + $0x24] sm:$0xf]
  %v56 = vld [vmem:[%s1 + $0x28] sm:$0xf]
  %v57 = vld [vmem:[%s1 + $0x2c] sm:$0xf]
  %v58 = vld [vmem:[%s1 + $0x30] sm:$0xf]
  %v59 = vld [vmem:[%s1 + $0x34] sm:$0xf]
  %v60 = vld [vmem:[%s1 + $0x38] sm:$0xf]
  %v61 = vld [vmem:[%s1 + $0x3c] sm:$0xf]
  %v62 = vld [vmem:[%s1 + $0x40] sm:$0xf]
  %v63 = vld [vmem:[%s1 + $0x44] sm:$0xf]
  %v64 = vld [vmem:[%s2] sm:$0x1]
  %v66 = vlaneseq
  %v67 = vshrl.u32 %v66, 7
  %v68 = vsub.s32 0, %v67
  %v69 = vrot.slane %v64, %v68
  %v102 = vunpack.c.l.b16 %v15
  %v103 = vunpack.c.h.b16 %v15
  %v104 = vunpack.c.l.b16 %v16
  %v105 = vunpack.c.h.b16 %v16
  %v106 = vunpack.c.l.b16 %v17
  %v107 = vunpack.c.h.b16 %v17
  %v108 = vunpack.c.l.b16 %v18
  %v109 = vunpack.c.h.b16 %v18
  %v110 = vunpack.c.l.b16 %v19
  %v111 = vunpack.c.h.b16 %v19
  %v112 = vunpack.c.l.b16 %v20
  %v113 = vunpack.c.h.b16 %v20
  %v114 = vunpack.c.l.b16 %v21
  %v115 = vunpack.c.h.b16 %v21
  %v116 = vunpack.c.l.b16 %v22
  %v117 = vunpack.c.h.b16 %v22
  %v118 = vunpack.c.l.b16 %v23
  %v119 = vunpack.c.h.b16 %v23
  %v120 = vunpack.c.l.b16 %v24
  %v121 = vunpack.c.h.b16 %v24
  %v122 = vunpack.c.l.b16 %v25
  %v123 = vunpack.c.h.b16 %v25
  %v124 = vunpack.c.l.b16 %v26
  %v125 = vunpack.c.h.b16 %v26
  %v126 = vunpack.c.l.b16 %v27
  %v127 = vunpack.c.h.b16 %v27
  %v128 = vunpack.c.l.b16 %v28
  %v129 = vunpack.c.h.b16 %v28
  %v130 = vunpack.c.l.b16 %v29
  %v131 = vunpack.c.h.b16 %v29
  %v132 = vunpack.c.l.b16 %v30
  %v133 = vunpack.c.h.b16 %v30
  %v134 = vunpack.c.l.b16 %v31
  %v135 = vunpack.c.h.b16 %v31
  %v136 = vunpack.c.l.b16 %v32
  %v137 = vunpack.c.h.b16 %v32
  %v138 = vunpack.c.l.b16 %v33
  %v139 = vunpack.c.h.b16 %v33
  %v140 = vunpack.c.l.b16 %v34
  %v141 = vunpack.c.h.b16 %v34
  %v142 = vunpack.c.l.b16 %v35
  %v143 = vunpack.c.h.b16 %v35
  %v144 = vunpack.c.l.b16 %v36
  %v145 = vunpack.c.h.b16 %v36
  %v146 = vunpack.c.l.b16 %v37
  %v147 = vunpack.c.h.b16 %v37
  %v148 = vunpack.c.l.b16 %v38
  %v149 = vunpack.c.h.b16 %v38
  %v150 = vunpack.c.l.b16 %v39
  %v151 = vunpack.c.h.b16 %v39
  %v152 = vunpack.c.l.b16 %v40
  %v153 = vunpack.c.h.b16 %v40
  %v154 = vunpack.c.l.b16 %v41
  %v155 = vunpack.c.h.b16 %v41
  %v156 = vunpack.c.l.b16 %v42
  %v157 = vunpack.c.h.b16 %v42
  %v158 = vunpack.c.l.b16 %v43
  %v159 = vunpack.c.h.b16 %v43
  %v160 = vunpack.c.l.b16 %v44
  %v161 = vunpack.c.h.b16 %v44
  %v162 = vunpack.c.l.b16 %v45
  %v163 = vunpack.c.h.b16 %v45
  %v164 = vpack.c.b16 %v104, %v102
  %v165 = vpack.c.b16 %v105, %v103
  %v166 = vpack.c.b16 %v108, %v106
  %v167 = vpack.c.b16 %v109, %v107
  %v168 = vpack.c.b16 %v112, %v110
  %v169 = vpack.c.b16 %v113, %v111
  %v170 = vpack.c.b16 %v116, %v114
  %v171 = vpack.c.b16 %v117, %v115
  %v172 = vpack.c.b16 %v120, %v118
  %v173 = vpack.c.b16 %v121, %v119
  %v174 = vpack.c.b16 %v124, %v122
  %v175 = vpack.c.b16 %v125, %v123
  %v176 = vpack.c.b16 %v128, %v126
  %v177 = vpack.c.b16 %v129, %v127
  %v178 = vpack.c.b16 %v132, %v130
  %v179 = vpack.c.b16 %v133, %v131
  %v180 = vpack.c.b16 %v136, %v134
  %v181 = vpack.c.b16 %v137, %v135
  %v182 = vpack.c.b16 %v140, %v138
  %v183 = vpack.c.b16 %v141, %v139
  %v184 = vpack.c.b16 %v144, %v142
  %v185 = vpack.c.b16 %v145, %v143
  %v186 = vpack.c.b16 %v148, %v146
  %v187 = vpack.c.b16 %v149, %v147
  %v188 = vpack.c.b16 %v152, %v150
  %v189 = vpack.c.b16 %v153, %v151
  %v190 = vpack.c.b16 %v156, %v154
  %v191 = vpack.c.b16 %v157, %v155
  %v192 = vpack.c.b16 %v160, %v158
  %v193 = vpack.c.b16 %v161, %v159
  %v194 = vpack.c.b16 %v162, %v162
  %v195 = vpack.c.b16 %v163, %v163
  %v230 = vunpack.c.l.b16 %v46
  %v231 = vunpack.c.l.b16 %v47
  %v232 = vunpack.c.l.b16 %v48
  %v233 = vunpack.c.l.b16 %v49
  %v234 = vunpack.c.l.b16 %v50
  %v235 = vunpack.c.l.b16 %v51
  %v236 = vunpack.c.l.b16 %v52
  %v237 = vunpack.c.l.b16 %v53
  %v238 = vunpack.c.l.b16 %v54
  %v239 = vunpack.c.l.b16 %v55
  %v240 = vunpack.c.l.b16 %v56
  %v241 = vunpack.c.l.b16 %v57
  %v242 = vunpack.c.l.b16 %v58
  %v243 = vunpack.c.l.b16 %v59
  %v244 = vunpack.c.l.b16 %v60
  %v245 = vunpack.c.l.b16 %v61
  %v246 = vunpack.c.l.b16 %v62
  %v247 = vunpack.c.l.b16 %v63
  %v248 = vpack.c.b16 %v231, %v230
  %v249 = vpack.c.b16 %v233, %v232
  %v250 = vpack.c.b16 %v235, %v234
  %v251 = vpack.c.b16 %v237, %v236
  %v252 = vpack.c.b16 %v239, %v238
  %v253 = vpack.c.b16 %v241, %v240
  %v254 = vpack.c.b16 %v243, %v242
  %v255 = vpack.c.b16 %v245, %v244
  %v256 = vpack.c.b16 %v247, %v246
  %vm266 = vcmask 130048
  %v268 = vsel %vm266, %v165, 0
  %v271 = vsel %vm266, %v167, 0
  %v274 = vsel %vm266, %v169, 0
  %v277 = vsel %vm266, %v171, 0
  %v280 = vsel %vm266, %v173, 0
  %v283 = vsel %vm266, %v175, 0
  %v286 = vsel %vm266, %v177, 0
  %v289 = vsel %vm266, %v179, 0
  %v292 = vsel %vm266, %v181, 0
  %v295 = vsel %vm266, %v183, 0
  %v298 = vsel %vm266, %v185, 0
  %v301 = vsel %vm266, %v187, 0
  %v304 = vsel %vm266, %v189, 0
  %v307 = vsel %vm266, %v191, 0
  %v310 = vsel %vm266, %v193, 0
  %v313 = vsel %vm266, %v195, 0
  %315 = vmatprep.subr.bf16.mxu0 0
  %316 = vmatpush1.bf16.msra.mxu0 %v255
  %317 = vmatprep.subr.bf16.mxu0 0
  %318 = vmatpush1.bf16.msra.mxu0 %v254
  %319 = vmatprep.subr.bf16.mxu0 0
  %320 = vmatpush1.bf16.msra.mxu0 %v253
  %321 = vmatprep.subr.bf16.mxu0 0
  %322 = vmatpush1.bf16.msra.mxu0 %v252
  %323 = vmatprep.subr.bf16.mxu0 0
  %324 = vmatpush1.bf16.msra.mxu0 %v251
  %325 = vmatprep.subr.bf16.mxu0 0
  %326 = vmatpush1.bf16.msra.mxu0 %v250
  %327 = vmatprep.subr.bf16.mxu0 0
  %328 = vmatpush1.bf16.msra.mxu0 %v249
  %329 = vmatprep.subr.bf16.mxu0 0
  %330 = vmatpush1.bf16.msra.mxu0 %v248
  %331 = vmatprep.subr.bf16.mxu0 0
  %332 = vmatpush2.bf16.msra.mxu0 0
  %333 = vmatprep.subr.bf16.mxu0 0
  %334 = vmatpush2.bf16.msra.mxu0 0
  %335 = vmatprep.subr.bf16.mxu0 0
  %336 = vmatpush2.bf16.msra.mxu0 0
  %337 = vmatprep.subr.bf16.mxu0 0
  %338 = vmatpush2.bf16.msra.mxu0 0
  %339 = vmatprep.subr.bf16.mxu0 0
  %340 = vmatpush2.bf16.msra.mxu0 0
  %341 = vmatprep.subr.bf16.mxu0 0
  %342 = vmatpush2.bf16.msra.mxu0 0
  %343 = vmatprep.subr.bf16.mxu0 0
  %344 = vmatpush2.bf16.msra.mxu0 0
  %345 = vmatprep.subr.bf16.mxu0 0
  %346 = vmatpush2.bf16.msra.mxu0 %v256
  %347 = vmatprep.mubr.bf16.mxu0 %v268
  %348 = vmatmul.mubr.bf16.gmra.mxu0 %v164
  %v349 = vpop.f32.mrf.mxu0
  %v350 = vadd.f32 %v69, %v349
  %v351 = vpop.f32.mrf.mxu0
  %v352 = vpop.f32.mrf.mxu0
  %v353 = vadd.f32 %v69, %v352
  %v354 = vpop.f32.mrf.mxu0
  %355 = vmatprep.mubr.bf16.mxu0 %v271
  %356 = vmatmul.mubr.bf16.gmra.mxu0 %v166
  %v357 = vpop.f32.mrf.mxu0
  %v358 = vadd.f32 %v69, %v357
  %v359 = vpop.f32.mrf.mxu0
  %v360 = vpop.f32.mrf.mxu0
  %v361 = vadd.f32 %v69, %v360
  %v362 = vpop.f32.mrf.mxu0
  %363 = vmatprep.mubr.bf16.mxu0 %v274
  %364 = vmatmul.mubr.bf16.gmra.mxu0 %v168
  %v365 = vpop.f32.mrf.mxu0
  %v366 = vadd.f32 %v69, %v365
  %v367 = vpop.f32.mrf.mxu0
  %v368 = vpop.f32.mrf.mxu0
  %v369 = vadd.f32 %v69, %v368
  %v370 = vpop.f32.mrf.mxu0
  %371 = vmatprep.mubr.bf16.mxu0 %v277
  %372 = vmatmul.mubr.bf16.gmra.mxu0 %v170
  %v373 = vpop.f32.mrf.mxu0
  %v374 = vadd.f32 %v69, %v373
  %v375 = vpop.f32.mrf.mxu0
  %v376 = vpop.f32.mrf.mxu0
  %v377 = vadd.f32 %v69, %v376
  %v378 = vpop.f32.mrf.mxu0
  %379 = vmatprep.mubr.bf16.mxu0 %v280
  %380 = vmatmul.mubr.bf16.gmra.mxu0 %v172
  %v381 = vpop.f32.mrf.mxu0
  %v382 = vadd.f32 %v69, %v381
  %v383 = vpop.f32.mrf.mxu0
  %v384 = vpop.f32.mrf.mxu0
  %v385 = vadd.f32 %v69, %v384
  %v386 = vpop.f32.mrf.mxu0
  %387 = vmatprep.mubr.bf16.mxu0 %v283
  %388 = vmatmul.mubr.bf16.gmra.mxu0 %v174
  %v389 = vpop.f32.mrf.mxu0
  %v390 = vadd.f32 %v69, %v389
  %v391 = vpop.f32.mrf.mxu0
  %v392 = vpop.f32.mrf.mxu0
  %v393 = vadd.f32 %v69, %v392
  %v394 = vpop.f32.mrf.mxu0
  %395 = vmatprep.mubr.bf16.mxu0 %v286
  %396 = vmatmul.mubr.bf16.gmra.mxu0 %v176
  %v397 = vpop.f32.mrf.mxu0
  %v398 = vadd.f32 %v69, %v397
  %v399 = vpop.f32.mrf.mxu0
  %v400 = vpop.f32.mrf.mxu0
  %v401 = vadd.f32 %v69, %v400
  %v402 = vpop.f32.mrf.mxu0
  %403 = vmatprep.mubr.bf16.mxu0 %v289
  %404 = vmatmul.mubr.bf16.gmra.mxu0 %v178
  %v405 = vpop.f32.mrf.mxu0
  %v406 = vadd.f32 %v69, %v405
  %v407 = vpop.f32.mrf.mxu0
  %v408 = vpop.f32.mrf.mxu0
  %v409 = vadd.f32 %v69, %v408
  %v410 = vpop.f32.mrf.mxu0
  %411 = vmatprep.mubr.bf16.mxu0 %v292
  %412 = vmatmul.mubr.bf16.gmra.mxu0 %v180
  %v413 = vpop.f32.mrf.mxu0
  %v414 = vadd.f32 %v69, %v413
  %v415 = vpop.f32.mrf.mxu0
  %v416 = vpop.f32.mrf.mxu0
  %v417 = vadd.f32 %v69, %v416
  %v418 = vpop.f32.mrf.mxu0
  %419 = vmatprep.mubr.bf16.mxu0 %v295
  %420 = vmatmul.mubr.bf16.gmra.mxu0 %v182
  %v421 = vpop.f32.mrf.mxu0
  %v422 = vadd.f32 %v69, %v421
  %v423 = vpop.f32.mrf.mxu0
  %v424 = vpop.f32.mrf.mxu0
  %v425 = vadd.f32 %v69, %v424
  %v426 = vpop.f32.mrf.mxu0
  %427 = vmatprep.mubr.bf16.mxu0 %v298
  %428 = vmatmul.mubr.bf16.gmra.mxu0 %v184
  %v429 = vpop.f32.mrf.mxu0
  %v430 = vadd.f32 %v69, %v429
  %v431 = vpop.f32.mrf.mxu0
  %v432 = vpop.f32.mrf.mxu0
  %v433 = vadd.f32 %v69, %v432
  %v434 = vpop.f32.mrf.mxu0
  %435 = vmatprep.mubr.bf16.mxu0 %v301
  %436 = vmatmul.mubr.bf16.gmra.mxu0 %v186
  %v437 = vpop.f32.mrf.mxu0
  %v438 = vadd.f32 %v69, %v437
  %v439 = vpop.f32.mrf.mxu0
  %v440 = vpop.f32.mrf.mxu0
  %v441 = vadd.f32 %v69, %v440
  %v442 = vpop.f32.mrf.mxu0
  %443 = vmatprep.mubr.bf16.mxu0 %v304
  %444 = vmatmul.mubr.bf16.gmra.mxu0 %v188
  %v445 = vpop.f32.mrf.mxu0
  %v446 = vadd.f32 %v69, %v445
  %v447 = vpop.f32.mrf.mxu0
  %v448 = vpop.f32.mrf.mxu0
  %v449 = vadd.f32 %v69, %v448
  %v450 = vpop.f32.mrf.mxu0
  %451 = vmatprep.mubr.bf16.mxu0 %v307
  %452 = vmatmul.mubr.bf16.gmra.mxu0 %v190
  %v453 = vpop.f32.mrf.mxu0
  %v454 = vadd.f32 %v69, %v453
  %v455 = vpop.f32.mrf.mxu0
  %v456 = vpop.f32.mrf.mxu0
  %v457 = vadd.f32 %v69, %v456
  %v458 = vpop.f32.mrf.mxu0
  %459 = vmatprep.mubr.bf16.mxu0 %v310
  %460 = vmatmul.mubr.bf16.gmra.mxu0 %v192
  %v461 = vpop.f32.mrf.mxu0
  %v462 = vadd.f32 %v69, %v461
  %v463 = vpop.f32.mrf.mxu0
  %v464 = vpop.f32.mrf.mxu0
  %v465 = vadd.f32 %v69, %v464
  %v466 = vpop.f32.mrf.mxu0
  %467 = vmatprep.mubr.bf16.mxu0 %v313
  %468 = vmatmul.mubr.bf16.gmra.mxu0 %v194
  %v469 = vpop.f32.mrf.mxu0
  %v470 = vadd.f32 %v69, %v469
  %v471 = vpop.f32.mrf.mxu0
  %v472 = vpop.f32.mrf.mxu0
  %v473 = vpop.f32.mrf.mxu0
  %474 = vdwg.mxu0
  %v475 = vmax.f32 %v350, 0.0
  %v476 = vmax.f32 %v353, 0.0
  %v477 = vmax.f32 %v358, 0.0
  %v478 = vmax.f32 %v361, 0.0
  %v479 = vmax.f32 %v366, 0.0
  %v480 = vmax.f32 %v369, 0.0
  %v481 = vmax.f32 %v374, 0.0
  %v482 = vmax.f32 %v377, 0.0
  %v483 = vmax.f32 %v382, 0.0
  %v484 = vmax.f32 %v385, 0.0
  %v485 = vmax.f32 %v390, 0.0
  %v486 = vmax.f32 %v393, 0.0
  %v487 = vmax.f32 %v398, 0.0
  %v488 = vmax.f32 %v401, 0.0
  %v489 = vmax.f32 %v406, 0.0
  %v490 = vmax.f32 %v409, 0.0
  %v491 = vmax.f32 %v414, 0.0
  %v492 = vmax.f32 %v417, 0.0
  %v493 = vmax.f32 %v422, 0.0
  %v494 = vmax.f32 %v425, 0.0
  %v495 = vmax.f32 %v430, 0.0
  %v496 = vmax.f32 %v433, 0.0
  %v497 = vmax.f32 %v438, 0.0
  %v498 = vmax.f32 %v441, 0.0
  %v499 = vmax.f32 %v446, 0.0
  %v500 = vmax.f32 %v449, 0.0
  %v501 = vmax.f32 %v454, 0.0
  %v502 = vmax.f32 %v457, 0.0
  %v503 = vmax.f32 %v462, 0.0
  %v504 = vmax.f32 %v465, 0.0
  %v505 = vmax.f32 %v470, 0.0
  %v506 = vpack.c.bf16 %v476, %v475
  %v507 = vpack.c.bf16 %v478, %v477
  %v508 = vpack.c.bf16 %v480, %v479
  %v509 = vpack.c.bf16 %v482, %v481
  %v510 = vpack.c.bf16 %v484, %v483
  %v511 = vpack.c.bf16 %v486, %v485
  %v512 = vpack.c.bf16 %v488, %v487
  %v513 = vpack.c.bf16 %v490, %v489
  %v514 = vpack.c.bf16 %v492, %v491
  %v515 = vpack.c.bf16 %v494, %v493
  %v516 = vpack.c.bf16 %v496, %v495
  %v517 = vpack.c.bf16 %v498, %v497
  %v518 = vpack.c.bf16 %v500, %v499
  %v519 = vpack.c.bf16 %v502, %v501
  %v520 = vpack.c.bf16 %v504, %v503
  %v521 = vpack.c.bf16 %v505, %v505
  %v538 = vunpack.c.l.b16 %v506
  %v539 = vunpack.c.h.b16 %v506
  %v540 = vunpack.c.l.b16 %v507
  %v541 = vunpack.c.h.b16 %v507
  %v542 = vunpack.c.l.b16 %v508
  %v543 = vunpack.c.h.b16 %v508
  %v544 = vunpack.c.l.b16 %v509
  %v545 = vunpack.c.h.b16 %v509
  %v546 = vunpack.c.l.b16 %v510
  %v547 = vunpack.c.h.b16 %v510
  %v548 = vunpack.c.l.b16 %v511
  %v549 = vunpack.c.h.b16 %v511
  %v550 = vunpack.c.l.b16 %v512
  %v551 = vunpack.c.h.b16 %v512
  %v552 = vunpack.c.l.b16 %v513
  %v553 = vunpack.c.h.b16 %v513
  %v554 = vunpack.c.l.b16 %v514
  %v555 = vunpack.c.h.b16 %v514
  %v556 = vunpack.c.l.b16 %v515
  %v557 = vunpack.c.h.b16 %v515
  %v558 = vunpack.c.l.b16 %v516
  %v559 = vunpack.c.h.b16 %v516
  %v560 = vunpack.c.l.b16 %v517
  %v561 = vunpack.c.h.b16 %v517
  %v562 = vunpack.c.l.b16 %v518
  %v563 = vunpack.c.h.b16 %v518
  %v564 = vunpack.c.l.b16 %v519
  %v565 = vunpack.c.h.b16 %v519
  %v566 = vunpack.c.l.b16 %v520
  %v567 = vunpack.c.h.b16 %v520
  %v568 = vunpack.c.l.b16 %v521
  %v569 = vpack.c.b16 %v538, %v538
  %v570 = vpack.c.b16 %v539, %v539
  %v571 = vpack.c.b16 %v540, %v540
  %v572 = vpack.c.b16 %v541, %v541
  %v573 = vpack.c.b16 %v542, %v542
  %v574 = vpack.c.b16 %v543, %v543
  %v575 = vpack.c.b16 %v544, %v544
  %v576 = vpack.c.b16 %v545, %v545
  %v577 = vpack.c.b16 %v546, %v546
  %v578 = vpack.c.b16 %v547, %v547
  %v579 = vpack.c.b16 %v548, %v548
  %v580 = vpack.c.b16 %v549, %v549
  %v581 = vpack.c.b16 %v550, %v550
  %v582 = vpack.c.b16 %v551, %v551
  %v583 = vpack.c.b16 %v552, %v552
  %v584 = vpack.c.b16 %v553, %v553
  %v585 = vpack.c.b16 %v554, %v554
  %v586 = vpack.c.b16 %v555, %v555
  %v587 = vpack.c.b16 %v556, %v556
  %v588 = vpack.c.b16 %v557, %v557
  %v589 = vpack.c.b16 %v558, %v558
  %v590 = vpack.c.b16 %v559, %v559
  %v591 = vpack.c.b16 %v560, %v560
  %v592 = vpack.c.b16 %v561, %v561
  %v593 = vpack.c.b16 %v562, %v562
  %v594 = vpack.c.b16 %v563, %v563
  %v595 = vpack.c.b16 %v564, %v564
  %v596 = vpack.c.b16 %v565, %v565
  %v597 = vpack.c.b16 %v566, %v566
  %v598 = vpack.c.b16 %v567, %v567
  %v599 = vpack.c.b16 %v568, %v568
  %vm631 = vcmask 125952
  %632 = vst.msk [vmem:[%s3] sm:$0xf] %vm631, %v569
  %633 = vst.msk [vmem:[%s3 + $0x4] sm:$0xf] %vm631, %v570
  %634 = vst.msk [vmem:[%s3 + $0x8] sm:$0xf] %vm631, %v571
  %635 = vst.msk [vmem:[%s3 + $0xc] sm:$0xf] %vm631, %v572
  %636 = vst.msk [vmem:[%s3 + $0x10] sm:$0xf] %vm631, %v573
  %637 = vst.msk [vmem:[%s3 + $0x14] sm:$0xf] %vm631, %v574
  %638 = vst.msk [vmem:[%s3 + $0x18] sm:$0xf] %vm631, %v575
  %639 = vst.msk [vmem:[%s3 + $0x1c] sm:$0xf] %vm631, %v576
  %640 = vst.msk [vmem:[%s3 + $0x20] sm:$0xf] %vm631, %v577
  %641 = vst.msk [vmem:[%s3 + $0x24] sm:$0xf] %vm631, %v578
  %642 = vst.msk [vmem:[%s3 + $0x28] sm:$0xf] %vm631, %v579
  %643 = vst.msk [vmem:[%s3 + $0x2c] sm:$0xf] %vm631, %v580
  %644 = vst.msk [vmem:[%s3 + $0x30] sm:$0xf] %vm631, %v581
  %645 = vst.msk [vmem:[%s3 + $0x34] sm:$0xf] %vm631, %v582
  %646 = vst.msk [vmem:[%s3 + $0x38] sm:$0xf] %vm631, %v583
  %647 = vst.msk [vmem:[%s3 + $0x3c] sm:$0xf] %vm631, %v584
  %648 = vst.msk [vmem:[%s3 + $0x40] sm:$0xf] %vm631, %v585
  %649 = vst.msk [vmem:[%s3 + $0x44] sm:$0xf] %vm631, %v586
  %650 = vst.msk [vmem:[%s3 + $0x48] sm:$0xf] %vm631, %v587
  %651 = vst.msk [vmem:[%s3 + $0x4c] sm:$0xf] %vm631, %v588
  %652 = vst.msk [vmem:[%s3 + $0x50] sm:$0xf] %vm631, %v589
  %653 = vst.msk [vmem:[%s3 + $0x54] sm:$0xf] %vm631, %v590
  %654 = vst.msk [vmem:[%s3 + $0x58] sm:$0xf] %vm631, %v591
  %655 = vst.msk [vmem:[%s3 + $0x5c] sm:$0xf] %vm631, %v592
  %656 = vst.msk [vmem:[%s3 + $0x60] sm:$0xf] %vm631, %v593
  %657 = vst.msk [vmem:[%s3 + $0x64] sm:$0xf] %vm631, %v594
  %658 = vst.msk [vmem:[%s3 + $0x68] sm:$0xf] %vm631, %v595
  %659 = vst.msk [vmem:[%s3 + $0x6c] sm:$0xf] %vm631, %v596
  %660 = vst.msk [vmem:[%s3 + $0x70] sm:$0xf] %vm631, %v597
  %661 = vst.msk [vmem:[%s3 + $0x74] sm:$0xf] %vm631, %v598
  %vm662 = vcmask 122880
  %663 = vst.msk [vmem:[%s3 + $0x78] sm:$0x1] %vm662, %v599
  // Predicated region
  $region14: #{_lambda_.8} parent=0 // pred_check
    _
  $region15: #{_lambda_.8} parent=0 // pred_check_branch
    %665 = sbr.rel (0) target = $region17
  $region16: #{_lambda_.8} parent=0 // pred_region
    _
  $region17: #{_lambda_.8} parent=0 // pred_fallthru
    _
  // Predicated region
  $region18: #{_lambda_.8} parent=0 // pred_check
    _
  $region19: #{_lambda_.8} parent=0 // pred_check_branch
    %667 = sbr.rel (0) target = $region21
  $region20: #{_lambda_.8} parent=0 // pred_region
    _
  $region21: #{_lambda_.8} parent=0 // pred_fallthru
    _

// kernel: _lambda_.9
$region0: #{_lambda_.9}
  #allocation0 [shape = 'u32[]', space=smem, size = 0x4, offset = 0x4, fixed_abs, tag = 'smem constant byte address 0x4 - core index']
  #allocation1 [shape = 'u32[144,128]{1,0:T(1,128)}', space=vmem, size = 0x12000, scoped, tag = 'internal scratch']
  %s0 = inlined_call_operand.vmem [shape: bf16[162,144], index: 0, kind: input, shape index: {}]
  %s1 = inlined_call_operand.vmem [shape: bf16[144,16], index: 1, kind: input, shape index: {}]
  %s2 = inlined_call_operand.vmem [shape: f32[1,16], index: 2, kind: input, shape index: {}]
  %s3 = inlined_call_operand.vmem [shape: bf16[162,16], index: 3, kind: output, shape index: {}]
  %s4 = sld [smem:[#allocation0]]
  $region22: #{_lambda_.9} parent=0
    _
  %s6 = ssub.s32 1, %s4
  %s7 = scalar_select 0, %s6, %s4
  // Predicated region
  $region2: #{_lambda_.9} parent=0 // pred_check
    _
  $region3: #{_lambda_.9} parent=0 // pred_check_branch
    %9 = sbr.rel (0) target = $region5
  $region4: #{_lambda_.9} parent=0 // pred_region
    _
  $region5: #{_lambda_.9} parent=0 // pred_fallthru
    _
  // Predicated region
  $region6: #{_lambda_.9} parent=0 // pred_check
    _
  $region7: #{_lambda_.9} parent=0 // pred_check_branch
    %11 = sbr.rel (0) target = $region9
  $region8: #{_lambda_.9} parent=0 // pred_region
    _
  $region9: #{_lambda_.9} parent=0 // pred_fallthru
    _
  // Predicated region
  $region10: #{_lambda_.9} parent=0 // pred_check
    _
  $region11: #{_lambda_.9} parent=0 // pred_check_branch
    %13 = sbr.rel (0) target = $region13
  $region12: #{_lambda_.9} parent=0 // pred_region
    _
  $region13: #{_lambda_.9} parent=0 // pred_fallthru
    _
  %v15 = vld [vmem:[%s0] sm:$0xff]
  %v16 = vld [vmem:[%s0 + $0x8] sm:$0xff]
  %v17 = vld [vmem:[%s0 + $0x10] sm:$0xff]
  %v18 = vld [vmem:[%s0 + $0x18] sm:$0xff]
  %v19 = vld [vmem:[%s0 + $0x20] sm:$0xff]
  %v20 = vld [vmem:[%s0 + $0x28] sm:$0xff]
  %v21 = vld [vmem:[%s0 + $0x30] sm:$0xff]
  %v22 = vld [vmem:[%s0 + $0x38] sm:$0xff]
  %v23 = vld [vmem:[%s0 + $0x40] sm:$0xff]
  %v24 = vld [vmem:[%s0 + $0x48] sm:$0xff]
  %v25 = vld [vmem:[%s0 + $0x50] sm:$0xff]
  %v26 = vld [vmem:[%s0 + $0x58] sm:$0xff]
  %v27 = vld [vmem:[%s0 + $0x60] sm:$0xff]
  %v28 = vld [vmem:[%s0 + $0x68] sm:$0xff]
  %v29 = vld [vmem:[%s0 + $0x70] sm:$0xff]
  %v30 = vld [vmem:[%s0 + $0x78] sm:$0xff]
  %v31 = vld [vmem:[%s0 + $0x80] sm:$0xff]
  %v32 = vld [vmem:[%s0 + $0x88] sm:$0xff]
  %v33 = vld [vmem:[%s0 + $0x90] sm:$0xff]
  %v34 = vld [vmem:[%s0 + $0x98] sm:$0xff]
  %v35 = vld [vmem:[%s0 + $0xa0] sm:$0x11]
  %v36 = vld [vmem:[%s1] sm:$0xf]
  %v37 = vld [vmem:[%s1 + $0x4] sm:$0xf]
  %v38 = vld [vmem:[%s1 + $0x8] sm:$0xf]
  %v39 = vld [vmem:[%s1 + $0xc] sm:$0xf]
  %v40 = vld [vmem:[%s1 + $0x10] sm:$0xf]
  %v41 = vld [vmem:[%s1 + $0x14] sm:$0xf]
  %v42 = vld [vmem:[%s1 + $0x18] sm:$0xf]
  %v43 = vld [vmem:[%s1 + $0x1c] sm:$0xf]
  %v44 = vld [vmem:[%s1 + $0x20] sm:$0xf]
  %v45 = vld [vmem:[%s1 + $0x24] sm:$0xf]
  %v46 = vld [vmem:[%s1 + $0x28] sm:$0xf]
  %v47 = vld [vmem:[%s1 + $0x2c] sm:$0xf]
  %v48 = vld [vmem:[%s1 + $0x30] sm:$0xf]
  %v49 = vld [vmem:[%s1 + $0x34] sm:$0xf]
  %v50 = vld [vmem:[%s1 + $0x38] sm:$0xf]
  %v51 = vld [vmem:[%s1 + $0x3c] sm:$0xf]
  %v52 = vld [vmem:[%s1 + $0x40] sm:$0xf]
  %v53 = vld [vmem:[%s1 + $0x44] sm:$0xf]
  %v54 = vld [vmem:[%s2] sm:$0x1]
  %v56 = vlaneseq
  %v57 = vshrl.u32 %v56, 7
  %v58 = vsub.s32 0, %v57
  %v59 = vrot.slane %v54, %v58
  %v82 = vunpack.c.l.b16 %v15
  %v83 = vunpack.c.h.b16 %v15
  %v84 = vunpack.c.l.b16 %v16
  %v85 = vunpack.c.h.b16 %v16
  %v86 = vunpack.c.l.b16 %v17
  %v87 = vunpack.c.h.b16 %v17
  %v88 = vunpack.c.l.b16 %v18
  %v89 = vunpack.c.h.b16 %v18
  %v90 = vunpack.c.l.b16 %v19
  %v91 = vunpack.c.h.b16 %v19
  %v92 = vunpack.c.l.b16 %v20
  %v93 = vunpack.c.h.b16 %v20
  %v94 = vunpack.c.l.b16 %v21
  %v95 = vunpack.c.h.b16 %v21
  %v96 = vunpack.c.l.b16 %v22
  %v97 = vunpack.c.h.b16 %v22
  %v98 = vunpack.c.l.b16 %v23
  %v99 = vunpack.c.h.b16 %v23
  %v100 = vunpack.c.l.b16 %v24
  %v101 = vunpack.c.h.b16 %v24
  %v102 = vunpack.c.l.b16 %v25
  %v103 = vunpack.c.h.b16 %v25
  %v104 = vunpack.c.l.b16 %v26
  %v105 = vunpack.c.h.b16 %v26
  %v106 = vunpack.c.l.b16 %v27
  %v107 = vunpack.c.h.b16 %v27
  %v108 = vunpack.c.l.b16 %v28
  %v109 = vunpack.c.h.b16 %v28
  %v110 = vunpack.c.l.b16 %v29
  %v111 = vunpack.c.h.b16 %v29
  %v112 = vunpack.c.l.b16 %v30
  %v113 = vunpack.c.h.b16 %v30
  %v114 = vunpack.c.l.b16 %v31
  %v115 = vunpack.c.h.b16 %v31
  %v116 = vunpack.c.l.b16 %v32
  %v117 = vunpack.c.h.b16 %v32
  %v118 = vunpack.c.l.b16 %v33
  %v119 = vunpack.c.h.b16 %v33
  %v120 = vunpack.c.l.b16 %v34
  %v121 = vunpack.c.h.b16 %v34
  %v122 = vunpack.c.l.b16 %v35
  %v123 = vunpack.c.h.b16 %v35
  %v124 = vpack.c.b16 %v84, %v82
  %v125 = vpack.c.b16 %v85, %v83
  %v126 = vpack.c.b16 %v88, %v86
  %v127 = vpack.c.b16 %v89, %v87
  %v128 = vpack.c.b16 %v92, %v90
  %v129 = vpack.c.b16 %v93, %v91
  %v130 = vpack.c.b16 %v96, %v94
  %v131 = vpack.c.b16 %v97, %v95
  %v132 = vpack.c.b16 %v100, %v98
  %v133 = vpack.c.b16 %v101, %v99
  %v134 = vpack.c.b16 %v104, %v102
  %v135 = vpack.c.b16 %v105, %v103
  %v136 = vpack.c.b16 %v108, %v106
  %v137 = vpack.c.b16 %v109, %v107
  %v138 = vpack.c.b16 %v112, %v110
  %v139 = vpack.c.b16 %v113, %v111
  %v140 = vpack.c.b16 %v116, %v114
  %v141 = vpack.c.b16 %v117, %v115
  %v142 = vpack.c.b16 %v120, %v118
  %v143 = vpack.c.b16 %v121, %v119
  %v144 = vpack.c.b16 %v122, %v122
  %v145 = vpack.c.b16 %v123, %v123
  %v175 = vunpack.c.l.b16 %v36
  %v176 = vunpack.c.l.b16 %v37
  %v177 = vunpack.c.l.b16 %v38
  %v178 = vunpack.c.l.b16 %v39
  %v179 = vunpack.c.l.b16 %v40
  %v180 = vunpack.c.l.b16 %v41
  %v181 = vunpack.c.l.b16 %v42
  %v182 = vunpack.c.l.b16 %v43
  %v183 = vunpack.c.l.b16 %v44
  %v184 = vunpack.c.l.b16 %v45
  %v185 = vunpack.c.l.b16 %v46
  %v186 = vunpack.c.l.b16 %v47
  %v187 = vunpack.c.l.b16 %v48
  %v188 = vunpack.c.l.b16 %v49
  %v189 = vunpack.c.l.b16 %v50
  %v190 = vunpack.c.l.b16 %v51
  %v191 = vunpack.c.l.b16 %v52
  %v192 = vunpack.c.l.b16 %v53
  %v193 = vpack.c.b16 %v176, %v175
  %v194 = vpack.c.b16 %v178, %v177
  %v195 = vpack.c.b16 %v180, %v179
  %v196 = vpack.c.b16 %v182, %v181
  %v197 = vpack.c.b16 %v184, %v183
  %v198 = vpack.c.b16 %v186, %v185
  %v199 = vpack.c.b16 %v188, %v187
  %v200 = vpack.c.b16 %v190, %v189
  %v201 = vpack.c.b16 %v192, %v191
  %vm211 = vcmask 130048
  %v213 = vsel %vm211, %v125, 0
  %v216 = vsel %vm211, %v127, 0
  %v219 = vsel %vm211, %v129, 0
  %v222 = vsel %vm211, %v131, 0
  %v225 = vsel %vm211, %v133, 0
  %v228 = vsel %vm211, %v135, 0
  %v231 = vsel %vm211, %v137, 0
  %v234 = vsel %vm211, %v139, 0
  %v237 = vsel %vm211, %v141, 0
  %v240 = vsel %vm211, %v143, 0
  %v243 = vsel %vm211, %v145, 0
  %245 = vmatprep.subr.bf16.mxu0 0
  %246 = vmatpush1.bf16.msra.mxu0 %v200
  %247 = vmatprep.subr.bf16.mxu0 0
  %248 = vmatpush1.bf16.msra.mxu0 %v199
  %249 = vmatprep.subr.bf16.mxu0 0
  %250 = vmatpush1.bf16.msra.mxu0 %v198
  %251 = vmatprep.subr.bf16.mxu0 0
  %252 = vmatpush1.bf16.msra.mxu0 %v197
  %253 = vmatprep.subr.bf16.mxu0 0
  %254 = vmatpush1.bf16.msra.mxu0 %v196
  %255 = vmatprep.subr.bf16.mxu0 0
  %256 = vmatpush1.bf16.msra.mxu0 %v195
  %257 = vmatprep.subr.bf16.mxu0 0
  %258 = vmatpush1.bf16.msra.mxu0 %v194
  %259 = vmatprep.subr.bf16.mxu0 0
  %260 = vmatpush1.bf16.msra.mxu0 %v193
  %261 = vmatprep.subr.bf16.mxu0 0
  %262 = vmatpush2.bf16.msra.mxu0 0
  %263 = vmatprep.subr.bf16.mxu0 0
  %264 = vmatpush2.bf16.msra.mxu0 0
  %265 = vmatprep.subr.bf16.mxu0 0
  %266 = vmatpush2.bf16.msra.mxu0 0
  %267 = vmatprep.subr.bf16.mxu0 0
  %268 = vmatpush2.bf16.msra.mxu0 0
  %269 = vmatprep.subr.bf16.mxu0 0
  %270 = vmatpush2.bf16.msra.mxu0 0
  %271 = vmatprep.subr.bf16.mxu0 0
  %272 = vmatpush2.bf16.msra.mxu0 0
  %273 = vmatprep.subr.bf16.mxu0 0
  %274 = vmatpush2.bf16.msra.mxu0 0
  %275 = vmatprep.subr.bf16.mxu0 0
  %276 = vmatpush2.bf16.msra.mxu0 %v201
  %277 = vmatprep.mubr.bf16.mxu0 %v213
  %278 = vmatmul.mubr.bf16.gmra.mxu0 %v124
  %v279 = vpop.f32.mrf.mxu0
  %v280 = vadd.f32 %v59, %v279
  %v281 = vpop.f32.mrf.mxu0
  %v282 = vpop.f32.mrf.mxu0
  %v283 = vadd.f32 %v59, %v282
  %v284 = vpop.f32.mrf.mxu0
  %285 = vmatprep.mubr.bf16.mxu0 %v216
  %286 = vmatmul.mubr.bf16.gmra.mxu0 %v126
  %v287 = vpop.f32.mrf.mxu0
  %v288 = vadd.f32 %v59, %v287
  %v289 = vpop.f32.mrf.mxu0
  %v290 = vpop.f32.mrf.mxu0
  %v291 = vadd.f32 %v59, %v290
  %v292 = vpop.f32.mrf.mxu0
  %293 = vmatprep.mubr.bf16.mxu0 %v219
  %294 = vmatmul.mubr.bf16.gmra.mxu0 %v128
  %v295 = vpop.f32.mrf.mxu0
  %v296 = vadd.f32 %v59, %v295
  %v297 = vpop.f32.mrf.mxu0
  %v298 = vpop.f32.mrf.mxu0
  %v299 = vadd.f32 %v59, %v298
  %v300 = vpop.f32.mrf.mxu0
  %301 = vmatprep.mubr.bf16.mxu0 %v222
  %302 = vmatmul.mubr.bf16.gmra.mxu0 %v130
  %v303 = vpop.f32.mrf.mxu0
  %v304 = vadd.f32 %v59, %v303
  %v305 = vpop.f32.mrf.mxu0
  %v306 = vpop.f32.mrf.mxu0
  %v307 = vadd.f32 %v59, %v306
  %v308 = vpop.f32.mrf.mxu0
  %309 = vmatprep.mubr.bf16.mxu0 %v225
  %310 = vmatmul.mubr.bf16.gmra.mxu0 %v132
  %v311 = vpop.f32.mrf.mxu0
  %v312 = vadd.f32 %v59, %v311
  %v313 = vpop.f32.mrf.mxu0
  %v314 = vpop.f32.mrf.mxu0
  %v315 = vadd.f32 %v59, %v314
  %v316 = vpop.f32.mrf.mxu0
  %317 = vmatprep.mubr.bf16.mxu0 %v228
  %318 = vmatmul.mubr.bf16.gmra.mxu0 %v134
  %v319 = vpop.f32.mrf.mxu0
  %v320 = vadd.f32 %v59, %v319
  %v321 = vpop.f32.mrf.mxu0
  %v322 = vpop.f32.mrf.mxu0
  %v323 = vadd.f32 %v59, %v322
  %v324 = vpop.f32.mrf.mxu0
  %325 = vmatprep.mubr.bf16.mxu0 %v231
  %326 = vmatmul.mubr.bf16.gmra.mxu0 %v136
  %v327 = vpop.f32.mrf.mxu0
  %v328 = vadd.f32 %v59, %v327
  %v329 = vpop.f32.mrf.mxu0
  %v330 = vpop.f32.mrf.mxu0
  %v331 = vadd.f32 %v59, %v330
  %v332 = vpop.f32.mrf.mxu0
  %333 = vmatprep.mubr.bf16.mxu0 %v234
  %334 = vmatmul.mubr.bf16.gmra.mxu0 %v138
  %v335 = vpop.f32.mrf.mxu0
  %v336 = vadd.f32 %v59, %v335
  %v337 = vpop.f32.mrf.mxu0
  %v338 = vpop.f32.mrf.mxu0
  %v339 = vadd.f32 %v59, %v338
  %v340 = vpop.f32.mrf.mxu0
  %341 = vmatprep.mubr.bf16.mxu0 %v237
  %342 = vmatmul.mubr.bf16.gmra.mxu0 %v140
  %v343 = vpop.f32.mrf.mxu0
  %v344 = vadd.f32 %v59, %v343
  %v345 = vpop.f32.mrf.mxu0
  %v346 = vpop.f32.mrf.mxu0
  %v347 = vadd.f32 %v59, %v346
  %v348 = vpop.f32.mrf.mxu0
  %349 = vmatprep.mubr.bf16.mxu0 %v240
  %350 = vmatmul.mubr.bf16.gmra.mxu0 %v142
  %v351 = vpop.f32.mrf.mxu0
  %v352 = vadd.f32 %v59, %v351
  %v353 = vpop.f32.mrf.mxu0
  %v354 = vpop.f32.mrf.mxu0
  %v355 = vadd.f32 %v59, %v354
  %v356 = vpop.f32.mrf.mxu0
  %357 = vmatprep.mubr.bf16.mxu0 %v243
  %358 = vmatmul.mubr.bf16.gmra.mxu0 %v144
  %v359 = vpop.f32.mrf.mxu0
  %v360 = vadd.f32 %v59, %v359
  %v361 = vpop.f32.mrf.mxu0
  %v362 = vpop.f32.mrf.mxu0
  %v363 = vpop.f32.mrf.mxu0
  %364 = vdwg.mxu0
  %v365 = vmax.f32 %v280, 0.0
  %v366 = vmax.f32 %v283, 0.0
  %v367 = vmax.f32 %v288, 0.0
  %v368 = vmax.f32 %v291, 0.0
  %v369 = vmax.f32 %v296, 0.0
  %v370 = vmax.f32 %v299, 0.0
  %v371 = vmax.f32 %v304, 0.0
  %v372 = vmax.f32 %v307, 0.0
  %v373 = vmax.f32 %v312, 0.0
  %v374 = vmax.f32 %v315, 0.0
  %v375 = vmax.f32 %v320, 0.0
  %v376 = vmax.f32 %v323, 0.0
  %v377 = vmax.f32 %v328, 0.0
  %v378 = vmax.f32 %v331, 0.0
  %v379 = vmax.f32 %v336, 0.0
  %v380 = vmax.f32 %v339, 0.0
  %v381 = vmax.f32 %v344, 0.0
  %v382 = vmax.f32 %v347, 0.0
  %v383 = vmax.f32 %v352, 0.0
  %v384 = vmax.f32 %v355, 0.0
  %v385 = vmax.f32 %v360, 0.0
  %v386 = vpack.c.bf16 %v366, %v365
  %v387 = vpack.c.bf16 %v368, %v367
  %v388 = vpack.c.bf16 %v370, %v369
  %v389 = vpack.c.bf16 %v372, %v371
  %v390 = vpack.c.bf16 %v374, %v373
  %v391 = vpack.c.bf16 %v376, %v375
  %v392 = vpack.c.bf16 %v378, %v377
  %v393 = vpack.c.bf16 %v380, %v379
  %v394 = vpack.c.bf16 %v382, %v381
  %v395 = vpack.c.bf16 %v384, %v383
  %v396 = vpack.c.bf16 %v385, %v385
  %v408 = vunpack.c.l.b16 %v386
  %v409 = vunpack.c.h.b16 %v386
  %v410 = vunpack.c.l.b16 %v387
  %v411 = vunpack.c.h.b16 %v387
  %v412 = vunpack.c.l.b16 %v388
  %v413 = vunpack.c.h.b16 %v388
  %v414 = vunpack.c.l.b16 %v389
  %v415 = vunpack.c.h.b16 %v389
  %v416 = vunpack.c.l.b16 %v390
  %v417 = vunpack.c.h.b16 %v390
  %v418 = vunpack.c.l.b16 %v391
  %v419 = vunpack.c.h.b16 %v391
  %v420 = vunpack.c.l.b16 %v392
  %v421 = vunpack.c.h.b16 %v392
  %v422 = vunpack.c.l.b16 %v393
  %v423 = vunpack.c.h.b16 %v393
  %v424 = vunpack.c.l.b16 %v394
  %v425 = vunpack.c.h.b16 %v394
  %v426 = vunpack.c.l.b16 %v395
  %v427 = vunpack.c.h.b16 %v395
  %v428 = vunpack.c.l.b16 %v396
  %v429 = vpack.c.b16 %v408, %v408
  %v430 = vpack.c.b16 %v409, %v409
  %v431 = vpack.c.b16 %v410, %v410
  %v432 = vpack.c.b16 %v411, %v411
  %v433 = vpack.c.b16 %v412, %v412
  %v434 = vpack.c.b16 %v413, %v413
  %v435 = vpack.c.b16 %v414, %v414
  %v436 = vpack.c.b16 %v415, %v415
  %v437 = vpack.c.b16 %v416, %v416
  %v438 = vpack.c.b16 %v417, %v417
  %v439 = vpack.c.b16 %v418, %v418
  %v440 = vpack.c.b16 %v419, %v419
  %v441 = vpack.c.b16 %v420, %v420
  %v442 = vpack.c.b16 %v421, %v421
  %v443 = vpack.c.b16 %v422, %v422
  %v444 = vpack.c.b16 %v423, %v423
  %v445 = vpack.c.b16 %v424, %v424
  %v446 = vpack.c.b16 %v425, %v425
  %v447 = vpack.c.b16 %v426, %v426
  %v448 = vpack.c.b16 %v427, %v427
  %v449 = vpack.c.b16 %v428, %v428
  %vm471 = vcmask 125952
  %472 = vst.msk [vmem:[%s3] sm:$0xf] %vm471, %v429
  %473 = vst.msk [vmem:[%s3 + $0x4] sm:$0xf] %vm471, %v430
  %474 = vst.msk [vmem:[%s3 + $0x8] sm:$0xf] %vm471, %v431
  %475 = vst.msk [vmem:[%s3 + $0xc] sm:$0xf] %vm471, %v432
  %476 = vst.msk [vmem:[%s3 + $0x10] sm:$0xf] %vm471, %v433
  %477 = vst.msk [vmem:[%s3 + $0x14] sm:$0xf] %vm471, %v434
  %478 = vst.msk [vmem:[%s3 + $0x18] sm:$0xf] %vm471, %v435
  %479 = vst.msk [vmem:[%s3 + $0x1c] sm:$0xf] %vm471, %v436
  %480 = vst.msk [vmem:[%s3 + $0x20] sm:$0xf] %vm471, %v437
  %481 = vst.msk [vmem:[%s3 + $0x24] sm:$0xf] %vm471, %v438
  %482 = vst.msk [vmem:[%s3 + $0x28] sm:$0xf] %vm471, %v439
  %483 = vst.msk [vmem:[%s3 + $0x2c] sm:$0xf] %vm471, %v440
  %484 = vst.msk [vmem:[%s3 + $0x30] sm:$0xf] %vm471, %v441
  %485 = vst.msk [vmem:[%s3 + $0x34] sm:$0xf] %vm471, %v442
  %486 = vst.msk [vmem:[%s3 + $0x38] sm:$0xf] %vm471, %v443
  %487 = vst.msk [vmem:[%s3 + $0x3c] sm:$0xf] %vm471, %v444
  %488 = vst.msk [vmem:[%s3 + $0x40] sm:$0xf] %vm471, %v445
  %489 = vst.msk [vmem:[%s3 + $0x44] sm:$0xf] %vm471, %v446
  %490 = vst.msk [vmem:[%s3 + $0x48] sm:$0xf] %vm471, %v447
  %491 = vst.msk [vmem:[%s3 + $0x4c] sm:$0xf] %vm471, %v448
  %vm492 = vcmask 122880
  %493 = vst.msk [vmem:[%s3 + $0x50] sm:$0x1] %vm492, %v449
  // Predicated region
  $region14: #{_lambda_.9} parent=0 // pred_check
    _
  $region15: #{_lambda_.9} parent=0 // pred_check_branch
    %495 = sbr.rel (0) target = $region17
  $region16: #{_lambda_.9} parent=0 // pred_region
    _
  $region17: #{_lambda_.9} parent=0 // pred_fallthru
    _
  // Predicated region
  $region18: #{_lambda_.9} parent=0 // pred_check
    _
  $region19: #{_lambda_.9} parent=0 // pred_check_branch
    %497 = sbr.rel (0) target = $region21
  $region20: #{_lambda_.9} parent=0 // pred_region
    _
  $region21: #{_lambda_.9} parent=0 // pred_fallthru
    _

// kernel: _lambda_.10
$region0: #{_lambda_.10}
  #allocation0 [shape = 'u32[]', space=smem, size = 0x4, offset = 0x4, fixed_abs, tag = 'smem constant byte address 0x4 - core index']
  #allocation1 [shape = 'u32[144,128]{1,0:T(1,128)}', space=vmem, size = 0x12000, scoped, tag = 'internal scratch']
  %s0 = inlined_call_operand.vmem [shape: bf16[2,1296], index: 0, kind: input, shape index: {}]
  %s1 = inlined_call_operand.vmem [shape: bf16[1296,32], index: 1, kind: input, shape index: {}]
  %s2 = inlined_call_operand.vmem [shape: f32[1,32], index: 2, kind: input, shape index: {}]
  %s3 = inlined_call_operand.vmem [shape: f32[1,32], index: 3, kind: input, shape index: {}]
  %s4 = inlined_call_operand.vmem [shape: f32[1,32], index: 4, kind: input, shape index: {}]
  %s5 = inlined_call_operand.vmem [shape: f32[2,32], index: 5, kind: output, shape index: {}]
  %s6 = sld [smem:[#allocation0]]
  $region30: #{_lambda_.10} parent=0
    _
  %s8 = ssub.s32 1, %s6
  %s9 = scalar_select 0, %s8, %s6
  // Predicated region
  $region2: #{_lambda_.10} parent=0 // pred_check
    _
  $region3: #{_lambda_.10} parent=0 // pred_check_branch
    %11 = sbr.rel (0) target = $region5
  $region4: #{_lambda_.10} parent=0 // pred_region
    _
  $region5: #{_lambda_.10} parent=0 // pred_fallthru
    _
  // Predicated region
  $region6: #{_lambda_.10} parent=0 // pred_check
    _
  $region7: #{_lambda_.10} parent=0 // pred_check_branch
    %13 = sbr.rel (0) target = $region9
  $region8: #{_lambda_.10} parent=0 // pred_region
    _
  $region9: #{_lambda_.10} parent=0 // pred_fallthru
    _
  // Predicated region
  $region10: #{_lambda_.10} parent=0 // pred_check
    _
  $region11: #{_lambda_.10} parent=0 // pred_check_branch
    %15 = sbr.rel (0) target = $region13
  $region12: #{_lambda_.10} parent=0 // pred_region
    _
  $region13: #{_lambda_.10} parent=0 // pred_fallthru
    _
  // Predicated region
  $region14: #{_lambda_.10} parent=0 // pred_check
    _
  $region15: #{_lambda_.10} parent=0 // pred_check_branch
    %17 = sbr.rel (0) target = $region17
  $region16: #{_lambda_.10} parent=0 // pred_region
    _
  $region17: #{_lambda_.10} parent=0 // pred_fallthru
    _
  // Predicated region
  $region18: #{_lambda_.10} parent=0 // pred_check
    _
  $region19: #{_lambda_.10} parent=0 // pred_check_branch
    %19 = sbr.rel (0) target = $region21
  $region20: #{_lambda_.10} parent=0 // pred_region
    _
  $region21: #{_lambda_.10} parent=0 // pred_fallthru
    _
  %v21 = vld [vmem:[%s0] sm:$0xff]
  %v22 = vld [vmem:[%s0 + $0x8] sm:$0x7]
  %v23 = vld [vmem:[%s1] sm:$0xf]
  %v24 = vld [vmem:[%s1 + $0x4] sm:$0xf]
  %v25 = vld [vmem:[%s1 + $0x8] sm:$0xf]
  %v26 = vld [vmem:[%s1 + $0xc] sm:$0xf]
  %v27 = vld [vmem:[%s1 + $0x10] sm:$0xf]
  %v28 = vld [vmem:[%s1 + $0x14] sm:$0xf]
  %v29 = vld [vmem:[%s1 + $0x18] sm:$0xf]
  %v30 = vld [vmem:[%s1 + $0x1c] sm:$0xf]
  %v31 = vld [vmem:[%s1 + $0x20] sm:$0xf]
  %v32 = vld [vmem:[%s1 + $0x24] sm:$0xf]
  %v33 = vld [vmem:[%s1 + $0x28] sm:$0xf]
  %v34 = vld [vmem:[%s1 + $0x2c] sm:$0xf]
  %v35 = vld [vmem:[%s1 + $0x30] sm:$0xf]
  %v36 = vld [vmem:[%s1 + $0x34] sm:$0xf]
  %v37 = vld [vmem:[%s1 + $0x38] sm:$0xf]
  %v38 = vld [vmem:[%s1 + $0x3c] sm:$0xf]
  %v39 = vld [vmem:[%s1 + $0x40] sm:$0xf]
  %v40 = vld [vmem:[%s1 + $0x44] sm:$0xf]
  %v41 = vld [vmem:[%s1 + $0x48] sm:$0xf]
  %v42 = vld [vmem:[%s1 + $0x4c] sm:$0xf]
  %v43 = vld [vmem:[%s1 + $0x50] sm:$0xf]
  %v44 = vld [vmem:[%s1 + $0x54] sm:$0xf]
  %v45 = vld [vmem:[%s1 + $0x58] sm:$0xf]
  %v46 = vld [vmem:[%s1 + $0x5c] sm:$0xf]
  %v47 = vld [vmem:[%s1 + $0x60] sm:$0xf]
  %v48 = vld [vmem:[%s1 + $0x64] sm:$0xf]
  %v49 = vld [vmem:[%s1 + $0x68] sm:$0xf]
  %v50 = vld [vmem:[%s1 + $0x6c] sm:$0xf]
  %v51 = vld [vmem:[%s1 + $0x70] sm:$0xf]
  %v52 = vld [vmem:[%s1 + $0x74] sm:$0xf]
  %v53 = vld [vmem:[%s1 + $0x78] sm:$0xf]
  %v54 = vld [vmem:[%s1 + $0x7c] sm:$0xf]
  %v55 = vld [vmem:[%s1 + $0x80] sm:$0xf]
  %v56 = vld [vmem:[%s1 + $0x84] sm:$0xf]
  %v57 = vld [vmem:[%s1 + $0x88] sm:$0xf]
  %v58 = vld [vmem:[%s1 + $0x8c] sm:$0xf]
  %v59 = vld [vmem:[%s1 + $0x90] sm:$0xf]
  %v60 = vld [vmem:[%s1 + $0x94] sm:$0xf]
  %v61 = vld [vmem:[%s1 + $0x98] sm:$0xf]
  %v62 = vld [vmem:[%s1 + $0x9c] sm:$0xf]
  %v63 = vld [vmem:[%s1 + $0xa0] sm:$0xf]
  %v64 = vld [vmem:[%s1 + $0xa4] sm:$0xf]
  %v65 = vld [vmem:[%s1 + $0xa8] sm:$0xf]
  %v66 = vld [vmem:[%s1 + $0xac] sm:$0xf]
  %v67 = vld [vmem:[%s1 + $0xb0] sm:$0xf]
  %v68 = vld [vmem:[%s1 + $0xb4] sm:$0xf]
  %v69 = vld [vmem:[%s1 + $0xb8] sm:$0xf]
  %v70 = vld [vmem:[%s1 + $0xbc] sm:$0xf]
  %v71 = vld [vmem:[%s1 + $0xc0] sm:$0xf]
  %v72 = vld [vmem:[%s1 + $0xc4] sm:$0xf]
  %v73 = vld [vmem:[%s1 + $0xc8] sm:$0xf]
  %v74 = vld [vmem:[%s1 + $0xcc] sm:$0xf]
  %v75 = vld [vmem:[%s1 + $0xd0] sm:$0xf]
  %v76 = vld [vmem:[%s1 + $0xd4] sm:$0xf]
  %v77 = vld [vmem:[%s1 + $0xd8] sm:$0xf]
  %v78 = vld [vmem:[%s1 + $0xdc] sm:$0xf]
  %v79 = vld [vmem:[%s1 + $0xe0] sm:$0xf]
  %v80 = vld [vmem:[%s1 + $0xe4] sm:$0xf]
  %v81 = vld [vmem:[%s1 + $0xe8] sm:$0xf]
  %v82 = vld [vmem:[%s1 + $0xec] sm:$0xf]
  %v83 = vld [vmem:[%s1 + $0xf0] sm:$0xf]
  %v84 = vld [vmem:[%s1 + $0xf4] sm:$0xf]
  %v85 = vld [vmem:[%s1 + $0xf8] sm:$0xf]
  %v86 = vld [vmem:[%s1 + $0xfc] sm:$0xf]
  %v87 = vld [vmem:[%s1 + $0x100] sm:$0xf]
  %v88 = vld [vmem:[%s1 + $0x104] sm:$0xf]
  %v89 = vld [vmem:[%s1 + $0x108] sm:$0xf]
  %v90 = vld [vmem:[%s1 + $0x10c] sm:$0xf]
  %v91 = vld [vmem:[%s1 + $0x110] sm:$0xf]
  %v92 = vld [vmem:[%s1 + $0x114] sm:$0xf]
  %v93 = vld [vmem:[%s1 + $0x118] sm:$0xf]
  %v94 = vld [vmem:[%s1 + $0x11c] sm:$0xf]
  %v95 = vld [vmem:[%s1 + $0x120] sm:$0xf]
  %v96 = vld [vmem:[%s1 + $0x124] sm:$0xf]
  %v97 = vld [vmem:[%s1 + $0x128] sm:$0xf]
  %v98 = vld [vmem:[%s1 + $0x12c] sm:$0xf]
  %v99 = vld [vmem:[%s1 + $0x130] sm:$0xf]
  %v100 = vld [vmem:[%s1 + $0x134] sm:$0xf]
  %v101 = vld [vmem:[%s1 + $0x138] sm:$0xf]
  %v102 = vld [vmem:[%s1 + $0x13c] sm:$0xf]
  %v103 = vld [vmem:[%s1 + $0x140] sm:$0xf]
  %v104 = vld [vmem:[%s1 + $0x144] sm:$0xf]
  %v105 = vld [vmem:[%s1 + $0x148] sm:$0xf]
  %v106 = vld [vmem:[%s1 + $0x14c] sm:$0xf]
  %v107 = vld [vmem:[%s1 + $0x150] sm:$0xf]
  %v108 = vld [vmem:[%s1 + $0x154] sm:$0xf]
  %v109 = vld [vmem:[%s1 + $0x158] sm:$0xf]
  %v110 = vld [vmem:[%s1 + $0x15c] sm:$0xf]
  %v111 = vld [vmem:[%s1 + $0x160] sm:$0xf]
  %v112 = vld [vmem:[%s1 + $0x164] sm:$0xf]
  %v113 = vld [vmem:[%s1 + $0x168] sm:$0xf]
  %v114 = vld [vmem:[%s1 + $0x16c] sm:$0xf]
  %v115 = vld [vmem:[%s1 + $0x170] sm:$0xf]
  %v116 = vld [vmem:[%s1 + $0x174] sm:$0xf]
  %v117 = vld [vmem:[%s1 + $0x178] sm:$0xf]
  %v118 = vld [vmem:[%s1 + $0x17c] sm:$0xf]
  %v119 = vld [vmem:[%s1 + $0x180] sm:$0xf]
  %v120 = vld [vmem:[%s1 + $0x184] sm:$0xf]
  %v121 = vld [vmem:[%s1 + $0x188] sm:$0xf]
  %v122 = vld [vmem:[%s1 + $0x18c] sm:$0xf]
  %v123 = vld [vmem:[%s1 + $0x190] sm:$0xf]
  %v124 = vld [vmem:[%s1 + $0x194] sm:$0xf]
  %v125 = vld [vmem:[%s1 + $0x198] sm:$0xf]
  %v126 = vld [vmem:[%s1 + $0x19c] sm:$0xf]
  %v127 = vld [vmem:[%s1 + $0x1a0] sm:$0xf]
  %v128 = vld [vmem:[%s1 + $0x1a4] sm:$0xf]
  %v129 = vld [vmem:[%s1 + $0x1a8] sm:$0xf]
  %v130 = vld [vmem:[%s1 + $0x1ac] sm:$0xf]
  %v131 = vld [vmem:[%s1 + $0x1b0] sm:$0xf]
  %v132 = vld [vmem:[%s1 + $0x1b4] sm:$0xf]
  %v133 = vld [vmem:[%s1 + $0x1b8] sm:$0xf]
  %v134 = vld [vmem:[%s1 + $0x1bc] sm:$0xf]
  %v135 = vld [vmem:[%s1 + $0x1c0] sm:$0xf]
  %v136 = vld [vmem:[%s1 + $0x1c4] sm:$0xf]
  %v137 = vld [vmem:[%s1 + $0x1c8] sm:$0xf]
  %v138 = vld [vmem:[%s1 + $0x1cc] sm:$0xf]
  %v139 = vld [vmem:[%s1 + $0x1d0] sm:$0xf]
  %v140 = vld [vmem:[%s1 + $0x1d4] sm:$0xf]
  %v141 = vld [vmem:[%s1 + $0x1d8] sm:$0xf]
  %v142 = vld [vmem:[%s1 + $0x1dc] sm:$0xf]
  %v143 = vld [vmem:[%s1 + $0x1e0] sm:$0xf]
  %v144 = vld [vmem:[%s1 + $0x1e4] sm:$0xf]
  %v145 = vld [vmem:[%s1 + $0x1e8] sm:$0xf]
  %v146 = vld [vmem:[%s1 + $0x1ec] sm:$0xf]
  %v147 = vld [vmem:[%s1 + $0x1f0] sm:$0xf]
  %v148 = vld [vmem:[%s1 + $0x1f4] sm:$0xf]
  %v149 = vld [vmem:[%s1 + $0x1f8] sm:$0xf]
  %v150 = vld [vmem:[%s1 + $0x1fc] sm:$0xf]
  %v151 = vld [vmem:[%s1 + $0x200] sm:$0xf]
  %v152 = vld [vmem:[%s1 + $0x204] sm:$0xf]
  %v153 = vld [vmem:[%s1 + $0x208] sm:$0xf]
  %v154 = vld [vmem:[%s1 + $0x20c] sm:$0xf]
  %v155 = vld [vmem:[%s1 + $0x210] sm:$0xf]
  %v156 = vld [vmem:[%s1 + $0x214] sm:$0xf]
  %v157 = vld [vmem:[%s1 + $0x218] sm:$0xf]
  %v158 = vld [vmem:[%s1 + $0x21c] sm:$0xf]
  %v159 = vld [vmem:[%s1 + $0x220] sm:$0xf]
  %v160 = vld [vmem:[%s1 + $0x224] sm:$0xf]
  %v161 = vld [vmem:[%s1 + $0x228] sm:$0xf]
  %v162 = vld [vmem:[%s1 + $0x22c] sm:$0xf]
  %v163 = vld [vmem:[%s1 + $0x230] sm:$0xf]
  %v164 = vld [vmem:[%s1 + $0x234] sm:$0xf]
  %v165 = vld [vmem:[%s1 + $0x238] sm:$0xf]
  %v166 = vld [vmem:[%s1 + $0x23c] sm:$0xf]
  %v167 = vld [vmem:[%s1 + $0x240] sm:$0xf]
  %v168 = vld [vmem:[%s1 + $0x244] sm:$0xf]
  %v169 = vld [vmem:[%s1 + $0x248] sm:$0xf]
  %v170 = vld [vmem:[%s1 + $0x24c] sm:$0xf]
  %v171 = vld [vmem:[%s1 + $0x250] sm:$0xf]
  %v172 = vld [vmem:[%s1 + $0x254] sm:$0xf]
  %v173 = vld [vmem:[%s1 + $0x258] sm:$0xf]
  %v174 = vld [vmem:[%s1 + $0x25c] sm:$0xf]
  %v175 = vld [vmem:[%s1 + $0x260] sm:$0xf]
  %v176 = vld [vmem:[%s1 + $0x264] sm:$0xf]
  %v177 = vld [vmem:[%s1 + $0x268] sm:$0xf]
  %v178 = vld [vmem:[%s1 + $0x26c] sm:$0xf]
  %v179 = vld [vmem:[%s1 + $0x270] sm:$0xf]
  %v180 = vld [vmem:[%s1 + $0x274] sm:$0xf]
  %v181 = vld [vmem:[%s1 + $0x278] sm:$0xf]
  %v182 = vld [vmem:[%s1 + $0x27c] sm:$0xf]
  %v183 = vld [vmem:[%s1 + $0x280] sm:$0xf]
  %v184 = vld [vmem:[%s1 + $0x284] sm:$0xf]
  %v185 = vld [vmem:[%s2] sm:$0x1]
  %v187 = vlaneseq
  %v188 = vshrl.u32 %v187, 7
  %v189 = vsub.s32 0, %v188
  %v190 = vrot.slane %v185, %v189
  %v194 = vcombine.high %v21, %v21
  %v196 = vunpack.c.l.s4 1966171168
  %v197 = vunpack.c.0.s8 %v196
  %v198 = vlaneseq
  %v199 = vshrl.u32 %v198, 7
  %v200 = vsub.s32 %v197, %v199
  %v201 = vrot.slane %v21, %v200
  %v203 = vunpack.c.l.s4 1966171168
  %v204 = vunpack.c.0.s8 %v203
  %v205 = vlaneseq
  %v206 = vshrl.u32 %v205, 7
  %v207 = vsub.s32 %v204, %v206
  %v208 = vrot.slane %v194, %v207
  %v209 = vcombine.high %v201, %v201
  %v210 = vcombine.high %v208, %v208
  %v212 = vunpack.c.l.s4 1966171168
  %v213 = vunpack.c.0.s8 %v212
  %v214 = vlaneseq
  %v215 = vshrl.u32 %v214, 7
  %v216 = vsub.s32 %v213, %v215
  %v217 = vrot.slane %v201, %v216
  %v219 = vunpack.c.l.s4 1966171168
  %v220 = vunpack.c.0.s8 %v219
  %v221 = vlaneseq
  %v222 = vshrl.u32 %v221, 7
  %v223 = vsub.s32 %v220, %v222
  %v224 = vrot.slane %v208, %v223
  %v226 = vunpack.c.l.s4 1966171168
  %v227 = vunpack.c.0.s8 %v226
  %v228 = vlaneseq
  %v229 = vshrl.u32 %v228, 7
  %v230 = vsub.s32 %v227, %v229
  %v231 = vrot.slane %v209, %v230
  %v233 = vunpack.c.l.s4 1966171168
  %v234 = vunpack.c.0.s8 %v233
  %v235 = vlaneseq
  %v236 = vshrl.u32 %v235, 7
  %v237 = vsub.s32 %v234, %v236
  %v238 = vrot.slane %v210, %v237
  %v239 = vcombine.high %v217, %v217
  %v240 = vcombine.high %v224, %v224
  %v241 = vcombine.high %v231, %v231
  %v242 = vcombine.high %v238, %v238
  %v244 = vunpack.c.l.s4 1966171168
  %v245 = vunpack.c.0.s8 %v244
  %v246 = vlaneseq
  %v247 = vshrl.u32 %v246, 7
  %v248 = vsub.s32 %v245, %v247
  %v249 = vrot.slane %v22, %v248
  %v250 = vcombine.high %v249, %v249
  %v252 = vunpack.c.l.s4 1966171168
  %v253 = vunpack.c.0.s8 %v252
  %v254 = vlaneseq
  %v255 = vshrl.u32 %v254, 7
  %v256 = vsub.s32 %v253, %v255
  %v257 = vrot.slane %v249, %v256
  %v259 = vunpack.c.l.s4 1966171168
  %v260 = vunpack.c.0.s8 %v259
  %v261 = vlaneseq
  %v262 = vshrl.u32 %v261, 7
  %v263 = vsub.s32 %v260, %v262
  %v264 = vrot.slane %v250, %v263
  %v265 = vcombine.high %v257, %v257
  %v438 = vunpack.c.l.b16 %v23
  %v439 = vunpack.c.l.b16 %v24
  %v440 = vunpack.c.l.b16 %v25
  %v441 = vunpack.c.l.b16 %v26
  %v442 = vunpack.c.l.b16 %v27
  %v443 = vunpack.c.l.b16 %v28
  %v444 = vunpack.c.l.b16 %v29
  %v445 = vunpack.c.l.b16 %v30
  %v446 = vunpack.c.l.b16 %v31
  %v447 = vunpack.c.l.b16 %v32
  %v448 = vunpack.c.l.b16 %v33
  %v449 = vunpack.c.l.b16 %v34
  %v450 = vunpack.c.l.b16 %v35
  %v451 = vunpack.c.l.b16 %v36
  %v452 = vunpack.c.l.b16 %v37
  %v453 = vunpack.c.l.b16 %v38
  %v454 = vunpack.c.l.b16 %v39
  %v455 = vunpack.c.l.b16 %v40
  %v456 = vunpack.c.l.b16 %v41
  %v457 = vunpack.c.l.b16 %v42
  %v458 = vunpack.c.l.b16 %v43
  %v459 = vunpack.c.l.b16 %v44
  %v460 = vunpack.c.l.b16 %v45
  %v461 = vunpack.c.l.b16 %v46
  %v462 = vunpack.c.l.b16 %v47
  %v463 = vunpack.c.l.b16 %v48
  %v464 = vunpack.c.l.b16 %v49
  %v465 = vunpack.c.l.b16 %v50
  %v466 = vunpack.c.l.b16 %v51
  %v467 = vunpack.c.l.b16 %v52
  %v468 = vunpack.c.l.b16 %v53
  %v469 = vunpack.c.l.b16 %v54
  %v470 = vunpack.c.l.b16 %v55
  %v471 = vunpack.c.l.b16 %v56
  %v472 = vunpack.c.l.b16 %v57
  %v473 = vunpack.c.l.b16 %v58
  %v474 = vunpack.c.l.b16 %v59
  %v475 = vunpack.c.l.b16 %v60
  %v476 = vunpack.c.l.b16 %v61
  %v477 = vunpack.c.l.b16 %v62
  %v478 = vunpack.c.l.b16 %v63
  %v479 = vunpack.c.l.b16 %v64
  %v480 = vunpack.c.l.b16 %v65
  %v481 = vunpack.c.l.b16 %v66
  %v482 = vunpack.c.l.b16 %v67
  %v483 = vunpack.c.l.b16 %v68
  %v484 = vunpack.c.l.b16 %v69
  %v485 = vunpack.c.l.b16 %v70
  %v486 = vunpack.c.l.b16 %v71
  %v487 = vunpack.c.l.b16 %v72
  %v488 = vunpack.c.l.b16 %v73
  %v489 = vunpack.c.l.b16 %v74
  %v490 = vunpack.c.l.b16 %v75
  %v491 = vunpack.c.l.b16 %v76
  %v492 = vunpack.c.l.b16 %v77
  %v493 = vunpack.c.l.b16 %v78
  %v494 = vunpack.c.l.b16 %v79
  %v495 = vunpack.c.l.b16 %v80
  %v496 = vunpack.c.l.b16 %v81
  %v497 = vunpack.c.l.b16 %v82
  %v498 = vunpack.c.l.b16 %v83
  %v499 = vunpack.c.l.b16 %v84
  %v500 = vunpack.c.l.b16 %v85
  %v501 = vunpack.c.l.b16 %v86
  %v502 = vunpack.c.l.b16 %v87
  %v503 = vunpack.c.l.b16 %v88
  %v504 = vunpack.c.l.b16 %v89
  %v505 = vunpack.c.l.b16 %v90
  %v506 = vunpack.c.l.b16 %v91
  %v507 = vunpack.c.l.b16 %v92
  %v508 = vunpack.c.l.b16 %v93
  %v509 = vunpack.c.l.b16 %v94
  %v510 = vunpack.c.l.b16 %v95
  %v511 = vunpack.c.l.b16 %v96
  %v512 = vunpack.c.l.b16 %v97
  %v513 = vunpack.c.l.b16 %v98
  %v514 = vunpack.c.l.b16 %v99
  %v515 = vunpack.c.l.b16 %v100
  %v516 = vunpack.c.l.b16 %v101
  %v517 = vunpack.c.l.b16 %v102
  %v518 = vunpack.c.l.b16 %v103
  %v519 = vunpack.c.l.b16 %v104
  %v520 = vunpack.c.l.b16 %v105
  %v521 = vunpack.c.l.b16 %v106
  %v522 = vunpack.c.l.b16 %v107
  %v523 = vunpack.c.l.b16 %v108
  %v524 = vunpack.c.l.b16 %v109
  %v525 = vunpack.c.l.b16 %v110
  %v526 = vunpack.c.l.b16 %v111
  %v527 = vunpack.c.l.b16 %v112
  %v528 = vunpack.c.l.b16 %v113
  %v529 = vunpack.c.l.b16 %v114
  %v530 = vunpack.c.l.b16 %v115
  %v531 = vunpack.c.l.b16 %v116
  %v532 = vunpack.c.l.b16 %v117
  %v533 = vunpack.c.l.b16 %v118
  %v534 = vunpack.c.l.b16 %v119
  %v535 = vunpack.c.l.b16 %v120
  %v536 = vunpack.c.l.b16 %v121
  %v537 = vunpack.c.l.b16 %v122
  %v538 = vunpack.c.l.b16 %v123
  %v539 = vunpack.c.l.b16 %v124
  %v540 = vunpack.c.l.b16 %v125
  %v541 = vunpack.c.l.b16 %v126
  %v542 = vunpack.c.l.b16 %v127
  %v543 = vunpack.c.l.b16 %v128
  %v544 = vunpack.c.l.b16 %v129
  %v545 = vunpack.c.l.b16 %v130
  %v546 = vunpack.c.l.b16 %v131
  %v547 = vunpack.c.l.b16 %v132
  %v548 = vunpack.c.l.b16 %v133
  %v549 = vunpack.c.l.b16 %v134
  %v550 = vunpack.c.l.b16 %v135
  %v551 = vunpack.c.l.b16 %v136
  %v552 = vunpack.c.l.b16 %v137
  %v553 = vunpack.c.l.b16 %v138
  %v554 = vunpack.c.l.b16 %v139
  %v555 = vunpack.c.l.b16 %v140
  %v556 = vunpack.c.l.b16 %v141
  %v557 = vunpack.c.l.b16 %v142
  %v558 = vunpack.c.l.b16 %v143
  %v559 = vunpack.c.l.b16 %v144
  %v560 = vunpack.c.l.b16 %v145
  %v561 = vunpack.c.l.b16 %v146
  %v562 = vunpack.c.l.b16 %v147
  %v563 = vunpack.c.l.b16 %v148
  %v564 = vunpack.c.l.b16 %v149
  %v565 = vunpack.c.l.b16 %v150
  %v566 = vunpack.c.l.b16 %v151
  %v567 = vunpack.c.l.b16 %v152
  %v568 = vunpack.c.l.b16 %v153
  %v569 = vunpack.c.l.b16 %v154
  %v570 = vunpack.c.l.b16 %v155
  %v571 = vunpack.c.l.b16 %v156
  %v572 = vunpack.c.l.b16 %v157
  %v573 = vunpack.c.l.b16 %v158
  %v574 = vunpack.c.l.b16 %v159
  %v575 = vunpack.c.l.b16 %v160
  %v576 = vunpack.c.l.b16 %v161
  %v577 = vunpack.c.l.b16 %v162
  %v578 = vunpack.c.l.b16 %v163
  %v579 = vunpack.c.l.b16 %v164
  %v580 = vunpack.c.l.b16 %v165
  %v581 = vunpack.c.l.b16 %v166
  %v582 = vunpack.c.l.b16 %v167
  %v583 = vunpack.c.l.b16 %v168
  %v584 = vunpack.c.l.b16 %v169
  %v585 = vunpack.c.l.b16 %v170
  %v586 = vunpack.c.l.b16 %v171
  %v587 = vunpack.c.l.b16 %v172
  %v588 = vunpack.c.l.b16 %v173
  %v589 = vunpack.c.l.b16 %v174
  %v590 = vunpack.c.l.b16 %v175
  %v591 = vunpack.c.l.b16 %v176
  %v592 = vunpack.c.l.b16 %v177
  %v593 = vunpack.c.l.b16 %v178
  %v594 = vunpack.c.l.b16 %v179
  %v595 = vunpack.c.l.b16 %v180
  %v596 = vunpack.c.l.b16 %v181
  %v597 = vunpack.c.l.b16 %v182
  %v598 = vunpack.c.l.b16 %v183
  %v599 = vunpack.c.l.b16 %v184
  %v600 = vpack.c.b16 %v439, %v438
  %v601 = vpack.c.b16 %v441, %v440
  %v602 = vpack.c.b16 %v443, %v442
  %v603 = vpack.c.b16 %v445, %v444
  %v604 = vpack.c.b16 %v447, %v446
  %v605 = vpack.c.b16 %v449, %v448
  %v606 = vpack.c.b16 %v451, %v450
  %v607 = vpack.c.b16 %v453, %v452
  %v608 = vpack.c.b16 %v455, %v454
  %v609 = vpack.c.b16 %v457, %v456
  %v610 = vpack.c.b16 %v459, %v458
  %v611 = vpack.c.b16 %v461, %v460
  %v612 = vpack.c.b16 %v463, %v462
  %v613 = vpack.c.b16 %v465, %v464
  %v614 = vpack.c.b16 %v467, %v466
  %v615 = vpack.c.b16 %v469, %v468
  %v616 = vpack.c.b16 %v471, %v470
  %v617 = vpack.c.b16 %v473, %v472
  %v618 = vpack.c.b16 %v475, %v474
  %v619 = vpack.c.b16 %v477, %v476
  %v620 = vpack.c.b16 %v479, %v478
  %v621 = vpack.c.b16 %v481, %v480
  %v622 = vpack.c.b16 %v483, %v482
  %v623 = vpack.c.b16 %v485, %v484
  %v624 = vpack.c.b16 %v487, %v486
  %v625 = vpack.c.b16 %v489, %v488
  %v626 = vpack.c.b16 %v491, %v490
  %v627 = vpack.c.b16 %v493, %v492
  %v628 = vpack.c.b16 %v495, %v494
  %v629 = vpack.c.b16 %v497, %v496
  %v630 = vpack.c.b16 %v499, %v498
  %v631 = vpack.c.b16 %v501, %v500
  %v632 = vpack.c.b16 %v503, %v502
  %v633 = vpack.c.b16 %v505, %v504
  %v634 = vpack.c.b16 %v507, %v506
  %v635 = vpack.c.b16 %v509, %v508
  %v636 = vpack.c.b16 %v511, %v510
  %v637 = vpack.c.b16 %v513, %v512
  %v638 = vpack.c.b16 %v515, %v514
  %v639 = vpack.c.b16 %v517, %v516
  %v640 = vpack.c.b16 %v519, %v518
  %v641 = vpack.c.b16 %v521, %v520
  %v642 = vpack.c.b16 %v523, %v522
  %v643 = vpack.c.b16 %v525, %v524
  %v644 = vpack.c.b16 %v527, %v526
  %v645 = vpack.c.b16 %v529, %v528
  %v646 = vpack.c.b16 %v531, %v530
  %v647 = vpack.c.b16 %v533, %v532
  %v648 = vpack.c.b16 %v535, %v534
  %v649 = vpack.c.b16 %v537, %v536
  %v650 = vpack.c.b16 %v539, %v538
  %v651 = vpack.c.b16 %v541, %v540
  %v652 = vpack.c.b16 %v543, %v542
  %v653 = vpack.c.b16 %v545, %v544
  %v654 = vpack.c.b16 %v547, %v546
  %v655 = vpack.c.b16 %v549, %v548
  %v656 = vpack.c.b16 %v551, %v550
  %v657 = vpack.c.b16 %v553, %v552
  %v658 = vpack.c.b16 %v555, %v554
  %v659 = vpack.c.b16 %v557, %v556
  %v660 = vpack.c.b16 %v559, %v558
  %v661 = vpack.c.b16 %v561, %v560
  %v662 = vpack.c.b16 %v563, %v562
  %v663 = vpack.c.b16 %v565, %v564
  %v664 = vpack.c.b16 %v567, %v566
  %v665 = vpack.c.b16 %v569, %v568
  %v666 = vpack.c.b16 %v571, %v570
  %v667 = vpack.c.b16 %v573, %v572
  %v668 = vpack.c.b16 %v575, %v574
  %v669 = vpack.c.b16 %v577, %v576
  %v670 = vpack.c.b16 %v579, %v578
  %v671 = vpack.c.b16 %v581, %v580
  %v672 = vpack.c.b16 %v583, %v582
  %v673 = vpack.c.b16 %v585, %v584
  %v674 = vpack.c.b16 %v587, %v586
  %v675 = vpack.c.b16 %v589, %v588
  %v676 = vpack.c.b16 %v591, %v590
  %v677 = vpack.c.b16 %v593, %v592
  %v678 = vpack.c.b16 %v595, %v594
  %v679 = vpack.c.b16 %v597, %v596
  %v680 = vpack.c.b16 %v599, %v598
  %vm762 = vcmask 130048
  %v764 = vsel %vm762, %v265, 0
  %766 = vmatprep.subr.bf16.mxu0 0
  %767 = vmatpush1.bf16.msra.mxu0 %v607
  %768 = vmatprep.subr.bf16.mxu0 0
  %769 = vmatpush1.bf16.msra.mxu0 %v606
  %770 = vmatprep.subr.bf16.mxu0 0
  %771 = vmatpush1.bf16.msra.mxu0 %v605
  %772 = vmatprep.subr.bf16.mxu0 0
  %773 = vmatpush1.bf16.msra.mxu0 %v604
  %774 = vmatprep.subr.bf16.mxu0 0
  %775 = vmatpush1.bf16.msra.mxu0 %v603
  %776 = vmatprep.subr.bf16.mxu0 0
  %777 = vmatpush1.bf16.msra.mxu0 %v602
  %778 = vmatprep.subr.bf16.mxu0 0
  %779 = vmatpush1.bf16.msra.mxu0 %v601
  %780 = vmatprep.subr.bf16.mxu0 0
  %781 = vmatpush1.bf16.msra.mxu0 %v600
  %782 = vmatprep.subr.bf16.mxu0 0
  %783 = vmatpush2.bf16.msra.mxu0 %v615
  %784 = vmatprep.subr.bf16.mxu0 0
  %785 = vmatpush2.bf16.msra.mxu0 %v614
  %786 = vmatprep.subr.bf16.mxu0 0
  %787 = vmatpush2.bf16.msra.mxu0 %v613
  %788 = vmatprep.subr.bf16.mxu0 0
  %789 = vmatpush2.bf16.msra.mxu0 %v612
  %790 = vmatprep.subr.bf16.mxu0 0
  %791 = vmatpush2.bf16.msra.mxu0 %v611
  %792 = vmatprep.subr.bf16.mxu0 0
  %793 = vmatpush2.bf16.msra.mxu0 %v610
  %794 = vmatprep.subr.bf16.mxu0 0
  %795 = vmatpush2.bf16.msra.mxu0 %v609
  %796 = vmatprep.subr.bf16.mxu0 0
  %797 = vmatpush2.bf16.msra.mxu0 %v608
  %798 = vmatprep.mubr.bf16.mxu0 %v231
  %799 = vmatmul.mubr.bf16.gmra.mxu0 %v217
  %v800 = vpop.f32.mrf.mxu0
  %v801 = vadd.f32 %v190, %v800
  %v802 = vpop.f32.mrf.mxu0
  %v803 = vpop.f32.mrf.mxu0
  %v804 = vpop.f32.mrf.mxu0
  %805 = vdwg.mxu0
  %806 = vmatprep.subr.bf16.mxu0 0
  %807 = vmatpush1.bf16.msra.mxu0 %v623
  %808 = vmatprep.subr.bf16.mxu0 0
  %809 = vmatpush1.bf16.msra.mxu0 %v622
  %810 = vmatprep.subr.bf16.mxu0 0
  %811 = vmatpush1.bf16.msra.mxu0 %v621
  %812 = vmatprep.subr.bf16.mxu0 0
  %813 = vmatpush1.bf16.msra.mxu0 %v620
  %814 = vmatprep.subr.bf16.mxu0 0
  %815 = vmatpush1.bf16.msra.mxu0 %v619
  %816 = vmatprep.subr.bf16.mxu0 0
  %817 = vmatpush1.bf16.msra.mxu0 %v618
  %818 = vmatprep.subr.bf16.mxu0 0
  %819 = vmatpush1.bf16.msra.mxu0 %v617
  %820 = vmatprep.subr.bf16.mxu0 0
  %821 = vmatpush1.bf16.msra.mxu0 %v616
  %822 = vmatprep.subr.bf16.mxu0 0
  %823 = vmatpush2.bf16.msra.mxu0 %v631
  %824 = vmatprep.subr.bf16.mxu0 0
  %825 = vmatpush2.bf16.msra.mxu0 %v630
  %826 = vmatprep.subr.bf16.mxu0 0
  %827 = vmatpush2.bf16.msra.mxu0 %v629
  %828 = vmatprep.subr.bf16.mxu0 0
  %829 = vmatpush2.bf16.msra.mxu0 %v628
  %830 = vmatprep.subr.bf16.mxu0 0
  %831 = vmatpush2.bf16.msra.mxu0 %v627
  %832 = vmatprep.subr.bf16.mxu0 0
  %833 = vmatpush2.bf16.msra.mxu0 %v626
  %834 = vmatprep.subr.bf16.mxu0 0
  %835 = vmatpush2.bf16.msra.mxu0 %v625
  %836 = vmatprep.subr.bf16.mxu0 0
  %837 = vmatpush2.bf16.msra.mxu0 %v624
  %838 = vmatprep.mubr.bf16.mxu0 %v241
  %839 = vmatmul.mubr.bf16.gmra.mxu0 %v239
  %v840 = vpop.f32.mrf.mxu0
  %v841 = vadd.f32 %v801, %v840
  %v842 = vpop.f32.mrf.mxu0
  %v843 = vpop.f32.mrf.mxu0
  %v844 = vpop.f32.mrf.mxu0
  %845 = vdwg.mxu0
  %846 = vmatprep.subr.bf16.mxu0 0
  %847 = vmatpush1.bf16.msra.mxu0 %v639
  %848 = vmatprep.subr.bf16.mxu0 0
  %849 = vmatpush1.bf16.msra.mxu0 %v638
  %850 = vmatprep.subr.bf16.mxu0 0
  %851 = vmatpush1.bf16.msra.mxu0 %v637
  %852 = vmatprep.subr.bf16.mxu0 0
  %853 = vmatpush1.bf16.msra.mxu0 %v636
  %854 = vmatprep.subr.bf16.mxu0 0
  %855 = vmatpush1.bf16.msra.mxu0 %v635
  %856 = vmatprep.subr.bf16.mxu0 0
  %857 = vmatpush1.bf16.msra.mxu0 %v634
  %858 = vmatprep.subr.bf16.mxu0 0
  %859 = vmatpush1.bf16.msra.mxu0 %v633
  %860 = vmatprep.subr.bf16.mxu0 0
  %861 = vmatpush1.bf16.msra.mxu0 %v632
  %862 = vmatprep.subr.bf16.mxu0 0
  %863 = vmatpush2.bf16.msra.mxu0 %v647
  %864 = vmatprep.subr.bf16.mxu0 0
  %865 = vmatpush2.bf16.msra.mxu0 %v646
  %866 = vmatprep.subr.bf16.mxu0 0
  %867 = vmatpush2.bf16.msra.mxu0 %v645
  %868 = vmatprep.subr.bf16.mxu0 0
  %869 = vmatpush2.bf16.msra.mxu0 %v644
  %870 = vmatprep.subr.bf16.mxu0 0
  %871 = vmatpush2.bf16.msra.mxu0 %v643
  %872 = vmatprep.subr.bf16.mxu0 0
  %873 = vmatpush2.bf16.msra.mxu0 %v642
  %874 = vmatprep.subr.bf16.mxu0 0
  %875 = vmatpush2.bf16.msra.mxu0 %v641
  %876 = vmatprep.subr.bf16.mxu0 0
  %877 = vmatpush2.bf16.msra.mxu0 %v640
  %878 = vmatprep.mubr.bf16.mxu0 %v238
  %879 = vmatmul.mubr.bf16.gmra.mxu0 %v224
  %v880 = vpop.f32.mrf.mxu0
  %v881 = vadd.f32 %v841, %v880
  %v882 = vpop.f32.mrf.mxu0
  %v883 = vpop.f32.mrf.mxu0
  %v884 = vpop.f32.mrf.mxu0
  %885 = vdwg.mxu0
  %886 = vmatprep.subr.bf16.mxu0 0
  %887 = vmatpush1.bf16.msra.mxu0 %v655
  %888 = vmatprep.subr.bf16.mxu0 0
  %889 = vmatpush1.bf16.msra.mxu0 %v654
  %890 = vmatprep.subr.bf16.mxu0 0
  %891 = vmatpush1.bf16.msra.mxu0 %v653
  %892 = vmatprep.subr.bf16.mxu0 0
  %893 = vmatpush1.bf16.msra.mxu0 %v652
  %894 = vmatprep.subr.bf16.mxu0 0
  %895 = vmatpush1.bf16.msra.mxu0 %v651
  %896 = vmatprep.subr.bf16.mxu0 0
  %897 = vmatpush1.bf16.msra.mxu0 %v650
  %898 = vmatprep.subr.bf16.mxu0 0
  %899 = vmatpush1.bf16.msra.mxu0 %v649
  %900 = vmatprep.subr.bf16.mxu0 0
  %901 = vmatpush1.bf16.msra.mxu0 %v648
  %902 = vmatprep.subr.bf16.mxu0 0
  %903 = vmatpush2.bf16.msra.mxu0 %v663
  %904 = vmatprep.subr.bf16.mxu0 0
  %905 = vmatpush2.bf16.msra.mxu0 %v662
  %906 = vmatprep.subr.bf16.mxu0 0
  %907 = vmatpush2.bf16.msra.mxu0 %v661
  %908 = vmatprep.subr.bf16.mxu0 0
  %909 = vmatpush2.bf16.msra.mxu0 %v660
  %910 = vmatprep.subr.bf16.mxu0 0
  %911 = vmatpush2.bf16.msra.mxu0 %v659
  %912 = vmatprep.subr.bf16.mxu0 0
  %913 = vmatpush2.bf16.msra.mxu0 %v658
  %914 = vmatprep.subr.bf16.mxu0 0
  %915 = vmatpush2.bf16.msra.mxu0 %v657
  %916 = vmatprep.subr.bf16.mxu0 0
  %917 = vmatpush2.bf16.msra.mxu0 %v656
  %918 = vmatprep.mubr.bf16.mxu0 %v242
  %919 = vmatmul.mubr.bf16.gmra.mxu0 %v240
  %v920 = vpop.f32.mrf.mxu0
  %v921 = vadd.f32 %v881, %v920
  %v922 = vpop.f32.mrf.mxu0
  %v923 = vpop.f32.mrf.mxu0
  %v924 = vpop.f32.mrf.mxu0
  %925 = vdwg.mxu0
  %926 = vmatprep.subr.bf16.mxu0 0
  %927 = vmatpush1.bf16.msra.mxu0 %v671
  %928 = vmatprep.subr.bf16.mxu0 0
  %929 = vmatpush1.bf16.msra.mxu0 %v670
  %930 = vmatprep.subr.bf16.mxu0 0
  %931 = vmatpush1.bf16.msra.mxu0 %v669
  %932 = vmatprep.subr.bf16.mxu0 0
  %933 = vmatpush1.bf16.msra.mxu0 %v668
  %934 = vmatprep.subr.bf16.mxu0 0
  %935 = vmatpush1.bf16.msra.mxu0 %v667
  %936 = vmatprep.subr.bf16.mxu0 0
  %937 = vmatpush1.bf16.msra.mxu0 %v666
  %938 = vmatprep.subr.bf16.mxu0 0
  %939 = vmatpush1.bf16.msra.mxu0 %v665
  %940 = vmatprep.subr.bf16.mxu0 0
  %941 = vmatpush1.bf16.msra.mxu0 %v664
  %942 = vmatprep.subr.bf16.mxu0 0
  %943 = vmatpush2.bf16.msra.mxu0 %v679
  %944 = vmatprep.subr.bf16.mxu0 0
  %945 = vmatpush2.bf16.msra.mxu0 %v678
  %946 = vmatprep.subr.bf16.mxu0 0
  %947 = vmatpush2.bf16.msra.mxu0 %v677
  %948 = vmatprep.subr.bf16.mxu0 0
  %949 = vmatpush2.bf16.msra.mxu0 %v676
  %950 = vmatprep.subr.bf16.mxu0 0
  %951 = vmatpush2.bf16.msra.mxu0 %v675
  %952 = vmatprep.subr.bf16.mxu0 0
  %953 = vmatpush2.bf16.msra.mxu0 %v674
  %954 = vmatprep.subr.bf16.mxu0 0
  %955 = vmatpush2.bf16.msra.mxu0 %v673
  %956 = vmatprep.subr.bf16.mxu0 0
  %957 = vmatpush2.bf16.msra.mxu0 %v672
  %958 = vmatprep.mubr.bf16.mxu0 %v264
  %959 = vmatmul.mubr.bf16.gmra.mxu0 %v257
  %v960 = vpop.f32.mrf.mxu0
  %v961 = vadd.f32 %v921, %v960
  %v962 = vpop.f32.mrf.mxu0
  %v963 = vpop.f32.mrf.mxu0
  %v964 = vpop.f32.mrf.mxu0
  %965 = vdwg.mxu0
  %966 = vmatprep.subr.bf16.mxu0 0
  %967 = vmatpush1.bf16.msra.mxu0 0
  %968 = vmatprep.subr.bf16.mxu0 0
  %969 = vmatpush1.bf16.msra.mxu0 0
  %970 = vmatprep.subr.bf16.mxu0 0
  %971 = vmatpush1.bf16.msra.mxu0 0
  %972 = vmatprep.subr.bf16.mxu0 0
  %973 = vmatpush1.bf16.msra.mxu0 0
  %974 = vmatprep.subr.bf16.mxu0 0
  %975 = vmatpush1.bf16.msra.mxu0 0
  %976 = vmatprep.subr.bf16.mxu0 0
  %977 = vmatpush1.bf16.msra.mxu0 0
  %978 = vmatprep.subr.bf16.mxu0 0
  %979 = vmatpush1.bf16.msra.mxu0 0
  %980 = vmatprep.subr.bf16.mxu0 0
  %981 = vmatpush1.bf16.msra.mxu0 %v680
  %982 = vmatprep.subr.bf16.mxu0 0
  %983 = vmatpush2.bf16.msra.mxu0 0
  %984 = vmatprep.subr.bf16.mxu0 0
  %985 = vmatpush2.bf16.msra.mxu0 0
  %986 = vmatprep.subr.bf16.mxu0 0
  %987 = vmatpush2.bf16.msra.mxu0 0
  %988 = vmatprep.subr.bf16.mxu0 0
  %989 = vmatpush2.bf16.msra.mxu0 0
  %990 = vmatprep.subr.bf16.mxu0 0
  %991 = vmatpush2.bf16.msra.mxu0 0
  %992 = vmatprep.subr.bf16.mxu0 0
  %993 = vmatpush2.bf16.msra.mxu0 0
  %994 = vmatprep.subr.bf16.mxu0 0
  %995 = vmatpush2.bf16.msra.mxu0 0
  %996 = vmatprep.subr.bf16.mxu0 0
  %997 = vmatpush2.bf16.msra.mxu0 0
  %998 = vmatprep.mubr.bf16.mxu0 0
  %999 = vmatmul.mubr.bf16.gmra.mxu0 %v764
  %v1000 = vpop.f32.mrf.mxu0
  %v1001 = vadd.f32 %v961, %v1000
  %v1002 = vpop.f32.mrf.mxu0
  %v1003 = vpop.f32.mrf.mxu0
  %v1004 = vpop.f32.mrf.mxu0
  %1005 = vdwg.mxu0
  %vm1006 = vcmask 254976
  %v1007 = vsel %vm1006, %v1001, 0.0
  %1008 = vadd.xlane.f32.xlu0 %v1007
  %v1009 = vpop.xlane.xlu0 %1008
  %v1010 = vrcp.pop 32.0
  %v1011 = vmul.f32 %v1009, %v1010
  %v1012 = vsub.f32 %v1001, %v1011
  %v1013 = vmul.f32 %v1012, %v1012
  %v1014 = vsel %vm1006, %v1013, 0.0
  %1015 = vadd.xlane.f32.xlu0 %v1014
  %v1016 = vpop.xlane.xlu0 %1015
  %v1017 = vmul.f32 %v1016, %v1010
  %v1018 = vadd.f32 %v1017, 1e-05
  %v1019 = vrsqrt.pop %v1018
  %v1020 = vmul.f32 %v1012, %v1019
  %v1021 = vld [vmem:[%s3] sm:$0x1]
  %v1023 = vlaneseq
  %v1024 = vshrl.u32 %v1023, 7
  %v1025 = vsub.s32 0, %v1024
  %v1026 = vrot.slane %v1021, %v1025
  %v1028 = vmul.f32 %v1020, %v1026
  %v1029 = vld [vmem:[%s4] sm:$0x1]
  %v1031 = vlaneseq
  %v1032 = vshrl.u32 %v1031, 7
  %v1033 = vsub.s32 0, %v1032
  %v1034 = vrot.slane %v1029, %v1033
  %v1036 = vadd.f32 %v1028, %v1034
  %v1037 = vtanh.pop %v1036
  %1038 = vst.msk [vmem:[%s5] sm:$0x3] %vm1006, %v1037
  // Predicated region
  $region22: #{_lambda_.10} parent=0 // pred_check
    _
  $region23: #{_lambda_.10} parent=0 // pred_check_branch
    %1040 = sbr.rel (0) target = $region25
  $region24: #{_lambda_.10} parent=0 // pred_region
    _
  $region25: #{_lambda_.10} parent=0 // pred_fallthru
    _
  // Predicated region
  $region26: #{_lambda_.10} parent=0 // pred_check
    _
  $region27: #{_lambda_.10} parent=0 // pred_check_branch
    %1042 = sbr.rel (0) target = $region29
  $region28: #{_lambda_.10} parent=0 // pred_region
    _
  $region29: #{_lambda_.10} parent=0 // pred_fallthru
    _

// kernel: _lambda_.11
$region0: #{_lambda_.11}
  #allocation0 [shape = 'u32[]', space=smem, size = 0x4, offset = 0x4, fixed_abs, tag = 'smem constant byte address 0x4 - core index']
  #allocation1 [shape = 'u32[144,128]{1,0:T(1,128)}', space=vmem, size = 0x12000, scoped, tag = 'internal scratch']
  %s0 = inlined_call_operand.vmem [shape: bf16[2,36], index: 0, kind: input, shape index: {}]
  %s1 = inlined_call_operand.vmem [shape: bf16[2,36,1024], index: 1, kind: input, shape index: {}]
  %s2 = inlined_call_operand.vmem [shape: f32[2,1,1024], index: 2, kind: input, shape index: {}]
  %s3 = inlined_call_operand.vmem [shape: bf16[2,1024,1024], index: 3, kind: input, shape index: {}]
  %s4 = inlined_call_operand.vmem [shape: f32[2,1,1024], index: 4, kind: input, shape index: {}]
  %s5 = inlined_call_operand.vmem [shape: bf16[2,1024,1], index: 5, kind: input, shape index: {}]
  %s6 = inlined_call_operand.vmem [shape: f32[2,1,1], index: 6, kind: input, shape index: {}]
  %s7 = inlined_call_operand.vmem [shape: f32[2,2,1], index: 7, kind: output, shape index: {}]
  %s8 = sld [smem:[#allocation0]]
  $region61: #{_lambda_.11} parent=0
    _
  %s10 = ssub.s32 1, %s8
  %s11 = scalar_select 0, %s10, %s8
  loop: start=0, step=1, limit=4
  $region2: #{_lambda_.11} parent=0 // loop_pre_header
    _
  $region3: #{_lambda_.11} parent=0 // loop_header
    %s13 = sphi 0, %s17
    %p14 = scmp.ge.s32.totalorder %s13, 4
    %s21 = sphi 0, %s21
    %s23 = sphi 0, %s21
    %s24 = sphi 0, %s23
    %s38 = sphi 0, %s24
    %s44 = sphi 0, %s46
    %s47 = sphi 0, %s44
    %s48 = sphi 0, %s47
    %s64 = sphi 0, %s48
    %s70 = sphi 0, %s72
    %s73 = sphi 0, %s70
    %s74 = sphi 0, %s73
    %s90 = sphi 0, %s74
    %s96 = sphi 0, %s98
    %s99 = sphi 0, %s96
    %s100 = sphi 0, %s99
    %s116 = sphi 0, %s100
    %s122 = sphi 0, %s124
    %s125 = sphi 0, %s122
    %s126 = sphi 0, %s125
    %s142 = sphi 0, %s126
    %s148 = sphi 0, %s150
    %s151 = sphi 0, %s148
    %s152 = sphi 0, %s151
    %s168 = sphi 0, %s152
    %s174 = sphi 0, %s176
    %s177 = sphi 0, %s174
    %s178 = sphi 0, %s177
    %s194 = sphi 0, %s178
    %s200 = sphi 0, %s202
    %s203 = sphi 0, %s200
    %s204 = sphi 0, %s203
    %s220 = sphi 0, %s204
  $region4: #{_lambda_.11} parent=0 // loop_header_branch
    %16 = sbr.rel (%p14) target = $region8
  $region5: #{_lambda_.11} parent=0 // loop_body
    %s18 = ssub.s32 %s13, 1
    %s19 = ssub.s32 %s13, 2
    %s20 = sadd.s32 %s13, 1
    %s22 = sadd.s32 %s21, 1
    %p25 = scmp.eq.s32.totalorder %s13, 1
    %p26 = scmp.ne.s32.totalorder %s21, %s23
    %p27 = scmp.eq.s32.totalorder %s13, 0
    %p28 = por %p26, %p27
    %p29 = scmp.ne.s32.totalorder %s21, %s23
    %p30 = scmp.eq.s32.totalorder %s18, 1
    %p31 = por %p29, %p30
    %p32 = scmp.ne.s32.totalorder %s23, %s24
    %p33 = scmp.eq.s32.totalorder %s18, 0
    %p34 = por %p32, %p33
    %p35 = scmp.ne.s32.totalorder %s23, %s24
    %p36 = scmp.eq.s32.totalorder %s19, 1
    %p37 = por %p35, %p36
    %p39 = scmp.ne.s32.totalorder %s24, %s38
    %p40 = scmp.eq.s32.totalorder %s19, 0
    %p41 = por %p39, %p40
    %s42 = ssub.s32 %s13, %s20
    %p43 = scmp.eq.s32.totalorder %s42, 0
    %s45 = sadd.s32 %s44, 1
    %s46 = scalar_select %p43, %s44, %s45
    %p49 = pneg %p43
    %p50 = scmp.eq.s32.totalorder %s13, 1
    %p51 = por %p49, %p50
    %p52 = scmp.ne.s32.totalorder %s44, %s47
    %p53 = scmp.eq.s32.totalorder %s13, 0
    %p54 = por %p52, %p53
    %p55 = scmp.ne.s32.totalorder %s44, %s47
    %p56 = scmp.eq.s32.totalorder %s18, 1
    %p57 = por %p55, %p56
    %p58 = scmp.ne.s32.totalorder %s47, %s48
    %p59 = scmp.eq.s32.totalorder %s18, 0
    %p60 = por %p58, %p59
    %p61 = scmp.ne.s32.totalorder %s47, %s48
    %p62 = scmp.eq.s32.totalorder %s19, 1
    %p63 = por %p61, %p62
    %p65 = scmp.ne.s32.totalorder %s48, %s64
    %p66 = scmp.eq.s32.totalorder %s19, 0
    %p67 = por %p65, %p66
    %s68 = ssub.s32 %s13, %s20
    %p69 = scmp.eq.s32.totalorder %s68, 0
    %s71 = sadd.s32 %s70, 1
    %s72 = scalar_select %p69, %s70, %s71
    %p75 = pneg %p69
    %p76 = scmp.eq.s32.totalorder %s13, 1
    %p77 = por %p75, %p76
    %p78 = scmp.ne.s32.totalorder %s70, %s73
    %p79 = scmp.eq.s32.totalorder %s13, 0
    %p80 = por %p78, %p79
    %p81 = scmp.ne.s32.totalorder %s70, %s73
    %p82 = scmp.eq.s32.totalorder %s18, 1
    %p83 = por %p81, %p82
    %p84 = scmp.ne.s32.totalorder %s73, %s74
    %p85 = scmp.eq.s32.totalorder %s18, 0
    %p86 = por %p84, %p85
    %p87 = scmp.ne.s32.totalorder %s73, %s74
    %p88 = scmp.eq.s32.totalorder %s19, 1
    %p89 = por %p87, %p88
    %p91 = scmp.ne.s32.totalorder %s74, %s90
    %p92 = scmp.eq.s32.totalorder %s19, 0
    %p93 = por %p91, %p92
    %s94 = ssub.s32 %s13, %s20
    %p95 = scmp.eq.s32.totalorder %s94, 0
    %s97 = sadd.s32 %s96, 1
    %s98 = scalar_select %p95, %s96, %s97
    %p101 = pneg %p95
    %p102 = scmp.eq.s32.totalorder %s13, 1
    %p103 = por %p101, %p102
    %p104 = scmp.ne.s32.totalorder %s96, %s99
    %p105 = scmp.eq.s32.totalorder %s13, 0
    %p106 = por %p104, %p105
    %p107 = scmp.ne.s32.totalorder %s96, %s99
    %p108 = scmp.eq.s32.totalorder %s18, 1
    %p109 = por %p107, %p108
    %p110 = scmp.ne.s32.totalorder %s99, %s100
    %p111 = scmp.eq.s32.totalorder %s18, 0
    %p112 = por %p110, %p111
    %p113 = scmp.ne.s32.totalorder %s99, %s100
    %p114 = scmp.eq.s32.totalorder %s19, 1
    %p115 = por %p113, %p114
    %p117 = scmp.ne.s32.totalorder %s100, %s116
    %p118 = scmp.eq.s32.totalorder %s19, 0
    %p119 = por %p117, %p118
    %s120 = ssub.s32 %s13, %s20
    %p121 = scmp.eq.s32.totalorder %s120, 0
    %s123 = sadd.s32 %s122, 1
    %s124 = scalar_select %p121, %s122, %s123
    %p127 = pneg %p121
    %p128 = scmp.eq.s32.totalorder %s13, 1
    %p129 = por %p127, %p128
    %p130 = scmp.ne.s32.totalorder %s122, %s125
    %p131 = scmp.eq.s32.totalorder %s13, 0
    %p132 = por %p130, %p131
    %p133 = scmp.ne.s32.totalorder %s122, %s125
    %p134 = scmp.eq.s32.totalorder %s18, 1
    %p135 = por %p133, %p134
    %p136 = scmp.ne.s32.totalorder %s125, %s126
    %p137 = scmp.eq.s32.totalorder %s18, 0
    %p138 = por %p136, %p137
    %p139 = scmp.ne.s32.totalorder %s125, %s126
    %p140 = scmp.eq.s32.totalorder %s19, 1
    %p141 = por %p139, %p140
    %p143 = scmp.ne.s32.totalorder %s126, %s142
    %p144 = scmp.eq.s32.totalorder %s19, 0
    %p145 = por %p143, %p144
    %s146 = ssub.s32 %s13, %s20
    %p147 = scmp.eq.s32.totalorder %s146, 0
    %s149 = sadd.s32 %s148, 1
    %s150 = scalar_select %p147, %s148, %s149
    %p153 = pneg %p147
    %p154 = scmp.eq.s32.totalorder %s13, 1
    %p155 = por %p153, %p154
    %p156 = scmp.ne.s32.totalorder %s148, %s151
    %p157 = scmp.eq.s32.totalorder %s13, 0
    %p158 = por %p156, %p157
    %p159 = scmp.ne.s32.totalorder %s148, %s151
    %p160 = scmp.eq.s32.totalorder %s18, 1
    %p161 = por %p159, %p160
    %p162 = scmp.ne.s32.totalorder %s151, %s152
    %p163 = scmp.eq.s32.totalorder %s18, 0
    %p164 = por %p162, %p163
    %p165 = scmp.ne.s32.totalorder %s151, %s152
    %p166 = scmp.eq.s32.totalorder %s19, 1
    %p167 = por %p165, %p166
    %p169 = scmp.ne.s32.totalorder %s152, %s168
    %p170 = scmp.eq.s32.totalorder %s19, 0
    %p171 = por %p169, %p170
    %s172 = ssub.s32 %s13, %s20
    %p173 = scmp.eq.s32.totalorder %s172, 0
    %s175 = sadd.s32 %s174, 1
    %s176 = scalar_select %p173, %s174, %s175
    %p179 = pneg %p173
    %p180 = scmp.eq.s32.totalorder %s13, 1
    %p181 = por %p179, %p180
    %p182 = scmp.ne.s32.totalorder %s174, %s177
    %p183 = scmp.eq.s32.totalorder %s13, 0
    %p184 = por %p182, %p183
    %p185 = scmp.ne.s32.totalorder %s174, %s177
    %p186 = scmp.eq.s32.totalorder %s18, 1
    %p187 = por %p185, %p186
    %p188 = scmp.ne.s32.totalorder %s177, %s178
    %p189 = scmp.eq.s32.totalorder %s18, 0
    %p190 = por %p188, %p189
    %p191 = scmp.ne.s32.totalorder %s177, %s178
    %p192 = scmp.eq.s32.totalorder %s19, 1
    %p193 = por %p191, %p192
    %p195 = scmp.ne.s32.totalorder %s178, %s194
    %p196 = scmp.eq.s32.totalorder %s19, 0
    %p197 = por %p195, %p196
    %s198 = ssub.s32 %s13, %s20
    %p199 = scmp.eq.s32.totalorder %s198, 0
    %s201 = sadd.s32 %s200, 1
    %s202 = scalar_select %p199, %s200, %s201
    %p205 = pneg %p199
    %p206 = scmp.eq.s32.totalorder %s13, 1
    %p207 = por %p205, %p206
    %p208 = scmp.ne.s32.totalorder %s200, %s203
    %p209 = scmp.eq.s32.totalorder %s13, 0
    %p210 = por %p208, %p209
    %p211 = scmp.ne.s32.totalorder %s200, %s203
    %p212 = scmp.eq.s32.totalorder %s18, 1
    %p213 = por %p211, %p212
    %p214 = scmp.ne.s32.totalorder %s203, %s204
    %p215 = scmp.eq.s32.totalorder %s18, 0
    %p216 = por %p214, %p215
    %p217 = scmp.ne.s32.totalorder %s203, %s204
    %p218 = scmp.eq.s32.totalorder %s19, 1
    %p219 = por %p217, %p218
    %p221 = scmp.ne.s32.totalorder %s204, %s220
    %p222 = scmp.eq.s32.totalorder %s19, 0
    %p223 = por %p221, %p222
    %p224 = scmp.le.s32.totalorder 1, %s13
    %p225 = scmp.lt.s32.totalorder %s13, 3
    %p226 = pnand %p224, %p225
    %p227 = pneg %p226
    // Predicated region
    $region9: #{_lambda_.11} parent=5 // pred_check
      _
    $region10: #{_lambda_.11} parent=5 // pred_check_branch
      %229 = sbr.rel (%p226) target = $region12
    $region11: #{_lambda_.11} parent=5 // pred_region
      %s230 = ssub.s32 %s13, 1
      // Predicated region
      $region13: #{_lambda_.11} parent=11 // pred_check
        %p231 = pneg %p34
      $region14: #{_lambda_.11} parent=11 // pred_check_branch
        %233 = sbr.rel (%p231) target = $region16
      $region15: #{_lambda_.11} parent=11 // pred_region
        _
      $region16: #{_lambda_.11} parent=11 // pred_fallthru
        _
    $region12: #{_lambda_.11} parent=5 // pred_fallthru
      _
    %p234 = scmp.lt.s32.totalorder %s13, 2
    // Predicated region
    $region17: #{_lambda_.11} parent=5 // pred_check
      %p235 = pneg %p234
    $region18: #{_lambda_.11} parent=5 // pred_check_branch
      %237 = sbr.rel (%p235) target = $region20
    $region19: #{_lambda_.11} parent=5 // pred_region
      // Predicated region
      $region21: #{_lambda_.11} parent=19 // pred_check
        %p238 = pneg %p54
      $region22: #{_lambda_.11} parent=19 // pred_check_branch
        %240 = sbr.rel (%p238) target = $region24
      $region23: #{_lambda_.11} parent=19 // pred_region
        %p241 = scmp.lt.s32.totalorder %s13, 1
        %s242 = scalar_select %p241, %s13, 1
        %s243 = smul.addr %s242, 40
        %s244 = smul.addr %s243, 4
        %s245 = scalar_lea.vmem %s1, %s244
      $region24: #{_lambda_.11} parent=19 // pred_fallthru
        _
      // Predicated region
      $region25: #{_lambda_.11} parent=19 // pred_check
        %p246 = pneg %p80
      $region26: #{_lambda_.11} parent=19 // pred_check_branch
        %248 = sbr.rel (%p246) target = $region28
      $region27: #{_lambda_.11} parent=19 // pred_region
        %p249 = scmp.lt.s32.totalorder %s13, 1
        %s250 = scalar_select %p249, %s13, 1
        %s251 = smul.addr %s250, 8
        %s252 = scalar_lea.vmem %s2, %s251
      $region28: #{_lambda_.11} parent=19 // pred_fallthru
        _
      // Predicated region
      $region29: #{_lambda_.11} parent=19 // pred_check
        %p253 = pneg %p106
      $region30: #{_lambda_.11} parent=19 // pred_check_branch
        %255 = sbr.rel (%p253) target = $region32
      $region31: #{_lambda_.11} parent=19 // pred_region
        %p256 = scmp.lt.s32.totalorder %s13, 1
        %s257 = scalar_select %p256, %s13, 1
        %s258 = smul.addr %s257, 1024
        %s259 = smul.addr %s258, 4
        %s260 = scalar_lea.vmem %s3, %s259
      $region32: #{_lambda_.11} parent=19 // pred_fallthru
        _
      // Predicated region
      $region33: #{_lambda_.11} parent=19 // pred_check
        %p261 = pneg %p132
      $region34: #{_lambda_.11} parent=19 // pred_check_branch
        %263 = sbr.rel (%p261) target = $region36
      $region35: #{_lambda_.11} parent=19 // pred_region
        %p264 = scmp.lt.s32.totalorder %s13, 1
        %s265 = scalar_select %p264, %s13, 1
        %s266 = smul.addr %s265, 8
        %s267 = scalar_lea.vmem %s4, %s266
      $region36: #{_lambda_.11} parent=19 // pred_fallthru
        _
      // Predicated region
      $region37: #{_lambda_.11} parent=19 // pred_check
        %p268 = pneg %p158
      $region38: #{_lambda_.11} parent=19 // pred_check_branch
        %270 = sbr.rel (%p268) target = $region40
      $region39: #{_lambda_.11} parent=19 // pred_region
        %p271 = scmp.lt.s32.totalorder %s13, 1
        %s272 = scalar_select %p271, %s13, 1
        %s273 = smul.addr %s272, 128
        %s274 = smul.addr %s273, 4
        %s275 = scalar_lea.vmem %s5, %s274
      $region40: #{_lambda_.11} parent=19 // pred_fallthru
        _
      // Predicated region
      $region41: #{_lambda_.11} parent=19 // pred_check
        %p276 = pneg %p184
      $region42: #{_lambda_.11} parent=19 // pred_check_branch
        %278 = sbr.rel (%p276) target = $region44
      $region43: #{_lambda_.11} parent=19 // pred_region
        %p279 = scmp.lt.s32.totalorder %s13, 1
        %s280 = scalar_select %p279, %s13, 1
        %s281 = scalar_lea.vmem %s6, %s280
      $region44: #{_lambda_.11} parent=19 // pred_fallthru
        _
    $region20: #{_lambda_.11} parent=5 // pred_fallthru
      _
    %p282 = scmp.le.s32.totalorder 1, %s13
    %p283 = scmp.lt.s32.totalorder %s13, 3
    %p284 = pnand %p282, %p283
    %p285 = pneg %p284
    // Predicated region
    $region45: #{_lambda_.11} parent=5 // pred_check
      _
    $region46: #{_lambda_.11} parent=5 // pred_check_branch
      %287 = sbr.rel (%p284) target = $region48
    $region47: #{_lambda_.11} parent=5 // pred_region
      %s288 = ssub.s32 %s13, 1
      %p289 = pneg %p34
      %p290 = pneg %p31
      %p291 = scmp.lt.s32.totalorder %s18, 1
      %s292 = scalar_select %p291, %s18, 1
      %s293 = smul.addr %s292, 40
      %s294 = smul.addr %s293, 4
      %s295 = scalar_lea.vmem %s1, %s294
      %p296 = pneg %p60
      %p297 = pneg %p57
      %p298 = scmp.lt.s32.totalorder %s18, 1
      %s299 = scalar_select %p298, %s18, 1
      %s300 = smul.addr %s299, 8
      %s301 = scalar_lea.vmem %s2, %s300
      %p302 = pneg %p86
      %p303 = pneg %p83
      %p304 = scmp.lt.s32.totalorder %s18, 1
      %s305 = scalar_select %p304, %s18, 1
      %s306 = smul.addr %s305, 1024
      %s307 = smul.addr %s306, 4
      %s308 = scalar_lea.vmem %s3, %s307
      %p309 = pneg %p112
      %p310 = pneg %p109
      %p311 = scmp.lt.s32.totalorder %s18, 1
      %s312 = scalar_select %p311, %s18, 1
      %s313 = smul.addr %s312, 8
      %s314 = scalar_lea.vmem %s4, %s313
      %p315 = pneg %p138
      %p316 = pneg %p135
      %p317 = scmp.lt.s32.totalorder %s18, 1
      %s318 = scalar_select %p317, %s18, 1
      %s319 = smul.addr %s318, 128
      %s320 = smul.addr %s319, 4
      %s321 = scalar_lea.vmem %s5, %s320
      %p322 = pneg %p164
      %p323 = pneg %p161
      %p324 = scmp.lt.s32.totalorder %s18, 1
      %s325 = scalar_select %p324, %s18, 1
      %s326 = scalar_lea.vmem %s6, %s325
      %p327 = pneg %p190
      %p328 = pneg %p187
      %p329 = pneg %p216
      %p330 = pneg %p213
      %p331 = scmp.lt.s32.totalorder %s18, 1
      %s332 = scalar_select %p331, %s18, 1
      %s333 = smul.addr %s332, 2
      %s334 = scalar_lea.vmem %s7, %s333
      %p335 = scmp.lt.s32.totalorder %s18, 1
      %s336 = scalar_select %p335, %s18, 1
      %s337 = smul.addr %s336, 40
      %s338 = smul.addr %s337, 4
      %s339 = scalar_lea.vmem %s1, %s338
      %p340 = scmp.lt.s32.totalorder %s18, 1
      %s341 = scalar_select %p340, %s18, 1
      %s342 = smul.addr %s341, 8
      %s343 = scalar_lea.vmem %s2, %s342
      %p344 = scmp.lt.s32.totalorder %s18, 1
      %s345 = scalar_select %p344, %s18, 1
      %s346 = smul.addr %s345, 1024
      %s347 = smul.addr %s346, 4
      %s348 = scalar_lea.vmem %s3, %s347
      %p349 = scmp.lt.s32.totalorder %s18, 1
      %s350 = scalar_select %p349, %s18, 1
      %s351 = smul.addr %s350, 8
      %s352 = scalar_lea.vmem %s4, %s351
      %p353 = scmp.lt.s32.totalorder %s18, 1
      %s354 = scalar_select %p353, %s18, 1
      %s355 = smul.addr %s354, 128
      %s356 = smul.addr %s355, 4
      %s357 = scalar_lea.vmem %s5, %s356
      %p358 = scmp.lt.s32.totalorder %s18, 1
      %s359 = scalar_select %p358, %s18, 1
      %s360 = scalar_lea.vmem %s6, %s359
      %p361 = scmp.lt.s32.totalorder %s18, 1
      %s362 = scalar_select %p361, %s18, 1
      %s363 = smul.addr %s362, 2
      %s364 = scalar_lea.vmem %s7, %s363
      %v366 = vld [vmem:[%s0] sm:$0x1]
      %v367 = vld [vmem:[%s339] sm:$0xff]
      %v368 = vld [vmem:[%s339 + $0x8] sm:$0xff]
      %v369 = vld [vmem:[%s339 + $0x10] sm:$0xff]
      %v370 = vld [vmem:[%s339 + $0x18] sm:$0xff]
      %v371 = vld [vmem:[%s339 + $0x20] sm:$0xff]
      %v372 = vld [vmem:[%s339 + $0x28] sm:$0xff]
      %v373 = vld [vmem:[%s339 + $0x30] sm:$0xff]
      %v374 = vld [vmem:[%s339 + $0x38] sm:$0xff]
      %v375 = vld [vmem:[%s339 + $0x40] sm:$0xff]
      %v376 = vld [vmem:[%s339 + $0x48] sm:$0xff]
      %v377 = vld [vmem:[%s339 + $0x50] sm:$0xff]
      %v378 = vld [vmem:[%s339 + $0x58] sm:$0xff]
      %v379 = vld [vmem:[%s339 + $0x60] sm:$0xff]
      %v380 = vld [vmem:[%s339 + $0x68] sm:$0xff]
      %v381 = vld [vmem:[%s339 + $0x70] sm:$0xff]
      %v382 = vld [vmem:[%s339 + $0x78] sm:$0xff]
      %v383 = vld [vmem:[%s339 + $0x80] sm:$0x33]
      %v384 = vld [vmem:[%s339 + $0x88] sm:$0x33]
      %v385 = vld [vmem:[%s339 + $0x90] sm:$0x33]
      %v386 = vld [vmem:[%s339 + $0x98] sm:$0x33]
      %v387 = vld [vmem:[%s343] sm:$0xff]
      %v389 = vlaneseq
      %v390 = vshrl.u32 %v389, 7
      %v391 = vsub.s32 0, %v390
      %v392 = vrot.slane %v387, %v391
      %v393 = vlaneseq
      %v394 = vshrl.u32 %v393, 7
      %v395 = vsub.s32 1, %v394
      %v396 = vrot.slane %v387, %v395
      %v397 = vlaneseq
      %v398 = vshrl.u32 %v397, 7
      %v399 = vsub.s32 2, %v398
      %v400 = vrot.slane %v387, %v399
      %v401 = vlaneseq
      %v402 = vshrl.u32 %v401, 7
      %v403 = vsub.s32 3, %v402
      %v404 = vrot.slane %v387, %v403
      %v405 = vlaneseq
      %v406 = vshrl.u32 %v405, 7
      %v407 = vsub.s32 4, %v406
      %v408 = vrot.slane %v387, %v407
      %v409 = vlaneseq
      %v410 = vshrl.u32 %v409, 7
      %v411 = vsub.s32 5, %v410
      %v412 = vrot.slane %v387, %v411
      %v413 = vlaneseq
      %v414 = vshrl.u32 %v413, 7
      %v415 = vsub.s32 6, %v414
      %v416 = vrot.slane %v387, %v415
      %v417 = vlaneseq
      %v418 = vshrl.u32 %v417, 7
      %v419 = vsub.s32 7, %v418
      %v420 = vrot.slane %v387, %v419
      %v449 = vunpack.c.l.b16 %v367
      %v450 = vunpack.c.h.b16 %v367
      %v451 = vunpack.c.l.b16 %v368
      %v452 = vunpack.c.h.b16 %v368
      %v453 = vunpack.c.l.b16 %v369
      %v454 = vunpack.c.h.b16 %v369
      %v455 = vunpack.c.l.b16 %v370
      %v456 = vunpack.c.h.b16 %v370
      %v457 = vunpack.c.l.b16 %v371
      %v458 = vunpack.c.h.b16 %v371
      %v459 = vunpack.c.l.b16 %v372
      %v460 = vunpack.c.h.b16 %v372
      %v461 = vunpack.c.l.b16 %v373
      %v462 = vunpack.c.h.b16 %v373
      %v463 = vunpack.c.l.b16 %v374
      %v464 = vunpack.c.h.b16 %v374
      %v465 = vunpack.c.l.b16 %v375
      %v466 = vunpack.c.h.b16 %v375
      %v467 = vunpack.c.l.b16 %v376
      %v468 = vunpack.c.h.b16 %v376
      %v469 = vunpack.c.l.b16 %v377
      %v470 = vunpack.c.h.b16 %v377
      %v471 = vunpack.c.l.b16 %v378
      %v472 = vunpack.c.h.b16 %v378
      %v473 = vunpack.c.l.b16 %v379
      %v474 = vunpack.c.h.b16 %v379
      %v475 = vunpack.c.l.b16 %v380
      %v476 = vunpack.c.h.b16 %v380
      %v477 = vunpack.c.l.b16 %v381
      %v478 = vunpack.c.h.b16 %v381
      %v479 = vunpack.c.l.b16 %v382
      %v480 = vunpack.c.h.b16 %v382
      %v481 = vunpack.c.l.b16 %v383
      %v482 = vunpack.c.h.b16 %v383
      %v483 = vunpack.c.l.b16 %v384
      %v484 = vunpack.c.h.b16 %v384
      %v485 = vunpack.c.l.b16 %v385
      %v486 = vunpack.c.h.b16 %v385
      %v487 = vunpack.c.l.b16 %v386
      %v488 = vunpack.c.h.b16 %v386
      %v489 = vpack.c.b16 %v457, %v449
      %v490 = vpack.c.b16 %v458, %v450
      %v491 = vpack.c.b16 %v459, %v451
      %v492 = vpack.c.b16 %v460, %v452
      %v493 = vpack.c.b16 %v461, %v453
      %v494 = vpack.c.b16 %v462, %v454
      %v495 = vpack.c.b16 %v463, %v455
      %v496 = vpack.c.b16 %v464, %v456
      %v497 = vpack.c.b16 %v473, %v465
      %v498 = vpack.c.b16 %v474, %v466
      %v499 = vpack.c.b16 %v475, %v467
      %v500 = vpack.c.b16 %v476, %v468
      %v501 = vpack.c.b16 %v477, %v469
      %v502 = vpack.c.b16 %v478, %v470
      %v503 = vpack.c.b16 %v479, %v471
      %v504 = vpack.c.b16 %v480, %v472
      %v505 = vpack.c.b16 %v481, %v481
      %v506 = vpack.c.b16 %v482, %v482
      %v507 = vpack.c.b16 %v483, %v483
      %v508 = vpack.c.b16 %v484, %v484
      %v509 = vpack.c.b16 %v485, %v485
      %v510 = vpack.c.b16 %v486, %v486
      %v511 = vpack.c.b16 %v487, %v487
      %v512 = vpack.c.b16 %v488, %v488
      %vm529 = vcmask 293888
      %v531 = vsel %vm529, %v366, 0
      %vm533 = vcmask 1041408
      %v535 = vsel %vm533, %v505, 0
      %v538 = vsel %vm533, %v506, 0
      %v541 = vsel %vm533, %v507, 0
      %v544 = vsel %vm533, %v508, 0
      %v547 = vsel %vm533, %v509, 0
      %v550 = vsel %vm533, %v510, 0
      %v553 = vsel %vm533, %v511, 0
      %v556 = vsel %vm533, %v512, 0
      %558 = vmatprep.subr.bf16.mxu0 0
      %559 = vmatpush1.bf16.msra.mxu0 0
      %560 = vmatprep.subr.bf16.mxu0 0
      %561 = vmatpush1.bf16.msra.mxu0 0
      %562 = vmatprep.subr.bf16.mxu0 0
      %563 = vmatpush1.bf16.msra.mxu0 0
      %564 = vmatprep.subr.bf16.mxu0 0
      %565 = vmatpush1.bf16.msra.mxu0 0
      %566 = vmatprep.subr.bf16.mxu0 0
      %567 = vmatpush1.bf16.msra.mxu0 0
      %568 = vmatprep.subr.bf16.mxu0 %v538
      %569 = vmatpush1.bf16.msra.mxu0 %v535
      %570 = vmatprep.subr.bf16.mxu0 %v498
      %571 = vmatpush1.bf16.msra.mxu0 %v497
      %572 = vmatprep.subr.bf16.mxu0 %v490
      %573 = vmatpush1.bf16.msra.mxu0 %v489
      %574 = vmatprep.subr.bf16.mxu0 0
      %575 = vmatpush2.bf16.msra.mxu0 0
      %576 = vmatprep.subr.bf16.mxu0 0
      %577 = vmatpush2.bf16.msra.mxu0 0
      %578 = vmatprep.subr.bf16.mxu0 0
      %579 = vmatpush2.bf16.msra.mxu0 0
      %580 = vmatprep.subr.bf16.mxu0 0
      %581 = vmatpush2.bf16.msra.mxu0 0
      %582 = vmatprep.subr.bf16.mxu0 0
      %583 = vmatpush2.bf16.msra.mxu0 0
      %584 = vmatprep.subr.bf16.mxu0 0
      %585 = vmatpush2.bf16.msra.mxu0 0
      %586 = vmatprep.subr.bf16.mxu0 0
      %587 = vmatpush2.bf16.msra.mxu0 0
      %588 = vmatprep.subr.bf16.mxu0 0
      %589 = vmatpush2.bf16.msra.mxu0 0
      %590 = vmatprep.mubr.bf16.mxu0 0
      %591 = vmatmul.mubr.bf16.gmra.mxu0 %v531
      %v592 = vpop.f32.mrf.mxu0
      %v593 = vadd.f32 %v392, %v592
      %v594 = vpop.f32.mrf.mxu0
      %v595 = vadd.f32 %v396, %v594
      %v596 = vpop.f32.mrf.mxu0
      %v597 = vpop.f32.mrf.mxu0
      %598 = vdwg.mxu0
      %599 = vmatprep.subr.bf16.mxu0 0
      %600 = vmatpush1.bf16.msra.mxu0 0
      %601 = vmatprep.subr.bf16.mxu0 0
      %602 = vmatpush1.bf16.msra.mxu0 0
      %603 = vmatprep.subr.bf16.mxu0 0
      %604 = vmatpush1.bf16.msra.mxu0 0
      %605 = vmatprep.subr.bf16.mxu0 0
      %606 = vmatpush1.bf16.msra.mxu0 0
      %607 = vmatprep.subr.bf16.mxu0 0
      %608 = vmatpush1.bf16.msra.mxu0 0
      %609 = vmatprep.subr.bf16.mxu0 %v544
      %610 = vmatpush1.bf16.msra.mxu0 %v541
      %611 = vmatprep.subr.bf16.mxu0 %v500
      %612 = vmatpush1.bf16.msra.mxu0 %v499
      %613 = vmatprep.subr.bf16.mxu0 %v492
      %614 = vmatpush1.bf16.msra.mxu0 %v491
      %615 = vmatprep.subr.bf16.mxu0 0
      %616 = vmatpush2.bf16.msra.mxu0 0
      %617 = vmatprep.subr.bf16.mxu0 0
      %618 = vmatpush2.bf16.msra.mxu0 0
      %619 = vmatprep.subr.bf16.mxu0 0
      %620 = vmatpush2.bf16.msra.mxu0 0
      %621 = vmatprep.subr.bf16.mxu0 0
      %622 = vmatpush2.bf16.msra.mxu0 0
      %623 = vmatprep.subr.bf16.mxu0 0
      %624 = vmatpush2.bf16.msra.mxu0 0
      %625 = vmatprep.subr.bf16.mxu0 0
      %626 = vmatpush2.bf16.msra.mxu0 0
      %627 = vmatprep.subr.bf16.mxu0 0
      %628 = vmatpush2.bf16.msra.mxu0 0
      %629 = vmatprep.subr.bf16.mxu0 0
      %630 = vmatpush2.bf16.msra.mxu0 0
      %631 = vmatprep.mubr.bf16.mxu0 0
      %632 = vmatmul.mubr.bf16.gmra.mxu0 %v531
      %v633 = vpop.f32.mrf.mxu0
      %v634 = vadd.f32 %v400, %v633
      %v635 = vpop.f32.mrf.mxu0
      %v636 = vadd.f32 %v404, %v635
      %v637 = vpop.f32.mrf.mxu0
      %v638 = vpop.f32.mrf.mxu0
      %639 = vdwg.mxu0
      %640 = vmatprep.subr.bf16.mxu0 0
      %641 = vmatpush1.bf16.msra.mxu0 0
      %642 = vmatprep.subr.bf16.mxu0 0
      %643 = vmatpush1.bf16.msra.mxu0 0
      %644 = vmatprep.subr.bf16.mxu0 0
      %645 = vmatpush1.bf16.msra.mxu0 0
      %646 = vmatprep.subr.bf16.mxu0 0
      %647 = vmatpush1.bf16.msra.mxu0 0
      %648 = vmatprep.subr.bf16.mxu0 0
      %649 = vmatpush1.bf16.msra.mxu0 0
      %650 = vmatprep.subr.bf16.mxu0 %v550
      %651 = vmatpush1.bf16.msra.mxu0 %v547
      %652 = vmatprep.subr.bf16.mxu0 %v502
      %653 = vmatpush1.bf16.msra.mxu0 %v501
      %654 = vmatprep.subr.bf16.mxu0 %v494
      %655 = vmatpush1.bf16.msra.mxu0 %v493
      %656 = vmatprep.subr.bf16.mxu0 0
      %657 = vmatpush2.bf16.msra.mxu0 0
      %658 = vmatprep.subr.bf16.mxu0 0
      %659 = vmatpush2.bf16.msra.mxu0 0
      %660 = vmatprep.subr.bf16.mxu0 0
      %661 = vmatpush2.bf16.msra.mxu0 0
      %662 = vmatprep.subr.bf16.mxu0 0
      %663 = vmatpush2.bf16.msra.mxu0 0
      %664 = vmatprep.subr.bf16.mxu0 0
      %665 = vmatpush2.bf16.msra.mxu0 0
      %666 = vmatprep.subr.bf16.mxu0 0
      %667 = vmatpush2.bf16.msra.mxu0 0
      %668 = vmatprep.subr.bf16.mxu0 0
      %669 = vmatpush2.bf16.msra.mxu0 0
      %670 = vmatprep.subr.bf16.mxu0 0
      %671 = vmatpush2.bf16.msra.mxu0 0
      %672 = vmatprep.mubr.bf16.mxu0 0
      %673 = vmatmul.mubr.bf16.gmra.mxu0 %v531
      %v674 = vpop.f32.mrf.mxu0
      %v675 = vadd.f32 %v408, %v674
      %v676 = vpop.f32.mrf.mxu0
      %v677 = vadd.f32 %v412, %v676
      %v678 = vpop.f32.mrf.mxu0
      %v679 = vpop.f32.mrf.mxu0
      %680 = vdwg.mxu0
      %681 = vmatprep.subr.bf16.mxu0 0
      %682 = vmatpush1.bf16.msra.mxu0 0
      %683 = vmatprep.subr.bf16.mxu0 0
      %684 = vmatpush1.bf16.msra.mxu0 0
      %685 = vmatprep.subr.bf16.mxu0 0
      %686 = vmatpush1.bf16.msra.mxu0 0
      %687 = vmatprep.subr.bf16.mxu0 0
      %688 = vmatpush1.bf16.msra.mxu0 0
      %689 = vmatprep.subr.bf16.mxu0 0
      %690 = vmatpush1.bf16.msra.mxu0 0
      %691 = vmatprep.subr.bf16.mxu0 %v556
      %692 = vmatpush1.bf16.msra.mxu0 %v553
      %693 = vmatprep.subr.bf16.mxu0 %v504
      %694 = vmatpush1.bf16.msra.mxu0 %v503
      %695 = vmatprep.subr.bf16.mxu0 %v496
      %696 = vmatpush1.bf16.msra.mxu0 %v495
      %697 = vmatprep.subr.bf16.mxu0 0
      %698 = vmatpush2.bf16.msra.mxu0 0
      %699 = vmatprep.subr.bf16.mxu0 0
      %700 = vmatpush2.bf16.msra.mxu0 0
      %701 = vmatprep.subr.bf16.mxu0 0
      %702 = vmatpush2.bf16.msra.mxu0 0
      %703 = vmatprep.subr.bf16.mxu0 0
      %704 = vmatpush2.bf16.msra.mxu0 0
      %705 = vmatprep.subr.bf16.mxu0 0
      %706 = vmatpush2.bf16.msra.mxu0 0
      %707 = vmatprep.subr.bf16.mxu0 0
      %708 = vmatpush2.bf16.msra.mxu0 0
      %709 = vmatprep.subr.bf16.mxu0 0
      %710 = vmatpush2.bf16.msra.mxu0 0
      %711 = vmatprep.subr.bf16.mxu0 0
      %712 = vmatpush2.bf16.msra.mxu0 0
      %713 = vmatprep.mubr.bf16.mxu0 0
      %714 = vmatmul.mubr.bf16.gmra.mxu0 %v531
      %v715 = vpop.f32.mrf.mxu0
      %v716 = vadd.f32 %v416, %v715
      %v717 = vpop.f32.mrf.mxu0
      %v718 = vadd.f32 %v420, %v717
      %v719 = vpop.f32.mrf.mxu0
      %v720 = vpop.f32.mrf.mxu0
      %721 = vdwg.mxu0
      %v722 = vmax.f32 %v593, 0.0
      %v723 = vmax.f32 %v595, 0.0
      %v724 = vmax.f32 %v634, 0.0
      %v725 = vmax.f32 %v636, 0.0
      %v726 = vmax.f32 %v675, 0.0
      %v727 = vmax.f32 %v677, 0.0
      %v728 = vmax.f32 %v716, 0.0
      %v729 = vmax.f32 %v718, 0.0
      %v730 = vpack.c.bf16 %v722, %v722
      %v731 = vpack.c.bf16 %v723, %v723
      %v732 = vpack.c.bf16 %v724, %v724
      %v733 = vpack.c.bf16 %v725, %v725
      %v734 = vpack.c.bf16 %v726, %v726
      %v735 = vpack.c.bf16 %v727, %v727
      %v736 = vpack.c.bf16 %v728, %v728
      %v737 = vpack.c.bf16 %v729, %v729
      %v738 = vld [vmem:[%s348] sm:$0xff]
      %v739 = vld [vmem:[%s348 + $0x8] sm:$0xff]
      %v740 = vld [vmem:[%s348 + $0x10] sm:$0xff]
      %v741 = vld [vmem:[%s348 + $0x18] sm:$0xff]
      %v742 = vld [vmem:[%s348 + $0x20] sm:$0xff]
      %v743 = vld [vmem:[%s348 + $0x28] sm:$0xff]
      %v744 = vld [vmem:[%s348 + $0x30] sm:$0xff]
      %v745 = vld [vmem:[%s348 + $0x38] sm:$0xff]
      %v746 = vld [vmem:[%s348 + $0x40] sm:$0xff]
      %v747 = vld [vmem:[%s348 + $0x48] sm:$0xff]
      %v748 = vld [vmem:[%s348 + $0x50] sm:$0xff]
      %v749 = vld [vmem:[%s348 + $0x58] sm:$0xff]
      %v750 = vld [vmem:[%s348 + $0x60] sm:$0xff]
      %v751 = vld [vmem:[%s348 + $0x68] sm:$0xff]
      %v752 = vld [vmem:[%s348 + $0x70] sm:$0xff]
      %v753 = vld [vmem:[%s348 + $0x78] sm:$0xff]
      %v754 = vld [vmem:[%s348 + $0x80] sm:$0xff]
      %v755 = vld [vmem:[%s348 + $0x88] sm:$0xff]
      %v756 = vld [vmem:[%s348 + $0x90] sm:$0xff]
      %v757 = vld [vmem:[%s348 + $0x98] sm:$0xff]
      %v758 = vld [vmem:[%s348 + $0xa0] sm:$0xff]
      %v759 = vld [vmem:[%s348 + $0xa8] sm:$0xff]
      %v760 = vld [vmem:[%s348 + $0xb0] sm:$0xff]
      %v761 = vld [vmem:[%s348 + $0xb8] sm:$0xff]
      %v762 = vld [vmem:[%s348 + $0xc0] sm:$0xff]
      %v763 = vld [vmem:[%s348 + $0xc8] sm:$0xff]
      %v764 = vld [vmem:[%s348 + $0xd0] sm:$0xff]
      %v765 = vld [vmem:[%s348 + $0xd8] sm:$0xff]
      %v766 = vld [vmem:[%s348 + $0xe0] sm:$0xff]
      %v767 = vld [vmem:[%s348 + $0xe8] sm:$0xff]
      %v768 = vld [vmem:[%s348 + $0xf0] sm:$0xff]
      %v769 = vld [vmem:[%s348 + $0xf8] sm:$0xff]
      %v770 = vld [vmem:[%s348 + $0x100] sm:$0xff]
      %v771 = vld [vmem:[%s348 + $0x108] sm:$0xff]
      %v772 = vld [vmem:[%s348 + $0x110] sm:$0xff]
      %v773 = vld [vmem:[%s348 + $0x118] sm:$0xff]
      %v774 = vld [vmem:[%s348 + $0x120] sm:$0xff]
      %v775 = vld [vmem:[%s348 + $0x128] sm:$0xff]
      %v776 = vld [vmem:[%s348 + $0x130] sm:$0xff]
      %v777 = vld [vmem:[%s348 + $0x138] sm:$0xff]
      %v778 = vld [vmem:[%s348 + $0x140] sm:$0xff]
      %v779 = vld [vmem:[%s348 + $0x148] sm:$0xff]
      %v780 = vld [vmem:[%s348 + $0x150] sm:$0xff]
      %v781 = vld [vmem:[%s348 + $0x158] sm:$0xff]
      %v782 = vld [vmem:[%s348 + $0x160] sm:$0xff]
      %v783 = vld [vmem:[%s348 + $0x168] sm:$0xff]
      %v784 = vld [vmem:[%s348 + $0x170] sm:$0xff]
      %v785 = vld [vmem:[%s348 + $0x178] sm:$0xff]
      %v786 = vld [vmem:[%s348 + $0x180] sm:$0xff]
      %v787 = vld [vmem:[%s348 + $0x188] sm:$0xff]
      %v788 = vld [vmem:[%s348 + $0x190] sm:$0xff]
      %v789 = vld [vmem:[%s348 + $0x198] sm:$0xff]
      %v790 = vld [vmem:[%s348 + $0x1a0] sm:$0xff]
      %v791 = vld [vmem:[%s348 + $0x1a8] sm:$0xff]
      %v792 = vld [vmem:[%s348 + $0x1b0] sm:$0xff]
      %v793 = vld [vmem:[%s348 + $0x1b8] sm:$0xff]
      %v794 = vld [vmem:[%s348 + $0x1c0] sm:$0xff]
      %v795 = vld [vmem:[%s348 + $0x1c8] sm:$0xff]
      %v796 = vld [vmem:[%s348 + $0x1d0] sm:$0xff]
      %v797 = vld [vmem:[%s348 + $0x1d8] sm:$0xff]
      %v798 = vld [vmem:[%s348 + $0x1e0] sm:$0xff]
      %v799 = vld [vmem:[%s348 + $0x1e8] sm:$0xff]
      %v800 = vld [vmem:[%s348 + $0x1f0] sm:$0xff]
      %v801 = vld [vmem:[%s348 + $0x1f8] sm:$0xff]
      %v802 = vld [vmem:[%s348 + $0x200] sm:$0xff]
      %v803 = vld [vmem:[%s348 + $0x208] sm:$0xff]
      %v804 = vld [vmem:[%s348 + $0x210] sm:$0xff]
      %v805 = vld [vmem:[%s348 + $0x218] sm:$0xff]
      %v806 = vld [vmem:[%s348 + $0x220] sm:$0xff]
      %v807 = vld [vmem:[%s348 + $0x228] sm:$0xff]
      %v808 = vld [vmem:[%s348 + $0x230] sm:$0xff]
      %v809 = vld [vmem:[%s348 + $0x238] sm:$0xff]
      %v810 = vld [vmem:[%s348 + $0x240] sm:$0xff]
      %v811 = vld [vmem:[%s348 + $0x248] sm:$0xff]
      %v812 = vld [vmem:[%s348 + $0x250] sm:$0xff]
      %v813 = vld [vmem:[%s348 + $0x258] sm:$0xff]
      %v814 = vld [vmem:[%s348 + $0x260] sm:$0xff]
      %v815 = vld [vmem:[%s348 + $0x268] sm:$0xff]
      %v816 = vld [vmem:[%s348 + $0x270] sm:$0xff]
      %v817 = vld [vmem:[%s348 + $0x278] sm:$0xff]
      %v818 = vld [vmem:[%s348 + $0x280] sm:$0xff]
      %v819 = vld [vmem:[%s348 + $0x288] sm:$0xff]
      %v820 = vld [vmem:[%s348 + $0x290] sm:$0xff]
      %v821 = vld [vmem:[%s348 + $0x298] sm:$0xff]
      %v822 = vld [vmem:[%s348 + $0x2a0] sm:$0xff]
      %v823 = vld [vmem:[%s348 + $0x2a8] sm:$0xff]
      %v824 = vld [vmem:[%s348 + $0x2b0] sm:$0xff]
      %v825 = vld [vmem:[%s348 + $0x2b8] sm:$0xff]
      %v826 = vld [vmem:[%s348 + $0x2c0] sm:$0xff]
      %v827 = vld [vmem:[%s348 + $0x2c8] sm:$0xff]
      %v828 = vld [vmem:[%s348 + $0x2d0] sm:$0xff]
      %v829 = vld [vmem:[%s348 + $0x2d8] sm:$0xff]
      %v830 = vld [vmem:[%s348 + $0x2e0] sm:$0xff]
      %v831 = vld [vmem:[%s348 + $0x2e8] sm:$0xff]
      %v832 = vld [vmem:[%s348 + $0x2f0] sm:$0xff]
      %v833 = vld [vmem:[%s348 + $0x2f8] sm:$0xff]
      %v834 = vld [vmem:[%s348 + $0x300] sm:$0xff]
      %v835 = vld [vmem:[%s348 + $0x308] sm:$0xff]
      %v836 = vld [vmem:[%s348 + $0x310] sm:$0xff]
      %v837 = vld [vmem:[%s348 + $0x318] sm:$0xff]
      %v838 = vld [vmem:[%s348 + $0x320] sm:$0xff]
      %v839 = vld [vmem:[%s348 + $0x328] sm:$0xff]
      %v840 = vld [vmem:[%s348 + $0x330] sm:$0xff]
      %v841 = vld [vmem:[%s348 + $0x338] sm:$0xff]
      %v842 = vld [vmem:[%s348 + $0x340] sm:$0xff]
      %v843 = vld [vmem:[%s348 + $0x348] sm:$0xff]
      %v844 = vld [vmem:[%s348 + $0x350] sm:$0xff]
      %v845 = vld [vmem:[%s348 + $0x358] sm:$0xff]
      %v846 = vld [vmem:[%s348 + $0x360] sm:$0xff]
      %v847 = vld [vmem:[%s348 + $0x368] sm:$0xff]
      %v848 = vld [vmem:[%s348 + $0x370] sm:$0xff]
      %v849 = vld [vmem:[%s348 + $0x378] sm:$0xff]
      %v850 = vld [vmem:[%s348 + $0x380] sm:$0xff]
      %v851 = vld [vmem:[%s348 + $0x388] sm:$0xff]
      %v852 = vld [vmem:[%s348 + $0x390] sm:$0xff]
      %v853 = vld [vmem:[%s348 + $0x398] sm:$0xff]
      %v854 = vld [vmem:[%s348 + $0x3a0] sm:$0xff]
      %v855 = vld [vmem:[%s348 + $0x3a8] sm:$0xff]
      %v856 = vld [vmem:[%s348 + $0x3b0] sm:$0xff]
      %v857 = vld [vmem:[%s348 + $0x3b8] sm:$0xff]
      %v858 = vld [vmem:[%s348 + $0x3c0] sm:$0xff]
      %v859 = vld [vmem:[%s348 + $0x3c8] sm:$0xff]
      %v860 = vld [vmem:[%s348 + $0x3d0] sm:$0xff]
      %v861 = vld [vmem:[%s348 + $0x3d8] sm:$0xff]
      %v862 = vld [vmem:[%s348 + $0x3e0] sm:$0xff]
      %v863 = vld [vmem:[%s348 + $0x3e8] sm:$0xff]
      %v864 = vld [vmem:[%s348 + $0x3f0] sm:$0xff]
      %v865 = vld [vmem:[%s348 + $0x3f8] sm:$0xff]
      %v866 = vld [vmem:[%s348 + $0x400] sm:$0xff]
      %v867 = vld [vmem:[%s348 + $0x408] sm:$0xff]
      %v868 = vld [vmem:[%s348 + $0x410] sm:$0xff]
      %v869 = vld [vmem:[%s348 + $0x418] sm:$0xff]
      %v870 = vld [vmem:[%s348 + $0x420] sm:$0xff]
      %v871 = vld [vmem:[%s348 + $0x428] sm:$0xff]
      %v872 = vld [vmem:[%s348 + $0x430] sm:$0xff]
      %v873 = vld [vmem:[%s348 + $0x438] sm:$0xff]
      %v874 = vld [vmem:[%s348 + $0x440] sm:$0xff]
      %v875 = vld [vmem:[%s348 + $0x448] sm:$0xff]
      %v876 = vld [vmem:[%s348 + $0x450] sm:$0xff]
      %v877 = vld [vmem:[%s348 + $0x458] sm:$0xff]
      %v878 = vld [vmem:[%s348 + $0x460] sm:$0xff]
      %v879 = vld [vmem:[%s348 + $0x468] sm:$0xff]
      %v880 = vld [vmem:[%s348 + $0x470] sm:$0xff]
      %v881 = vld [vmem:[%s348 + $0x478] sm:$0xff]
      %v882 = vld [vmem:[%s348 + $0x480] sm:$0xff]
      %v883 = vld [vmem:[%s348 + $0x488] sm:$0xff]
      %v884 = vld [vmem:[%s348 + $0x490] sm:$0xff]
      %v885 = vld [vmem:[%s348 + $0x498] sm:$0xff]
      %v886 = vld [vmem:[%s348 + $0x4a0] sm:$0xff]
      %v887 = vld [vmem:[%s348 + $0x4a8] sm:$0xff]
      %v888 = vld [vmem:[%s348 + $0x4b0] sm:$0xff]
      %v889 = vld [vmem:[%s348 + $0x4b8] sm:$0xff]
      %v890 = vld [vmem:[%s348 + $0x4c0] sm:$0xff]
      %v891 = vld [vmem:[%s348 + $0x4c8] sm:$0xff]
      %v892 = vld [vmem:[%s348 + $0x4d0] sm:$0xff]
      %v893 = vld [vmem:[%s348 + $0x4d8] sm:$0xff]
      %v894 = vld [vmem:[%s348 + $0x4e0] sm:$0xff]
      %v895 = vld [vmem:[%s348 + $0x4e8] sm:$0xff]
      %v896 = vld [vmem:[%s348 + $0x4f0] sm:$0xff]
      %v897 = vld [vmem:[%s348 + $0x4f8] sm:$0xff]
      %v898 = vld [vmem:[%s348 + $0x500] sm:$0xff]
      %v899 = vld [vmem:[%s348 + $0x508] sm:$0xff]
      %v900 = vld [vmem:[%s348 + $0x510] sm:$0xff]
      %v901 = vld [vmem:[%s348 + $0x518] sm:$0xff]
      %v902 = vld [vmem:[%s348 + $0x520] sm:$0xff]
      %v903 = vld [vmem:[%s348 + $0x528] sm:$0xff]
      %v904 = vld [vmem:[%s348 + $0x530] sm:$0xff]
      %v905 = vld [vmem:[%s348 + $0x538] sm:$0xff]
      %v906 = vld [vmem:[%s348 + $0x540] sm:$0xff]
      %v907 = vld [vmem:[%s348 + $0x548] sm:$0xff]
      %v908 = vld [vmem:[%s348 + $0x550] sm:$0xff]
      %v909 = vld [vmem:[%s348 + $0x558] sm:$0xff]
      %v910 = vld [vmem:[%s348 + $0x560] sm:$0xff]
      %v911 = vld [vmem:[%s348 + $0x568] sm:$0xff]
      %v912 = vld [vmem:[%s348 + $0x570] sm:$0xff]
      %v913 = vld [vmem:[%s348 + $0x578] sm:$0xff]
      %v914 = vld [vmem:[%s348 + $0x580] sm:$0xff]
      %v915 = vld [vmem:[%s348 + $0x588] sm:$0xff]
      %v916 = vld [vmem:[%s348 + $0x590] sm:$0xff]
      %v917 = vld [vmem:[%s348 + $0x598] sm:$0xff]
      %v918 = vld [vmem:[%s348 + $0x5a0] sm:$0xff]
      %v919 = vld [vmem:[%s348 + $0x5a8] sm:$0xff]
      %v920 = vld [vmem:[%s348 + $0x5b0] sm:$0xff]
      %v921 = vld [vmem:[%s348 + $0x5b8] sm:$0xff]
      %v922 = vld [vmem:[%s348 + $0x5c0] sm:$0xff]
      %v923 = vld [vmem:[%s348 + $0x5c8] sm:$0xff]
      %v924 = vld [vmem:[%s348 + $0x5d0] sm:$0xff]
      %v925 = vld [vmem:[%s348 + $0x5d8] sm:$0xff]
      %v926 = vld [vmem:[%s348 + $0x5e0] sm:$0xff]
      %v927 = vld [vmem:[%s348 + $0x5e8] sm:$0xff]
      %v928 = vld [vmem:[%s348 + $0x5f0] sm:$0xff]
      %v929 = vld [vmem:[%s348 + $0x5f8] sm:$0xff]
      %v930 = vld [vmem:[%s348 + $0x600] sm:$0xff]
      %v931 = vld [vmem:[%s348 + $0x608] sm:$0xff]
      %v932 = vld [vmem:[%s348 + $0x610] sm:$0xff]
      %v933 = vld [vmem:[%s348 + $0x618] sm:$0xff]
      %v934 = vld [vmem:[%s348 + $0x620] sm:$0xff]
      %v935 = vld [vmem:[%s348 + $0x628] sm:$0xff]
      %v936 = vld [vmem:[%s348 + $0x630] sm:$0xff]
      %v937 = vld [vmem:[%s348 + $0x638] sm:$0xff]
      %v938 = vld [vmem:[%s348 + $0x640] sm:$0xff]
      %v939 = vld [vmem:[%s348 + $0x648] sm:$0xff]
      %v940 = vld [vmem:[%s348 + $0x650] sm:$0xff]
      %v941 = vld [vmem:[%s348 + $0x658] sm:$0xff]
      %v942 = vld [vmem:[%s348 + $0x660] sm:$0xff]
      %v943 = vld [vmem:[%s348 + $0x668] sm:$0xff]
      %v944 = vld [vmem:[%s348 + $0x670] sm:$0xff]
      %v945 = vld [vmem:[%s348 + $0x678] sm:$0xff]
      %v946 = vld [vmem:[%s348 + $0x680] sm:$0xff]
      %v947 = vld [vmem:[%s348 + $0x688] sm:$0xff]
      %v948 = vld [vmem:[%s348 + $0x690] sm:$0xff]
      %v949 = vld [vmem:[%s348 + $0x698] sm:$0xff]
      %v950 = vld [vmem:[%s348 + $0x6a0] sm:$0xff]
      %v951 = vld [vmem:[%s348 + $0x6a8] sm:$0xff]
      %v952 = vld [vmem:[%s348 + $0x6b0] sm:$0xff]
      %v953 = vld [vmem:[%s348 + $0x6b8] sm:$0xff]
      %v954 = vld [vmem:[%s348 + $0x6c0] sm:$0xff]
      %v955 = vld [vmem:[%s348 + $0x6c8] sm:$0xff]
      %v956 = vld [vmem:[%s348 + $0x6d0] sm:$0xff]
      %v957 = vld [vmem:[%s348 + $0x6d8] sm:$0xff]
      %v958 = vld [vmem:[%s348 + $0x6e0] sm:$0xff]
      %v959 = vld [vmem:[%s348 + $0x6e8] sm:$0xff]
      %v960 = vld [vmem:[%s348 + $0x6f0] sm:$0xff]
      %v961 = vld [vmem:[%s348 + $0x6f8] sm:$0xff]
      %v962 = vld [vmem:[%s348 + $0x700] sm:$0xff]
      %v963 = vld [vmem:[%s348 + $0x708] sm:$0xff]
      %v964 = vld [vmem:[%s348 + $0x710] sm:$0xff]
      %v965 = vld [vmem:[%s348 + $0x718] sm:$0xff]
      %v966 = vld [vmem:[%s348 + $0x720] sm:$0xff]
      %v967 = vld [vmem:[%s348 + $0x728] sm:$0xff]
      %v968 = vld [vmem:[%s348 + $0x730] sm:$0xff]
      %v969 = vld [vmem:[%s348 + $0x738] sm:$0xff]
      %v970 = vld [vmem:[%s348 + $0x740] sm:$0xff]
      %v971 = vld [vmem:[%s348 + $0x748] sm:$0xff]
      %v972 = vld [vmem:[%s348 + $0x750] sm:$0xff]
      %v973 = vld [vmem:[%s348 + $0x758] sm:$0xff]
      %v974 = vld [vmem:[%s348 + $0x760] sm:$0xff]
      %v975 = vld [vmem:[%s348 + $0x768] sm:$0xff]
      %v976 = vld [vmem:[%s348 + $0x770] sm:$0xff]
      %v977 = vld [vmem:[%s348 + $0x778] sm:$0xff]
      %v978 = vld [vmem:[%s348 + $0x780] sm:$0xff]
      %v979 = vld [vmem:[%s348 + $0x788] sm:$0xff]
      %v980 = vld [vmem:[%s348 + $0x790] sm:$0xff]
      %v981 = vld [vmem:[%s348 + $0x798] sm:$0xff]
      %v982 = vld [vmem:[%s348 + $0x7a0] sm:$0xff]
      %v983 = vld [vmem:[%s348 + $0x7a8] sm:$0xff]
      %v984 = vld [vmem:[%s348 + $0x7b0] sm:$0xff]
      %v985 = vld [vmem:[%s348 + $0x7b8] sm:$0xff]
      %v986 = vld [vmem:[%s348 + $0x7c0] sm:$0xff]
      %v987 = vld [vmem:[%s348 + $0x7c8] sm:$0xff]
      %v988 = vld [vmem:[%s348 + $0x7d0] sm:$0xff]
      %v989 = vld [vmem:[%s348 + $0x7d8] sm:$0xff]
      %v990 = vld [vmem:[%s348 + $0x7e0] sm:$0xff]
      %v991 = vld [vmem:[%s348 + $0x7e8] sm:$0xff]
      %v992 = vld [vmem:[%s348 + $0x7f0] sm:$0xff]
      %v993 = vld [vmem:[%s348 + $0x7f8] sm:$0xff]
      %v994 = vld [vmem:[%s348 + $0x800] sm:$0xff]
      %v995 = vld [vmem:[%s348 + $0x808] sm:$0xff]
      %v996 = vld [vmem:[%s348 + $0x810] sm:$0xff]
      %v997 = vld [vmem:[%s348 + $0x818] sm:$0xff]
      %v998 = vld [vmem:[%s348 + $0x820] sm:$0xff]
      %v999 = vld [vmem:[%s348 + $0x828] sm:$0xff]
      %v1000 = vld [vmem:[%s348 + $0x830] sm:$0xff]
      %v1001 = vld [vmem:[%s348 + $0x838] sm:$0xff]
      %v1002 = vld [vmem:[%s348 + $0x840] sm:$0xff]
      %v1003 = vld [vmem:[%s348 + $0x848] sm:$0xff]
      %v1004 = vld [vmem:[%s348 + $0x850] sm:$0xff]
      %v1005 = vld [vmem:[%s348 + $0x858] sm:$0xff]
      %v1006 = vld [vmem:[%s348 + $0x860] sm:$0xff]
      %v1007 = vld [vmem:[%s348 + $0x868] sm:$0xff]
      %v1008 = vld [vmem:[%s348 + $0x870] sm:$0xff]
      %v1009 = vld [vmem:[%s348 + $0x878] sm:$0xff]
      %v1010 = vld [vmem:[%s348 + $0x880] sm:$0xff]
      %v1011 = vld [vmem:[%s348 + $0x888] sm:$0xff]
      %v1012 = vld [vmem:[%s348 + $0x890] sm:$0xff]
      %v1013 = vld [vmem:[%s348 + $0x898] sm:$0xff]
      %v1014 = vld [vmem:[%s348 + $0x8a0] sm:$0xff]
      %v1015 = vld [vmem:[%s348 + $0x8a8] sm:$0xff]
      %v1016 = vld [vmem:[%s348 + $0x8b0] sm:$0xff]
      %v1017 = vld [vmem:[%s348 + $0x8b8] sm:$0xff]
      %v1018 = vld [vmem:[%s348 + $0x8c0] sm:$0xff]
      %v1019 = vld [vmem:[%s348 + $0x8c8] sm:$0xff]
      %v1020 = vld [vmem:[%s348 + $0x8d0] sm:$0xff]
      %v1021 = vld [vmem:[%s348 + $0x8d8] sm:$0xff]
      %v1022 = vld [vmem:[%s348 + $0x8e0] sm:$0xff]
      %v1023 = vld [vmem:[%s348 + $0x8e8] sm:$0xff]
      %v1024 = vld [vmem:[%s348 + $0x8f0] sm:$0xff]
      %v1025 = vld [vmem:[%s348 + $0x8f8] sm:$0xff]
      %v1026 = vld [vmem:[%s348 + $0x900] sm:$0xff]
      %v1027 = vld [vmem:[%s348 + $0x908] sm:$0xff]
      %v1028 = vld [vmem:[%s348 + $0x910] sm:$0xff]
      %v1029 = vld [vmem:[%s348 + $0x918] sm:$0xff]
      %v1030 = vld [vmem:[%s348 + $0x920] sm:$0xff]
      %v1031 = vld [vmem:[%s348 + $0x928] sm:$0xff]
      %v1032 = vld [vmem:[%s348 + $0x930] sm:$0xff]
      %v1033 = vld [vmem:[%s348 + $0x938] sm:$0xff]
      %v1034 = vld [vmem:[%s348 + $0x940] sm:$0xff]
      %v1035 = vld [vmem:[%s348 + $0x948] sm:$0xff]
      %v1036 = vld [vmem:[%s348 + $0x950] sm:$0xff]
      %v1037 = vld [vmem:[%s348 + $0x958] sm:$0xff]
      %v1038 = vld [vmem:[%s348 + $0x960] sm:$0xff]
      %v1039 = vld [vmem:[%s348 + $0x968] sm:$0xff]
      %v1040 = vld [vmem:[%s348 + $0x970] sm:$0xff]
      %v1041 = vld [vmem:[%s348 + $0x978] sm:$0xff]
      %v1042 = vld [vmem:[%s348 + $0x980] sm:$0xff]
      %v1043 = vld [vmem:[%s348 + $0x988] sm:$0xff]
      %v1044 = vld [vmem:[%s348 + $0x990] sm:$0xff]
      %v1045 = vld [vmem:[%s348 + $0x998] sm:$0xff]
      %v1046 = vld [vmem:[%s348 + $0x9a0] sm:$0xff]
      %v1047 = vld [vmem:[%s348 + $0x9a8] sm:$0xff]
      %v1048 = vld [vmem:[%s348 + $0x9b0] sm:$0xff]
      %v1049 = vld [vmem:[%s348 + $0x9b8] sm:$0xff]
      %v1050 = vld [vmem:[%s348 + $0x9c0] sm:$0xff]
      %v1051 = vld [vmem:[%s348 + $0x9c8] sm:$0xff]
      %v1052 = vld [vmem:[%s348 + $0x9d0] sm:$0xff]
      %v1053 = vld [vmem:[%s348 + $0x9d8] sm:$0xff]
      %v1054 = vld [vmem:[%s348 + $0x9e0] sm:$0xff]
      %v1055 = vld [vmem:[%s348 + $0x9e8] sm:$0xff]
      %v1056 = vld [vmem:[%s348 + $0x9f0] sm:$0xff]
      %v1057 = vld [vmem:[%s348 + $0x9f8] sm:$0xff]
      %v1058 = vld [vmem:[%s348 + $0xa00] sm:$0xff]
      %v1059 = vld [vmem:[%s348 + $0xa08] sm:$0xff]
      %v1060 = vld [vmem:[%s348 + $0xa10] sm:$0xff]
      %v1061 = vld [vmem:[%s348 + $0xa18] sm:$0xff]
      %v1062 = vld [vmem:[%s348 + $0xa20] sm:$0xff]
      %v1063 = vld [vmem:[%s348 + $0xa28] sm:$0xff]
      %v1064 = vld [vmem:[%s348 + $0xa30] sm:$0xff]
      %v1065 = vld [vmem:[%s348 + $0xa38] sm:$0xff]
      %v1066 = vld [vmem:[%s348 + $0xa40] sm:$0xff]
      %v1067 = vld [vmem:[%s348 + $0xa48] sm:$0xff]
      %v1068 = vld [vmem:[%s348 + $0xa50] sm:$0xff]
      %v1069 = vld [vmem:[%s348 + $0xa58] sm:$0xff]
      %v1070 = vld [vmem:[%s348 + $0xa60] sm:$0xff]
      %v1071 = vld [vmem:[%s348 + $0xa68] sm:$0xff]
      %v1072 = vld [vmem:[%s348 + $0xa70] sm:$0xff]
      %v1073 = vld [vmem:[%s348 + $0xa78] sm:$0xff]
      %v1074 = vld [vmem:[%s348 + $0xa80] sm:$0xff]
      %v1075 = vld [vmem:[%s348 + $0xa88] sm:$0xff]
      %v1076 = vld [vmem:[%s348 + $0xa90] sm:$0xff]
      %v1077 = vld [vmem:[%s348 + $0xa98] sm:$0xff]
      %v1078 = vld [vmem:[%s348 + $0xaa0] sm:$0xff]
      %v1079 = vld [vmem:[%s348 + $0xaa8] sm:$0xff]
      %v1080 = vld [vmem:[%s348 + $0xab0] sm:$0xff]
      %v1081 = vld [vmem:[%s348 + $0xab8] sm:$0xff]
      %v1082 = vld [vmem:[%s348 + $0xac0] sm:$0xff]
      %v1083 = vld [vmem:[%s348 + $0xac8] sm:$0xff]
      %v1084 = vld [vmem:[%s348 + $0xad0] sm:$0xff]
      %v1085 = vld [vmem:[%s348 + $0xad8] sm:$0xff]
      %v1086 = vld [vmem:[%s348 + $0xae0] sm:$0xff]
      %v1087 = vld [vmem:[%s348 + $0xae8] sm:$0xff]
      %v1088 = vld [vmem:[%s348 + $0xaf0] sm:$0xff]
      %v1089 = vld [vmem:[%s348 + $0xaf8] sm:$0xff]
      %v1090 = vld [vmem:[%s348 + $0xb00] sm:$0xff]
      %v1091 = vld [vmem:[%s348 + $0xb08] sm:$0xff]
      %v1092 = vld [vmem:[%s348 + $0xb10] sm:$0xff]
      %v1093 = vld [vmem:[%s348 + $0xb18] sm:$0xff]
      %v1094 = vld [vmem:[%s348 + $0xb20] sm:$0xff]
      %v1095 = vld [vmem:[%s348 + $0xb28] sm:$0xff]
      %v1096 = vld [vmem:[%s348 + $0xb30] sm:$0xff]
      %v1097 = vld [vmem:[%s348 + $0xb38] sm:$0xff]
      %v1098 = vld [vmem:[%s348 + $0xb40] sm:$0xff]
      %v1099 = vld [vmem:[%s348 + $0xb48] sm:$0xff]
      %v1100 = vld [vmem:[%s348 + $0xb50] sm:$0xff]
      %v1101 = vld [vmem:[%s348 + $0xb58] sm:$0xff]
      %v1102 = vld [vmem:[%s348 + $0xb60] sm:$0xff]
      %v1103 = vld [vmem:[%s348 + $0xb68] sm:$0xff]
      %v1104 = vld [vmem:[%s348 + $0xb70] sm:$0xff]
      %v1105 = vld [vmem:[%s348 + $0xb78] sm:$0xff]
      %v1106 = vld [vmem:[%s348 + $0xb80] sm:$0xff]
      %v1107 = vld [vmem:[%s348 + $0xb88] sm:$0xff]
      %v1108 = vld [vmem:[%s348 + $0xb90] sm:$0xff]
      %v1109 = vld [vmem:[%s348 + $0xb98] sm:$0xff]
      %v1110 = vld [vmem:[%s348 + $0xba0] sm:$0xff]
      %v1111 = vld [vmem:[%s348 + $0xba8] sm:$0xff]
      %v1112 = vld [vmem:[%s348 + $0xbb0] sm:$0xff]
      %v1113 = vld [vmem:[%s348 + $0xbb8] sm:$0xff]
      %v1114 = vld [vmem:[%s348 + $0xbc0] sm:$0xff]
      %v1115 = vld [vmem:[%s348 + $0xbc8] sm:$0xff]
      %v1116 = vld [vmem:[%s348 + $0xbd0] sm:$0xff]
      %v1117 = vld [vmem:[%s348 + $0xbd8] sm:$0xff]
      %v1118 = vld [vmem:[%s348 + $0xbe0] sm:$0xff]
      %v1119 = vld [vmem:[%s348 + $0xbe8] sm:$0xff]
      %v1120 = vld [vmem:[%s348 + $0xbf0] sm:$0xff]
      %v1121 = vld [vmem:[%s348 + $0xbf8] sm:$0xff]
      %v1122 = vld [vmem:[%s348 + $0xc00] sm:$0xff]
      %v1123 = vld [vmem:[%s348 + $0xc08] sm:$0xff]
      %v1124 = vld [vmem:[%s348 + $0xc10] sm:$0xff]
      %v1125 = vld [vmem:[%s348 + $0xc18] sm:$0xff]
      %v1126 = vld [vmem:[%s348 + $0xc20] sm:$0xff]
      %v1127 = vld [vmem:[%s348 + $0xc28] sm:$0xff]
      %v1128 = vld [vmem:[%s348 + $0xc30] sm:$0xff]
      %v1129 = vld [vmem:[%s348 + $0xc38] sm:$0xff]
      %v1130 = vld [vmem:[%s348 + $0xc40] sm:$0xff]
      %v1131 = vld [vmem:[%s348 + $0xc48] sm:$0xff]
      %v1132 = vld [vmem:[%s348 + $0xc50] sm:$0xff]
      %v1133 = vld [vmem:[%s348 + $0xc58] sm:$0xff]
      %v1134 = vld [vmem:[%s348 + $0xc60] sm:$0xff]
      %v1135 = vld [vmem:[%s348 + $0xc68] sm:$0xff]
      %v1136 = vld [vmem:[%s348 + $0xc70] sm:$0xff]
      %v1137 = vld [vmem:[%s348 + $0xc78] sm:$0xff]
      %v1138 = vld [vmem:[%s348 + $0xc80] sm:$0xff]
      %v1139 = vld [vmem:[%s348 + $0xc88] sm:$0xff]
      %v1140 = vld [vmem:[%s348 + $0xc90] sm:$0xff]
      %v1141 = vld [vmem:[%s348 + $0xc98] sm:$0xff]
      %v1142 = vld [vmem:[%s348 + $0xca0] sm:$0xff]
      %v1143 = vld [vmem:[%s348 + $0xca8] sm:$0xff]
      %v1144 = vld [vmem:[%s348 + $0xcb0] sm:$0xff]
      %v1145 = vld [vmem:[%s348 + $0xcb8] sm:$0xff]
      %v1146 = vld [vmem:[%s348 + $0xcc0] sm:$0xff]
      %v1147 = vld [vmem:[%s348 + $0xcc8] sm:$0xff]
      %v1148 = vld [vmem:[%s348 + $0xcd0] sm:$0xff]
      %v1149 = vld [vmem:[%s348 + $0xcd8] sm:$0xff]
      %v1150 = vld [vmem:[%s348 + $0xce0] sm:$0xff]
      %v1151 = vld [vmem:[%s348 + $0xce8] sm:$0xff]
      %v1152 = vld [vmem:[%s348 + $0xcf0] sm:$0xff]
      %v1153 = vld [vmem:[%s348 + $0xcf8] sm:$0xff]
      %v1154 = vld [vmem:[%s348 + $0xd00] sm:$0xff]
      %v1155 = vld [vmem:[%s348 + $0xd08] sm:$0xff]
      %v1156 = vld [vmem:[%s348 + $0xd10] sm:$0xff]
      %v1157 = vld [vmem:[%s348 + $0xd18] sm:$0xff]
      %v1158 = vld [vmem:[%s348 + $0xd20] sm:$0xff]
      %v1159 = vld [vmem:[%s348 + $0xd28] sm:$0xff]
      %v1160 = vld [vmem:[%s348 + $0xd30] sm:$0xff]
      %v1161 = vld [vmem:[%s348 + $0xd38] sm:$0xff]
      %v1162 = vld [vmem:[%s348 + $0xd40] sm:$0xff]
      %v1163 = vld [vmem:[%s348 + $0xd48] sm:$0xff]
      %v1164 = vld [vmem:[%s348 + $0xd50] sm:$0xff]
      %v1165 = vld [vmem:[%s348 + $0xd58] sm:$0xff]
      %v1166 = vld [vmem:[%s348 + $0xd60] sm:$0xff]
      %v1167 = vld [vmem:[%s348 + $0xd68] sm:$0xff]
      %v1168 = vld [vmem:[%s348 + $0xd70] sm:$0xff]
      %v1169 = vld [vmem:[%s348 + $0xd78] sm:$0xff]
      %v1170 = vld [vmem:[%s348 + $0xd80] sm:$0xff]
      %v1171 = vld [vmem:[%s348 + $0xd88] sm:$0xff]
      %v1172 = vld [vmem:[%s348 + $0xd90] sm:$0xff]
      %v1173 = vld [vmem:[%s348 + $0xd98] sm:$0xff]
      %v1174 = vld [vmem:[%s348 + $0xda0] sm:$0xff]
      %v1175 = vld [vmem:[%s348 + $0xda8] sm:$0xff]
      %v1176 = vld [vmem:[%s348 + $0xdb0] sm:$0xff]
      %v1177 = vld [vmem:[%s348 + $0xdb8] sm:$0xff]
      %v1178 = vld [vmem:[%s348 + $0xdc0] sm:$0xff]
      %v1179 = vld [vmem:[%s348 + $0xdc8] sm:$0xff]
      %v1180 = vld [vmem:[%s348 + $0xdd0] sm:$0xff]
      %v1181 = vld [vmem:[%s348 + $0xdd8] sm:$0xff]
      %v1182 = vld [vmem:[%s348 + $0xde0] sm:$0xff]
      %v1183 = vld [vmem:[%s348 + $0xde8] sm:$0xff]
      %v1184 = vld [vmem:[%s348 + $0xdf0] sm:$0xff]
      %v1185 = vld [vmem:[%s348 + $0xdf8] sm:$0xff]
      %v1186 = vld [vmem:[%s348 + $0xe00] sm:$0xff]
      %v1187 = vld [vmem:[%s348 + $0xe08] sm:$0xff]
      %v1188 = vld [vmem:[%s348 + $0xe10] sm:$0xff]
      %v1189 = vld [vmem:[%s348 + $0xe18] sm:$0xff]
      %v1190 = vld [vmem:[%s348 + $0xe20] sm:$0xff]
      %v1191 = vld [vmem:[%s348 + $0xe28] sm:$0xff]
      %v1192 = vld [vmem:[%s348 + $0xe30] sm:$0xff]
      %v1193 = vld [vmem:[%s348 + $0xe38] sm:$0xff]
      %v1194 = vld [vmem:[%s348 + $0xe40] sm:$0xff]
      %v1195 = vld [vmem:[%s348 + $0xe48] sm:$0xff]
      %v1196 = vld [vmem:[%s348 + $0xe50] sm:$0xff]
      %v1197 = vld [vmem:[%s348 + $0xe58] sm:$0xff]
      %v1198 = vld [vmem:[%s348 + $0xe60] sm:$0xff]
      %v1199 = vld [vmem:[%s348 + $0xe68] sm:$0xff]
      %v1200 = vld [vmem:[%s348 + $0xe70] sm:$0xff]
      %v1201 = vld [vmem:[%s348 + $0xe78] sm:$0xff]
      %v1202 = vld [vmem:[%s348 + $0xe80] sm:$0xff]
      %v1203 = vld [vmem:[%s348 + $0xe88] sm:$0xff]
      %v1204 = vld [vmem:[%s348 + $0xe90] sm:$0xff]
      %v1205 = vld [vmem:[%s348 + $0xe98] sm:$0xff]
      %v1206 = vld [vmem:[%s348 + $0xea0] sm:$0xff]
      %v1207 = vld [vmem:[%s348 + $0xea8] sm:$0xff]
      %v1208 = vld [vmem:[%s348 + $0xeb0] sm:$0xff]
      %v1209 = vld [vmem:[%s348 + $0xeb8] sm:$0xff]
      %v1210 = vld [vmem:[%s348 + $0xec0] sm:$0xff]
      %v1211 = vld [vmem:[%s348 + $0xec8] sm:$0xff]
      %v1212 = vld [vmem:[%s348 + $0xed0] sm:$0xff]
      %v1213 = vld [vmem:[%s348 + $0xed8] sm:$0xff]
      %v1214 = vld [vmem:[%s348 + $0xee0] sm:$0xff]
      %v1215 = vld [vmem:[%s348 + $0xee8] sm:$0xff]
      %v1216 = vld [vmem:[%s348 + $0xef0] sm:$0xff]
      %v1217 = vld [vmem:[%s348 + $0xef8] sm:$0xff]
      %v1218 = vld [vmem:[%s348 + $0xf00] sm:$0xff]
      %v1219 = vld [vmem:[%s348 + $0xf08] sm:$0xff]
      %v1220 = vld [vmem:[%s348 + $0xf10] sm:$0xff]
      %v1221 = vld [vmem:[%s348 + $0xf18] sm:$0xff]
      %v1222 = vld [vmem:[%s348 + $0xf20] sm:$0xff]
      %v1223 = vld [vmem:[%s348 + $0xf28] sm:$0xff]
      %v1224 = vld [vmem:[%s348 + $0xf30] sm:$0xff]
      %v1225 = vld [vmem:[%s348 + $0xf38] sm:$0xff]
      %v1226 = vld [vmem:[%s348 + $0xf40] sm:$0xff]
      %v1227 = vld [vmem:[%s348 + $0xf48] sm:$0xff]
      %v1228 = vld [vmem:[%s348 + $0xf50] sm:$0xff]
      %v1229 = vld [vmem:[%s348 + $0xf58] sm:$0xff]
      %v1230 = vld [vmem:[%s348 + $0xf60] sm:$0xff]
      %v1231 = vld [vmem:[%s348 + $0xf68] sm:$0xff]
      %v1232 = vld [vmem:[%s348 + $0xf70] sm:$0xff]
      %v1233 = vld [vmem:[%s348 + $0xf78] sm:$0xff]
      %v1234 = vld [vmem:[%s348 + $0xf80] sm:$0xff]
      %v1235 = vld [vmem:[%s348 + $0xf88] sm:$0xff]
      %v1236 = vld [vmem:[%s348 + $0xf90] sm:$0xff]
      %v1237 = vld [vmem:[%s348 + $0xf98] sm:$0xff]
      %v1238 = vld [vmem:[%s348 + $0xfa0] sm:$0xff]
      %v1239 = vld [vmem:[%s348 + $0xfa8] sm:$0xff]
      %v1240 = vld [vmem:[%s348 + $0xfb0] sm:$0xff]
      %v1241 = vld [vmem:[%s348 + $0xfb8] sm:$0xff]
      %v1242 = vld [vmem:[%s348 + $0xfc0] sm:$0xff]
      %v1243 = vld [vmem:[%s348 + $0xfc8] sm:$0xff]
      %v1244 = vld [vmem:[%s348 + $0xfd0] sm:$0xff]
      %v1245 = vld [vmem:[%s348 + $0xfd8] sm:$0xff]
      %v1246 = vld [vmem:[%s348 + $0xfe0] sm:$0xff]
      %v1247 = vld [vmem:[%s348 + $0xfe8] sm:$0xff]
      %v1248 = vld [vmem:[%s348 + $0xff0] sm:$0xff]
      %v1249 = vld [vmem:[%s348 + $0xff8] sm:$0xff]
      %v1250 = vld [vmem:[%s352] sm:$0xff]
      %v1252 = vlaneseq
      %v1253 = vshrl.u32 %v1252, 7
      %v1254 = vsub.s32 0, %v1253
      %v1255 = vrot.slane %v1250, %v1254
      %v1256 = vlaneseq
      %v1257 = vshrl.u32 %v1256, 7
      %v1258 = vsub.s32 1, %v1257
      %v1259 = vrot.slane %v1250, %v1258
      %v1260 = vlaneseq
      %v1261 = vshrl.u32 %v1260, 7
      %v1262 = vsub.s32 2, %v1261
      %v1263 = vrot.slane %v1250, %v1262
      %v1264 = vlaneseq
      %v1265 = vshrl.u32 %v1264, 7
      %v1266 = vsub.s32 3, %v1265
      %v1267 = vrot.slane %v1250, %v1266
      %v1268 = vlaneseq
      %v1269 = vshrl.u32 %v1268, 7
      %v1270 = vsub.s32 4, %v1269
      %v1271 = vrot.slane %v1250, %v1270
      %v1272 = vlaneseq
      %v1273 = vshrl.u32 %v1272, 7
      %v1274 = vsub.s32 5, %v1273
      %v1275 = vrot.slane %v1250, %v1274
      %v1276 = vlaneseq
      %v1277 = vshrl.u32 %v1276, 7
      %v1278 = vsub.s32 6, %v1277
      %v1279 = vrot.slane %v1250, %v1278
      %v1280 = vlaneseq
      %v1281 = vshrl.u32 %v1280, 7
      %v1282 = vsub.s32 7, %v1281
      %v1283 = vrot.slane %v1250, %v1282
      %v1804 = vunpack.c.l.b16 %v738
      %v1805 = vunpack.c.h.b16 %v738
      %v1806 = vunpack.c.l.b16 %v739
      %v1807 = vunpack.c.h.b16 %v739
      %v1808 = vunpack.c.l.b16 %v740
      %v1809 = vunpack.c.h.b16 %v740
      %v1810 = vunpack.c.l.b16 %v741
      %v1811 = vunpack.c.h.b16 %v741
      %v1812 = vunpack.c.l.b16 %v742
      %v1813 = vunpack.c.h.b16 %v742
      %v1814 = vunpack.c.l.b16 %v743
      %v1815 = vunpack.c.h.b16 %v743
      %v1816 = vunpack.c.l.b16 %v744
      %v1817 = vunpack.c.h.b16 %v744
      %v1818 = vunpack.c.l.b16 %v745
      %v1819 = vunpack.c.h.b16 %v745
      %v1820 = vunpack.c.l.b16 %v746
      %v1821 = vunpack.c.h.b16 %v746
      %v1822 = vunpack.c.l.b16 %v747
      %v1823 = vunpack.c.h.b16 %v747
      %v1824 = vunpack.c.l.b16 %v748
      %v1825 = vunpack.c.h.b16 %v748
      %v1826 = vunpack.c.l.b16 %v749
      %v1827 = vunpack.c.h.b16 %v749
      %v1828 = vunpack.c.l.b16 %v750
      %v1829 = vunpack.c.h.b16 %v750
      %v1830 = vunpack.c.l.b16 %v751
      %v1831 = vunpack.c.h.b16 %v751
      %v1832 = vunpack.c.l.b16 %v752
      %v1833 = vunpack.c.h.b16 %v752
      %v1834 = vunpack.c.l.b16 %v753
      %v1835 = vunpack.c.h.b16 %v753
      %v1836 = vunpack.c.l.b16 %v754
      %v1837 = vunpack.c.h.b16 %v754
      %v1838 = vunpack.c.l.b16 %v755
      %v1839 = vunpack.c.h.b16 %v755
      %v1840 = vunpack.c.l.b16 %v756
      %v1841 = vunpack.c.h.b16 %v756
      %v1842 = vunpack.c.l.b16 %v757
      %v1843 = vunpack.c.h.b16 %v757
      %v1844 = vunpack.c.l.b16 %v758
      %v1845 = vunpack.c.h.b16 %v758
      %v1846 = vunpack.c.l.b16 %v759
      %v1847 = vunpack.c.h.b16 %v759
      %v1848 = vunpack.c.l.b16 %v760
      %v1849 = vunpack.c.h.b16 %v760
      %v1850 = vunpack.c.l.b16 %v761
      %v1851 = vunpack.c.h.b16 %v761
      %v1852 = vunpack.c.l.b16 %v762
      %v1853 = vunpack.c.h.b16 %v762
      %v1854 = vunpack.c.l.b16 %v763
      %v1855 = vunpack.c.h.b16 %v763
      %v1856 = vunpack.c.l.b16 %v764
      %v1857 = vunpack.c.h.b16 %v764
      %v1858 = vunpack.c.l.b16 %v765
      %v1859 = vunpack.c.h.b16 %v765
      %v1860 = vunpack.c.l.b16 %v766
      %v1861 = vunpack.c.h.b16 %v766
      %v1862 = vunpack.c.l.b16 %v767
      %v1863 = vunpack.c.h.b16 %v767
      %v1864 = vunpack.c.l.b16 %v768
      %v1865 = vunpack.c.h.b16 %v768
      %v1866 = vunpack.c.l.b16 %v769
      %v1867 = vunpack.c.h.b16 %v769
      %v1868 = vunpack.c.l.b16 %v770
      %v1869 = vunpack.c.h.b16 %v770
      %v1870 = vunpack.c.l.b16 %v771
      %v1871 = vunpack.c.h.b16 %v771
      %v1872 = vunpack.c.l.b16 %v772
      %v1873 = vunpack.c.h.b16 %v772
      %v1874 = vunpack.c.l.b16 %v773
      %v1875 = vunpack.c.h.b16 %v773
      %v1876 = vunpack.c.l.b16 %v774
      %v1877 = vunpack.c.h.b16 %v774
      %v1878 = vunpack.c.l.b16 %v775
      %v1879 = vunpack.c.h.b16 %v775
      %v1880 = vunpack.c.l.b16 %v776
      %v1881 = vunpack.c.h.b16 %v776
      %v1882 = vunpack.c.l.b16 %v777
      %v1883 = vunpack.c.h.b16 %v777
      %v1884 = vunpack.c.l.b16 %v778
      %v1885 = vunpack.c.h.b16 %v778
      %v1886 = vunpack.c.l.b16 %v779
      %v1887 = vunpack.c.h.b16 %v779
      %v1888 = vunpack.c.l.b16 %v780
      %v1889 = vunpack.c.h.b16 %v780
      %v1890 = vunpack.c.l.b16 %v781
      %v1891 = vunpack.c.h.b16 %v781
      %v1892 = vunpack.c.l.b16 %v782
      %v1893 = vunpack.c.h.b16 %v782
      %v1894 = vunpack.c.l.b16 %v783
      %v1895 = vunpack.c.h.b16 %v783
      %v1896 = vunpack.c.l.b16 %v784
      %v1897 = vunpack.c.h.b16 %v784
      %v1898 = vunpack.c.l.b16 %v785
      %v1899 = vunpack.c.h.b16 %v785
      %v1900 = vunpack.c.l.b16 %v786
      %v1901 = vunpack.c.h.b16 %v786
      %v1902 = vunpack.c.l.b16 %v787
      %v1903 = vunpack.c.h.b16 %v787
      %v1904 = vunpack.c.l.b16 %v788
      %v1905 = vunpack.c.h.b16 %v788
      %v1906 = vunpack.c.l.b16 %v789
      %v1907 = vunpack.c.h.b16 %v789
      %v1908 = vunpack.c.l.b16 %v790
      %v1909 = vunpack.c.h.b16 %v790
      %v1910 = vunpack.c.l.b16 %v791
      %v1911 = vunpack.c.h.b16 %v791
      %v1912 = vunpack.c.l.b16 %v792
      %v1913 = vunpack.c.h.b16 %v792
      %v1914 = vunpack.c.l.b16 %v793
      %v1915 = vunpack.c.h.b16 %v793
      %v1916 = vunpack.c.l.b16 %v794
      %v1917 = vunpack.c.h.b16 %v794
      %v1918 = vunpack.c.l.b16 %v795
      %v1919 = vunpack.c.h.b16 %v795
      %v1920 = vunpack.c.l.b16 %v796
      %v1921 = vunpack.c.h.b16 %v796
      %v1922 = vunpack.c.l.b16 %v797
      %v1923 = vunpack.c.h.b16 %v797
      %v1924 = vunpack.c.l.b16 %v798
      %v1925 = vunpack.c.h.b16 %v798
      %v1926 = vunpack.c.l.b16 %v799
      %v1927 = vunpack.c.h.b16 %v799
      %v1928 = vunpack.c.l.b16 %v800
      %v1929 = vunpack.c.h.b16 %v800
      %v1930 = vunpack.c.l.b16 %v801
      %v1931 = vunpack.c.h.b16 %v801
      %v1932 = vunpack.c.l.b16 %v802
      %v1933 = vunpack.c.h.b16 %v802
      %v1934 = vunpack.c.l.b16 %v803
      %v1935 = vunpack.c.h.b16 %v803
      %v1936 = vunpack.c.l.b16 %v804
      %v1937 = vunpack.c.h.b16 %v804
      %v1938 = vunpack.c.l.b16 %v805
      %v1939 = vunpack.c.h.b16 %v805
      %v1940 = vunpack.c.l.b16 %v806
      %v1941 = vunpack.c.h.b16 %v806
      %v1942 = vunpack.c.l.b16 %v807
      %v1943 = vunpack.c.h.b16 %v807
      %v1944 = vunpack.c.l.b16 %v808
      %v1945 = vunpack.c.h.b16 %v808
      %v1946 = vunpack.c.l.b16 %v809
      %v1947 = vunpack.c.h.b16 %v809
      %v1948 = vunpack.c.l.b16 %v810
      %v1949 = vunpack.c.h.b16 %v810
      %v1950 = vunpack.c.l.b16 %v811
      %v1951 = vunpack.c.h.b16 %v811
      %v1952 = vunpack.c.l.b16 %v812
      %v1953 = vunpack.c.h.b16 %v812
      %v1954 = vunpack.c.l.b16 %v813
      %v1955 = vunpack.c.h.b16 %v813
      %v1956 = vunpack.c.l.b16 %v814
      %v1957 = vunpack.c.h.b16 %v814
      %v1958 = vunpack.c.l.b16 %v815
      %v1959 = vunpack.c.h.b16 %v815
      %v1960 = vunpack.c.l.b16 %v816
      %v1961 = vunpack.c.h.b16 %v816
      %v1962 = vunpack.c.l.b16 %v817
      %v1963 = vunpack.c.h.b16 %v817
      %v1964 = vunpack.c.l.b16 %v818
      %v1965 = vunpack.c.h.b16 %v818
      %v1966 = vunpack.c.l.b16 %v819
      %v1967 = vunpack.c.h.b16 %v819
      %v1968 = vunpack.c.l.b16 %v820
      %v1969 = vunpack.c.h.b16 %v820
      %v1970 = vunpack.c.l.b16 %v821
      %v1971 = vunpack.c.h.b16 %v821
      %v1972 = vunpack.c.l.b16 %v822
      %v1973 = vunpack.c.h.b16 %v822
      %v1974 = vunpack.c.l.b16 %v823
      %v1975 = vunpack.c.h.b16 %v823
      %v1976 = vunpack.c.l.b16 %v824
      %v1977 = vunpack.c.h.b16 %v824
      %v1978 = vunpack.c.l.b16 %v825
      %v1979 = vunpack.c.h.b16 %v825
      %v1980 = vunpack.c.l.b16 %v826
      %v1981 = vunpack.c.h.b16 %v826
      %v1982 = vunpack.c.l.b16 %v827
      %v1983 = vunpack.c.h.b16 %v827
      %v1984 = vunpack.c.l.b16 %v828
      %v1985 = vunpack.c.h.b16 %v828
      %v1986 = vunpack.c.l.b16 %v829
      %v1987 = vunpack.c.h.b16 %v829
      %v1988 = vunpack.c.l.b16 %v830
      %v1989 = vunpack.c.h.b16 %v830
      %v1990 = vunpack.c.l.b16 %v831
      %v1991 = vunpack.c.h.b16 %v831
      %v1992 = vunpack.c.l.b16 %v832
      %v1993 = vunpack.c.h.b16 %v832
      %v1994 = vunpack.c.l.b16 %v833
      %v1995 = vunpack.c.h.b16 %v833
      %v1996 = vunpack.c.l.b16 %v834
      %v1997 = vunpack.c.h.b16 %v834
      %v1998 = vunpack.c.l.b16 %v835
      %v1999 = vunpack.c.h.b16 %v835
      %v2000 = vunpack.c.l.b16 %v836
      %v2001 = vunpack.c.h.b16 %v836
      %v2002 = vunpack.c.l.b16 %v837
      %v2003 = vunpack.c.h.b16 %v837
      %v2004 = vunpack.c.l.b16 %v838
      %v2005 = vunpack.c.h.b16 %v838
      %v2006 = vunpack.c.l.b16 %v839
      %v2007 = vunpack.c.h.b16 %v839
      %v2008 = vunpack.c.l.b16 %v840
      %v2009 = vunpack.c.h.b16 %v840
      %v2010 = vunpack.c.l.b16 %v841
      %v2011 = vunpack.c.h.b16 %v841
      %v2012 = vunpack.c.l.b16 %v842
      %v2013 = vunpack.c.h.b16 %v842
      %v2014 = vunpack.c.l.b16 %v843
      %v2015 = vunpack.c.h.b16 %v843
      %v2016 = vunpack.c.l.b16 %v844
      %v2017 = vunpack.c.h.b16 %v844
      %v2018 = vunpack.c.l.b16 %v845
      %v2019 = vunpack.c.h.b16 %v845
      %v2020 = vunpack.c.l.b16 %v846
      %v2021 = vunpack.c.h.b16 %v846
      %v2022 = vunpack.c.l.b16 %v847
      %v2023 = vunpack.c.h.b16 %v847
      %v2024 = vunpack.c.l.b16 %v848
      %v2025 = vunpack.c.h.b16 %v848
      %v2026 = vunpack.c.l.b16 %v849
      %v2027 = vunpack.c.h.b16 %v849
      %v2028 = vunpack.c.l.b16 %v850
      %v2029 = vunpack.c.h.b16 %v850
      %v2030 = vunpack.c.l.b16 %v851
      %v2031 = vunpack.c.h.b16 %v851
      %v2032 = vunpack.c.l.b16 %v852
      %v2033 = vunpack.c.h.b16 %v852
      %v2034 = vunpack.c.l.b16 %v853
      %v2035 = vunpack.c.h.b16 %v853
      %v2036 = vunpack.c.l.b16 %v854
      %v2037 = vunpack.c.h.b16 %v854
      %v2038 = vunpack.c.l.b16 %v855
      %v2039 = vunpack.c.h.b16 %v855
      %v2040 = vunpack.c.l.b16 %v856
      %v2041 = vunpack.c.h.b16 %v856
      %v2042 = vunpack.c.l.b16 %v857
      %v2043 = vunpack.c.h.b16 %v857
      %v2044 = vunpack.c.l.b16 %v858
      %v2045 = vunpack.c.h.b16 %v858
      %v2046 = vunpack.c.l.b16 %v859
      %v2047 = vunpack.c.h.b16 %v859
      %v2048 = vunpack.c.l.b16 %v860
      %v2049 = vunpack.c.h.b16 %v860
      %v2050 = vunpack.c.l.b16 %v861
      %v2051 = vunpack.c.h.b16 %v861
      %v2052 = vunpack.c.l.b16 %v862
      %v2053 = vunpack.c.h.b16 %v862
      %v2054 = vunpack.c.l.b16 %v863
      %v2055 = vunpack.c.h.b16 %v863
      %v2056 = vunpack.c.l.b16 %v864
      %v2057 = vunpack.c.h.b16 %v864
      %v2058 = vunpack.c.l.b16 %v865
      %v2059 = vunpack.c.h.b16 %v865
      %v2060 = vunpack.c.l.b16 %v866
      %v2061 = vunpack.c.h.b16 %v866
      %v2062 = vunpack.c.l.b16 %v867
      %v2063 = vunpack.c.h.b16 %v867
      %v2064 = vunpack.c.l.b16 %v868
      %v2065 = vunpack.c.h.b16 %v868
      %v2066 = vunpack.c.l.b16 %v869
      %v2067 = vunpack.c.h.b16 %v869
      %v2068 = vunpack.c.l.b16 %v870
      %v2069 = vunpack.c.h.b16 %v870
      %v2070 = vunpack.c.l.b16 %v871
      %v2071 = vunpack.c.h.b16 %v871
      %v2072 = vunpack.c.l.b16 %v872
      %v2073 = vunpack.c.h.b16 %v872
      %v2074 = vunpack.c.l.b16 %v873
      %v2075 = vunpack.c.h.b16 %v873
      %v2076 = vunpack.c.l.b16 %v874
      %v2077 = vunpack.c.h.b16 %v874
      %v2078 = vunpack.c.l.b16 %v875
      %v2079 = vunpack.c.h.b16 %v875
      %v2080 = vunpack.c.l.b16 %v876
      %v2081 = vunpack.c.h.b16 %v876
      %v2082 = vunpack.c.l.b16 %v877
      %v2083 = vunpack.c.h.b16 %v877
      %v2084 = vunpack.c.l.b16 %v878
      %v2085 = vunpack.c.h.b16 %v878
      %v2086 = vunpack.c.l.b16 %v879
      %v2087 = vunpack.c.h.b16 %v879
      %v2088 = vunpack.c.l.b16 %v880
      %v2089 = vunpack.c.h.b16 %v880
      %v2090 = vunpack.c.l.b16 %v881
      %v2091 = vunpack.c.h.b16 %v881
      %v2092 = vunpack.c.l.b16 %v882
      %v2093 = vunpack.c.h.b16 %v882
      %v2094 = vunpack.c.l.b16 %v883
      %v2095 = vunpack.c.h.b16 %v883
      %v2096 = vunpack.c.l.b16 %v884
      %v2097 = vunpack.c.h.b16 %v884
      %v2098 = vunpack.c.l.b16 %v885
      %v2099 = vunpack.c.h.b16 %v885
      %v2100 = vunpack.c.l.b16 %v886
      %v2101 = vunpack.c.h.b16 %v886
      %v2102 = vunpack.c.l.b16 %v887
      %v2103 = vunpack.c.h.b16 %v887
      %v2104 = vunpack.c.l.b16 %v888
      %v2105 = vunpack.c.h.b16 %v888
      %v2106 = vunpack.c.l.b16 %v889
      %v2107 = vunpack.c.h.b16 %v889
      %v2108 = vunpack.c.l.b16 %v890
      %v2109 = vunpack.c.h.b16 %v890
      %v2110 = vunpack.c.l.b16 %v891
      %v2111 = vunpack.c.h.b16 %v891
      %v2112 = vunpack.c.l.b16 %v892
      %v2113 = vunpack.c.h.b16 %v892
      %v2114 = vunpack.c.l.b16 %v893
      %v2115 = vunpack.c.h.b16 %v893
      %v2116 = vunpack.c.l.b16 %v894
      %v2117 = vunpack.c.h.b16 %v894
      %v2118 = vunpack.c.l.b16 %v895
      %v2119 = vunpack.c.h.b16 %v895
      %v2120 = vunpack.c.l.b16 %v896
      %v2121 = vunpack.c.h.b16 %v896
      %v2122 = vunpack.c.l.b16 %v897
      %v2123 = vunpack.c.h.b16 %v897
      %v2124 = vunpack.c.l.b16 %v898
      %v2125 = vunpack.c.h.b16 %v898
      %v2126 = vunpack.c.l.b16 %v899
      %v2127 = vunpack.c.h.b16 %v899
      %v2128 = vunpack.c.l.b16 %v900
      %v2129 = vunpack.c.h.b16 %v900
      %v2130 = vunpack.c.l.b16 %v901
      %v2131 = vunpack.c.h.b16 %v901
      %v2132 = vunpack.c.l.b16 %v902
      %v2133 = vunpack.c.h.b16 %v902
      %v2134 = vunpack.c.l.b16 %v903
      %v2135 = vunpack.c.h.b16 %v903
      %v2136 = vunpack.c.l.b16 %v904
      %v2137 = vunpack.c.h.b16 %v904
      %v2138 = vunpack.c.l.b16 %v905
      %v2139 = vunpack.c.h.b16 %v905
      %v2140 = vunpack.c.l.b16 %v906
      %v2141 = vunpack.c.h.b16 %v906
      %v2142 = vunpack.c.l.b16 %v907
      %v2143 = vunpack.c.h.b16 %v907
      %v2144 = vunpack.c.l.b16 %v908
      %v2145 = vunpack.c.h.b16 %v908
      %v2146 = vunpack.c.l.b16 %v909
      %v2147 = vunpack.c.h.b16 %v909
      %v2148 = vunpack.c.l.b16 %v910
      %v2149 = vunpack.c.h.b16 %v910
      %v2150 = vunpack.c.l.b16 %v911
      %v2151 = vunpack.c.h.b16 %v911
      %v2152 = vunpack.c.l.b16 %v912
      %v2153 = vunpack.c.h.b16 %v912
      %v2154 = vunpack.c.l.b16 %v913
      %v2155 = vunpack.c.h.b16 %v913
      %v2156 = vunpack.c.l.b16 %v914
      %v2157 = vunpack.c.h.b16 %v914
      %v2158 = vunpack.c.l.b16 %v915
      %v2159 = vunpack.c.h.b16 %v915
      %v2160 = vunpack.c.l.b16 %v916
      %v2161 = vunpack.c.h.b16 %v916
      %v2162 = vunpack.c.l.b16 %v917
      %v2163 = vunpack.c.h.b16 %v917
      %v2164 = vunpack.c.l.b16 %v918
      %v2165 = vunpack.c.h.b16 %v918
      %v2166 = vunpack.c.l.b16 %v919
      %v2167 = vunpack.c.h.b16 %v919
      %v2168 = vunpack.c.l.b16 %v920
      %v2169 = vunpack.c.h.b16 %v920
      %v2170 = vunpack.c.l.b16 %v921
      %v2171 = vunpack.c.h.b16 %v921
      %v2172 = vunpack.c.l.b16 %v922
      %v2173 = vunpack.c.h.b16 %v922
      %v2174 = vunpack.c.l.b16 %v923
      %v2175 = vunpack.c.h.b16 %v923
      %v2176 = vunpack.c.l.b16 %v924
      %v2177 = vunpack.c.h.b16 %v924
      %v2178 = vunpack.c.l.b16 %v925
      %v2179 = vunpack.c.h.b16 %v925
      %v2180 = vunpack.c.l.b16 %v926
      %v2181 = vunpack.c.h.b16 %v926
      %v2182 = vunpack.c.l.b16 %v927
      %v2183 = vunpack.c.h.b16 %v927
      %v2184 = vunpack.c.l.b16 %v928
      %v2185 = vunpack.c.h.b16 %v928
      %v2186 = vunpack.c.l.b16 %v929
      %v2187 = vunpack.c.h.b16 %v929
      %v2188 = vunpack.c.l.b16 %v930
      %v2189 = vunpack.c.h.b16 %v930
      %v2190 = vunpack.c.l.b16 %v931
      %v2191 = vunpack.c.h.b16 %v931
      %v2192 = vunpack.c.l.b16 %v932
      %v2193 = vunpack.c.h.b16 %v932
      %v2194 = vunpack.c.l.b16 %v933
      %v2195 = vunpack.c.h.b16 %v933
      %v2196 = vunpack.c.l.b16 %v934
      %v2197 = vunpack.c.h.b16 %v934
      %v2198 = vunpack.c.l.b16 %v935
      %v2199 = vunpack.c.h.b16 %v935
      %v2200 = vunpack.c.l.b16 %v936
      %v2201 = vunpack.c.h.b16 %v936
      %v2202 = vunpack.c.l.b16 %v937
      %v2203 = vunpack.c.h.b16 %v937
      %v2204 = vunpack.c.l.b16 %v938
      %v2205 = vunpack.c.h.b16 %v938
      %v2206 = vunpack.c.l.b16 %v939
      %v2207 = vunpack.c.h.b16 %v939
      %v2208 = vunpack.c.l.b16 %v940
      %v2209 = vunpack.c.h.b16 %v940
      %v2210 = vunpack.c.l.b16 %v941
      %v2211 = vunpack.c.h.b16 %v941
      %v2212 = vunpack.c.l.b16 %v942
      %v2213 = vunpack.c.h.b16 %v942
      %v2214 = vunpack.c.l.b16 %v943
      %v2215 = vunpack.c.h.b16 %v943
      %v2216 = vunpack.c.l.b16 %v944
      %v2217 = vunpack.c.h.b16 %v944
      %v2218 = vunpack.c.l.b16 %v945
      %v2219 = vunpack.c.h.b16 %v945
      %v2220 = vunpack.c.l.b16 %v946
      %v2221 = vunpack.c.h.b16 %v946
      %v2222 = vunpack.c.l.b16 %v947
      %v2223 = vunpack.c.h.b16 %v947
      %v2224 = vunpack.c.l.b16 %v948
      %v2225 = vunpack.c.h.b16 %v948
      %v2226 = vunpack.c.l.b16 %v949
      %v2227 = vunpack.c.h.b16 %v949
      %v2228 = vunpack.c.l.b16 %v950
      %v2229 = vunpack.c.h.b16 %v950
      %v2230 = vunpack.c.l.b16 %v951
      %v2231 = vunpack.c.h.b16 %v951
      %v2232 = vunpack.c.l.b16 %v952
      %v2233 = vunpack.c.h.b16 %v952
      %v2234 = vunpack.c.l.b16 %v953
      %v2235 = vunpack.c.h.b16 %v953
      %v2236 = vunpack.c.l.b16 %v954
      %v2237 = vunpack.c.h.b16 %v954
      %v2238 = vunpack.c.l.b16 %v955
      %v2239 = vunpack.c.h.b16 %v955
      %v2240 = vunpack.c.l.b16 %v956
      %v2241 = vunpack.c.h.b16 %v956
      %v2242 = vunpack.c.l.b16 %v957
      %v2243 = vunpack.c.h.b16 %v957
      %v2244 = vunpack.c.l.b16 %v958
      %v2245 = vunpack.c.h.b16 %v958
      %v2246 = vunpack.c.l.b16 %v959
      %v2247 = vunpack.c.h.b16 %v959
      %v2248 = vunpack.c.l.b16 %v960
      %v2249 = vunpack.c.h.b16 %v960
      %v2250 = vunpack.c.l.b16 %v961
      %v2251 = vunpack.c.h.b16 %v961
      %v2252 = vunpack.c.l.b16 %v962
      %v2253 = vunpack.c.h.b16 %v962
      %v2254 = vunpack.c.l.b16 %v963
      %v2255 = vunpack.c.h.b16 %v963
      %v2256 = vunpack.c.l.b16 %v964
      %v2257 = vunpack.c.h.b16 %v964
      %v2258 = vunpack.c.l.b16 %v965
      %v2259 = vunpack.c.h.b16 %v965
      %v2260 = vunpack.c.l.b16 %v966
      %v2261 = vunpack.c.h.b16 %v966
      %v2262 = vunpack.c.l.b16 %v967
      %v2263 = vunpack.c.h.b16 %v967
      %v2264 = vunpack.c.l.b16 %v968
      %v2265 = vunpack.c.h.b16 %v968
      %v2266 = vunpack.c.l.b16 %v969
      %v2267 = vunpack.c.h.b16 %v969
      %v2268 = vunpack.c.l.b16 %v970
      %v2269 = vunpack.c.h.b16 %v970
      %v2270 = vunpack.c.l.b16 %v971
      %v2271 = vunpack.c.h.b16 %v971
      %v2272 = vunpack.c.l.b16 %v972
      %v2273 = vunpack.c.h.b16 %v972
      %v2274 = vunpack.c.l.b16 %v973
      %v2275 = vunpack.c.h.b16 %v973
      %v2276 = vunpack.c.l.b16 %v974
      %v2277 = vunpack.c.h.b16 %v974
      %v2278 = vunpack.c.l.b16 %v975
      %v2279 = vunpack.c.h.b16 %v975
      %v2280 = vunpack.c.l.b16 %v976
      %v2281 = vunpack.c.h.b16 %v976
      %v2282 = vunpack.c.l.b16 %v977
      %v2283 = vunpack.c.h.b16 %v977
      %v2284 = vunpack.c.l.b16 %v978
      %v2285 = vunpack.c.h.b16 %v978
      %v2286 = vunpack.c.l.b16 %v979
      %v2287 = vunpack.c.h.b16 %v979
      %v2288 = vunpack.c.l.b16 %v980
      %v2289 = vunpack.c.h.b16 %v980
      %v2290 = vunpack.c.l.b16 %v981
      %v2291 = vunpack.c.h.b16 %v981
      %v2292 = vunpack.c.l.b16 %v982
      %v2293 = vunpack.c.h.b16 %v982
      %v2294 = vunpack.c.l.b16 %v983
      %v2295 = vunpack.c.h.b16 %v983
      %v2296 = vunpack.c.l.b16 %v984
      %v2297 = vunpack.c.h.b16 %v984
      %v2298 = vunpack.c.l.b16 %v985
      %v2299 = vunpack.c.h.b16 %v985
      %v2300 = vunpack.c.l.b16 %v986
      %v2301 = vunpack.c.h.b16 %v986
      %v2302 = vunpack.c.l.b16 %v987
      %v2303 = vunpack.c.h.b16 %v987
      %v2304 = vunpack.c.l.b16 %v988
      %v2305 = vunpack.c.h.b16 %v988
      %v2306 = vunpack.c.l.b16 %v989
      %v2307 = vunpack.c.h.b16 %v989
      %v2308 = vunpack.c.l.b16 %v990
      %v2309 = vunpack.c.h.b16 %v990
      %v2310 = vunpack.c.l.b16 %v991
      %v2311 = vunpack.c.h.b16 %v991
      %v2312 = vunpack.c.l.b16 %v992
      %v2313 = vunpack.c.h.b16 %v992
      %v2314 = vunpack.c.l.b16 %v993
      %v2315 = vunpack.c.h.b16 %v993
      %v2316 = vunpack.c.l.b16 %v994
      %v2317 = vunpack.c.h.b16 %v994
      %v2318 = vunpack.c.l.b16 %v995
      %v2319 = vunpack.c.h.b16 %v995
      %v2320 = vunpack.c.l.b16 %v996
      %v2321 = vunpack.c.h.b16 %v996
      %v2322 = vunpack.c.l.b16 %v997
      %v2323 = vunpack.c.h.b16 %v997
      %v2324 = vunpack.c.l.b16 %v998
      %v2325 = vunpack.c.h.b16 %v998
      %v2326 = vunpack.c.l.b16 %v999
      %v2327 = vunpack.c.h.b16 %v999
      %v2328 = vunpack.c.l.b16 %v1000
      %v2329 = vunpack.c.h.b16 %v1000
      %v2330 = vunpack.c.l.b16 %v1001
      %v2331 = vunpack.c.h.b16 %v1001
      %v2332 = vunpack.c.l.b16 %v1002
      %v2333 = vunpack.c.h.b16 %v1002
      %v2334 = vunpack.c.l.b16 %v1003
      %v2335 = vunpack.c.h.b16 %v1003
      %v2336 = vunpack.c.l.b16 %v1004
      %v2337 = vunpack.c.h.b16 %v1004
      %v2338 = vunpack.c.l.b16 %v1005
      %v2339 = vunpack.c.h.b16 %v1005
      %v2340 = vunpack.c.l.b16 %v1006
      %v2341 = vunpack.c.h.b16 %v1006
      %v2342 = vunpack.c.l.b16 %v1007
      %v2343 = vunpack.c.h.b16 %v1007
      %v2344 = vunpack.c.l.b16 %v1008
      %v2345 = vunpack.c.h.b16 %v1008
      %v2346 = vunpack.c.l.b16 %v1009
      %v2347 = vunpack.c.h.b16 %v1009
      %v2348 = vunpack.c.l.b16 %v1010
      %v2349 = vunpack.c.h.b16 %v1010
      %v2350 = vunpack.c.l.b16 %v1011
      %v2351 = vunpack.c.h.b16 %v1011
      %v2352 = vunpack.c.l.b16 %v1012
      %v2353 = vunpack.c.h.b16 %v1012
      %v2354 = vunpack.c.l.b16 %v1013
      %v2355 = vunpack.c.h.b16 %v1013
      %v2356 = vunpack.c.l.b16 %v1014
      %v2357 = vunpack.c.h.b16 %v1014
      %v2358 = vunpack.c.l.b16 %v1015
      %v2359 = vunpack.c.h.b16 %v1015
      %v2360 = vunpack.c.l.b16 %v1016
      %v2361 = vunpack.c.h.b16 %v1016
      %v2362 = vunpack.c.l.b16 %v1017
      %v2363 = vunpack.c.h.b16 %v1017
      %v2364 = vunpack.c.l.b16 %v1018
      %v2365 = vunpack.c.h.b16 %v1018
      %v2366 = vunpack.c.l.b16 %v1019
      %v2367 = vunpack.c.h.b16 %v1019
      %v2368 = vunpack.c.l.b16 %v1020
      %v2369 = vunpack.c.h.b16 %v1020
      %v2370 = vunpack.c.l.b16 %v1021
      %v2371 = vunpack.c.h.b16 %v1021
      %v2372 = vunpack.c.l.b16 %v1022
      %v2373 = vunpack.c.h.b16 %v1022
      %v2374 = vunpack.c.l.b16 %v1023
      %v2375 = vunpack.c.h.b16 %v1023
      %v2376 = vunpack.c.l.b16 %v1024
      %v2377 = vunpack.c.h.b16 %v1024
      %v2378 = vunpack.c.l.b16 %v1025
      %v2379 = vunpack.c.h.b16 %v1025
      %v2380 = vunpack.c.l.b16 %v1026
      %v2381 = vunpack.c.h.b16 %v1026
      %v2382 = vunpack.c.l.b16 %v1027
      %v2383 = vunpack.c.h.b16 %v1027
      %v2384 = vunpack.c.l.b16 %v1028
      %v2385 = vunpack.c.h.b16 %v1028
      %v2386 = vunpack.c.l.b16 %v1029
      %v2387 = vunpack.c.h.b16 %v1029
      %v2388 = vunpack.c.l.b16 %v1030
      %v2389 = vunpack.c.h.b16 %v1030
      %v2390 = vunpack.c.l.b16 %v1031
      %v2391 = vunpack.c.h.b16 %v1031
      %v2392 = vunpack.c.l.b16 %v1032
      %v2393 = vunpack.c.h.b16 %v1032
      %v2394 = vunpack.c.l.b16 %v1033
      %v2395 = vunpack.c.h.b16 %v1033
      %v2396 = vunpack.c.l.b16 %v1034
      %v2397 = vunpack.c.h.b16 %v1034
      %v2398 = vunpack.c.l.b16 %v1035
      %v2399 = vunpack.c.h.b16 %v1035
      %v2400 = vunpack.c.l.b16 %v1036
      %v2401 = vunpack.c.h.b16 %v1036
      %v2402 = vunpack.c.l.b16 %v1037
      %v2403 = vunpack.c.h.b16 %v1037
      %v2404 = vunpack.c.l.b16 %v1038
      %v2405 = vunpack.c.h.b16 %v1038
      %v2406 = vunpack.c.l.b16 %v1039
      %v2407 = vunpack.c.h.b16 %v1039
      %v2408 = vunpack.c.l.b16 %v1040
      %v2409 = vunpack.c.h.b16 %v1040
      %v2410 = vunpack.c.l.b16 %v1041
      %v2411 = vunpack.c.h.b16 %v1041
      %v2412 = vunpack.c.l.b16 %v1042
      %v2413 = vunpack.c.h.b16 %v1042
      %v2414 = vunpack.c.l.b16 %v1043
      %v2415 = vunpack.c.h.b16 %v1043
      %v2416 = vunpack.c.l.b16 %v1044
      %v2417 = vunpack.c.h.b16 %v1044
      %v2418 = vunpack.c.l.b16 %v1045
      %v2419 = vunpack.c.h.b16 %v1045
      %v2420 = vunpack.c.l.b16 %v1046
      %v2421 = vunpack.c.h.b16 %v1046
      %v2422 = vunpack.c.l.b16 %v1047
      %v2423 = vunpack.c.h.b16 %v1047
      %v2424 = vunpack.c.l.b16 %v1048
      %v2425 = vunpack.c.h.b16 %v1048
      %v2426 = vunpack.c.l.b16 %v1049
      %v2427 = vunpack.c.h.b16 %v1049
      %v2428 = vunpack.c.l.b16 %v1050
      %v2429 = vunpack.c.h.b16 %v1050
      %v2430 = vunpack.c.l.b16 %v1051
      %v2431 = vunpack.c.h.b16 %v1051
      %v2432 = vunpack.c.l.b16 %v1052
      %v2433 = vunpack.c.h.b16 %v1052
      %v2434 = vunpack.c.l.b16 %v1053
      %v2435 = vunpack.c.h.b16 %v1053
      %v2436 = vunpack.c.l.b16 %v1054
      %v2437 = vunpack.c.h.b16 %v1054
      %v2438 = vunpack.c.l.b16 %v1055
      %v2439 = vunpack.c.h.b16 %v1055
      %v2440 = vunpack.c.l.b16 %v1056
      %v2441 = vunpack.c.h.b16 %v1056
      %v2442 = vunpack.c.l.b16 %v1057
      %v2443 = vunpack.c.h.b16 %v1057
      %v2444 = vunpack.c.l.b16 %v1058
      %v2445 = vunpack.c.h.b16 %v1058
      %v2446 = vunpack.c.l.b16 %v1059
      %v2447 = vunpack.c.h.b16 %v1059
      %v2448 = vunpack.c.l.b16 %v1060
      %v2449 = vunpack.c.h.b16 %v1060
      %v2450 = vunpack.c.l.b16 %v1061
      %v2451 = vunpack.c.h.b16 %v1061
      %v2452 = vunpack.c.l.b16 %v1062
      %v2453 = vunpack.c.h.b16 %v1062
      %v2454 = vunpack.c.l.b16 %v1063
      %v2455 = vunpack.c.h.b16 %v1063
      %v2456 = vunpack.c.l.b16 %v1064
      %v2457 = vunpack.c.h.b16 %v1064
      %v2458 = vunpack.c.l.b16 %v1065
      %v2459 = vunpack.c.h.b16 %v1065
      %v2460 = vunpack.c.l.b16 %v1066
      %v2461 = vunpack.c.h.b16 %v1066
      %v2462 = vunpack.c.l.b16 %v1067
      %v2463 = vunpack.c.h.b16 %v1067
      %v2464 = vunpack.c.l.b16 %v1068
      %v2465 = vunpack.c.h.b16 %v1068
      %v2466 = vunpack.c.l.b16 %v1069
      %v2467 = vunpack.c.h.b16 %v1069
      %v2468 = vunpack.c.l.b16 %v1070
      %v2469 = vunpack.c.h.b16 %v1070
      %v2470 = vunpack.c.l.b16 %v1071
      %v2471 = vunpack.c.h.b16 %v1071
      %v2472 = vunpack.c.l.b16 %v1072
      %v2473 = vunpack.c.h.b16 %v1072
      %v2474 = vunpack.c.l.b16 %v1073
      %v2475 = vunpack.c.h.b16 %v1073
      %v2476 = vunpack.c.l.b16 %v1074
      %v2477 = vunpack.c.h.b16 %v1074
      %v2478 = vunpack.c.l.b16 %v1075
      %v2479 = vunpack.c.h.b16 %v1075
      %v2480 = vunpack.c.l.b16 %v1076
      %v2481 = vunpack.c.h.b16 %v1076
      %v2482 = vunpack.c.l.b16 %v1077
      %v2483 = vunpack.c.h.b16 %v1077
      %v2484 = vunpack.c.l.b16 %v1078
      %v2485 = vunpack.c.h.b16 %v1078
      %v2486 = vunpack.c.l.b16 %v1079
      %v2487 = vunpack.c.h.b16 %v1079
      %v2488 = vunpack.c.l.b16 %v1080
      %v2489 = vunpack.c.h.b16 %v1080
      %v2490 = vunpack.c.l.b16 %v1081
      %v2491 = vunpack.c.h.b16 %v1081
      %v2492 = vunpack.c.l.b16 %v1082
      %v2493 = vunpack.c.h.b16 %v1082
      %v2494 = vunpack.c.l.b16 %v1083
      %v2495 = vunpack.c.h.b16 %v1083
      %v2496 = vunpack.c.l.b16 %v1084
      %v2497 = vunpack.c.h.b16 %v1084
      %v2498 = vunpack.c.l.b16 %v1085
      %v2499 = vunpack.c.h.b16 %v1085
      %v2500 = vunpack.c.l.b16 %v1086
      %v2501 = vunpack.c.h.b16 %v1086
      %v2502 = vunpack.c.l.b16 %v1087
      %v2503 = vunpack.c.h.b16 %v1087
      %v2504 = vunpack.c.l.b16 %v1088
      %v2505 = vunpack.c.h.b16 %v1088
      %v2506 = vunpack.c.l.b16 %v1089
      %v2507 = vunpack.c.h.b16 %v1089
      %v2508 = vunpack.c.l.b16 %v1090
      %v2509 = vunpack.c.h.b16 %v1090
      %v2510 = vunpack.c.l.b16 %v1091
      %v2511 = vunpack.c.h.b16 %v1091
      %v2512 = vunpack.c.l.b16 %v1092
      %v2513 = vunpack.c.h.b16 %v1092
      %v2514 = vunpack.c.l.b16 %v1093
      %v2515 = vunpack.c.h.b16 %v1093
      %v2516 = vunpack.c.l.b16 %v1094
      %v2517 = vunpack.c.h.b16 %v1094
      %v2518 = vunpack.c.l.b16 %v1095
      %v2519 = vunpack.c.h.b16 %v1095
      %v2520 = vunpack.c.l.b16 %v1096
      %v2521 = vunpack.c.h.b16 %v1096
      %v2522 = vunpack.c.l.b16 %v1097
      %v2523 = vunpack.c.h.b16 %v1097
      %v2524 = vunpack.c.l.b16 %v1098
      %v2525 = vunpack.c.h.b16 %v1098
      %v2526 = vunpack.c.l.b16 %v1099
      %v2527 = vunpack.c.h.b16 %v1099
      %v2528 = vunpack.c.l.b16 %v1100
      %v2529 = vunpack.c.h.b16 %v1100
      %v2530 = vunpack.c.l.b16 %v1101
      %v2531 = vunpack.c.h.b16 %v1101
      %v2532 = vunpack.c.l.b16 %v1102
      %v2533 = vunpack.c.h.b16 %v1102
      %v2534 = vunpack.c.l.b16 %v1103
      %v2535 = vunpack.c.h.b16 %v1103
      %v2536 = vunpack.c.l.b16 %v1104
      %v2537 = vunpack.c.h.b16 %v1104
      %v2538 = vunpack.c.l.b16 %v1105
      %v2539 = vunpack.c.h.b16 %v1105
      %v2540 = vunpack.c.l.b16 %v1106
      %v2541 = vunpack.c.h.b16 %v1106
      %v2542 = vunpack.c.l.b16 %v1107
      %v2543 = vunpack.c.h.b16 %v1107
      %v2544 = vunpack.c.l.b16 %v1108
      %v2545 = vunpack.c.h.b16 %v1108
      %v2546 = vunpack.c.l.b16 %v1109
      %v2547 = vunpack.c.h.b16 %v1109
      %v2548 = vunpack.c.l.b16 %v1110
      %v2549 = vunpack.c.h.b16 %v1110
      %v2550 = vunpack.c.l.b16 %v1111
      %v2551 = vunpack.c.h.b16 %v1111
      %v2552 = vunpack.c.l.b16 %v1112
      %v2553 = vunpack.c.h.b16 %v1112
      %v2554 = vunpack.c.l.b16 %v1113
      %v2555 = vunpack.c.h.b16 %v1113
      %v2556 = vunpack.c.l.b16 %v1114
      %v2557 = vunpack.c.h.b16 %v1114
      %v2558 = vunpack.c.l.b16 %v1115
      %v2559 = vunpack.c.h.b16 %v1115
      %v2560 = vunpack.c.l.b16 %v1116
      %v2561 = vunpack.c.h.b16 %v1116
      %v2562 = vunpack.c.l.b16 %v1117
      %v2563 = vunpack.c.h.b16 %v1117
      %v2564 = vunpack.c.l.b16 %v1118
      %v2565 = vunpack.c.h.b16 %v1118
      %v2566 = vunpack.c.l.b16 %v1119
      %v2567 = vunpack.c.h.b16 %v1119
      %v2568 = vunpack.c.l.b16 %v1120
      %v2569 = vunpack.c.h.b16 %v1120
      %v2570 = vunpack.c.l.b16 %v1121
      %v2571 = vunpack.c.h.b16 %v1121
      %v2572 = vunpack.c.l.b16 %v1122
      %v2573 = vunpack.c.h.b16 %v1122
      %v2574 = vunpack.c.l.b16 %v1123
      %v2575 = vunpack.c.h.b16 %v1123
      %v2576 = vunpack.c.l.b16 %v1124
      %v2577 = vunpack.c.h.b16 %v1124
      %v2578 = vunpack.c.l.b16 %v1125
      %v2579 = vunpack.c.h.b16 %v1125
      %v2580 = vunpack.c.l.b16 %v1126
      %v2581 = vunpack.c.h.b16 %v1126
      %v2582 = vunpack.c.l.b16 %v1127
      %v2583 = vunpack.c.h.b16 %v1127
      %v2584 = vunpack.c.l.b16 %v1128
      %v2585 = vunpack.c.h.b16 %v1128
      %v2586 = vunpack.c.l.b16 %v1129
      %v2587 = vunpack.c.h.b16 %v1129
      %v2588 = vunpack.c.l.b16 %v1130
      %v2589 = vunpack.c.h.b16 %v1130
      %v2590 = vunpack.c.l.b16 %v1131
      %v2591 = vunpack.c.h.b16 %v1131
      %v2592 = vunpack.c.l.b16 %v1132
      %v2593 = vunpack.c.h.b16 %v1132
      %v2594 = vunpack.c.l.b16 %v1133
      %v2595 = vunpack.c.h.b16 %v1133
      %v2596 = vunpack.c.l.b16 %v1134
      %v2597 = vunpack.c.h.b16 %v1134
      %v2598 = vunpack.c.l.b16 %v1135
      %v2599 = vunpack.c.h.b16 %v1135
      %v2600 = vunpack.c.l.b16 %v1136
      %v2601 = vunpack.c.h.b16 %v1136
      %v2602 = vunpack.c.l.b16 %v1137
      %v2603 = vunpack.c.h.b16 %v1137
      %v2604 = vunpack.c.l.b16 %v1138
      %v2605 = vunpack.c.h.b16 %v1138
      %v2606 = vunpack.c.l.b16 %v1139
      %v2607 = vunpack.c.h.b16 %v1139
      %v2608 = vunpack.c.l.b16 %v1140
      %v2609 = vunpack.c.h.b16 %v1140
      %v2610 = vunpack.c.l.b16 %v1141
      %v2611 = vunpack.c.h.b16 %v1141
      %v2612 = vunpack.c.l.b16 %v1142
      %v2613 = vunpack.c.h.b16 %v1142
      %v2614 = vunpack.c.l.b16 %v1143
      %v2615 = vunpack.c.h.b16 %v1143
      %v2616 = vunpack.c.l.b16 %v1144
      %v2617 = vunpack.c.h.b16 %v1144
      %v2618 = vunpack.c.l.b16 %v1145
      %v2619 = vunpack.c.h.b16 %v1145
      %v2620 = vunpack.c.l.b16 %v1146
      %v2621 = vunpack.c.h.b16 %v1146
      %v2622 = vunpack.c.l.b16 %v1147
      %v2623 = vunpack.c.h.b16 %v1147
      %v2624 = vunpack.c.l.b16 %v1148
      %v2625 = vunpack.c.h.b16 %v1148
      %v2626 = vunpack.c.l.b16 %v1149
      %v2627 = vunpack.c.h.b16 %v1149
      %v2628 = vunpack.c.l.b16 %v1150
      %v2629 = vunpack.c.h.b16 %v1150
      %v2630 = vunpack.c.l.b16 %v1151
      %v2631 = vunpack.c.h.b16 %v1151
      %v2632 = vunpack.c.l.b16 %v1152
      %v2633 = vunpack.c.h.b16 %v1152
      %v2634 = vunpack.c.l.b16 %v1153
      %v2635 = vunpack.c.h.b16 %v1153
      %v2636 = vunpack.c.l.b16 %v1154
      %v2637 = vunpack.c.h.b16 %v1154
      %v2638 = vunpack.c.l.b16 %v1155
      %v2639 = vunpack.c.h.b16 %v1155
      %v2640 = vunpack.c.l.b16 %v1156
      %v2641 = vunpack.c.h.b16 %v1156
      %v2642 = vunpack.c.l.b16 %v1157
      %v2643 = vunpack.c.h.b16 %v1157
      %v2644 = vunpack.c.l.b16 %v1158
      %v2645 = vunpack.c.h.b16 %v1158
      %v2646 = vunpack.c.l.b16 %v1159
      %v2647 = vunpack.c.h.b16 %v1159
      %v2648 = vunpack.c.l.b16 %v1160
      %v2649 = vunpack.c.h.b16 %v1160
      %v2650 = vunpack.c.l.b16 %v1161
      %v2651 = vunpack.c.h.b16 %v1161
      %v2652 = vunpack.c.l.b16 %v1162
      %v2653 = vunpack.c.h.b16 %v1162
      %v2654 = vunpack.c.l.b16 %v1163
      %v2655 = vunpack.c.h.b16 %v1163
      %v2656 = vunpack.c.l.b16 %v1164
      %v2657 = vunpack.c.h.b16 %v1164
      %v2658 = vunpack.c.l.b16 %v1165
      %v2659 = vunpack.c.h.b16 %v1165
      %v2660 = vunpack.c.l.b16 %v1166
      %v2661 = vunpack.c.h.b16 %v1166
      %v2662 = vunpack.c.l.b16 %v1167
      %v2663 = vunpack.c.h.b16 %v1167
      %v2664 = vunpack.c.l.b16 %v1168
      %v2665 = vunpack.c.h.b16 %v1168
      %v2666 = vunpack.c.l.b16 %v1169
      %v2667 = vunpack.c.h.b16 %v1169
      %v2668 = vunpack.c.l.b16 %v1170
      %v2669 = vunpack.c.h.b16 %v1170
      %v2670 = vunpack.c.l.b16 %v1171
      %v2671 = vunpack.c.h.b16 %v1171
      %v2672 = vunpack.c.l.b16 %v1172
      %v2673 = vunpack.c.h.b16 %v1172
      %v2674 = vunpack.c.l.b16 %v1173
      %v2675 = vunpack.c.h.b16 %v1173
      %v2676 = vunpack.c.l.b16 %v1174
      %v2677 = vunpack.c.h.b16 %v1174
      %v2678 = vunpack.c.l.b16 %v1175
      %v2679 = vunpack.c.h.b16 %v1175
      %v2680 = vunpack.c.l.b16 %v1176
      %v2681 = vunpack.c.h.b16 %v1176
      %v2682 = vunpack.c.l.b16 %v1177
      %v2683 = vunpack.c.h.b16 %v1177
      %v2684 = vunpack.c.l.b16 %v1178
      %v2685 = vunpack.c.h.b16 %v1178
      %v2686 = vunpack.c.l.b16 %v1179
      %v2687 = vunpack.c.h.b16 %v1179
      %v2688 = vunpack.c.l.b16 %v1180
      %v2689 = vunpack.c.h.b16 %v1180
      %v2690 = vunpack.c.l.b16 %v1181
      %v2691 = vunpack.c.h.b16 %v1181
      %v2692 = vunpack.c.l.b16 %v1182
      %v2693 = vunpack.c.h.b16 %v1182
      %v2694 = vunpack.c.l.b16 %v1183
      %v2695 = vunpack.c.h.b16 %v1183
      %v2696 = vunpack.c.l.b16 %v1184
      %v2697 = vunpack.c.h.b16 %v1184
      %v2698 = vunpack.c.l.b16 %v1185
      %v2699 = vunpack.c.h.b16 %v1185
      %v2700 = vunpack.c.l.b16 %v1186
      %v2701 = vunpack.c.h.b16 %v1186
      %v2702 = vunpack.c.l.b16 %v1187
      %v2703 = vunpack.c.h.b16 %v1187
      %v2704 = vunpack.c.l.b16 %v1188
      %v2705 = vunpack.c.h.b16 %v1188
      %v2706 = vunpack.c.l.b16 %v1189
      %v2707 = vunpack.c.h.b16 %v1189
      %v2708 = vunpack.c.l.b16 %v1190
      %v2709 = vunpack.c.h.b16 %v1190
      %v2710 = vunpack.c.l.b16 %v1191
      %v2711 = vunpack.c.h.b16 %v1191
      %v2712 = vunpack.c.l.b16 %v1192
      %v2713 = vunpack.c.h.b16 %v1192
      %v2714 = vunpack.c.l.b16 %v1193
      %v2715 = vunpack.c.h.b16 %v1193
      %v2716 = vunpack.c.l.b16 %v1194
      %v2717 = vunpack.c.h.b16 %v1194
      %v2718 = vunpack.c.l.b16 %v1195
      %v2719 = vunpack.c.h.b16 %v1195
      %v2720 = vunpack.c.l.b16 %v1196
      %v2721 = vunpack.c.h.b16 %v1196
      %v2722 = vunpack.c.l.b16 %v1197
      %v2723 = vunpack.c.h.b16 %v1197
      %v2724 = vunpack.c.l.b16 %v1198
      %v2725 = vunpack.c.h.b16 %v1198
      %v2726 = vunpack.c.l.b16 %v1199
      %v2727 = vunpack.c.h.b16 %v1199
      %v2728 = vunpack.c.l.b16 %v1200
      %v2729 = vunpack.c.h.b16 %v1200
      %v2730 = vunpack.c.l.b16 %v1201
      %v2731 = vunpack.c.h.b16 %v1201
      %v2732 = vunpack.c.l.b16 %v1202
      %v2733 = vunpack.c.h.b16 %v1202
      %v2734 = vunpack.c.l.b16 %v1203
      %v2735 = vunpack.c.h.b16 %v1203
      %v2736 = vunpack.c.l.b16 %v1204
      %v2737 = vunpack.c.h.b16 %v1204
      %v2738 = vunpack.c.l.b16 %v1205
      %v2739 = vunpack.c.h.b16 %v1205
      %v2740 = vunpack.c.l.b16 %v1206
      %v2741 = vunpack.c.h.b16 %v1206
      %v2742 = vunpack.c.l.b16 %v1207
      %v2743 = vunpack.c.h.b16 %v1207
      %v2744 = vunpack.c.l.b16 %v1208
      %v2745 = vunpack.c.h.b16 %v1208
      %v2746 = vunpack.c.l.b16 %v1209
      %v2747 = vunpack.c.h.b16 %v1209
      %v2748 = vunpack.c.l.b16 %v1210
      %v2749 = vunpack.c.h.b16 %v1210
      %v2750 = vunpack.c.l.b16 %v1211
      %v2751 = vunpack.c.h.b16 %v1211
      %v2752 = vunpack.c.l.b16 %v1212
      %v2753 = vunpack.c.h.b16 %v1212
      %v2754 = vunpack.c.l.b16 %v1213
      %v2755 = vunpack.c.h.b16 %v1213
      %v2756 = vunpack.c.l.b16 %v1214
      %v2757 = vunpack.c.h.b16 %v1214
      %v2758 = vunpack.c.l.b16 %v1215
      %v2759 = vunpack.c.h.b16 %v1215
      %v2760 = vunpack.c.l.b16 %v1216
      %v2761 = vunpack.c.h.b16 %v1216
      %v2762 = vunpack.c.l.b16 %v1217
      %v2763 = vunpack.c.h.b16 %v1217
      %v2764 = vunpack.c.l.b16 %v1218
      %v2765 = vunpack.c.h.b16 %v1218
      %v2766 = vunpack.c.l.b16 %v1219
      %v2767 = vunpack.c.h.b16 %v1219
      %v2768 = vunpack.c.l.b16 %v1220
      %v2769 = vunpack.c.h.b16 %v1220
      %v2770 = vunpack.c.l.b16 %v1221
      %v2771 = vunpack.c.h.b16 %v1221
      %v2772 = vunpack.c.l.b16 %v1222
      %v2773 = vunpack.c.h.b16 %v1222
      %v2774 = vunpack.c.l.b16 %v1223
      %v2775 = vunpack.c.h.b16 %v1223
      %v2776 = vunpack.c.l.b16 %v1224
      %v2777 = vunpack.c.h.b16 %v1224
      %v2778 = vunpack.c.l.b16 %v1225
      %v2779 = vunpack.c.h.b16 %v1225
      %v2780 = vunpack.c.l.b16 %v1226
      %v2781 = vunpack.c.h.b16 %v1226
      %v2782 = vunpack.c.l.b16 %v1227
      %v2783 = vunpack.c.h.b16 %v1227
      %v2784 = vunpack.c.l.b16 %v1228
      %v2785 = vunpack.c.h.b16 %v1228
      %v2786 = vunpack.c.l.b16 %v1229
      %v2787 = vunpack.c.h.b16 %v1229
      %v2788 = vunpack.c.l.b16 %v1230
      %v2789 = vunpack.c.h.b16 %v1230
      %v2790 = vunpack.c.l.b16 %v1231
      %v2791 = vunpack.c.h.b16 %v1231
      %v2792 = vunpack.c.l.b16 %v1232
      %v2793 = vunpack.c.h.b16 %v1232
      %v2794 = vunpack.c.l.b16 %v1233
      %v2795 = vunpack.c.h.b16 %v1233
      %v2796 = vunpack.c.l.b16 %v1234
      %v2797 = vunpack.c.h.b16 %v1234
      %v2798 = vunpack.c.l.b16 %v1235
      %v2799 = vunpack.c.h.b16 %v1235
      %v2800 = vunpack.c.l.b16 %v1236
      %v2801 = vunpack.c.h.b16 %v1236
      %v2802 = vunpack.c.l.b16 %v1237
      %v2803 = vunpack.c.h.b16 %v1237
      %v2804 = vunpack.c.l.b16 %v1238
      %v2805 = vunpack.c.h.b16 %v1238
      %v2806 = vunpack.c.l.b16 %v1239
      %v2807 = vunpack.c.h.b16 %v1239
      %v2808 = vunpack.c.l.b16 %v1240
      %v2809 = vunpack.c.h.b16 %v1240
      %v2810 = vunpack.c.l.b16 %v1241
      %v2811 = vunpack.c.h.b16 %v1241
      %v2812 = vunpack.c.l.b16 %v1242
      %v2813 = vunpack.c.h.b16 %v1242
      %v2814 = vunpack.c.l.b16 %v1243
      %v2815 = vunpack.c.h.b16 %v1243
      %v2816 = vunpack.c.l.b16 %v1244
      %v2817 = vunpack.c.h.b16 %v1244
      %v2818 = vunpack.c.l.b16 %v1245
      %v2819 = vunpack.c.h.b16 %v1245
      %v2820 = vunpack.c.l.b16 %v1246
      %v2821 = vunpack.c.h.b16 %v1246
      %v2822 = vunpack.c.l.b16 %v1247
      %v2823 = vunpack.c.h.b16 %v1247
      %v2824 = vunpack.c.l.b16 %v1248
      %v2825 = vunpack.c.h.b16 %v1248
      %v2826 = vunpack.c.l.b16 %v1249
      %v2827 = vunpack.c.h.b16 %v1249
      %v2828 = vpack.c.b16 %v1812, %v1804
      %v2829 = vpack.c.b16 %v1813, %v1805
      %v2830 = vpack.c.b16 %v1814, %v1806
      %v2831 = vpack.c.b16 %v1815, %v1807
      %v2832 = vpack.c.b16 %v1816, %v1808
      %v2833 = vpack.c.b16 %v1817, %v1809
      %v2834 = vpack.c.b16 %v1818, %v1810
      %v2835 = vpack.c.b16 %v1819, %v1811
      %v2836 = vpack.c.b16 %v1828, %v1820
      %v2837 = vpack.c.b16 %v1829, %v1821
      %v2838 = vpack.c.b16 %v1830, %v1822
      %v2839 = vpack.c.b16 %v1831, %v1823
      %v2840 = vpack.c.b16 %v1832, %v1824
      %v2841 = vpack.c.b16 %v1833, %v1825
      %v2842 = vpack.c.b16 %v1834, %v1826
      %v2843 = vpack.c.b16 %v1835, %v1827
      %v2844 = vpack.c.b16 %v1844, %v1836
      %v2845 = vpack.c.b16 %v1845, %v1837
      %v2846 = vpack.c.b16 %v1846, %v1838
      %v2847 = vpack.c.b16 %v1847, %v1839
      %v2848 = vpack.c.b16 %v1848, %v1840
      %v2849 = vpack.c.b16 %v1849, %v1841
      %v2850 = vpack.c.b16 %v1850, %v1842
      %v2851 = vpack.c.b16 %v1851, %v1843
      %v2852 = vpack.c.b16 %v1860, %v1852
      %v2853 = vpack.c.b16 %v1861, %v1853
      %v2854 = vpack.c.b16 %v1862, %v1854
      %v2855 = vpack.c.b16 %v1863, %v1855
      %v2856 = vpack.c.b16 %v1864, %v1856
      %v2857 = vpack.c.b16 %v1865, %v1857
      %v2858 = vpack.c.b16 %v1866, %v1858
      %v2859 = vpack.c.b16 %v1867, %v1859
      %v2860 = vpack.c.b16 %v1876, %v1868
      %v2861 = vpack.c.b16 %v1877, %v1869
      %v2862 = vpack.c.b16 %v1878, %v1870
      %v2863 = vpack.c.b16 %v1879, %v1871
      %v2864 = vpack.c.b16 %v1880, %v1872
      %v2865 = vpack.c.b16 %v1881, %v1873
      %v2866 = vpack.c.b16 %v1882, %v1874
      %v2867 = vpack.c.b16 %v1883, %v1875
      %v2868 = vpack.c.b16 %v1892, %v1884
      %v2869 = vpack.c.b16 %v1893, %v1885
      %v2870 = vpack.c.b16 %v1894, %v1886
      %v2871 = vpack.c.b16 %v1895, %v1887
      %v2872 = vpack.c.b16 %v1896, %v1888
      %v2873 = vpack.c.b16 %v1897, %v1889
      %v2874 = vpack.c.b16 %v1898, %v1890
      %v2875 = vpack.c.b16 %v1899, %v1891
      %v2876 = vpack.c.b16 %v1908, %v1900
      %v2877 = vpack.c.b16 %v1909, %v1901
      %v2878 = vpack.c.b16 %v1910, %v1902
      %v2879 = vpack.c.b16 %v1911, %v1903
      %v2880 = vpack.c.b16 %v1912, %v1904
      %v2881 = vpack.c.b16 %v1913, %v1905
      %v2882 = vpack.c.b16 %v1914, %v1906
      %v2883 = vpack.c.b16 %v1915, %v1907
      %v2884 = vpack.c.b16 %v1924, %v1916
      %v2885 = vpack.c.b16 %v1925, %v1917
      %v2886 = vpack.c.b16 %v1926, %v1918
      %v2887 = vpack.c.b16 %v1927, %v1919
      %v2888 = vpack.c.b16 %v1928, %v1920
      %v2889 = vpack.c.b16 %v1929, %v1921
      %v2890 = vpack.c.b16 %v1930, %v1922
      %v2891 = vpack.c.b16 %v1931, %v1923
      %v2892 = vpack.c.b16 %v1940, %v1932
      %v2893 = vpack.c.b16 %v1941, %v1933
      %v2894 = vpack.c.b16 %v1942, %v1934
      %v2895 = vpack.c.b16 %v1943, %v1935
      %v2896 = vpack.c.b16 %v1944, %v1936
      %v2897 = vpack.c.b16 %v1945, %v1937
      %v2898 = vpack.c.b16 %v1946, %v1938
      %v2899 = vpack.c.b16 %v1947, %v1939
      %v2900 = vpack.c.b16 %v1956, %v1948
      %v2901 = vpack.c.b16 %v1957, %v1949
      %v2902 = vpack.c.b16 %v1958, %v1950
      %v2903 = vpack.c.b16 %v1959, %v1951
      %v2904 = vpack.c.b16 %v1960, %v1952
      %v2905 = vpack.c.b16 %v1961, %v1953
      %v2906 = vpack.c.b16 %v1962, %v1954
      %v2907 = vpack.c.b16 %v1963, %v1955
      %v2908 = vpack.c.b16 %v1972, %v1964
      %v2909 = vpack.c.b16 %v1973, %v1965
      %v2910 = vpack.c.b16 %v1974, %v1966
      %v2911 = vpack.c.b16 %v1975, %v1967
      %v2912 = vpack.c.b16 %v1976, %v1968
      %v2913 = vpack.c.b16 %v1977, %v1969
      %v2914 = vpack.c.b16 %v1978, %v1970
      %v2915 = vpack.c.b16 %v1979, %v1971
      %v2916 = vpack.c.b16 %v1988, %v1980
      %v2917 = vpack.c.b16 %v1989, %v1981
      %v2918 = vpack.c.b16 %v1990, %v1982
      %v2919 = vpack.c.b16 %v1991, %v1983
      %v2920 = vpack.c.b16 %v1992, %v1984
      %v2921 = vpack.c.b16 %v1993, %v1985
      %v2922 = vpack.c.b16 %v1994, %v1986
      %v2923 = vpack.c.b16 %v1995, %v1987
      %v2924 = vpack.c.b16 %v2004, %v1996
      %v2925 = vpack.c.b16 %v2005, %v1997
      %v2926 = vpack.c.b16 %v2006, %v1998
      %v2927 = vpack.c.b16 %v2007, %v1999
      %v2928 = vpack.c.b16 %v2008, %v2000
      %v2929 = vpack.c.b16 %v2009, %v2001
      %v2930 = vpack.c.b16 %v2010, %v2002
      %v2931 = vpack.c.b16 %v2011, %v2003
      %v2932 = vpack.c.b16 %v2020, %v2012
      %v2933 = vpack.c.b16 %v2021, %v2013
      %v2934 = vpack.c.b16 %v2022, %v2014
      %v2935 = vpack.c.b16 %v2023, %v2015
      %v2936 = vpack.c.b16 %v2024, %v2016
      %v2937 = vpack.c.b16 %v2025, %v2017
      %v2938 = vpack.c.b16 %v2026, %v2018
      %v2939 = vpack.c.b16 %v2027, %v2019
      %v2940 = vpack.c.b16 %v2036, %v2028
      %v2941 = vpack.c.b16 %v2037, %v2029
      %v2942 = vpack.c.b16 %v2038, %v2030
      %v2943 = vpack.c.b16 %v2039, %v2031
      %v2944 = vpack.c.b16 %v2040, %v2032
      %v2945 = vpack.c.b16 %v2041, %v2033
      %v2946 = vpack.c.b16 %v2042, %v2034
      %v2947 = vpack.c.b16 %v2043, %v2035
      %v2948 = vpack.c.b16 %v2052, %v2044
      %v2949 = vpack.c.b16 %v2053, %v2045
      %v2950 = vpack.c.b16 %v2054, %v2046
      %v2951 = vpack.c.b16 %v2055, %v2047
      %v2952 = vpack.c.b16 %v2056, %v2048
      %v2953 = vpack.c.b16 %v2057, %v2049
      %v2954 = vpack.c.b16 %v2058, %v2050
      %v2955 = vpack.c.b16 %v2059, %v2051
      %v2956 = vpack.c.b16 %v2068, %v2060
      %v2957 = vpack.c.b16 %v2069, %v2061
      %v2958 = vpack.c.b16 %v2070, %v2062
      %v2959 = vpack.c.b16 %v2071, %v2063
      %v2960 = vpack.c.b16 %v2072, %v2064
      %v2961 = vpack.c.b16 %v2073, %v2065
      %v2962 = vpack.c.b16 %v2074, %v2066
      %v2963 = vpack.c.b16 %v2075, %v2067
      %v2964 = vpack.c.b16 %v2084, %v2076
      %v2965 = vpack.c.b16 %v2085, %v2077
      %v2966 = vpack.c.b16 %v2086, %v2078
      %v2967 = vpack.c.b16 %v2087, %v2079
      %v2968 = vpack.c.b16 %v2088, %v2080
      %v2969 = vpack.c.b16 %v2089, %v2081
      %v2970 = vpack.c.b16 %v2090, %v2082
      %v2971 = vpack.c.b16 %v2091, %v2083
      %v2972 = vpack.c.b16 %v2100, %v2092
      %v2973 = vpack.c.b16 %v2101, %v2093
      %v2974 = vpack.c.b16 %v2102, %v2094
      %v2975 = vpack.c.b16 %v2103, %v2095
      %v2976 = vpack.c.b16 %v2104, %v2096
      %v2977 = vpack.c.b16 %v2105, %v2097
      %v2978 = vpack.c.b16 %v2106, %v2098
      %v2979 = vpack.c.b16 %v2107, %v2099
      %v2980 = vpack.c.b16 %v2116, %v2108
      %v2981 = vpack.c.b16 %v2117, %v2109
      %v2982 = vpack.c.b16 %v2118, %v2110
      %v2983 = vpack.c.b16 %v2119, %v2111
      %v2984 = vpack.c.b16 %v2120, %v2112
      %v2985 = vpack.c.b16 %v2121, %v2113
      %v2986 = vpack.c.b16 %v2122, %v2114
      %v2987 = vpack.c.b16 %v2123, %v2115
      %v2988 = vpack.c.b16 %v2132, %v2124
      %v2989 = vpack.c.b16 %v2133, %v2125
      %v2990 = vpack.c.b16 %v2134, %v2126
      %v2991 = vpack.c.b16 %v2135, %v2127
      %v2992 = vpack.c.b16 %v2136, %v2128
      %v2993 = vpack.c.b16 %v2137, %v2129
      %v2994 = vpack.c.b16 %v2138, %v2130
      %v2995 = vpack.c.b16 %v2139, %v2131
      %v2996 = vpack.c.b16 %v2148, %v2140
      %v2997 = vpack.c.b16 %v2149, %v2141
      %v2998 = vpack.c.b16 %v2150, %v2142
      %v2999 = vpack.c.b16 %v2151, %v2143
      %v3000 = vpack.c.b16 %v2152, %v2144
      %v3001 = vpack.c.b16 %v2153, %v2145
      %v3002 = vpack.c.b16 %v2154, %v2146
      %v3003 = vpack.c.b16 %v2155, %v2147
      %v3004 = vpack.c.b16 %v2164, %v2156
      %v3005 = vpack.c.b16 %v2165, %v2157
      %v3006 = vpack.c.b16 %v2166, %v2158
      %v3007 = vpack.c.b16 %v2167, %v2159
      %v3008 = vpack.c.b16 %v2168, %v2160
      %v3009 = vpack.c.b16 %v2169, %v2161
      %v3010 = vpack.c.b16 %v2170, %v2162
      %v3011 = vpack.c.b16 %v2171, %v2163
      %v3012 = vpack.c.b16 %v2180, %v2172
      %v3013 = vpack.c.b16 %v2181, %v2173
      %v3014 = vpack.c.b16 %v2182, %v2174
      %v3015 = vpack.c.b16 %v2183, %v2175
      %v3016 = vpack.c.b16 %v2184, %v2176
      %v3017 = vpack.c.b16 %v2185, %v2177
      %v3018 = vpack.c.b16 %v2186, %v2178
      %v3019 = vpack.c.b16 %v2187, %v2179
      %v3020 = vpack.c.b16 %v2196, %v2188
      %v3021 = vpack.c.b16 %v2197, %v2189
      %v3022 = vpack.c.b16 %v2198, %v2190
      %v3023 = vpack.c.b16 %v2199, %v2191
      %v3024 = vpack.c.b16 %v2200, %v2192
      %v3025 = vpack.c.b16 %v2201, %v2193
      %v3026 = vpack.c.b16 %v2202, %v2194
      %v3027 = vpack.c.b16 %v2203, %v2195
      %v3028 = vpack.c.b16 %v2212, %v2204
      %v3029 = vpack.c.b16 %v2213, %v2205
      %v3030 = vpack.c.b16 %v2214, %v2206
      %v3031 = vpack.c.b16 %v2215, %v2207
      %v3032 = vpack.c.b16 %v2216, %v2208
      %v3033 = vpack.c.b16 %v2217, %v2209
      %v3034 = vpack.c.b16 %v2218, %v2210
      %v3035 = vpack.c.b16 %v2219, %v2211
      %v3036 = vpack.c.b16 %v2228, %v2220
      %v3037 = vpack.c.b16 %v2229, %v2221
      %v3038 = vpack.c.b16 %v2230, %v2222
      %v3039 = vpack.c.b16 %v2231, %v2223
      %v3040 = vpack.c.b16 %v2232, %v2224
      %v3041 = vpack.c.b16 %v2233, %v2225
      %v3042 = vpack.c.b16 %v2234, %v2226
      %v3043 = vpack.c.b16 %v2235, %v2227
      %v3044 = vpack.c.b16 %v2244, %v2236
      %v3045 = vpack.c.b16 %v2245, %v2237
      %v3046 = vpack.c.b16 %v2246, %v2238
      %v3047 = vpack.c.b16 %v2247, %v2239
      %v3048 = vpack.c.b16 %v2248, %v2240
      %v3049 = vpack.c.b16 %v2249, %v2241
      %v3050 = vpack.c.b16 %v2250, %v2242
      %v3051 = vpack.c.b16 %v2251, %v2243
      %v3052 = vpack.c.b16 %v2260, %v2252
      %v3053 = vpack.c.b16 %v2261, %v2253
      %v3054 = vpack.c.b16 %v2262, %v2254
      %v3055 = vpack.c.b16 %v2263, %v2255
      %v3056 = vpack.c.b16 %v2264, %v2256
      %v3057 = vpack.c.b16 %v2265, %v2257
      %v3058 = vpack.c.b16 %v2266, %v2258
      %v3059 = vpack.c.b16 %v2267, %v2259
      %v3060 = vpack.c.b16 %v2276, %v2268
      %v3061 = vpack.c.b16 %v2277, %v2269
      %v3062 = vpack.c.b16 %v2278, %v2270
      %v3063 = vpack.c.b16 %v2279, %v2271
      %v3064 = vpack.c.b16 %v2280, %v2272
      %v3065 = vpack.c.b16 %v2281, %v2273
      %v3066 = vpack.c.b16 %v2282, %v2274
      %v3067 = vpack.c.b16 %v2283, %v2275
      %v3068 = vpack.c.b16 %v2292, %v2284
      %v3069 = vpack.c.b16 %v2293, %v2285
      %v3070 = vpack.c.b16 %v2294, %v2286
      %v3071 = vpack.c.b16 %v2295, %v2287
      %v3072 = vpack.c.b16 %v2296, %v2288
      %v3073 = vpack.c.b16 %v2297, %v2289
      %v3074 = vpack.c.b16 %v2298, %v2290
      %v3075 = vpack.c.b16 %v2299, %v2291
      %v3076 = vpack.c.b16 %v2308, %v2300
      %v3077 = vpack.c.b16 %v2309, %v2301
      %v3078 = vpack.c.b16 %v2310, %v2302
      %v3079 = vpack.c.b16 %v2311, %v2303
      %v3080 = vpack.c.b16 %v2312, %v2304
      %v3081 = vpack.c.b16 %v2313, %v2305
      %v3082 = vpack.c.b16 %v2314, %v2306
      %v3083 = vpack.c.b16 %v2315, %v2307
      %v3084 = vpack.c.b16 %v2324, %v2316
      %v3085 = vpack.c.b16 %v2325, %v2317
      %v3086 = vpack.c.b16 %v2326, %v2318
      %v3087 = vpack.c.b16 %v2327, %v2319
      %v3088 = vpack.c.b16 %v2328, %v2320
      %v3089 = vpack.c.b16 %v2329, %v2321
      %v3090 = vpack.c.b16 %v2330, %v2322
      %v3091 = vpack.c.b16 %v2331, %v2323
      %v3092 = vpack.c.b16 %v2340, %v2332
      %v3093 = vpack.c.b16 %v2341, %v2333
      %v3094 = vpack.c.b16 %v2342, %v2334
      %v3095 = vpack.c.b16 %v2343, %v2335
      %v3096 = vpack.c.b16 %v2344, %v2336
      %v3097 = vpack.c.b16 %v2345, %v2337
      %v3098 = vpack.c.b16 %v2346, %v2338
      %v3099 = vpack.c.b16 %v2347, %v2339
      %v3100 = vpack.c.b16 %v2356, %v2348
      %v3101 = vpack.c.b16 %v2357, %v2349
      %v3102 = vpack.c.b16 %v2358, %v2350
      %v3103 = vpack.c.b16 %v2359, %v2351
      %v3104 = vpack.c.b16 %v2360, %v2352
      %v3105 = vpack.c.b16 %v2361, %v2353
      %v3106 = vpack.c.b16 %v2362, %v2354
      %v3107 = vpack.c.b16 %v2363, %v2355
      %v3108 = vpack.c.b16 %v2372, %v2364
      %v3109 = vpack.c.b16 %v2373, %v2365
      %v3110 = vpack.c.b16 %v2374, %v2366
      %v3111 = vpack.c.b16 %v2375, %v2367
      %v3112 = vpack.c.b16 %v2376, %v2368
      %v3113 = vpack.c.b16 %v2377, %v2369
      %v3114 = vpack.c.b16 %v2378, %v2370
      %v3115 = vpack.c.b16 %v2379, %v2371
      %v3116 = vpack.c.b16 %v2388, %v2380
      %v3117 = vpack.c.b16 %v2389, %v2381
      %v3118 = vpack.c.b16 %v2390, %v2382
      %v3119 = vpack.c.b16 %v2391, %v2383
      %v3120 = vpack.c.b16 %v2392, %v2384
      %v3121 = vpack.c.b16 %v2393, %v2385
      %v3122 = vpack.c.b16 %v2394, %v2386
      %v3123 = vpack.c.b16 %v2395, %v2387
      %v3124 = vpack.c.b16 %v2404, %v2396
      %v3125 = vpack.c.b16 %v2405, %v2397
      %v3126 = vpack.c.b16 %v2406, %v2398
      %v3127 = vpack.c.b16 %v2407, %v2399
      %v3128 = vpack.c.b16 %v2408, %v2400
      %v3129 = vpack.c.b16 %v2409, %v2401
      %v3130 = vpack.c.b16 %v2410, %v2402
      %v3131 = vpack.c.b16 %v2411, %v2403
      %v3132 = vpack.c.b16 %v2420, %v2412
      %v3133 = vpack.c.b16 %v2421, %v2413
      %v3134 = vpack.c.b16 %v2422, %v2414
      %v3135 = vpack.c.b16 %v2423, %v2415
      %v3136 = vpack.c.b16 %v2424, %v2416
      %v3137 = vpack.c.b16 %v2425, %v2417
      %v3138 = vpack.c.b16 %v2426, %v2418
      %v3139 = vpack.c.b16 %v2427, %v2419
      %v3140 = vpack.c.b16 %v2436, %v2428
      %v3141 = vpack.c.b16 %v2437, %v2429
      %v3142 = vpack.c.b16 %v2438, %v2430
      %v3143 = vpack.c.b16 %v2439, %v2431
      %v3144 = vpack.c.b16 %v2440, %v2432
      %v3145 = vpack.c.b16 %v2441, %v2433
      %v3146 = vpack.c.b16 %v2442, %v2434
      %v3147 = vpack.c.b16 %v2443, %v2435
      %v3148 = vpack.c.b16 %v2452, %v2444
      %v3149 = vpack.c.b16 %v2453, %v2445
      %v3150 = vpack.c.b16 %v2454, %v2446
      %v3151 = vpack.c.b16 %v2455, %v2447
      %v3152 = vpack.c.b16 %v2456, %v2448
      %v3153 = vpack.c.b16 %v2457, %v2449
      %v3154 = vpack.c.b16 %v2458, %v2450
      %v3155 = vpack.c.b16 %v2459, %v2451
      %v3156 = vpack.c.b16 %v2468, %v2460
      %v3157 = vpack.c.b16 %v2469, %v2461
      %v3158 = vpack.c.b16 %v2470, %v2462
      %v3159 = vpack.c.b16 %v2471, %v2463
      %v3160 = vpack.c.b16 %v2472, %v2464
      %v3161 = vpack.c.b16 %v2473, %v2465
      %v3162 = vpack.c.b16 %v2474, %v2466
      %v3163 = vpack.c.b16 %v2475, %v2467
      %v3164 = vpack.c.b16 %v2484, %v2476
      %v3165 = vpack.c.b16 %v2485, %v2477
      %v3166 = vpack.c.b16 %v2486, %v2478
      %v3167 = vpack.c.b16 %v2487, %v2479
      %v3168 = vpack.c.b16 %v2488, %v2480
      %v3169 = vpack.c.b16 %v2489, %v2481
      %v3170 = vpack.c.b16 %v2490, %v2482
      %v3171 = vpack.c.b16 %v2491, %v2483
      %v3172 = vpack.c.b16 %v2500, %v2492
      %v3173 = vpack.c.b16 %v2501, %v2493
      %v3174 = vpack.c.b16 %v2502, %v2494
      %v3175 = vpack.c.b16 %v2503, %v2495
      %v3176 = vpack.c.b16 %v2504, %v2496
      %v3177 = vpack.c.b16 %v2505, %v2497
      %v3178 = vpack.c.b16 %v2506, %v2498
      %v3179 = vpack.c.b16 %v2507, %v2499
      %v3180 = vpack.c.b16 %v2516, %v2508
      %v3181 = vpack.c.b16 %v2517, %v2509
      %v3182 = vpack.c.b16 %v2518, %v2510
      %v3183 = vpack.c.b16 %v2519, %v2511
      %v3184 = vpack.c.b16 %v2520, %v2512
      %v3185 = vpack.c.b16 %v2521, %v2513
      %v3186 = vpack.c.b16 %v2522, %v2514
      %v3187 = vpack.c.b16 %v2523, %v2515
      %v3188 = vpack.c.b16 %v2532, %v2524
      %v3189 = vpack.c.b16 %v2533, %v2525
      %v3190 = vpack.c.b16 %v2534, %v2526
      %v3191 = vpack.c.b16 %v2535, %v2527
      %v3192 = vpack.c.b16 %v2536, %v2528
      %v3193 = vpack.c.b16 %v2537, %v2529
      %v3194 = vpack.c.b16 %v2538, %v2530
      %v3195 = vpack.c.b16 %v2539, %v2531
      %v3196 = vpack.c.b16 %v2548, %v2540
      %v3197 = vpack.c.b16 %v2549, %v2541
      %v3198 = vpack.c.b16 %v2550, %v2542
      %v3199 = vpack.c.b16 %v2551, %v2543
      %v3200 = vpack.c.b16 %v2552, %v2544
      %v3201 = vpack.c.b16 %v2553, %v2545
      %v3202 = vpack.c.b16 %v2554, %v2546
      %v3203 = vpack.c.b16 %v2555, %v2547
      %v3204 = vpack.c.b16 %v2564, %v2556
      %v3205 = vpack.c.b16 %v2565, %v2557
      %v3206 = vpack.c.b16 %v2566, %v2558
      %v3207 = vpack.c.b16 %v2567, %v2559
      %v3208 = vpack.c.b16 %v2568, %v2560
      %v3209 = vpack.c.b16 %v2569, %v2561
      %v3210 = vpack.c.b16 %v2570, %v2562
      %v3211 = vpack.c.b16 %v2571, %v2563
      %v3212 = vpack.c.b16 %v2580, %v2572
      %v3213 = vpack.c.b16 %v2581, %v2573
      %v3214 = vpack.c.b16 %v2582, %v2574
      %v3215 = vpack.c.b16 %v2583, %v2575
      %v3216 = vpack.c.b16 %v2584, %v2576
      %v3217 = vpack.c.b16 %v2585, %v2577
      %v3218 = vpack.c.b16 %v2586, %v2578
      %v3219 = vpack.c.b16 %v2587, %v2579
      %v3220 = vpack.c.b16 %v2596, %v2588
      %v3221 = vpack.c.b16 %v2597, %v2589
      %v3222 = vpack.c.b16 %v2598, %v2590
      %v3223 = vpack.c.b16 %v2599, %v2591
      %v3224 = vpack.c.b16 %v2600, %v2592
      %v3225 = vpack.c.b16 %v2601, %v2593
      %v3226 = vpack.c.b16 %v2602, %v2594
      %v3227 = vpack.c.b16 %v2603, %v2595
      %v3228 = vpack.c.b16 %v2612, %v2604
      %v3229 = vpack.c.b16 %v2613, %v2605
      %v3230 = vpack.c.b16 %v2614, %v2606
      %v3231 = vpack.c.b16 %v2615, %v2607
      %v3232 = vpack.c.b16 %v2616, %v2608
      %v3233 = vpack.c.b16 %v2617, %v2609
      %v3234 = vpack.c.b16 %v2618, %v2610
      %v3235 = vpack.c.b16 %v2619, %v2611
      %v3236 = vpack.c.b16 %v2628, %v2620
      %v3237 = vpack.c.b16 %v2629, %v2621
      %v3238 = vpack.c.b16 %v2630, %v2622
      %v3239 = vpack.c.b16 %v2631, %v2623
      %v3240 = vpack.c.b16 %v2632, %v2624
      %v3241 = vpack.c.b16 %v2633, %v2625
      %v3242 = vpack.c.b16 %v2634, %v2626
      %v3243 = vpack.c.b16 %v2635, %v2627
      %v3244 = vpack.c.b16 %v2644, %v2636
      %v3245 = vpack.c.b16 %v2645, %v2637
      %v3246 = vpack.c.b16 %v2646, %v2638
      %v3247 = vpack.c.b16 %v2647, %v2639
      %v3248 = vpack.c.b16 %v2648, %v2640
      %v3249 = vpack.c.b16 %v2649, %v2641
      %v3250 = vpack.c.b16 %v2650, %v2642
      %v3251 = vpack.c.b16 %v2651, %v2643
      %v3252 = vpack.c.b16 %v2660, %v2652
      %v3253 = vpack.c.b16 %v2661, %v2653
      %v3254 = vpack.c.b16 %v2662, %v2654
      %v3255 = vpack.c.b16 %v2663, %v2655
      %v3256 = vpack.c.b16 %v2664, %v2656
      %v3257 = vpack.c.b16 %v2665, %v2657
      %v3258 = vpack.c.b16 %v2666, %v2658
      %v3259 = vpack.c.b16 %v2667, %v2659
      %v3260 = vpack.c.b16 %v2676, %v2668
      %v3261 = vpack.c.b16 %v2677, %v2669
      %v3262 = vpack.c.b16 %v2678, %v2670
      %v3263 = vpack.c.b16 %v2679, %v2671
      %v3264 = vpack.c.b16 %v2680, %v2672
      %v3265 = vpack.c.b16 %v2681, %v2673
      %v3266 = vpack.c.b16 %v2682, %v2674
      %v3267 = vpack.c.b16 %v2683, %v2675
      %v3268 = vpack.c.b16 %v2692, %v2684
      %v3269 = vpack.c.b16 %v2693, %v2685
      %v3270 = vpack.c.b16 %v2694, %v2686
      %v3271 = vpack.c.b16 %v2695, %v2687
      %v3272 = vpack.c.b16 %v2696, %v2688
      %v3273 = vpack.c.b16 %v2697, %v2689
      %v3274 = vpack.c.b16 %v2698, %v2690
      %v3275 = vpack.c.b16 %v2699, %v2691
      %v3276 = vpack.c.b16 %v2708, %v2700
      %v3277 = vpack.c.b16 %v2709, %v2701
      %v3278 = vpack.c.b16 %v2710, %v2702
      %v3279 = vpack.c.b16 %v2711, %v2703
      %v3280 = vpack.c.b16 %v2712, %v2704
      %v3281 = vpack.c.b16 %v2713, %v2705
      %v3282 = vpack.c.b16 %v2714, %v2706
      %v3283 = vpack.c.b16 %v2715, %v2707
      %v3284 = vpack.c.b16 %v2724, %v2716
      %v3285 = vpack.c.b16 %v2725, %v2717
      %v3286 = vpack.c.b16 %v2726, %v2718
      %v3287 = vpack.c.b16 %v2727, %v2719
      %v3288 = vpack.c.b16 %v2728, %v2720
      %v3289 = vpack.c.b16 %v2729, %v2721
      %v3290 = vpack.c.b16 %v2730, %v2722
      %v3291 = vpack.c.b16 %v2731, %v2723
      %v3292 = vpack.c.b16 %v2740, %v2732
      %v3293 = vpack.c.b16 %v2741, %v2733
      %v3294 = vpack.c.b16 %v2742, %v2734
      %v3295 = vpack.c.b16 %v2743, %v2735
      %v3296 = vpack.c.b16 %v2744, %v2736
      %v3297 = vpack.c.b16 %v2745, %v2737
      %v3298 = vpack.c.b16 %v2746, %v2738
      %v3299 = vpack.c.b16 %v2747, %v2739
      %v3300 = vpack.c.b16 %v2756, %v2748
      %v3301 = vpack.c.b16 %v2757, %v2749
      %v3302 = vpack.c.b16 %v2758, %v2750
      %v3303 = vpack.c.b16 %v2759, %v2751
      %v3304 = vpack.c.b16 %v2760, %v2752
      %v3305 = vpack.c.b16 %v2761, %v2753
      %v3306 = vpack.c.b16 %v2762, %v2754
      %v3307 = vpack.c.b16 %v2763, %v2755
      %v3308 = vpack.c.b16 %v2772, %v2764
      %v3309 = vpack.c.b16 %v2773, %v2765
      %v3310 = vpack.c.b16 %v2774, %v2766
      %v3311 = vpack.c.b16 %v2775, %v2767
      %v3312 = vpack.c.b16 %v2776, %v2768
      %v3313 = vpack.c.b16 %v2777, %v2769
      %v3314 = vpack.c.b16 %v2778, %v2770
      %v3315 = vpack.c.b16 %v2779, %v2771
      %v3316 = vpack.c.b16 %v2788, %v2780
      %v3317 = vpack.c.b16 %v2789, %v2781
      %v3318 = vpack.c.b16 %v2790, %v2782
      %v3319 = vpack.c.b16 %v2791, %v2783
      %v3320 = vpack.c.b16 %v2792, %v2784
      %v3321 = vpack.c.b16 %v2793, %v2785
      %v3322 = vpack.c.b16 %v2794, %v2786
      %v3323 = vpack.c.b16 %v2795, %v2787
      %v3324 = vpack.c.b16 %v2804, %v2796
      %v3325 = vpack.c.b16 %v2805, %v2797
      %v3326 = vpack.c.b16 %v2806, %v2798
      %v3327 = vpack.c.b16 %v2807, %v2799
      %v3328 = vpack.c.b16 %v2808, %v2800
      %v3329 = vpack.c.b16 %v2809, %v2801
      %v3330 = vpack.c.b16 %v2810, %v2802
      %v3331 = vpack.c.b16 %v2811, %v2803
      %v3332 = vpack.c.b16 %v2820, %v2812
      %v3333 = vpack.c.b16 %v2821, %v2813
      %v3334 = vpack.c.b16 %v2822, %v2814
      %v3335 = vpack.c.b16 %v2823, %v2815
      %v3336 = vpack.c.b16 %v2824, %v2816
      %v3337 = vpack.c.b16 %v2825, %v2817
      %v3338 = vpack.c.b16 %v2826, %v2818
      %v3339 = vpack.c.b16 %v2827, %v2819
      %3852 = vmatprep.subr.bf16.mxu0 %v2885
      %3853 = vmatpush1.bf16.msra.mxu0 %v2884
      %3854 = vmatprep.subr.bf16.mxu0 %v2877
      %3855 = vmatpush1.bf16.msra.mxu0 %v2876
      %3856 = vmatprep.subr.bf16.mxu0 %v2869
      %3857 = vmatpush1.bf16.msra.mxu0 %v2868
      %3858 = vmatprep.subr.bf16.mxu0 %v2861
      %3859 = vmatpush1.bf16.msra.mxu0 %v2860
      %3860 = vmatprep.subr.bf16.mxu0 %v2853
      %3861 = vmatpush1.bf16.msra.mxu0 %v2852
      %3862 = vmatprep.subr.bf16.mxu0 %v2845
      %3863 = vmatpush1.bf16.msra.mxu0 %v2844
      %3864 = vmatprep.subr.bf16.mxu0 %v2837
      %3865 = vmatpush1.bf16.msra.mxu0 %v2836
      %3866 = vmatprep.subr.bf16.mxu0 %v2829
      %3867 = vmatpush1.bf16.msra.mxu0 %v2828
      %3868 = vmatprep.subr.bf16.mxu0 %v2949
      %3869 = vmatpush2.bf16.msra.mxu0 %v2948
      %3870 = vmatprep.subr.bf16.mxu0 %v2941
      %3871 = vmatpush2.bf16.msra.mxu0 %v2940
      %3872 = vmatprep.subr.bf16.mxu0 %v2933
      %3873 = vmatpush2.bf16.msra.mxu0 %v2932
      %3874 = vmatprep.subr.bf16.mxu0 %v2925
      %3875 = vmatpush2.bf16.msra.mxu0 %v2924
      %3876 = vmatprep.subr.bf16.mxu0 %v2917
      %3877 = vmatpush2.bf16.msra.mxu0 %v2916
      %3878 = vmatprep.subr.bf16.mxu0 %v2909
      %3879 = vmatpush2.bf16.msra.mxu0 %v2908
      %3880 = vmatprep.subr.bf16.mxu0 %v2901
      %3881 = vmatpush2.bf16.msra.mxu0 %v2900
      %3882 = vmatprep.subr.bf16.mxu0 %v2893
      %3883 = vmatpush2.bf16.msra.mxu0 %v2892
      %3884 = vmatprep.mubr.bf16.mxu0 %v731
      %3885 = vmatmul.mubr.bf16.gmra.mxu0 %v730
      %v3886 = vpop.f32.mrf.mxu0
      %v3887 = vadd.f32 %v1255, %v3886
      %v3888 = vpop.f32.mrf.mxu0
      %v3889 = vadd.f32 %v1259, %v3888
      %v3890 = vpop.f32.mrf.mxu0
      %v3891 = vpop.f32.mrf.mxu0
      %3892 = vdwg.mxu0
      %3893 = vmatprep.subr.bf16.mxu0 %v3013
      %3894 = vmatpush1.bf16.msra.mxu0 %v3012
      %3895 = vmatprep.subr.bf16.mxu0 %v3005
      %3896 = vmatpush1.bf16.msra.mxu0 %v3004
      %3897 = vmatprep.subr.bf16.mxu0 %v2997
      %3898 = vmatpush1.bf16.msra.mxu0 %v2996
      %3899 = vmatprep.subr.bf16.mxu0 %v2989
      %3900 = vmatpush1.bf16.msra.mxu0 %v2988
      %3901 = vmatprep.subr.bf16.mxu0 %v2981
      %3902 = vmatpush1.bf16.msra.mxu0 %v2980
      %3903 = vmatprep.subr.bf16.mxu0 %v2973
      %3904 = vmatpush1.bf16.msra.mxu0 %v2972
      %3905 = vmatprep.subr.bf16.mxu0 %v2965
      %3906 = vmatpush1.bf16.msra.mxu0 %v2964
      %3907 = vmatprep.subr.bf16.mxu0 %v2957
      %3908 = vmatpush1.bf16.msra.mxu0 %v2956
      %3909 = vmatprep.subr.bf16.mxu0 %v3077
      %3910 = vmatpush2.bf16.msra.mxu0 %v3076
      %3911 = vmatprep.subr.bf16.mxu0 %v3069
      %3912 = vmatpush2.bf16.msra.mxu0 %v3068
      %3913 = vmatprep.subr.bf16.mxu0 %v3061
      %3914 = vmatpush2.bf16.msra.mxu0 %v3060
      %3915 = vmatprep.subr.bf16.mxu0 %v3053
      %3916 = vmatpush2.bf16.msra.mxu0 %v3052
      %3917 = vmatprep.subr.bf16.mxu0 %v3045
      %3918 = vmatpush2.bf16.msra.mxu0 %v3044
      %3919 = vmatprep.subr.bf16.mxu0 %v3037
      %3920 = vmatpush2.bf16.msra.mxu0 %v3036
      %3921 = vmatprep.subr.bf16.mxu0 %v3029
      %3922 = vmatpush2.bf16.msra.mxu0 %v3028
      %3923 = vmatprep.subr.bf16.mxu0 %v3021
      %3924 = vmatpush2.bf16.msra.mxu0 %v3020
      %3925 = vmatprep.mubr.bf16.mxu0 %v733
      %3926 = vmatmul.mubr.bf16.gmra.mxu0 %v732
      %v3927 = vpop.f32.mrf.mxu0
      %v3928 = vadd.f32 %v3887, %v3927
      %v3929 = vpop.f32.mrf.mxu0
      %v3930 = vadd.f32 %v3889, %v3929
      %v3931 = vpop.f32.mrf.mxu0
      %v3932 = vpop.f32.mrf.mxu0
      %3933 = vdwg.mxu0
      %3934 = vmatprep.subr.bf16.mxu0 %v3141
      %3935 = vmatpush1.bf16.msra.mxu0 %v3140
      %3936 = vmatprep.subr.bf16.mxu0 %v3133
      %3937 = vmatpush1.bf16.msra.mxu0 %v3132
      %3938 = vmatprep.subr.bf16.mxu0 %v3125
      %3939 = vmatpush1.bf16.msra.mxu0 %v3124
      %3940 = vmatprep.subr.bf16.mxu0 %v3117
      %3941 = vmatpush1.bf16.msra.mxu0 %v3116
      %3942 = vmatprep.subr.bf16.mxu0 %v3109
      %3943 = vmatpush1.bf16.msra.mxu0 %v3108
      %3944 = vmatprep.subr.bf16.mxu0 %v3101
      %3945 = vmatpush1.bf16.msra.mxu0 %v3100
      %3946 = vmatprep.subr.bf16.mxu0 %v3093
      %3947 = vmatpush1.bf16.msra.mxu0 %v3092
      %3948 = vmatprep.subr.bf16.mxu0 %v3085
      %3949 = vmatpush1.bf16.msra.mxu0 %v3084
      %3950 = vmatprep.subr.bf16.mxu0 %v3205
      %3951 = vmatpush2.bf16.msra.mxu0 %v3204
      %3952 = vmatprep.subr.bf16.mxu0 %v3197
      %3953 = vmatpush2.bf16.msra.mxu0 %v3196
      %3954 = vmatprep.subr.bf16.mxu0 %v3189
      %3955 = vmatpush2.bf16.msra.mxu0 %v3188
      %3956 = vmatprep.subr.bf16.mxu0 %v3181
      %3957 = vmatpush2.bf16.msra.mxu0 %v3180
      %3958 = vmatprep.subr.bf16.mxu0 %v3173
      %3959 = vmatpush2.bf16.msra.mxu0 %v3172
      %3960 = vmatprep.subr.bf16.mxu0 %v3165
      %3961 = vmatpush2.bf16.msra.mxu0 %v3164
      %3962 = vmatprep.subr.bf16.mxu0 %v3157
      %3963 = vmatpush2.bf16.msra.mxu0 %v3156
      %3964 = vmatprep.subr.bf16.mxu0 %v3149
      %3965 = vmatpush2.bf16.msra.mxu0 %v3148
      %3966 = vmatprep.mubr.bf16.mxu0 %v735
      %3967 = vmatmul.mubr.bf16.gmra.mxu0 %v734
      %v3968 = vpop.f32.mrf.mxu0
      %v3969 = vadd.f32 %v3928, %v3968
      %v3970 = vpop.f32.mrf.mxu0
      %v3971 = vadd.f32 %v3930, %v3970
      %v3972 = vpop.f32.mrf.mxu0
      %v3973 = vpop.f32.mrf.mxu0
      %3974 = vdwg.mxu0
      %3975 = vmatprep.subr.bf16.mxu0 %v3269
      %3976 = vmatpush1.bf16.msra.mxu0 %v3268
      %3977 = vmatprep.subr.bf16.mxu0 %v3261
      %3978 = vmatpush1.bf16.msra.mxu0 %v3260
      %3979 = vmatprep.subr.bf16.mxu0 %v3253
      %3980 = vmatpush1.bf16.msra.mxu0 %v3252
      %3981 = vmatprep.subr.bf16.mxu0 %v3245
      %3982 = vmatpush1.bf16.msra.mxu0 %v3244
      %3983 = vmatprep.subr.bf16.mxu0 %v3237
      %3984 = vmatpush1.bf16.msra.mxu0 %v3236
      %3985 = vmatprep.subr.bf16.mxu0 %v3229
      %3986 = vmatpush1.bf16.msra.mxu0 %v3228
      %3987 = vmatprep.subr.bf16.mxu0 %v3221
      %3988 = vmatpush1.bf16.msra.mxu0 %v3220
      %3989 = vmatprep.subr.bf16.mxu0 %v3213
      %3990 = vmatpush1.bf16.msra.mxu0 %v3212
      %3991 = vmatprep.subr.bf16.mxu0 %v3333
      %3992 = vmatpush2.bf16.msra.mxu0 %v3332
      %3993 = vmatprep.subr.bf16.mxu0 %v3325
      %3994 = vmatpush2.bf16.msra.mxu0 %v3324
      %3995 = vmatprep.subr.bf16.mxu0 %v3317
      %3996 = vmatpush2.bf16.msra.mxu0 %v3316
      %3997 = vmatprep.subr.bf16.mxu0 %v3309
      %3998 = vmatpush2.bf16.msra.mxu0 %v3308
      %3999 = vmatprep.subr.bf16.mxu0 %v3301
      %4000 = vmatpush2.bf16.msra.mxu0 %v3300
      %4001 = vmatprep.subr.bf16.mxu0 %v3293
      %4002 = vmatpush2.bf16.msra.mxu0 %v3292
      %4003 = vmatprep.subr.bf16.mxu0 %v3285
      %4004 = vmatpush2.bf16.msra.mxu0 %v3284
      %4005 = vmatprep.subr.bf16.mxu0 %v3277
      %4006 = vmatpush2.bf16.msra.mxu0 %v3276
      %4007 = vmatprep.mubr.bf16.mxu0 %v737
      %4008 = vmatmul.mubr.bf16.gmra.mxu0 %v736
      %v4009 = vpop.f32.mrf.mxu0
      %v4010 = vadd.f32 %v3969, %v4009
      %v4011 = vpop.f32.mrf.mxu0
      %v4012 = vadd.f32 %v3971, %v4011
      %v4013 = vpop.f32.mrf.mxu0
      %v4014 = vpop.f32.mrf.mxu0
      %4015 = vdwg.mxu0
      %4016 = vmatprep.subr.bf16.mxu0 %v2887
      %4017 = vmatpush1.bf16.msra.mxu0 %v2886
      %4018 = vmatprep.subr.bf16.mxu0 %v2879
      %4019 = vmatpush1.bf16.msra.mxu0 %v2878
      %4020 = vmatprep.subr.bf16.mxu0 %v2871
      %4021 = vmatpush1.bf16.msra.mxu0 %v2870
      %4022 = vmatprep.subr.bf16.mxu0 %v2863
      %4023 = vmatpush1.bf16.msra.mxu0 %v2862
      %4024 = vmatprep.subr.bf16.mxu0 %v2855
      %4025 = vmatpush1.bf16.msra.mxu0 %v2854
      %4026 = vmatprep.subr.bf16.mxu0 %v2847
      %4027 = vmatpush1.bf16.msra.mxu0 %v2846
      %4028 = vmatprep.subr.bf16.mxu0 %v2839
      %4029 = vmatpush1.bf16.msra.mxu0 %v2838
      %4030 = vmatprep.subr.bf16.mxu0 %v2831
      %4031 = vmatpush1.bf16.msra.mxu0 %v2830
      %4032 = vmatprep.subr.bf16.mxu0 %v2951
      %4033 = vmatpush2.bf16.msra.mxu0 %v2950
      %4034 = vmatprep.subr.bf16.mxu0 %v2943
      %4035 = vmatpush2.bf16.msra.mxu0 %v2942
      %4036 = vmatprep.subr.bf16.mxu0 %v2935
      %4037 = vmatpush2.bf16.msra.mxu0 %v2934
      %4038 = vmatprep.subr.bf16.mxu0 %v2927
      %4039 = vmatpush2.bf16.msra.mxu0 %v2926
      %4040 = vmatprep.subr.bf16.mxu0 %v2919
      %4041 = vmatpush2.bf16.msra.mxu0 %v2918
      %4042 = vmatprep.subr.bf16.mxu0 %v2911
      %4043 = vmatpush2.bf16.msra.mxu0 %v2910
      %4044 = vmatprep.subr.bf16.mxu0 %v2903
      %4045 = vmatpush2.bf16.msra.mxu0 %v2902
      %4046 = vmatprep.subr.bf16.mxu0 %v2895
      %4047 = vmatpush2.bf16.msra.mxu0 %v2894
      %4048 = vmatprep.mubr.bf16.mxu0 %v731
      %4049 = vmatmul.mubr.bf16.gmra.mxu0 %v730
      %v4050 = vpop.f32.mrf.mxu0
      %v4051 = vadd.f32 %v1263, %v4050
      %v4052 = vpop.f32.mrf.mxu0
      %v4053 = vadd.f32 %v1267, %v4052
      %v4054 = vpop.f32.mrf.mxu0
      %v4055 = vpop.f32.mrf.mxu0
      %4056 = vdwg.mxu0
      %4057 = vmatprep.subr.bf16.mxu0 %v3015
      %4058 = vmatpush1.bf16.msra.mxu0 %v3014
      %4059 = vmatprep.subr.bf16.mxu0 %v3007
      %4060 = vmatpush1.bf16.msra.mxu0 %v3006
      %4061 = vmatprep.subr.bf16.mxu0 %v2999
      %4062 = vmatpush1.bf16.msra.mxu0 %v2998
      %4063 = vmatprep.subr.bf16.mxu0 %v2991
      %4064 = vmatpush1.bf16.msra.mxu0 %v2990
      %4065 = vmatprep.subr.bf16.mxu0 %v2983
      %4066 = vmatpush1.bf16.msra.mxu0 %v2982
      %4067 = vmatprep.subr.bf16.mxu0 %v2975
      %4068 = vmatpush1.bf16.msra.mxu0 %v2974
      %4069 = vmatprep.subr.bf16.mxu0 %v2967
      %4070 = vmatpush1.bf16.msra.mxu0 %v2966
      %4071 = vmatprep.subr.bf16.mxu0 %v2959
      %4072 = vmatpush1.bf16.msra.mxu0 %v2958
      %4073 = vmatprep.subr.bf16.mxu0 %v3079
      %4074 = vmatpush2.bf16.msra.mxu0 %v3078
      %4075 = vmatprep.subr.bf16.mxu0 %v3071
      %4076 = vmatpush2.bf16.msra.mxu0 %v3070
      %4077 = vmatprep.subr.bf16.mxu0 %v3063
      %4078 = vmatpush2.bf16.msra.mxu0 %v3062
      %4079 = vmatprep.subr.bf16.mxu0 %v3055
      %4080 = vmatpush2.bf16.msra.mxu0 %v3054
      %4081 = vmatprep.subr.bf16.mxu0 %v3047
      %4082 = vmatpush2.bf16.msra.mxu0 %v3046
      %4083 = vmatprep.subr.bf16.mxu0 %v3039
      %4084 = vmatpush2.bf16.msra.mxu0 %v3038
      %4085 = vmatprep.subr.bf16.mxu0 %v3031
      %4086 = vmatpush2.bf16.msra.mxu0 %v3030
      %4087 = vmatprep.subr.bf16.mxu0 %v3023
      %4088 = vmatpush2.bf16.msra.mxu0 %v3022
      %4089 = vmatprep.mubr.bf16.mxu0 %v733
      %4090 = vmatmul.mubr.bf16.gmra.mxu0 %v732
      %v4091 = vpop.f32.mrf.mxu0
      %v4092 = vadd.f32 %v4051, %v4091
      %v4093 = vpop.f32.mrf.mxu0
      %v4094 = vadd.f32 %v4053, %v4093
      %v4095 = vpop.f32.mrf.mxu0
      %v4096 = vpop.f32.mrf.mxu0
      %4097 = vdwg.mxu0
      %4098 = vmatprep.subr.bf16.mxu0 %v3143
      %4099 = vmatpush1.bf16.msra.mxu0 %v3142
      %4100 = vmatprep.subr.bf16.mxu0 %v3135
      %4101 = vmatpush1.bf16.msra.mxu0 %v3134
      %4102 = vmatprep.subr.bf16.mxu0 %v3127
      %4103 = vmatpush1.bf16.msra.mxu0 %v3126
      %4104 = vmatprep.subr.bf16.mxu0 %v3119
      %4105 = vmatpush1.bf16.msra.mxu0 %v3118
      %4106 = vmatprep.subr.bf16.mxu0 %v3111
      %4107 = vmatpush1.bf16.msra.mxu0 %v3110
      %4108 = vmatprep.subr.bf16.mxu0 %v3103
      %4109 = vmatpush1.bf16.msra.mxu0 %v3102
      %4110 = vmatprep.subr.bf16.mxu0 %v3095
      %4111 = vmatpush1.bf16.msra.mxu0 %v3094
      %4112 = vmatprep.subr.bf16.mxu0 %v3087
      %4113 = vmatpush1.bf16.msra.mxu0 %v3086
      %4114 = vmatprep.subr.bf16.mxu0 %v3207
      %4115 = vmatpush2.bf16.msra.mxu0 %v3206
      %4116 = vmatprep.subr.bf16.mxu0 %v3199
      %4117 = vmatpush2.bf16.msra.mxu0 %v3198
      %4118 = vmatprep.subr.bf16.mxu0 %v3191
      %4119 = vmatpush2.bf16.msra.mxu0 %v3190
      %4120 = vmatprep.subr.bf16.mxu0 %v3183
      %4121 = vmatpush2.bf16.msra.mxu0 %v3182
      %4122 = vmatprep.subr.bf16.mxu0 %v3175
      %4123 = vmatpush2.bf16.msra.mxu0 %v3174
      %4124 = vmatprep.subr.bf16.mxu0 %v3167
      %4125 = vmatpush2.bf16.msra.mxu0 %v3166
      %4126 = vmatprep.subr.bf16.mxu0 %v3159
      %4127 = vmatpush2.bf16.msra.mxu0 %v3158
      %4128 = vmatprep.subr.bf16.mxu0 %v3151
      %4129 = vmatpush2.bf16.msra.mxu0 %v3150
      %4130 = vmatprep.mubr.bf16.mxu0 %v735
      %4131 = vmatmul.mubr.bf16.gmra.mxu0 %v734
      %v4132 = vpop.f32.mrf.mxu0
      %v4133 = vadd.f32 %v4092, %v4132
      %v4134 = vpop.f32.mrf.mxu0
      %v4135 = vadd.f32 %v4094, %v4134
      %v4136 = vpop.f32.mrf.mxu0
      %v4137 = vpop.f32.mrf.mxu0
      %4138 = vdwg.mxu0
      %4139 = vmatprep.subr.bf16.mxu0 %v3271
      %4140 = vmatpush1.bf16.msra.mxu0 %v3270
      %4141 = vmatprep.subr.bf16.mxu0 %v3263
      %4142 = vmatpush1.bf16.msra.mxu0 %v3262
      %4143 = vmatprep.subr.bf16.mxu0 %v3255
      %4144 = vmatpush1.bf16.msra.mxu0 %v3254
      %4145 = vmatprep.subr.bf16.mxu0 %v3247
      %4146 = vmatpush1.bf16.msra.mxu0 %v3246
      %4147 = vmatprep.subr.bf16.mxu0 %v3239
      %4148 = vmatpush1.bf16.msra.mxu0 %v3238
      %4149 = vmatprep.subr.bf16.mxu0 %v3231
      %4150 = vmatpush1.bf16.msra.mxu0 %v3230
      %4151 = vmatprep.subr.bf16.mxu0 %v3223
      %4152 = vmatpush1.bf16.msra.mxu0 %v3222
      %4153 = vmatprep.subr.bf16.mxu0 %v3215
      %4154 = vmatpush1.bf16.msra.mxu0 %v3214
      %4155 = vmatprep.subr.bf16.mxu0 %v3335
      %4156 = vmatpush2.bf16.msra.mxu0 %v3334
      %4157 = vmatprep.subr.bf16.mxu0 %v3327
      %4158 = vmatpush2.bf16.msra.mxu0 %v3326
      %4159 = vmatprep.subr.bf16.mxu0 %v3319
      %4160 = vmatpush2.bf16.msra.mxu0 %v3318
      %4161 = vmatprep.subr.bf16.mxu0 %v3311
      %4162 = vmatpush2.bf16.msra.mxu0 %v3310
      %4163 = vmatprep.subr.bf16.mxu0 %v3303
      %4164 = vmatpush2.bf16.msra.mxu0 %v3302
      %4165 = vmatprep.subr.bf16.mxu0 %v3295
      %4166 = vmatpush2.bf16.msra.mxu0 %v3294
      %4167 = vmatprep.subr.bf16.mxu0 %v3287
      %4168 = vmatpush2.bf16.msra.mxu0 %v3286
      %4169 = vmatprep.subr.bf16.mxu0 %v3279
      %4170 = vmatpush2.bf16.msra.mxu0 %v3278
      %4171 = vmatprep.mubr.bf16.mxu0 %v737
      %4172 = vmatmul.mubr.bf16.gmra.mxu0 %v736
      %v4173 = vpop.f32.mrf.mxu0
      %v4174 = vadd.f32 %v4133, %v4173
      %v4175 = vpop.f32.mrf.mxu0
      %v4176 = vadd.f32 %v4135, %v4175
      %v4177 = vpop.f32.mrf.mxu0
      %v4178 = vpop.f32.mrf.mxu0
      %4179 = vdwg.mxu0
      %4180 = vmatprep.subr.bf16.mxu0 %v2889
      %4181 = vmatpush1.bf16.msra.mxu0 %v2888
      %4182 = vmatprep.subr.bf16.mxu0 %v2881
      %4183 = vmatpush1.bf16.msra.mxu0 %v2880
      %4184 = vmatprep.subr.bf16.mxu0 %v2873
      %4185 = vmatpush1.bf16.msra.mxu0 %v2872
      %4186 = vmatprep.subr.bf16.mxu0 %v2865
      %4187 = vmatpush1.bf16.msra.mxu0 %v2864
      %4188 = vmatprep.subr.bf16.mxu0 %v2857
      %4189 = vmatpush1.bf16.msra.mxu0 %v2856
      %4190 = vmatprep.subr.bf16.mxu0 %v2849
      %4191 = vmatpush1.bf16.msra.mxu0 %v2848
      %4192 = vmatprep.subr.bf16.mxu0 %v2841
      %4193 = vmatpush1.bf16.msra.mxu0 %v2840
      %4194 = vmatprep.subr.bf16.mxu0 %v2833
      %4195 = vmatpush1.bf16.msra.mxu0 %v2832
      %4196 = vmatprep.subr.bf16.mxu0 %v2953
      %4197 = vmatpush2.bf16.msra.mxu0 %v2952
      %4198 = vmatprep.subr.bf16.mxu0 %v2945
      %4199 = vmatpush2.bf16.msra.mxu0 %v2944
      %4200 = vmatprep.subr.bf16.mxu0 %v2937
      %4201 = vmatpush2.bf16.msra.mxu0 %v2936
      %4202 = vmatprep.subr.bf16.mxu0 %v2929
      %4203 = vmatpush2.bf16.msra.mxu0 %v2928
      %4204 = vmatprep.subr.bf16.mxu0 %v2921
      %4205 = vmatpush2.bf16.msra.mxu0 %v2920
      %4206 = vmatprep.subr.bf16.mxu0 %v2913
      %4207 = vmatpush2.bf16.msra.mxu0 %v2912
      %4208 = vmatprep.subr.bf16.mxu0 %v2905
      %4209 = vmatpush2.bf16.msra.mxu0 %v2904
      %4210 = vmatprep.subr.bf16.mxu0 %v2897
      %4211 = vmatpush2.bf16.msra.mxu0 %v2896
      %4212 = vmatprep.mubr.bf16.mxu0 %v731
      %4213 = vmatmul.mubr.bf16.gmra.mxu0 %v730
      %v4214 = vpop.f32.mrf.mxu0
      %v4215 = vadd.f32 %v1271, %v4214
      %v4216 = vpop.f32.mrf.mxu0
      %v4217 = vadd.f32 %v1275, %v4216
      %v4218 = vpop.f32.mrf.mxu0
      %v4219 = vpop.f32.mrf.mxu0
      %4220 = vdwg.mxu0
      %4221 = vmatprep.subr.bf16.mxu0 %v3017
      %4222 = vmatpush1.bf16.msra.mxu0 %v3016
      %4223 = vmatprep.subr.bf16.mxu0 %v3009
      %4224 = vmatpush1.bf16.msra.mxu0 %v3008
      %4225 = vmatprep.subr.bf16.mxu0 %v3001
      %4226 = vmatpush1.bf16.msra.mxu0 %v3000
      %4227 = vmatprep.subr.bf16.mxu0 %v2993
      %4228 = vmatpush1.bf16.msra.mxu0 %v2992
      %4229 = vmatprep.subr.bf16.mxu0 %v2985
      %4230 = vmatpush1.bf16.msra.mxu0 %v2984
      %4231 = vmatprep.subr.bf16.mxu0 %v2977
      %4232 = vmatpush1.bf16.msra.mxu0 %v2976
      %4233 = vmatprep.subr.bf16.mxu0 %v2969
      %4234 = vmatpush1.bf16.msra.mxu0 %v2968
      %4235 = vmatprep.subr.bf16.mxu0 %v2961
      %4236 = vmatpush1.bf16.msra.mxu0 %v2960
      %4237 = vmatprep.subr.bf16.mxu0 %v3081
      %4238 = vmatpush2.bf16.msra.mxu0 %v3080
      %4239 = vmatprep.subr.bf16.mxu0 %v3073
      %4240 = vmatpush2.bf16.msra.mxu0 %v3072
      %4241 = vmatprep.subr.bf16.mxu0 %v3065
      %4242 = vmatpush2.bf16.msra.mxu0 %v3064
      %4243 = vmatprep.subr.bf16.mxu0 %v3057
      %4244 = vmatpush2.bf16.msra.mxu0 %v3056
      %4245 = vmatprep.subr.bf16.mxu0 %v3049
      %4246 = vmatpush2.bf16.msra.mxu0 %v3048
      %4247 = vmatprep.subr.bf16.mxu0 %v3041
      %4248 = vmatpush2.bf16.msra.mxu0 %v3040
      %4249 = vmatprep.subr.bf16.mxu0 %v3033
      %4250 = vmatpush2.bf16.msra.mxu0 %v3032
      %4251 = vmatprep.subr.bf16.mxu0 %v3025
      %4252 = vmatpush2.bf16.msra.mxu0 %v3024
      %4253 = vmatprep.mubr.bf16.mxu0 %v733
      %4254 = vmatmul.mubr.bf16.gmra.mxu0 %v732
      %v4255 = vpop.f32.mrf.mxu0
      %v4256 = vadd.f32 %v4215, %v4255
      %v4257 = vpop.f32.mrf.mxu0
      %v4258 = vadd.f32 %v4217, %v4257
      %v4259 = vpop.f32.mrf.mxu0
      %v4260 = vpop.f32.mrf.mxu0
      %4261 = vdwg.mxu0
      %4262 = vmatprep.subr.bf16.mxu0 %v3145
      %4263 = vmatpush1.bf16.msra.mxu0 %v3144
      %4264 = vmatprep.subr.bf16.mxu0 %v3137
      %4265 = vmatpush1.bf16.msra.mxu0 %v3136
      %4266 = vmatprep.subr.bf16.mxu0 %v3129
      %4267 = vmatpush1.bf16.msra.mxu0 %v3128
      %4268 = vmatprep.subr.bf16.mxu0 %v3121
      %4269 = vmatpush1.bf16.msra.mxu0 %v3120
      %4270 = vmatprep.subr.bf16.mxu0 %v3113
      %4271 = vmatpush1.bf16.msra.mxu0 %v3112
      %4272 = vmatprep.subr.bf16.mxu0 %v3105
      %4273 = vmatpush1.bf16.msra.mxu0 %v3104
      %4274 = vmatprep.subr.bf16.mxu0 %v3097
      %4275 = vmatpush1.bf16.msra.mxu0 %v3096
      %4276 = vmatprep.subr.bf16.mxu0 %v3089
      %4277 = vmatpush1.bf16.msra.mxu0 %v3088
      %4278 = vmatprep.subr.bf16.mxu0 %v3209
      %4279 = vmatpush2.bf16.msra.mxu0 %v3208
      %4280 = vmatprep.subr.bf16.mxu0 %v3201
      %4281 = vmatpush2.bf16.msra.mxu0 %v3200
      %4282 = vmatprep.subr.bf16.mxu0 %v3193
      %4283 = vmatpush2.bf16.msra.mxu0 %v3192
      %4284 = vmatprep.subr.bf16.mxu0 %v3185
      %4285 = vmatpush2.bf16.msra.mxu0 %v3184
      %4286 = vmatprep.subr.bf16.mxu0 %v3177
      %4287 = vmatpush2.bf16.msra.mxu0 %v3176
      %4288 = vmatprep.subr.bf16.mxu0 %v3169
      %4289 = vmatpush2.bf16.msra.mxu0 %v3168
      %4290 = vmatprep.subr.bf16.mxu0 %v3161
      %4291 = vmatpush2.bf16.msra.mxu0 %v3160
      %4292 = vmatprep.subr.bf16.mxu0 %v3153
      %4293 = vmatpush2.bf16.msra.mxu0 %v3152
      %4294 = vmatprep.mubr.bf16.mxu0 %v735
      %4295 = vmatmul.mubr.bf16.gmra.mxu0 %v734
      %v4296 = vpop.f32.mrf.mxu0
      %v4297 = vadd.f32 %v4256, %v4296
      %v4298 = vpop.f32.mrf.mxu0
      %v4299 = vadd.f32 %v4258, %v4298
      %v4300 = vpop.f32.mrf.mxu0
      %v4301 = vpop.f32.mrf.mxu0
      %4302 = vdwg.mxu0
      %4303 = vmatprep.subr.bf16.mxu0 %v3273
      %4304 = vmatpush1.bf16.msra.mxu0 %v3272
      %4305 = vmatprep.subr.bf16.mxu0 %v3265
      %4306 = vmatpush1.bf16.msra.mxu0 %v3264
      %4307 = vmatprep.subr.bf16.mxu0 %v3257
      %4308 = vmatpush1.bf16.msra.mxu0 %v3256
      %4309 = vmatprep.subr.bf16.mxu0 %v3249
      %4310 = vmatpush1.bf16.msra.mxu0 %v3248
      %4311 = vmatprep.subr.bf16.mxu0 %v3241
      %4312 = vmatpush1.bf16.msra.mxu0 %v3240
      %4313 = vmatprep.subr.bf16.mxu0 %v3233
      %4314 = vmatpush1.bf16.msra.mxu0 %v3232
      %4315 = vmatprep.subr.bf16.mxu0 %v3225
      %4316 = vmatpush1.bf16.msra.mxu0 %v3224
      %4317 = vmatprep.subr.bf16.mxu0 %v3217
      %4318 = vmatpush1.bf16.msra.mxu0 %v3216
      %4319 = vmatprep.subr.bf16.mxu0 %v3337
      %4320 = vmatpush2.bf16.msra.mxu0 %v3336
      %4321 = vmatprep.subr.bf16.mxu0 %v3329
      %4322 = vmatpush2.bf16.msra.mxu0 %v3328
      %4323 = vmatprep.subr.bf16.mxu0 %v3321
      %4324 = vmatpush2.bf16.msra.mxu0 %v3320
      %4325 = vmatprep.subr.bf16.mxu0 %v3313
      %4326 = vmatpush2.bf16.msra.mxu0 %v3312
      %4327 = vmatprep.subr.bf16.mxu0 %v3305
      %4328 = vmatpush2.bf16.msra.mxu0 %v3304
      %4329 = vmatprep.subr.bf16.mxu0 %v3297
      %4330 = vmatpush2.bf16.msra.mxu0 %v3296
      %4331 = vmatprep.subr.bf16.mxu0 %v3289
      %4332 = vmatpush2.bf16.msra.mxu0 %v3288
      %4333 = vmatprep.subr.bf16.mxu0 %v3281
      %4334 = vmatpush2.bf16.msra.mxu0 %v3280
      %4335 = vmatprep.mubr.bf16.mxu0 %v737
      %4336 = vmatmul.mubr.bf16.gmra.mxu0 %v736
      %v4337 = vpop.f32.mrf.mxu0
      %v4338 = vadd.f32 %v4297, %v4337
      %v4339 = vpop.f32.mrf.mxu0
      %v4340 = vadd.f32 %v4299, %v4339
      %v4341 = vpop.f32.mrf.mxu0
      %v4342 = vpop.f32.mrf.mxu0
      %4343 = vdwg.mxu0
      %4344 = vmatprep.subr.bf16.mxu0 %v2891
      %4345 = vmatpush1.bf16.msra.mxu0 %v2890
      %4346 = vmatprep.subr.bf16.mxu0 %v2883
      %4347 = vmatpush1.bf16.msra.mxu0 %v2882
      %4348 = vmatprep.subr.bf16.mxu0 %v2875
      %4349 = vmatpush1.bf16.msra.mxu0 %v2874
      %4350 = vmatprep.subr.bf16.mxu0 %v2867
      %4351 = vmatpush1.bf16.msra.mxu0 %v2866
      %4352 = vmatprep.subr.bf16.mxu0 %v2859
      %4353 = vmatpush1.bf16.msra.mxu0 %v2858
      %4354 = vmatprep.subr.bf16.mxu0 %v2851
      %4355 = vmatpush1.bf16.msra.mxu0 %v2850
      %4356 = vmatprep.subr.bf16.mxu0 %v2843
      %4357 = vmatpush1.bf16.msra.mxu0 %v2842
      %4358 = vmatprep.subr.bf16.mxu0 %v2835
      %4359 = vmatpush1.bf16.msra.mxu0 %v2834
      %4360 = vmatprep.subr.bf16.mxu0 %v2955
      %4361 = vmatpush2.bf16.msra.mxu0 %v2954
      %4362 = vmatprep.subr.bf16.mxu0 %v2947
      %4363 = vmatpush2.bf16.msra.mxu0 %v2946
      %4364 = vmatprep.subr.bf16.mxu0 %v2939
      %4365 = vmatpush2.bf16.msra.mxu0 %v2938
      %4366 = vmatprep.subr.bf16.mxu0 %v2931
      %4367 = vmatpush2.bf16.msra.mxu0 %v2930
      %4368 = vmatprep.subr.bf16.mxu0 %v2923
      %4369 = vmatpush2.bf16.msra.mxu0 %v2922
      %4370 = vmatprep.subr.bf16.mxu0 %v2915
      %4371 = vmatpush2.bf16.msra.mxu0 %v2914
      %4372 = vmatprep.subr.bf16.mxu0 %v2907
      %4373 = vmatpush2.bf16.msra.mxu0 %v2906
      %4374 = vmatprep.subr.bf16.mxu0 %v2899
      %4375 = vmatpush2.bf16.msra.mxu0 %v2898
      %4376 = vmatprep.mubr.bf16.mxu0 %v731
      %4377 = vmatmul.mubr.bf16.gmra.mxu0 %v730
      %v4378 = vpop.f32.mrf.mxu0
      %v4379 = vadd.f32 %v1279, %v4378
      %v4380 = vpop.f32.mrf.mxu0
      %v4381 = vadd.f32 %v1283, %v4380
      %v4382 = vpop.f32.mrf.mxu0
      %v4383 = vpop.f32.mrf.mxu0
      %4384 = vdwg.mxu0
      %4385 = vmatprep.subr.bf16.mxu0 %v3019
      %4386 = vmatpush1.bf16.msra.mxu0 %v3018
      %4387 = vmatprep.subr.bf16.mxu0 %v3011
      %4388 = vmatpush1.bf16.msra.mxu0 %v3010
      %4389 = vmatprep.subr.bf16.mxu0 %v3003
      %4390 = vmatpush1.bf16.msra.mxu0 %v3002
      %4391 = vmatprep.subr.bf16.mxu0 %v2995
      %4392 = vmatpush1.bf16.msra.mxu0 %v2994
      %4393 = vmatprep.subr.bf16.mxu0 %v2987
      %4394 = vmatpush1.bf16.msra.mxu0 %v2986
      %4395 = vmatprep.subr.bf16.mxu0 %v2979
      %4396 = vmatpush1.bf16.msra.mxu0 %v2978
      %4397 = vmatprep.subr.bf16.mxu0 %v2971
      %4398 = vmatpush1.bf16.msra.mxu0 %v2970
      %4399 = vmatprep.subr.bf16.mxu0 %v2963
      %4400 = vmatpush1.bf16.msra.mxu0 %v2962
      %4401 = vmatprep.subr.bf16.mxu0 %v3083
      %4402 = vmatpush2.bf16.msra.mxu0 %v3082
      %4403 = vmatprep.subr.bf16.mxu0 %v3075
      %4404 = vmatpush2.bf16.msra.mxu0 %v3074
      %4405 = vmatprep.subr.bf16.mxu0 %v3067
      %4406 = vmatpush2.bf16.msra.mxu0 %v3066
      %4407 = vmatprep.subr.bf16.mxu0 %v3059
      %4408 = vmatpush2.bf16.msra.mxu0 %v3058
      %4409 = vmatprep.subr.bf16.mxu0 %v3051
      %4410 = vmatpush2.bf16.msra.mxu0 %v3050
      %4411 = vmatprep.subr.bf16.mxu0 %v3043
      %4412 = vmatpush2.bf16.msra.mxu0 %v3042
      %4413 = vmatprep.subr.bf16.mxu0 %v3035
      %4414 = vmatpush2.bf16.msra.mxu0 %v3034
      %4415 = vmatprep.subr.bf16.mxu0 %v3027
      %4416 = vmatpush2.bf16.msra.mxu0 %v3026
      %4417 = vmatprep.mubr.bf16.mxu0 %v733
      %4418 = vmatmul.mubr.bf16.gmra.mxu0 %v732
      %v4419 = vpop.f32.mrf.mxu0
      %v4420 = vadd.f32 %v4379, %v4419
      %v4421 = vpop.f32.mrf.mxu0
      %v4422 = vadd.f32 %v4381, %v4421
      %v4423 = vpop.f32.mrf.mxu0
      %v4424 = vpop.f32.mrf.mxu0
      %4425 = vdwg.mxu0
      %4426 = vmatprep.subr.bf16.mxu0 %v3147
      %4427 = vmatpush1.bf16.msra.mxu0 %v3146
      %4428 = vmatprep.subr.bf16.mxu0 %v3139
      %4429 = vmatpush1.bf16.msra.mxu0 %v3138
      %4430 = vmatprep.subr.bf16.mxu0 %v3131
      %4431 = vmatpush1.bf16.msra.mxu0 %v3130
      %4432 = vmatprep.subr.bf16.mxu0 %v3123
      %4433 = vmatpush1.bf16.msra.mxu0 %v3122
      %4434 = vmatprep.subr.bf16.mxu0 %v3115
      %4435 = vmatpush1.bf16.msra.mxu0 %v3114
      %4436 = vmatprep.subr.bf16.mxu0 %v3107
      %4437 = vmatpush1.bf16.msra.mxu0 %v3106
      %4438 = vmatprep.subr.bf16.mxu0 %v3099
      %4439 = vmatpush1.bf16.msra.mxu0 %v3098
      %4440 = vmatprep.subr.bf16.mxu0 %v3091
      %4441 = vmatpush1.bf16.msra.mxu0 %v3090
      %4442 = vmatprep.subr.bf16.mxu0 %v3211
      %4443 = vmatpush2.bf16.msra.mxu0 %v3210
      %4444 = vmatprep.subr.bf16.mxu0 %v3203
      %4445 = vmatpush2.bf16.msra.mxu0 %v3202
      %4446 = vmatprep.subr.bf16.mxu0 %v3195
      %4447 = vmatpush2.bf16.msra.mxu0 %v3194
      %4448 = vmatprep.subr.bf16.mxu0 %v3187
      %4449 = vmatpush2.bf16.msra.mxu0 %v3186
      %4450 = vmatprep.subr.bf16.mxu0 %v3179
      %4451 = vmatpush2.bf16.msra.mxu0 %v3178
      %4452 = vmatprep.subr.bf16.mxu0 %v3171
      %4453 = vmatpush2.bf16.msra.mxu0 %v3170
      %4454 = vmatprep.subr.bf16.mxu0 %v3163
      %4455 = vmatpush2.bf16.msra.mxu0 %v3162
      %4456 = vmatprep.subr.bf16.mxu0 %v3155
      %4457 = vmatpush2.bf16.msra.mxu0 %v3154
      %4458 = vmatprep.mubr.bf16.mxu0 %v735
      %4459 = vmatmul.mubr.bf16.gmra.mxu0 %v734
      %v4460 = vpop.f32.mrf.mxu0
      %v4461 = vadd.f32 %v4420, %v4460
      %v4462 = vpop.f32.mrf.mxu0
      %v4463 = vadd.f32 %v4422, %v4462
      %v4464 = vpop.f32.mrf.mxu0
      %v4465 = vpop.f32.mrf.mxu0
      %4466 = vdwg.mxu0
      %4467 = vmatprep.subr.bf16.mxu0 %v3275
      %4468 = vmatpush1.bf16.msra.mxu0 %v3274
      %4469 = vmatprep.subr.bf16.mxu0 %v3267
      %4470 = vmatpush1.bf16.msra.mxu0 %v3266
      %4471 = vmatprep.subr.bf16.mxu0 %v3259
      %4472 = vmatpush1.bf16.msra.mxu0 %v3258
      %4473 = vmatprep.subr.bf16.mxu0 %v3251
      %4474 = vmatpush1.bf16.msra.mxu0 %v3250
      %4475 = vmatprep.subr.bf16.mxu0 %v3243
      %4476 = vmatpush1.bf16.msra.mxu0 %v3242
      %4477 = vmatprep.subr.bf16.mxu0 %v3235
      %4478 = vmatpush1.bf16.msra.mxu0 %v3234
      %4479 = vmatprep.subr.bf16.mxu0 %v3227
      %4480 = vmatpush1.bf16.msra.mxu0 %v3226
      %4481 = vmatprep.subr.bf16.mxu0 %v3219
      %4482 = vmatpush1.bf16.msra.mxu0 %v3218
      %4483 = vmatprep.subr.bf16.mxu0 %v3339
      %4484 = vmatpush2.bf16.msra.mxu0 %v3338
      %4485 = vmatprep.subr.bf16.mxu0 %v3331
      %4486 = vmatpush2.bf16.msra.mxu0 %v3330
      %4487 = vmatprep.subr.bf16.mxu0 %v3323
      %4488 = vmatpush2.bf16.msra.mxu0 %v3322
      %4489 = vmatprep.subr.bf16.mxu0 %v3315
      %4490 = vmatpush2.bf16.msra.mxu0 %v3314
      %4491 = vmatprep.subr.bf16.mxu0 %v3307
      %4492 = vmatpush2.bf16.msra.mxu0 %v3306
      %4493 = vmatprep.subr.bf16.mxu0 %v3299
      %4494 = vmatpush2.bf16.msra.mxu0 %v3298
      %4495 = vmatprep.subr.bf16.mxu0 %v3291
      %4496 = vmatpush2.bf16.msra.mxu0 %v3290
      %4497 = vmatprep.subr.bf16.mxu0 %v3283
      %4498 = vmatpush2.bf16.msra.mxu0 %v3282
      %4499 = vmatprep.mubr.bf16.mxu0 %v737
      %4500 = vmatmul.mubr.bf16.gmra.mxu0 %v736
      %v4501 = vpop.f32.mrf.mxu0
      %v4502 = vadd.f32 %v4461, %v4501
      %v4503 = vpop.f32.mrf.mxu0
      %v4504 = vadd.f32 %v4463, %v4503
      %v4505 = vpop.f32.mrf.mxu0
      %v4506 = vpop.f32.mrf.mxu0
      %4507 = vdwg.mxu0
      %v4508 = vmax.f32 %v4010, 0.0
      %v4509 = vmax.f32 %v4012, 0.0
      %v4510 = vmax.f32 %v4174, 0.0
      %v4511 = vmax.f32 %v4176, 0.0
      %v4512 = vmax.f32 %v4338, 0.0
      %v4513 = vmax.f32 %v4340, 0.0
      %v4514 = vmax.f32 %v4502, 0.0
      %v4515 = vmax.f32 %v4504, 0.0
      %v4516 = vpack.c.bf16 %v4508, %v4508
      %v4517 = vpack.c.bf16 %v4509, %v4509
      %v4518 = vpack.c.bf16 %v4510, %v4510
      %v4519 = vpack.c.bf16 %v4511, %v4511
      %v4520 = vpack.c.bf16 %v4512, %v4512
      %v4521 = vpack.c.bf16 %v4513, %v4513
      %v4522 = vpack.c.bf16 %v4514, %v4514
      %v4523 = vpack.c.bf16 %v4515, %v4515
      %v4524 = vld [vmem:[%s357] sm:$0xf]
      %v4525 = vld [vmem:[%s357 + $0x4] sm:$0xf]
      %v4526 = vld [vmem:[%s357 + $0x8] sm:$0xf]
      %v4527 = vld [vmem:[%s357 + $0xc] sm:$0xf]
      %v4528 = vld [vmem:[%s357 + $0x10] sm:$0xf]
      %v4529 = vld [vmem:[%s357 + $0x14] sm:$0xf]
      %v4530 = vld [vmem:[%s357 + $0x18] sm:$0xf]
      %v4531 = vld [vmem:[%s357 + $0x1c] sm:$0xf]
      %v4532 = vld [vmem:[%s357 + $0x20] sm:$0xf]
      %v4533 = vld [vmem:[%s357 + $0x24] sm:$0xf]
      %v4534 = vld [vmem:[%s357 + $0x28] sm:$0xf]
      %v4535 = vld [vmem:[%s357 + $0x2c] sm:$0xf]
      %v4536 = vld [vmem:[%s357 + $0x30] sm:$0xf]
      %v4537 = vld [vmem:[%s357 + $0x34] sm:$0xf]
      %v4538 = vld [vmem:[%s357 + $0x38] sm:$0xf]
      %v4539 = vld [vmem:[%s357 + $0x3c] sm:$0xf]
      %v4540 = vld [vmem:[%s357 + $0x40] sm:$0xf]
      %v4541 = vld [vmem:[%s357 + $0x44] sm:$0xf]
      %v4542 = vld [vmem:[%s357 + $0x48] sm:$0xf]
      %v4543 = vld [vmem:[%s357 + $0x4c] sm:$0xf]
      %v4544 = vld [vmem:[%s357 + $0x50] sm:$0xf]
      %v4545 = vld [vmem:[%s357 + $0x54] sm:$0xf]
      %v4546 = vld [vmem:[%s357 + $0x58] sm:$0xf]
      %v4547 = vld [vmem:[%s357 + $0x5c] sm:$0xf]
      %v4548 = vld [vmem:[%s357 + $0x60] sm:$0xf]
      %v4549 = vld [vmem:[%s357 + $0x64] sm:$0xf]
      %v4550 = vld [vmem:[%s357 + $0x68] sm:$0xf]
      %v4551 = vld [vmem:[%s357 + $0x6c] sm:$0xf]
      %v4552 = vld [vmem:[%s357 + $0x70] sm:$0xf]
      %v4553 = vld [vmem:[%s357 + $0x74] sm:$0xf]
      %v4554 = vld [vmem:[%s357 + $0x78] sm:$0xf]
      %v4555 = vld [vmem:[%s357 + $0x7c] sm:$0xf]
      %v4556 = vld [vmem:[%s357 + $0x80] sm:$0xf]
      %v4557 = vld [vmem:[%s357 + $0x84] sm:$0xf]
      %v4558 = vld [vmem:[%s357 + $0x88] sm:$0xf]
      %v4559 = vld [vmem:[%s357 + $0x8c] sm:$0xf]
      %v4560 = vld [vmem:[%s357 + $0x90] sm:$0xf]
      %v4561 = vld [vmem:[%s357 + $0x94] sm:$0xf]
      %v4562 = vld [vmem:[%s357 + $0x98] sm:$0xf]
      %v4563 = vld [vmem:[%s357 + $0x9c] sm:$0xf]
      %v4564 = vld [vmem:[%s357 + $0xa0] sm:$0xf]
      %v4565 = vld [vmem:[%s357 + $0xa4] sm:$0xf]
      %v4566 = vld [vmem:[%s357 + $0xa8] sm:$0xf]
      %v4567 = vld [vmem:[%s357 + $0xac] sm:$0xf]
      %v4568 = vld [vmem:[%s357 + $0xb0] sm:$0xf]
      %v4569 = vld [vmem:[%s357 + $0xb4] sm:$0xf]
      %v4570 = vld [vmem:[%s357 + $0xb8] sm:$0xf]
      %v4571 = vld [vmem:[%s357 + $0xbc] sm:$0xf]
      %v4572 = vld [vmem:[%s357 + $0xc0] sm:$0xf]
      %v4573 = vld [vmem:[%s357 + $0xc4] sm:$0xf]
      %v4574 = vld [vmem:[%s357 + $0xc8] sm:$0xf]
      %v4575 = vld [vmem:[%s357 + $0xcc] sm:$0xf]
      %v4576 = vld [vmem:[%s357 + $0xd0] sm:$0xf]
      %v4577 = vld [vmem:[%s357 + $0xd4] sm:$0xf]
      %v4578 = vld [vmem:[%s357 + $0xd8] sm:$0xf]
      %v4579 = vld [vmem:[%s357 + $0xdc] sm:$0xf]
      %v4580 = vld [vmem:[%s357 + $0xe0] sm:$0xf]
      %v4581 = vld [vmem:[%s357 + $0xe4] sm:$0xf]
      %v4582 = vld [vmem:[%s357 + $0xe8] sm:$0xf]
      %v4583 = vld [vmem:[%s357 + $0xec] sm:$0xf]
      %v4584 = vld [vmem:[%s357 + $0xf0] sm:$0xf]
      %v4585 = vld [vmem:[%s357 + $0xf4] sm:$0xf]
      %v4586 = vld [vmem:[%s357 + $0xf8] sm:$0xf]
      %v4587 = vld [vmem:[%s357 + $0xfc] sm:$0xf]
      %v4588 = vld [vmem:[%s357 + $0x100] sm:$0xf]
      %v4589 = vld [vmem:[%s357 + $0x104] sm:$0xf]
      %v4590 = vld [vmem:[%s357 + $0x108] sm:$0xf]
      %v4591 = vld [vmem:[%s357 + $0x10c] sm:$0xf]
      %v4592 = vld [vmem:[%s357 + $0x110] sm:$0xf]
      %v4593 = vld [vmem:[%s357 + $0x114] sm:$0xf]
      %v4594 = vld [vmem:[%s357 + $0x118] sm:$0xf]
      %v4595 = vld [vmem:[%s357 + $0x11c] sm:$0xf]
      %v4596 = vld [vmem:[%s357 + $0x120] sm:$0xf]
      %v4597 = vld [vmem:[%s357 + $0x124] sm:$0xf]
      %v4598 = vld [vmem:[%s357 + $0x128] sm:$0xf]
      %v4599 = vld [vmem:[%s357 + $0x12c] sm:$0xf]
      %v4600 = vld [vmem:[%s357 + $0x130] sm:$0xf]
      %v4601 = vld [vmem:[%s357 + $0x134] sm:$0xf]
      %v4602 = vld [vmem:[%s357 + $0x138] sm:$0xf]
      %v4603 = vld [vmem:[%s357 + $0x13c] sm:$0xf]
      %v4604 = vld [vmem:[%s357 + $0x140] sm:$0xf]
      %v4605 = vld [vmem:[%s357 + $0x144] sm:$0xf]
      %v4606 = vld [vmem:[%s357 + $0x148] sm:$0xf]
      %v4607 = vld [vmem:[%s357 + $0x14c] sm:$0xf]
      %v4608 = vld [vmem:[%s357 + $0x150] sm:$0xf]
      %v4609 = vld [vmem:[%s357 + $0x154] sm:$0xf]
      %v4610 = vld [vmem:[%s357 + $0x158] sm:$0xf]
      %v4611 = vld [vmem:[%s357 + $0x15c] sm:$0xf]
      %v4612 = vld [vmem:[%s357 + $0x160] sm:$0xf]
      %v4613 = vld [vmem:[%s357 + $0x164] sm:$0xf]
      %v4614 = vld [vmem:[%s357 + $0x168] sm:$0xf]
      %v4615 = vld [vmem:[%s357 + $0x16c] sm:$0xf]
      %v4616 = vld [vmem:[%s357 + $0x170] sm:$0xf]
      %v4617 = vld [vmem:[%s357 + $0x174] sm:$0xf]
      %v4618 = vld [vmem:[%s357 + $0x178] sm:$0xf]
      %v4619 = vld [vmem:[%s357 + $0x17c] sm:$0xf]
      %v4620 = vld [vmem:[%s357 + $0x180] sm:$0xf]
      %v4621 = vld [vmem:[%s357 + $0x184] sm:$0xf]
      %v4622 = vld [vmem:[%s357 + $0x188] sm:$0xf]
      %v4623 = vld [vmem:[%s357 + $0x18c] sm:$0xf]
      %v4624 = vld [vmem:[%s357 + $0x190] sm:$0xf]
      %v4625 = vld [vmem:[%s357 + $0x194] sm:$0xf]
      %v4626 = vld [vmem:[%s357 + $0x198] sm:$0xf]
      %v4627 = vld [vmem:[%s357 + $0x19c] sm:$0xf]
      %v4628 = vld [vmem:[%s357 + $0x1a0] sm:$0xf]
      %v4629 = vld [vmem:[%s357 + $0x1a4] sm:$0xf]
      %v4630 = vld [vmem:[%s357 + $0x1a8] sm:$0xf]
      %v4631 = vld [vmem:[%s357 + $0x1ac] sm:$0xf]
      %v4632 = vld [vmem:[%s357 + $0x1b0] sm:$0xf]
      %v4633 = vld [vmem:[%s357 + $0x1b4] sm:$0xf]
      %v4634 = vld [vmem:[%s357 + $0x1b8] sm:$0xf]
      %v4635 = vld [vmem:[%s357 + $0x1bc] sm:$0xf]
      %v4636 = vld [vmem:[%s357 + $0x1c0] sm:$0xf]
      %v4637 = vld [vmem:[%s357 + $0x1c4] sm:$0xf]
      %v4638 = vld [vmem:[%s357 + $0x1c8] sm:$0xf]
      %v4639 = vld [vmem:[%s357 + $0x1cc] sm:$0xf]
      %v4640 = vld [vmem:[%s357 + $0x1d0] sm:$0xf]
      %v4641 = vld [vmem:[%s357 + $0x1d4] sm:$0xf]
      %v4642 = vld [vmem:[%s357 + $0x1d8] sm:$0xf]
      %v4643 = vld [vmem:[%s357 + $0x1dc] sm:$0xf]
      %v4644 = vld [vmem:[%s357 + $0x1e0] sm:$0xf]
      %v4645 = vld [vmem:[%s357 + $0x1e4] sm:$0xf]
      %v4646 = vld [vmem:[%s357 + $0x1e8] sm:$0xf]
      %v4647 = vld [vmem:[%s357 + $0x1ec] sm:$0xf]
      %v4648 = vld [vmem:[%s357 + $0x1f0] sm:$0xf]
      %v4649 = vld [vmem:[%s357 + $0x1f4] sm:$0xf]
      %v4650 = vld [vmem:[%s357 + $0x1f8] sm:$0xf]
      %v4651 = vld [vmem:[%s357 + $0x1fc] sm:$0xf]
      %v4652 = vld [vmem:[%s360] sm:$0x1]
      %v4654 = vlaneseq
      %v4655 = vshrl.u32 %v4654, 7
      %v4656 = vsub.s32 0, %v4655
      %v4657 = vrot.slane %v4652, %v4656
      %v4787 = vunpack.c.l.b16 %v4524
      %v4788 = vunpack.c.l.b16 %v4525
      %v4789 = vunpack.c.l.b16 %v4526
      %v4790 = vunpack.c.l.b16 %v4527
      %v4791 = vunpack.c.l.b16 %v4528
      %v4792 = vunpack.c.l.b16 %v4529
      %v4793 = vunpack.c.l.b16 %v4530
      %v4794 = vunpack.c.l.b16 %v4531
      %v4795 = vunpack.c.l.b16 %v4532
      %v4796 = vunpack.c.l.b16 %v4533
      %v4797 = vunpack.c.l.b16 %v4534
      %v4798 = vunpack.c.l.b16 %v4535
      %v4799 = vunpack.c.l.b16 %v4536
      %v4800 = vunpack.c.l.b16 %v4537
      %v4801 = vunpack.c.l.b16 %v4538
      %v4802 = vunpack.c.l.b16 %v4539
      %v4803 = vunpack.c.l.b16 %v4540
      %v4804 = vunpack.c.l.b16 %v4541
      %v4805 = vunpack.c.l.b16 %v4542
      %v4806 = vunpack.c.l.b16 %v4543
      %v4807 = vunpack.c.l.b16 %v4544
      %v4808 = vunpack.c.l.b16 %v4545
      %v4809 = vunpack.c.l.b16 %v4546
      %v4810 = vunpack.c.l.b16 %v4547
      %v4811 = vunpack.c.l.b16 %v4548
      %v4812 = vunpack.c.l.b16 %v4549
      %v4813 = vunpack.c.l.b16 %v4550
      %v4814 = vunpack.c.l.b16 %v4551
      %v4815 = vunpack.c.l.b16 %v4552
      %v4816 = vunpack.c.l.b16 %v4553
      %v4817 = vunpack.c.l.b16 %v4554
      %v4818 = vunpack.c.l.b16 %v4555
      %v4819 = vunpack.c.l.b16 %v4556
      %v4820 = vunpack.c.l.b16 %v4557
      %v4821 = vunpack.c.l.b16 %v4558
      %v4822 = vunpack.c.l.b16 %v4559
      %v4823 = vunpack.c.l.b16 %v4560
      %v4824 = vunpack.c.l.b16 %v4561
      %v4825 = vunpack.c.l.b16 %v4562
      %v4826 = vunpack.c.l.b16 %v4563
      %v4827 = vunpack.c.l.b16 %v4564
      %v4828 = vunpack.c.l.b16 %v4565
      %v4829 = vunpack.c.l.b16 %v4566
      %v4830 = vunpack.c.l.b16 %v4567
      %v4831 = vunpack.c.l.b16 %v4568
      %v4832 = vunpack.c.l.b16 %v4569
      %v4833 = vunpack.c.l.b16 %v4570
      %v4834 = vunpack.c.l.b16 %v4571
      %v4835 = vunpack.c.l.b16 %v4572
      %v4836 = vunpack.c.l.b16 %v4573
      %v4837 = vunpack.c.l.b16 %v4574
      %v4838 = vunpack.c.l.b16 %v4575
      %v4839 = vunpack.c.l.b16 %v4576
      %v4840 = vunpack.c.l.b16 %v4577
      %v4841 = vunpack.c.l.b16 %v4578
      %v4842 = vunpack.c.l.b16 %v4579
      %v4843 = vunpack.c.l.b16 %v4580
      %v4844 = vunpack.c.l.b16 %v4581
      %v4845 = vunpack.c.l.b16 %v4582
      %v4846 = vunpack.c.l.b16 %v4583
      %v4847 = vunpack.c.l.b16 %v4584
      %v4848 = vunpack.c.l.b16 %v4585
      %v4849 = vunpack.c.l.b16 %v4586
      %v4850 = vunpack.c.l.b16 %v4587
      %v4851 = vunpack.c.l.b16 %v4588
      %v4852 = vunpack.c.l.b16 %v4589
      %v4853 = vunpack.c.l.b16 %v4590
      %v4854 = vunpack.c.l.b16 %v4591
      %v4855 = vunpack.c.l.b16 %v4592
      %v4856 = vunpack.c.l.b16 %v4593
      %v4857 = vunpack.c.l.b16 %v4594
      %v4858 = vunpack.c.l.b16 %v4595
      %v4859 = vunpack.c.l.b16 %v4596
      %v4860 = vunpack.c.l.b16 %v4597
      %v4861 = vunpack.c.l.b16 %v4598
      %v4862 = vunpack.c.l.b16 %v4599
      %v4863 = vunpack.c.l.b16 %v4600
      %v4864 = vunpack.c.l.b16 %v4601
      %v4865 = vunpack.c.l.b16 %v4602
      %v4866 = vunpack.c.l.b16 %v4603
      %v4867 = vunpack.c.l.b16 %v4604
      %v4868 = vunpack.c.l.b16 %v4605
      %v4869 = vunpack.c.l.b16 %v4606
      %v4870 = vunpack.c.l.b16 %v4607
      %v4871 = vunpack.c.l.b16 %v4608
      %v4872 = vunpack.c.l.b16 %v4609
      %v4873 = vunpack.c.l.b16 %v4610
      %v4874 = vunpack.c.l.b16 %v4611
      %v4875 = vunpack.c.l.b16 %v4612
      %v4876 = vunpack.c.l.b16 %v4613
      %v4877 = vunpack.c.l.b16 %v4614
      %v4878 = vunpack.c.l.b16 %v4615
      %v4879 = vunpack.c.l.b16 %v4616
      %v4880 = vunpack.c.l.b16 %v4617
      %v4881 = vunpack.c.l.b16 %v4618
      %v4882 = vunpack.c.l.b16 %v4619
      %v4883 = vunpack.c.l.b16 %v4620
      %v4884 = vunpack.c.l.b16 %v4621
      %v4885 = vunpack.c.l.b16 %v4622
      %v4886 = vunpack.c.l.b16 %v4623
      %v4887 = vunpack.c.l.b16 %v4624
      %v4888 = vunpack.c.l.b16 %v4625
      %v4889 = vunpack.c.l.b16 %v4626
      %v4890 = vunpack.c.l.b16 %v4627
      %v4891 = vunpack.c.l.b16 %v4628
      %v4892 = vunpack.c.l.b16 %v4629
      %v4893 = vunpack.c.l.b16 %v4630
      %v4894 = vunpack.c.l.b16 %v4631
      %v4895 = vunpack.c.l.b16 %v4632
      %v4896 = vunpack.c.l.b16 %v4633
      %v4897 = vunpack.c.l.b16 %v4634
      %v4898 = vunpack.c.l.b16 %v4635
      %v4899 = vunpack.c.l.b16 %v4636
      %v4900 = vunpack.c.l.b16 %v4637
      %v4901 = vunpack.c.l.b16 %v4638
      %v4902 = vunpack.c.l.b16 %v4639
      %v4903 = vunpack.c.l.b16 %v4640
      %v4904 = vunpack.c.l.b16 %v4641
      %v4905 = vunpack.c.l.b16 %v4642
      %v4906 = vunpack.c.l.b16 %v4643
      %v4907 = vunpack.c.l.b16 %v4644
      %v4908 = vunpack.c.l.b16 %v4645
      %v4909 = vunpack.c.l.b16 %v4646
      %v4910 = vunpack.c.l.b16 %v4647
      %v4911 = vunpack.c.l.b16 %v4648
      %v4912 = vunpack.c.l.b16 %v4649
      %v4913 = vunpack.c.l.b16 %v4650
      %v4914 = vunpack.c.l.b16 %v4651
      %v4915 = vpack.c.b16 %v4788, %v4787
      %v4916 = vpack.c.b16 %v4790, %v4789
      %v4917 = vpack.c.b16 %v4792, %v4791
      %v4918 = vpack.c.b16 %v4794, %v4793
      %v4919 = vpack.c.b16 %v4796, %v4795
      %v4920 = vpack.c.b16 %v4798, %v4797
      %v4921 = vpack.c.b16 %v4800, %v4799
      %v4922 = vpack.c.b16 %v4802, %v4801
      %v4923 = vpack.c.b16 %v4804, %v4803
      %v4924 = vpack.c.b16 %v4806, %v4805
      %v4925 = vpack.c.b16 %v4808, %v4807
      %v4926 = vpack.c.b16 %v4810, %v4809
      %v4927 = vpack.c.b16 %v4812, %v4811
      %v4928 = vpack.c.b16 %v4814, %v4813
      %v4929 = vpack.c.b16 %v4816, %v4815
      %v4930 = vpack.c.b16 %v4818, %v4817
      %v4931 = vpack.c.b16 %v4820, %v4819
      %v4932 = vpack.c.b16 %v4822, %v4821
      %v4933 = vpack.c.b16 %v4824, %v4823
      %v4934 = vpack.c.b16 %v4826, %v4825
      %v4935 = vpack.c.b16 %v4828, %v4827
      %v4936 = vpack.c.b16 %v4830, %v4829
      %v4937 = vpack.c.b16 %v4832, %v4831
      %v4938 = vpack.c.b16 %v4834, %v4833
      %v4939 = vpack.c.b16 %v4836, %v4835
      %v4940 = vpack.c.b16 %v4838, %v4837
      %v4941 = vpack.c.b16 %v4840, %v4839
      %v4942 = vpack.c.b16 %v4842, %v4841
      %v4943 = vpack.c.b16 %v4844, %v4843
      %v4944 = vpack.c.b16 %v4846, %v4845
      %v4945 = vpack.c.b16 %v4848, %v4847
      %v4946 = vpack.c.b16 %v4850, %v4849
      %v4947 = vpack.c.b16 %v4852, %v4851
      %v4948 = vpack.c.b16 %v4854, %v4853
      %v4949 = vpack.c.b16 %v4856, %v4855
      %v4950 = vpack.c.b16 %v4858, %v4857
      %v4951 = vpack.c.b16 %v4860, %v4859
      %v4952 = vpack.c.b16 %v4862, %v4861
      %v4953 = vpack.c.b16 %v4864, %v4863
      %v4954 = vpack.c.b16 %v4866, %v4865
      %v4955 = vpack.c.b16 %v4868, %v4867
      %v4956 = vpack.c.b16 %v4870, %v4869
      %v4957 = vpack.c.b16 %v4872, %v4871
      %v4958 = vpack.c.b16 %v4874, %v4873
      %v4959 = vpack.c.b16 %v4876, %v4875
      %v4960 = vpack.c.b16 %v4878, %v4877
      %v4961 = vpack.c.b16 %v4880, %v4879
      %v4962 = vpack.c.b16 %v4882, %v4881
      %v4963 = vpack.c.b16 %v4884, %v4883
      %v4964 = vpack.c.b16 %v4886, %v4885
      %v4965 = vpack.c.b16 %v4888, %v4887
      %v4966 = vpack.c.b16 %v4890, %v4889
      %v4967 = vpack.c.b16 %v4892, %v4891
      %v4968 = vpack.c.b16 %v4894, %v4893
      %v4969 = vpack.c.b16 %v4896, %v4895
      %v4970 = vpack.c.b16 %v4898, %v4897
      %v4971 = vpack.c.b16 %v4900, %v4899
      %v4972 = vpack.c.b16 %v4902, %v4901
      %v4973 = vpack.c.b16 %v4904, %v4903
      %v4974 = vpack.c.b16 %v4906, %v4905
      %v4975 = vpack.c.b16 %v4908, %v4907
      %v4976 = vpack.c.b16 %v4910, %v4909
      %v4977 = vpack.c.b16 %v4912, %v4911
      %v4978 = vpack.c.b16 %v4914, %v4913
      %5043 = vmatprep.subr.bf16.mxu0 0
      %5044 = vmatpush1.bf16.msra.mxu0 %v4922
      %5045 = vmatprep.subr.bf16.mxu0 0
      %5046 = vmatpush1.bf16.msra.mxu0 %v4921
      %5047 = vmatprep.subr.bf16.mxu0 0
      %5048 = vmatpush1.bf16.msra.mxu0 %v4920
      %5049 = vmatprep.subr.bf16.mxu0 0
      %5050 = vmatpush1.bf16.msra.mxu0 %v4919
      %5051 = vmatprep.subr.bf16.mxu0 0
      %5052 = vmatpush1.bf16.msra.mxu0 %v4918
      %5053 = vmatprep.subr.bf16.mxu0 0
      %5054 = vmatpush1.bf16.msra.mxu0 %v4917
      %5055 = vmatprep.subr.bf16.mxu0 0
      %5056 = vmatpush1.bf16.msra.mxu0 %v4916
      %5057 = vmatprep.subr.bf16.mxu0 0
      %5058 = vmatpush1.bf16.msra.mxu0 %v4915
      %5059 = vmatprep.subr.bf16.mxu0 0
      %5060 = vmatpush2.bf16.msra.mxu0 %v4930
      %5061 = vmatprep.subr.bf16.mxu0 0
      %5062 = vmatpush2.bf16.msra.mxu0 %v4929
      %5063 = vmatprep.subr.bf16.mxu0 0
      %5064 = vmatpush2.bf16.msra.mxu0 %v4928
      %5065 = vmatprep.subr.bf16.mxu0 0
      %5066 = vmatpush2.bf16.msra.mxu0 %v4927
      %5067 = vmatprep.subr.bf16.mxu0 0
      %5068 = vmatpush2.bf16.msra.mxu0 %v4926
      %5069 = vmatprep.subr.bf16.mxu0 0
      %5070 = vmatpush2.bf16.msra.mxu0 %v4925
      %5071 = vmatprep.subr.bf16.mxu0 0
      %5072 = vmatpush2.bf16.msra.mxu0 %v4924
      %5073 = vmatprep.subr.bf16.mxu0 0
      %5074 = vmatpush2.bf16.msra.mxu0 %v4923
      %5075 = vmatprep.mubr.bf16.mxu0 %v4517
      %5076 = vmatmul.mubr.bf16.gmra.mxu0 %v4516
      %v5077 = vpop.f32.mrf.mxu0
      %v5078 = vadd.f32 %v4657, %v5077
      %v5079 = vpop.f32.mrf.mxu0
      %v5080 = vpop.f32.mrf.mxu0
      %v5081 = vpop.f32.mrf.mxu0
      %5082 = vdwg.mxu0
      %5083 = vmatprep.subr.bf16.mxu0 0
      %5084 = vmatpush1.bf16.msra.mxu0 %v4938
      %5085 = vmatprep.subr.bf16.mxu0 0
      %5086 = vmatpush1.bf16.msra.mxu0 %v4937
      %5087 = vmatprep.subr.bf16.mxu0 0
      %5088 = vmatpush1.bf16.msra.mxu0 %v4936
      %5089 = vmatprep.subr.bf16.mxu0 0
      %5090 = vmatpush1.bf16.msra.mxu0 %v4935
      %5091 = vmatprep.subr.bf16.mxu0 0
      %5092 = vmatpush1.bf16.msra.mxu0 %v4934
      %5093 = vmatprep.subr.bf16.mxu0 0
      %5094 = vmatpush1.bf16.msra.mxu0 %v4933
      %5095 = vmatprep.subr.bf16.mxu0 0
      %5096 = vmatpush1.bf16.msra.mxu0 %v4932
      %5097 = vmatprep.subr.bf16.mxu0 0
      %5098 = vmatpush1.bf16.msra.mxu0 %v4931
      %5099 = vmatprep.subr.bf16.mxu0 0
      %5100 = vmatpush2.bf16.msra.mxu0 %v4946
      %5101 = vmatprep.subr.bf16.mxu0 0
      %5102 = vmatpush2.bf16.msra.mxu0 %v4945
      %5103 = vmatprep.subr.bf16.mxu0 0
      %5104 = vmatpush2.bf16.msra.mxu0 %v4944
      %5105 = vmatprep.subr.bf16.mxu0 0
      %5106 = vmatpush2.bf16.msra.mxu0 %v4943
      %5107 = vmatprep.subr.bf16.mxu0 0
      %5108 = vmatpush2.bf16.msra.mxu0 %v4942
      %5109 = vmatprep.subr.bf16.mxu0 0
      %5110 = vmatpush2.bf16.msra.mxu0 %v4941
      %5111 = vmatprep.subr.bf16.mxu0 0
      %5112 = vmatpush2.bf16.msra.mxu0 %v4940
      %5113 = vmatprep.subr.bf16.mxu0 0
      %5114 = vmatpush2.bf16.msra.mxu0 %v4939
      %5115 = vmatprep.mubr.bf16.mxu0 %v4519
      %5116 = vmatmul.mubr.bf16.gmra.mxu0 %v4518
      %v5117 = vpop.f32.mrf.mxu0
      %v5118 = vadd.f32 %v5078, %v5117
      %v5119 = vpop.f32.mrf.mxu0
      %v5120 = vpop.f32.mrf.mxu0
      %v5121 = vpop.f32.mrf.mxu0
      %5122 = vdwg.mxu0
      %5123 = vmatprep.subr.bf16.mxu0 0
      %5124 = vmatpush1.bf16.msra.mxu0 %v4954
      %5125 = vmatprep.subr.bf16.mxu0 0
      %5126 = vmatpush1.bf16.msra.mxu0 %v4953
      %5127 = vmatprep.subr.bf16.mxu0 0
      %5128 = vmatpush1.bf16.msra.mxu0 %v4952
      %5129 = vmatprep.subr.bf16.mxu0 0
      %5130 = vmatpush1.bf16.msra.mxu0 %v4951
      %5131 = vmatprep.subr.bf16.mxu0 0
      %5132 = vmatpush1.bf16.msra.mxu0 %v4950
      %5133 = vmatprep.subr.bf16.mxu0 0
      %5134 = vmatpush1.bf16.msra.mxu0 %v4949
      %5135 = vmatprep.subr.bf16.mxu0 0
      %5136 = vmatpush1.bf16.msra.mxu0 %v4948
      %5137 = vmatprep.subr.bf16.mxu0 0
      %5138 = vmatpush1.bf16.msra.mxu0 %v4947
      %5139 = vmatprep.subr.bf16.mxu0 0
      %5140 = vmatpush2.bf16.msra.mxu0 %v4962
      %5141 = vmatprep.subr.bf16.mxu0 0
      %5142 = vmatpush2.bf16.msra.mxu0 %v4961
      %5143 = vmatprep.subr.bf16.mxu0 0
      %5144 = vmatpush2.bf16.msra.mxu0 %v4960
      %5145 = vmatprep.subr.bf16.mxu0 0
      %5146 = vmatpush2.bf16.msra.mxu0 %v4959
      %5147 = vmatprep.subr.bf16.mxu0 0
      %5148 = vmatpush2.bf16.msra.mxu0 %v4958
      %5149 = vmatprep.subr.bf16.mxu0 0
      %5150 = vmatpush2.bf16.msra.mxu0 %v4957
      %5151 = vmatprep.subr.bf16.mxu0 0
      %5152 = vmatpush2.bf16.msra.mxu0 %v4956
      %5153 = vmatprep.subr.bf16.mxu0 0
      %5154 = vmatpush2.bf16.msra.mxu0 %v4955
      %5155 = vmatprep.mubr.bf16.mxu0 %v4521
      %5156 = vmatmul.mubr.bf16.gmra.mxu0 %v4520
      %v5157 = vpop.f32.mrf.mxu0
      %v5158 = vadd.f32 %v5118, %v5157
      %v5159 = vpop.f32.mrf.mxu0
      %v5160 = vpop.f32.mrf.mxu0
      %v5161 = vpop.f32.mrf.mxu0
      %5162 = vdwg.mxu0
      %5163 = vmatprep.subr.bf16.mxu0 0
      %5164 = vmatpush1.bf16.msra.mxu0 %v4970
      %5165 = vmatprep.subr.bf16.mxu0 0
      %5166 = vmatpush1.bf16.msra.mxu0 %v4969
      %5167 = vmatprep.subr.bf16.mxu0 0
      %5168 = vmatpush1.bf16.msra.mxu0 %v4968
      %5169 = vmatprep.subr.bf16.mxu0 0
      %5170 = vmatpush1.bf16.msra.mxu0 %v4967
      %5171 = vmatprep.subr.bf16.mxu0 0
      %5172 = vmatpush1.bf16.msra.mxu0 %v4966
      %5173 = vmatprep.subr.bf16.mxu0 0
      %5174 = vmatpush1.bf16.msra.mxu0 %v4965
      %5175 = vmatprep.subr.bf16.mxu0 0
      %5176 = vmatpush1.bf16.msra.mxu0 %v4964
      %5177 = vmatprep.subr.bf16.mxu0 0
      %5178 = vmatpush1.bf16.msra.mxu0 %v4963
      %5179 = vmatprep.subr.bf16.mxu0 0
      %5180 = vmatpush2.bf16.msra.mxu0 %v4978
      %5181 = vmatprep.subr.bf16.mxu0 0
      %5182 = vmatpush2.bf16.msra.mxu0 %v4977
      %5183 = vmatprep.subr.bf16.mxu0 0
      %5184 = vmatpush2.bf16.msra.mxu0 %v4976
      %5185 = vmatprep.subr.bf16.mxu0 0
      %5186 = vmatpush2.bf16.msra.mxu0 %v4975
      %5187 = vmatprep.subr.bf16.mxu0 0
      %5188 = vmatpush2.bf16.msra.mxu0 %v4974
      %5189 = vmatprep.subr.bf16.mxu0 0
      %5190 = vmatpush2.bf16.msra.mxu0 %v4973
      %5191 = vmatprep.subr.bf16.mxu0 0
      %5192 = vmatpush2.bf16.msra.mxu0 %v4972
      %5193 = vmatprep.subr.bf16.mxu0 0
      %5194 = vmatpush2.bf16.msra.mxu0 %v4971
      %5195 = vmatprep.mubr.bf16.mxu0 %v4523
      %5196 = vmatmul.mubr.bf16.gmra.mxu0 %v4522
      %v5197 = vpop.f32.mrf.mxu0
      %v5198 = vadd.f32 %v5158, %v5197
      %v5199 = vpop.f32.mrf.mxu0
      %v5200 = vpop.f32.mrf.mxu0
      %v5201 = vpop.f32.mrf.mxu0
      %5202 = vdwg.mxu0
      %vm5203 = vcmask 1024
      %5204 = vst.msk [vmem:[%s364] sm:$0x3] %vm5203, %v5198
      %p5205 = scmp.lt.s32.totalorder %s18, 1
      %s5206 = scalar_select %p5205, %s18, 1
      %s5207 = smul.addr %s5206, 2
      %s5208 = scalar_lea.vmem %s7, %s5207
      // Predicated region
      $region49: #{_lambda_.11} parent=47 // pred_check
        %p5209 = pneg %p213
      $region50: #{_lambda_.11} parent=47 // pred_check_branch
        %5211 = sbr.rel (%p5209) target = $region52
      $region51: #{_lambda_.11} parent=47 // pred_region
        _
      $region52: #{_lambda_.11} parent=47 // pred_fallthru
        _
    $region48: #{_lambda_.11} parent=5 // pred_fallthru
      _
    %p5212 = scmp.le.s32.totalorder 2, %s13
    // Predicated region
    $region53: #{_lambda_.11} parent=5 // pred_check
      %p5213 = pneg %p5212
    $region54: #{_lambda_.11} parent=5 // pred_check_branch
      %5215 = sbr.rel (%p5213) target = $region56
    $region55: #{_lambda_.11} parent=5 // pred_region
      %s5216 = ssub.s32 %s13, 2
      // Predicated region
      $region57: #{_lambda_.11} parent=55 // pred_check
        %p5217 = pneg %p219
      $region58: #{_lambda_.11} parent=55 // pred_check_branch
        %5219 = sbr.rel (%p5217) target = $region60
      $region59: #{_lambda_.11} parent=55 // pred_region
        %p5220 = scmp.lt.s32.totalorder %s19, 1
        %s5221 = scalar_select %p5220, %s19, 1
        %s5222 = smul.addr %s5221, 2
        %s5223 = scalar_lea.vmem %s7, %s5222
      $region60: #{_lambda_.11} parent=55 // pred_fallthru
        _
    $region56: #{_lambda_.11} parent=5 // pred_fallthru
      _
  $region6: #{_lambda_.11} parent=0 // loop_footer
    %s17 = sadd.s32 1, %s13
  $region7: #{_lambda_.11} parent=0 // loop_footer_branch
    %12 = sbr.rel target = $region3
  $region8: #{_lambda_.11} parent=0 // loop_exit
    _

</llo_original>
